<compile_context>
chip_gen: v6e
topology: v6e:2x2x1
jax: 0.10.0
libtpu: 0.0.40
codegen_flags: <defaults>
</compile_context>

<pallas_src>
import functools

import jax
import jax.numpy as jnp
from jax.experimental import pallas as pl
from jax.experimental.pallas import tpu as pltpu


def _round_up(x, m):
    return (x + m - 1) // m * m


def _sigmoid(x):
    # Single-EUP-op logistic: sigmoid(x) = 0.5 * (tanh(x/2) + 1).
    return 0.5 * (jnp.tanh(0.5 * x) + 1.0)


@functools.lru_cache(maxsize=None)
def _vmem_limit_bytes():
    """Generation-aware VMEM budget (~80% of physical), or None -> compiler default."""
    try:
        cap = int(pltpu.get_tpu_info().vmem_capacity_bytes)
    except Exception:
        return None
    # ~51 MiB on v7x (64 MiB physical), ~102 MiB on v5e/v6e (128 MiB physical).
    return min(int(cap * 0.8), 112 * 1024 * 1024)


# --------------------------- fused per-layer kernel --------------------------
def _bilstm_fused_kernel(x_ref, wih_ref, whh_ref, b_ref, out_ref, gx_sc, h_sc, c_sc):
    """One (direction, time-chunk) grid step: fused input projection + recurrence.

    x_ref  : (Tc, Bp, I)   f32/bf16  raw layer input chunk
    wih_ref: (I, 4Hp)      bf16      input-projection weights for this direction
    whh_ref: (Hp, 4Hp)     bf16      recurrent weights for this direction
    b_ref  : (1, 4Hp)      f32       fused bias (b_ih + b_hh)
    out_ref: (Tc, Bp, Hp)  bf16/f32  this direction's half of the (T, Bp, 2Hp) output
    gx_sc  : (Tc, Bp, 4Hp) f32       per-chunk input-projection scratch
    h_sc/c_sc: (2, Bp, Hp) f32       per-direction carry state
    """
    d = pl.program_id(0)              # 0 = forward, 1 = reverse
    c = pl.program_id(1)              # time-chunk index (sequential)
    Tc, Bp, I = x_ref.shape
    Hp = whh_ref.shape[0]
    G = 4 * Hp
    unroll = min(Tc, 8)               # bounded unroll: LLO visibility w/o vreg blowup

    # ---- fused input projection for the whole chunk: one big MXU matmul ----
    x2d = x_ref[...].reshape(Tc * Bp, I).astype(jnp.bfloat16)
    gx = jnp.dot(x2d, wih_ref[...], preferred_element_type=jnp.float32) + b_ref[...]
    gx_sc[...] = gx.reshape(Tc, Bp, G)

    # ---- serial recurrence over the chunk (direction is static per branch) ----
    def recur(slot, reverse):
        @pl.when(c == 0)
        def _init():
            h_sc[slot] = jnp.zeros((Bp, Hp), jnp.float32)
            c_sc[slot] = jnp.zeros((Bp, Hp), jnp.float32)

        def step(j, carry):
            h, cell = carry
            lt = (Tc - 1 - j) if reverse else j
            # W_hh read inside the step (not hoisted) to keep vreg live ranges short.
            g = gx_sc[lt] + jnp.dot(h.astype(jnp.bfloat16), whh_ref[...],
                                    preferred_element_type=jnp.float32)
            i_g = _sigmoid(g[:, 0 * Hp:1 * Hp])
            f_g = _sigmoid(g[:, 1 * Hp:2 * Hp])
            g_g = jnp.tanh(g[:, 2 * Hp:3 * Hp])
            o_g = _sigmoid(g[:, 3 * Hp:4 * Hp])
            cell = f_g * cell + i_g * g_g
            h = o_g * jnp.tanh(cell)
            out_ref[lt] = h.astype(out_ref.dtype)
            return h, cell

        h_fin, c_fin = jax.lax.fori_loop(0, Tc, step, (h_sc[slot], c_sc[slot]),
                                         unroll=unroll)
        h_sc[slot] = h_fin
        c_sc[slot] = c_fin

    @pl.when(d == 0)
    def _fwd():
        recur(0, reverse=False)

    @pl.when(d == 1)
    def _rev():
        recur(1, reverse=True)


def _bilstm_layer(x_tbi, w_ih, w_hh, b, *, time_chunk, out_dtype):
    """x_tbi (T, Bp, I); w_ih (2, I, 4Hp) bf16; w_hh (2, Hp, 4Hp) bf16; b (2, 1, 4Hp).

    Returns the fused bidirectional output (T, Bp, 2Hp) in `out_dtype`.
    """
    T, Bp, I = x_tbi.shape
    Hp = w_hh.shape[1]
    G = 4 * Hp
    Tc = time_chunk
    assert T % Tc == 0, (T, Tc)
    nc = T // Tc

    def rev_chunk(d, c):
        # Reverse direction walks chunks back-to-front (and steps within a chunk too).
        return c * (1 - 2 * d) + d * (nc - 1)

    return pl.pallas_call(
        _bilstm_fused_kernel,
        out_shape=jax.ShapeDtypeStruct((T, Bp, 2 * Hp), out_dtype),
        grid=(2, nc),
        in_specs=[
            pl.BlockSpec((Tc, Bp, I), lambda d, c: (rev_chunk(d, c), 0, 0)),  # x chunk
            pl.BlockSpec((None, I, G), lambda d, c: (d, 0, 0)),               # W_ih
            pl.BlockSpec((None, Hp, G), lambda d, c: (d, 0, 0)),              # W_hh
            pl.BlockSpec((None, 1, G), lambda d, c: (d, 0, 0)),               # bias
        ],
        out_specs=pl.BlockSpec((Tc, Bp, Hp), lambda d, c: (rev_chunk(d, c), 0, d)),
        scratch_shapes=[
            pltpu.VMEM((Tc, Bp, G), jnp.float32),   # per-chunk input-projection gates
            pltpu.VMEM((2, Bp, Hp), jnp.float32),   # h carry per direction
            pltpu.VMEM((2, Bp, Hp), jnp.float32),   # c carry per direction
        ],
        compiler_params=pltpu.CompilerParams(
            dimension_semantics=("parallel", "arbitrary"),
            vmem_limit_bytes=_vmem_limit_bytes(),
        ),
    )(x_tbi, w_ih, w_hh, b)


# --------------------------- parameter construction -------------------------
def init_bilstm_params(key, input_size, hidden_size, num_layers):
    """Deterministic init, PyTorch-shaped weights stored transposed (in, 4H)."""
    k = 1.0 / jnp.sqrt(hidden_size)
    params = []
    for layer in range(num_layers):
        in_sz = input_size if layer == 0 else 2 * hidden_size
        layer_p = {}
        for direction in ("f", "r"):
            key, k1, k2, k3, k4 = jax.random.split(key, 5)
            layer_p[f"w_ih_{direction}"] = jax.random.uniform(
                k1, (in_sz, 4 * hidden_size), jnp.float32, -k, k)
            layer_p[f"w_hh_{direction}"] = jax.random.uniform(
                k2, (hidden_size, 4 * hidden_size), jnp.float32, -k, k)
            b_ih = jax.random.uniform(k3, (4 * hidden_size,), jnp.float32, -k, k)
            b_hh = jax.random.uniform(k4, (4 * hidden_size,), jnp.float32, -k, k)
            layer_p[f"b_{direction}"] = b_ih + b_hh
        params.append(layer_p)
    return params


def _pad_gate_dim(w, H, Hp):
    """Pad the gate axis 4H -> 4Hp per-gate ([i|f|g|o] each H -> Hp, zero fill)."""
    lead = w.shape[:-1]
    w = w.reshape(lead + (4, H))
    w = jnp.pad(w, [(0, 0)] * len(lead) + [(0, 0), (0, Hp - H)])
    return w.reshape(lead + (4 * Hp,))


def prepare_params(raw_params, input_size, hidden_size):
    """Pad H to a multiple of 128, stack directions, cast weights to bf16."""
    H = hidden_size
    Hp = _round_up(H, 128)
    prepared = []
    for layer, lp in enumerate(raw_params):
        w_ih_d, w_hh_d, b_d = [], [], []
        for direction in ("f", "r"):
            w_ih = lp[f"w_ih_{direction}"]      # (in_sz, 4H)
            w_hh = lp[f"w_hh_{direction}"]      # (H, 4H)
            b = lp[f"b_{direction}"]            # (4H,)
            if layer > 0:
                # Input is [fwd(H) | bwd(H)]; pad each half's rows to Hp.
                w_ih = w_ih.reshape(2, H, 4 * H)
                w_ih = jnp.pad(w_ih, ((0, 0), (0, Hp - H), (0, 0)))
                w_ih = w_ih.reshape(2 * Hp, 4 * H)
            w_ih = _pad_gate_dim(w_ih, H, Hp)
            w_hh = jnp.pad(w_hh, ((0, Hp - H), (0, 0)))
            w_hh = _pad_gate_dim(w_hh, H, Hp)
            b = _pad_gate_dim(b, H, Hp)
            w_ih_d.append(w_ih)
            w_hh_d.append(w_hh)
            b_d.append(b)
        prepared.append({
            "w_ih": jnp.stack(w_ih_d).astype(jnp.bfloat16),          # (2, I_l, 4Hp)
            "w_hh": jnp.stack(w_hh_d).astype(jnp.bfloat16),          # (2, Hp, 4Hp)
            "b": jnp.stack(b_d)[:, None, :].astype(jnp.float32),     # (2, 1, 4Hp)
        })
    return prepared


# --------------------------------- forward ----------------------------------
@functools.partial(jax.jit, static_argnames=("hidden_size", "time_chunk"))
def bilstm_forward(x_btf, prepared, hidden_size, time_chunk):
    """x_btf: (B, T, input_size) batch-first, like PyTorch. Returns (B, T, 2H) f32."""
    B, T, _ = x_btf.shape
    Bp = _round_up(B, 16)                              # bf16 MXU LHS: 16-row sublanes
    Hp = prepared[0]["w_hh"].shape[1]
    h = jnp.transpose(x_btf, (1, 0, 2))                # (T, B, I)
    h = jnp.pad(h, ((0, 0), (0, Bp - B), (0, 0)))      # (T, Bp, I)
    n_layers = len(prepared)
    for li, p in enumerate(prepared):
        out_dtype = jnp.float32 if li == n_layers - 1 else jnp.bfloat16
        h = _bilstm_layer(h, p["w_ih"], p["w_hh"], p["b"],
                          time_chunk=time_chunk, out_dtype=out_dtype)
        # (inter-layer dropout is identity in inference mode)
    y = jnp.transpose(h, (1, 0, 2))[:B]                # (B, T, 2Hp)
    return jnp.concatenate(
        [y[..., :hidden_size], y[..., Hp:Hp + hidden_size]], axis=-1)


# ------------------------- pure-JAX reference (same math) -------------------
def _ref_bilstm(x_btf, prepared, hidden_size):
    B, T, _ = x_btf.shape
    Bp = _round_up(B, 16)
    Hp = prepared[0]["w_hh"].shape[1]
    h = jnp.transpose(x_btf, (1, 0, 2))
    h = jnp.pad(h, ((0, 0), (0, Bp - B), (0, 0)))
    n_layers = len(prepared)
    for li, p in enumerate(prepared):
        gx = jnp.einsum("tbi,dig->dtbg", h.astype(jnp.bfloat16), p["w_ih"],
                        preferred_element_type=jnp.float32) + p["b"][:, None, :, :]
        outs = []
        for d in range(2):
            g_seq = gx[d] if d == 0 else gx[d][::-1]
            w_hh = p["w_hh"][d]

            def step(carry, g_t, w_hh=w_hh, Hp=Hp):
                hh, cc = carry
                g = g_t + jnp.dot(hh.astype(jnp.bfloat16), w_hh,
                                  preferred_element_type=jnp.float32)
                i = _sigmoid(g[:, :Hp])
                f = _sigmoid(g[:, Hp:2 * Hp])
                gg = jnp.tanh(g[:, 2 * Hp:3 * Hp])
                o = _sigmoid(g[:, 3 * Hp:])
                cc = f * cc + i * gg
                hh = o * jnp.tanh(cc)
                return (hh, cc), hh

            init = (jnp.zeros((Bp, Hp), jnp.float32),
                    jnp.zeros((Bp, Hp), jnp.float32))
            _, hs = jax.lax.scan(step, init, g_seq)
            outs.append(hs if d == 0 else hs[::-1])
        h = jnp.concatenate(outs, axis=-1)
        if li < n_layers - 1:
            h = h.astype(jnp.bfloat16)   # matches the kernel's bf16 inter-layer output
    y = jnp.transpose(h, (1, 0, 2))[:B]
    return jnp.concatenate(
        [y[..., :hidden_size], y[..., Hp:Hp + hidden_size]], axis=-1)


if __name__ == "__main__":
    B, T, INPUT, HIDDEN, LAYERS = 2, 8, 16, 32, 2
    TIME_CHUNK = 4   # must divide T; sweep per generation (larger on v5e/v6e VMEM)

    key = jax.random.PRNGKey(0)
    k_x, k_p = jax.random.split(key)
    x = jax.random.normal(k_x, (B, T, INPUT), jnp.float32)

    raw_params = init_bilstm_params(k_p, INPUT, HIDDEN, LAYERS)
    prepared = prepare_params(raw_params, INPUT, HIDDEN)

    out = bilstm_forward(x, prepared, hidden_size=HIDDEN, time_chunk=TIME_CHUNK)
    out = jax.block_until_ready(out)
    assert out.shape == (B, T, 2 * HIDDEN), out.shape

    ref = jax.block_until_ready(_ref_bilstm(x, prepared, HIDDEN))
    max_err = float(jnp.max(jnp.abs(out - ref)))
    assert jnp.allclose(out, ref, atol=3e-3, rtol=3e-3), max_err

    print("KERNEL_OK")
</pallas_src>

<mosaic_0001>
module attributes {stable_mosaic.version = 11 : i64} {
  func.func @_bilstm_fused_kernel(%arg0: i32, %arg1: i32, %arg2: memref<4x16x256xbf16, #tpu.memory_space<vmem>>, %arg3: memref<1x256x512xbf16, #tpu.memory_space<vmem>>, %arg4: memref<1x128x512xbf16, #tpu.memory_space<vmem>>, %arg5: memref<1x1x512xf32, #tpu.memory_space<vmem>>, %arg6: memref<4x16x128xf32, #tpu.memory_space<vmem>>, %arg7: memref<4x16x512xf32, #tpu.memory_space<vmem>>, %arg8: memref<2x16x128xf32, #tpu.memory_space<vmem>>, %arg9: memref<2x16x128xf32, #tpu.memory_space<vmem>>) attributes {dimension_semantics = [#tpu.dimension_semantics<parallel>, #tpu.dimension_semantics<arbitrary>], iteration_bounds = array<i64: 2, 2>, scalar_prefetch = 0 : i64, scratch_operands = 3 : i64, tpu.core_type = #tpu.core_type<tc>, window_params = [{transform_indices = @transform_0, window_bounds = array<i64: 4, 16, 256>}, {transform_indices = @transform_1, window_bounds = array<i64: 1, 256, 512>}, {transform_indices = @transform_2, window_bounds = array<i64: 1, 128, 512>}, {transform_indices = @transform_3, window_bounds = array<i64: 1, 1, 512>}, {transform_indices = @transform_4, window_bounds = array<i64: 4, 16, 128>}]} {
    %c0 = arith.constant 0 : index
    %c0_0 = arith.constant 0 : index
    %c0_1 = arith.constant 0 : index
    %0 = vector.load %arg2[%c0, %c0_0, %c0_1] : memref<4x16x256xbf16, #tpu.memory_space<vmem>>, vector<4x16x256xbf16>
    %1 = vector.shape_cast %0 : vector<4x16x256xbf16> to vector<64x256xbf16>
    %c0_2 = arith.constant 0 : index
    %c0_3 = arith.constant 0 : index
    %c0_4 = arith.constant 0 : index
    %2 = vector.load %arg3[%c0_2, %c0_3, %c0_4] : memref<1x256x512xbf16, #tpu.memory_space<vmem>>, vector<1x256x512xbf16>
    %3 = vector.shape_cast %2 : vector<1x256x512xbf16> to vector<256x512xbf16>
    %cst = arith.constant dense<0.000000e+00> : vector<64x512xf32>
    %4 = tpu.matmul %1, %3, %cst {dimension_numbers = #tpu.dot_dimension_numbers<[1], [0], [0], [1], [0, 0, 1, 1], [], []>} : vector<64x256xbf16>, vector<256x512xbf16>, vector<64x512xf32> -> vector<64x512xf32>
    %c0_5 = arith.constant 0 : index
    %c0_6 = arith.constant 0 : index
    %c0_7 = arith.constant 0 : index
    %5 = vector.load %arg5[%c0_5, %c0_6, %c0_7] : memref<1x1x512xf32, #tpu.memory_space<vmem>>, vector<1x1x512xf32>
    %6 = vector.shape_cast %5 : vector<1x1x512xf32> to vector<1x512xf32>
    %7 = vector.broadcast %6 : vector<1x512xf32> to vector<64x512xf32>
    %8 = arith.addf %4, %7 : vector<64x512xf32>
    %9 = vector.shape_cast %8 : vector<64x512xf32> to vector<4x16x512xf32>
    %c0_8 = arith.constant 0 : index
    %c0_9 = arith.constant 0 : index
    %c0_10 = arith.constant 0 : index
    %10 = vector.load %arg7[%c0_8, %c0_9, %c0_10] : memref<4x16x512xf32, #tpu.memory_space<vmem>>, vector<4x16x512xf32>
    tpu.vector_store %arg7[%c0_8, %c0_9, %c0_10], %9 {strides = array<i32>} : memref<4x16x512xf32, #tpu.memory_space<vmem>>, vector<4x16x512xf32>,
    %c0_i32 = arith.constant 0 : i32
    %11 = arith.cmpi eq, %arg0, %c0_i32 : i32
    %12 = arith.extui %11 : i1 to i32
    %c0_i32_11 = arith.constant 0 : i32
    %13 = arith.cmpi ne, %12, %c0_i32_11 : i32
    scf.if %13 {
      %c0_i32_13 = arith.constant 0 : i32
      %17 = arith.cmpi eq, %arg1, %c0_i32_13 : i32
      %18 = arith.extui %17 : i1 to i32
      %c0_i32_14 = arith.constant 0 : i32
      %19 = arith.cmpi ne, %18, %c0_i32_14 : i32
      scf.if %19 {
        %cst_97 = arith.constant 0.000000e+00 : f32
        %202 = vector.broadcast %cst_97 : f32 to vector<16x128xf32>
        %c0_98 = arith.constant 0 : index
        %c0_99 = arith.constant 0 : index
        %c0_100 = arith.constant 0 : index
        %203 = vector.load %arg8[%c0_98, %c0_99, %c0_100] : memref<2x16x128xf32, #tpu.memory_space<vmem>>, vector<1x16x128xf32>
        %204 = vector.shape_cast %203 : vector<1x16x128xf32> to vector<16x128xf32>
        %205 = vector.shape_cast %202 : vector<16x128xf32> to vector<1x16x128xf32>
        tpu.vector_store %arg8[%c0_98, %c0_99, %c0_100], %205 {strides = array<i32>} : memref<2x16x128xf32, #tpu.memory_space<vmem>>, vector<1x16x128xf32>,
        %cst_101 = arith.constant 0.000000e+00 : f32
        %206 = vector.broadcast %cst_101 : f32 to vector<16x128xf32>
        %c0_102 = arith.constant 0 : index
        %c0_103 = arith.constant 0 : index
        %c0_104 = arith.constant 0 : index
        %207 = vector.load %arg9[%c0_102, %c0_103, %c0_104] : memref<2x16x128xf32, #tpu.memory_space<vmem>>, vector<1x16x128xf32>
        %208 = vector.shape_cast %207 : vector<1x16x128xf32> to vector<16x128xf32>
        %209 = vector.shape_cast %206 : vector<16x128xf32> to vector<1x16x128xf32>
        tpu.vector_store %arg9[%c0_102, %c0_103, %c0_104], %209 {strides = array<i32>} : memref<2x16x128xf32, #tpu.memory_space<vmem>>, vector<1x16x128xf32>,
      } else {
      }
      %c0_15 = arith.constant 0 : index
      %c0_16 = arith.constant 0 : index
      %c0_17 = arith.constant 0 : index
      %20 = vector.load %arg8[%c0_15, %c0_16, %c0_17] : memref<2x16x128xf32, #tpu.memory_space<vmem>>, vector<1x16x128xf32>
      %21 = vector.shape_cast %20 : vector<1x16x128xf32> to vector<16x128xf32>
      %c0_18 = arith.constant 0 : index
      %c0_19 = arith.constant 0 : index
      %c0_20 = arith.constant 0 : index
      %22 = vector.load %arg9[%c0_18, %c0_19, %c0_20] : memref<2x16x128xf32, #tpu.memory_space<vmem>>, vector<1x16x128xf32>
      %23 = vector.shape_cast %22 : vector<1x16x128xf32> to vector<16x128xf32>
      %c0_i32_21 = arith.constant 0 : i32
      %24 = arith.index_cast %c0_i32_21 : i32 to index
      %c0_22 = arith.constant 0 : index
      %c0_23 = arith.constant 0 : index
      %25 = vector.load %arg7[%24, %c0_22, %c0_23] : memref<4x16x512xf32, #tpu.memory_space<vmem>>, vector<1x16x512xf32>
      %26 = vector.shape_cast %25 : vector<1x16x512xf32> to vector<16x512xf32>
      %27 = arith.truncf %21 : vector<16x128xf32> to vector<16x128xbf16>
      %c0_24 = arith.constant 0 : index
      %c0_25 = arith.constant 0 : index
      %c0_26 = arith.constant 0 : index
      %28 = vector.load %arg4[%c0_24, %c0_25, %c0_26] : memref<1x128x512xbf16, #tpu.memory_space<vmem>>, vector<1x128x512xbf16>
      %29 = vector.shape_cast %28 : vector<1x128x512xbf16> to vector<128x512xbf16>
      %cst_27 = arith.constant dense<0.000000e+00> : vector<16x512xf32>
      %30 = tpu.matmul %27, %29, %cst_27 {dimension_numbers = #tpu.dot_dimension_numbers<[1], [0], [0], [1], [0, 0, 1, 1], [], []>} : vector<16x128xbf16>, vector<128x512xbf16>, vector<16x512xf32> -> vector<16x512xf32>
      %31 = arith.addf %26, %30 : vector<16x512xf32>
      %32 = vector.extract_strided_slice %31 {offsets = [0, 0], sizes = [16, 128], strides = [1, 1]} : vector<16x512xf32> to vector<16x128xf32>
      %cst_28 = arith.constant 5.000000e-01 : f32
      %33 = vector.broadcast %cst_28 : f32 to vector<16x128xf32>
      %34 = arith.mulf %33, %32 : vector<16x128xf32>
      %35 = math.tanh %34 : vector<16x128xf32>
      %cst_29 = arith.constant 1.000000e+00 : f32
      %36 = vector.broadcast %cst_29 : f32 to vector<16x128xf32>
      %37 = arith.addf %35, %36 : vector<16x128xf32>
      %cst_30 = arith.constant 5.000000e-01 : f32
      %38 = vector.broadcast %cst_30 : f32 to vector<16x128xf32>
      %39 = arith.mulf %38, %37 : vector<16x128xf32>
      %40 = vector.extract_strided_slice %31 {offsets = [0, 128], sizes = [16, 128], strides = [1, 1]} : vector<16x512xf32> to vector<16x128xf32>
      %cst_31 = arith.constant 5.000000e-01 : f32
      %41 = vector.broadcast %cst_31 : f32 to vector<16x128xf32>
      %42 = arith.mulf %41, %40 : vector<16x128xf32>
      %43 = math.tanh %42 : vector<16x128xf32>
      %cst_32 = arith.constant 1.000000e+00 : f32
      %44 = vector.broadcast %cst_32 : f32 to vector<16x128xf32>
      %45 = arith.addf %43, %44 : vector<16x128xf32>
      %cst_33 = arith.constant 5.000000e-01 : f32
      %46 = vector.broadcast %cst_33 : f32 to vector<16x128xf32>
      %47 = arith.mulf %46, %45 : vector<16x128xf32>
      %48 = vector.extract_strided_slice %31 {offsets = [0, 256], sizes = [16, 128], strides = [1, 1]} : vector<16x512xf32> to vector<16x128xf32>
      %49 = math.tanh %48 : vector<16x128xf32>
      %50 = vector.extract_strided_slice %31 {offsets = [0, 384], sizes = [16, 128], strides = [1, 1]} : vector<16x512xf32> to vector<16x128xf32>
      %cst_34 = arith.constant 5.000000e-01 : f32
      %51 = vector.broadcast %cst_34 : f32 to vector<16x128xf32>
      %52 = arith.mulf %51, %50 : vector<16x128xf32>
      %53 = math.tanh %52 : vector<16x128xf32>
      %cst_35 = arith.constant 1.000000e+00 : f32
      %54 = vector.broadcast %cst_35 : f32 to vector<16x128xf32>
      %55 = arith.addf %53, %54 : vector<16x128xf32>
      %cst_36 = arith.constant 5.000000e-01 : f32
      %56 = vector.broadcast %cst_36 : f32 to vector<16x128xf32>
      %57 = arith.mulf %56, %55 : vector<16x128xf32>
      %58 = arith.mulf %47, %23 : vector<16x128xf32>
      %59 = arith.mulf %39, %49 : vector<16x128xf32>
      %60 = arith.addf %58, %59 : vector<16x128xf32>
      %61 = math.tanh %60 : vector<16x128xf32>
      %62 = arith.mulf %57, %61 : vector<16x128xf32>
      %63 = arith.index_cast %c0_i32_21 : i32 to index
      %c0_37 = arith.constant 0 : index
      %c0_38 = arith.constant 0 : index
      %64 = vector.load %arg6[%63, %c0_37, %c0_38] : memref<4x16x128xf32, #tpu.memory_space<vmem>>, vector<1x16x128xf32>
      %65 = vector.shape_cast %64 : vector<1x16x128xf32> to vector<16x128xf32>
      %66 = vector.shape_cast %62 : vector<16x128xf32> to vector<1x16x128xf32>
      tpu.vector_store %arg6[%63, %c0_37, %c0_38], %66 {strides = array<i32>} : memref<4x16x128xf32, #tpu.memory_space<vmem>>, vector<1x16x128xf32>,
      %c1_i32_39 = arith.constant 1 : i32
      %67 = arith.index_cast %c1_i32_39 : i32 to index
      %c0_40 = arith.constant 0 : index
      %c0_41 = arith.constant 0 : index
      %68 = vector.load %arg7[%67, %c0_40, %c0_41] : memref<4x16x512xf32, #tpu.memory_space<vmem>>, vector<1x16x512xf32>
      %69 = vector.shape_cast %68 : vector<1x16x512xf32> to vector<16x512xf32>
      %70 = arith.truncf %62 : vector<16x128xf32> to vector<16x128xbf16>
      %c0_42 = arith.constant 0 : index
      %c0_43 = arith.constant 0 : index
      %c0_44 = arith.constant 0 : index
      %71 = vector.load %arg4[%c0_42, %c0_43, %c0_44] : memref<1x128x512xbf16, #tpu.memory_space<vmem>>, vector<1x128x512xbf16>
      %72 = vector.shape_cast %71 : vector<1x128x512xbf16> to vector<128x512xbf16>
      %cst_45 = arith.constant dense<0.000000e+00> : vector<16x512xf32>
      %73 = tpu.matmul %70, %72, %cst_45 {dimension_numbers = #tpu.dot_dimension_numbers<[1], [0], [0], [1], [0, 0, 1, 1], [], []>} : vector<16x128xbf16>, vector<128x512xbf16>, vector<16x512xf32> -> vector<16x512xf32>
      %74 = arith.addf %69, %73 : vector<16x512xf32>
      %75 = vector.extract_strided_slice %74 {offsets = [0, 0], sizes = [16, 128], strides = [1, 1]} : vector<16x512xf32> to vector<16x128xf32>
      %cst_46 = arith.constant 5.000000e-01 : f32
      %76 = vector.broadcast %cst_46 : f32 to vector<16x128xf32>
      %77 = arith.mulf %76, %75 : vector<16x128xf32>
      %78 = math.tanh %77 : vector<16x128xf32>
      %cst_47 = arith.constant 1.000000e+00 : f32
      %79 = vector.broadcast %cst_47 : f32 to vector<16x128xf32>
      %80 = arith.addf %78, %79 : vector<16x128xf32>
      %cst_48 = arith.constant 5.000000e-01 : f32
      %81 = vector.broadcast %cst_48 : f32 to vector<16x128xf32>
      %82 = arith.mulf %81, %80 : vector<16x128xf32>
      %83 = vector.extract_strided_slice %74 {offsets = [0, 128], sizes = [16, 128], strides = [1, 1]} : vector<16x512xf32> to vector<16x128xf32>
      %cst_49 = arith.constant 5.000000e-01 : f32
      %84 = vector.broadcast %cst_49 : f32 to vector<16x128xf32>
      %85 = arith.mulf %84, %83 : vector<16x128xf32>
      %86 = math.tanh %85 : vector<16x128xf32>
      %cst_50 = arith.constant 1.000000e+00 : f32
      %87 = vector.broadcast %cst_50 : f32 to vector<16x128xf32>
      %88 = arith.addf %86, %87 : vector<16x128xf32>
      %cst_51 = arith.constant 5.000000e-01 : f32
      %89 = vector.broadcast %cst_51 : f32 to vector<16x128xf32>
      %90 = arith.mulf %89, %88 : vector<16x128xf32>
      %91 = vector.extract_strided_slice %74 {offsets = [0, 256], sizes = [16, 128], strides = [1, 1]} : vector<16x512xf32> to vector<16x128xf32>
      %92 = math.tanh %91 : vector<16x128xf32>
      %93 = vector.extract_strided_slice %74 {offsets = [0, 384], sizes = [16, 128], strides = [1, 1]} : vector<16x512xf32> to vector<16x128xf32>
      %cst_52 = arith.constant 5.000000e-01 : f32
      %94 = vector.broadcast %cst_52 : f32 to vector<16x128xf32>
      %95 = arith.mulf %94, %93 : vector<16x128xf32>
      %96 = math.tanh %95 : vector<16x128xf32>
      %cst_53 = arith.constant 1.000000e+00 : f32
      %97 = vector.broadcast %cst_53 : f32 to vector<16x128xf32>
      %98 = arith.addf %96, %97 : vector<16x128xf32>
      %cst_54 = arith.constant 5.000000e-01 : f32
      %99 = vector.broadcast %cst_54 : f32 to vector<16x128xf32>
      %100 = arith.mulf %99, %98 : vector<16x128xf32>
      %101 = arith.mulf %90, %60 : vector<16x128xf32>
      %102 = arith.mulf %82, %92 : vector<16x128xf32>
      %103 = arith.addf %101, %102 : vector<16x128xf32>
      %104 = math.tanh %103 : vector<16x128xf32>
      %105 = arith.mulf %100, %104 : vector<16x128xf32>
      %106 = arith.index_cast %c1_i32_39 : i32 to index
      %c0_55 = arith.constant 0 : index
      %c0_56 = arith.constant 0 : index
      %107 = vector.load %arg6[%106, %c0_55, %c0_56] : memref<4x16x128xf32, #tpu.memory_space<vmem>>, vector<1x16x128xf32>
      %108 = vector.shape_cast %107 : vector<1x16x128xf32> to vector<16x128xf32>
      %109 = vector.shape_cast %105 : vector<16x128xf32> to vector<1x16x128xf32>
      tpu.vector_store %arg6[%106, %c0_55, %c0_56], %109 {strides = array<i32>} : memref<4x16x128xf32, #tpu.memory_space<vmem>>, vector<1x16x128xf32>,
      %c2_i32 = arith.constant 2 : i32
      %110 = arith.index_cast %c2_i32 : i32 to index
      %c0_57 = arith.constant 0 : index
      %c0_58 = arith.constant 0 : index
      %111 = vector.load %arg7[%110, %c0_57, %c0_58] : memref<4x16x512xf32, #tpu.memory_space<vmem>>, vector<1x16x512xf32>
      %112 = vector.shape_cast %111 : vector<1x16x512xf32> to vector<16x512xf32>
      %113 = arith.truncf %105 : vector<16x128xf32> to vector<16x128xbf16>
      %c0_59 = arith.constant 0 : index
      %c0_60 = arith.constant 0 : index
      %c0_61 = arith.constant 0 : index
      %114 = vector.load %arg4[%c0_59, %c0_60, %c0_61] : memref<1x128x512xbf16, #tpu.memory_space<vmem>>, vector<1x128x512xbf16>
      %115 = vector.shape_cast %114 : vector<1x128x512xbf16> to vector<128x512xbf16>
      %cst_62 = arith.constant dense<0.000000e+00> : vector<16x512xf32>
      %116 = tpu.matmul %113, %115, %cst_62 {dimension_numbers = #tpu.dot_dimension_numbers<[1], [0], [0], [1], [0, 0, 1, 1], [], []>} : vector<16x128xbf16>, vector<128x512xbf16>, vector<16x512xf32> -> vector<16x512xf32>
      %117 = arith.addf %112, %116 : vector<16x512xf32>
      %118 = vector.extract_strided_slice %117 {offsets = [0, 0], sizes = [16, 128], strides = [1, 1]} : vector<16x512xf32> to vector<16x128xf32>
      %cst_63 = arith.constant 5.000000e-01 : f32
      %119 = vector.broadcast %cst_63 : f32 to vector<16x128xf32>
      %120 = arith.mulf %119, %118 : vector<16x128xf32>
      %121 = math.tanh %120 : vector<16x128xf32>
      %cst_64 = arith.constant 1.000000e+00 : f32
      %122 = vector.broadcast %cst_64 : f32 to vector<16x128xf32>
      %123 = arith.addf %121, %122 : vector<16x128xf32>
      %cst_65 = arith.constant 5.000000e-01 : f32
      %124 = vector.broadcast %cst_65 : f32 to vector<16x128xf32>
      %125 = arith.mulf %124, %123 : vector<16x128xf32>
      %126 = vector.extract_strided_slice %117 {offsets = [0, 128], sizes = [16, 128], strides = [1, 1]} : vector<16x512xf32> to vector<16x128xf32>
      %cst_66 = arith.constant 5.000000e-01 : f32
      %127 = vector.broadcast %cst_66 : f32 to vector<16x128xf32>
      %128 = arith.mulf %127, %126 : vector<16x128xf32>
      %129 = math.tanh %128 : vector<16x128xf32>
      %cst_67 = arith.constant 1.000000e+00 : f32
      %130 = vector.broadcast %cst_67 : f32 to vector<16x128xf32>
      %131 = arith.addf %129, %130 : vector<16x128xf32>
      %cst_68 = arith.constant 5.000000e-01 : f32
      %132 = vector.broadcast %cst_68 : f32 to vector<16x128xf32>
      %133 = arith.mulf %132, %131 : vector<16x128xf32>
      %134 = vector.extract_strided_slice %117 {offsets = [0, 256], sizes = [16, 128], strides = [1, 1]} : vector<16x512xf32> to vector<16x128xf32>
      %135 = math.tanh %134 : vector<16x128xf32>
      %136 = vector.extract_strided_slice %117 {offsets = [0, 384], sizes = [16, 128], strides = [1, 1]} : vector<16x512xf32> to vector<16x128xf32>
      %cst_69 = arith.constant 5.000000e-01 : f32
      %137 = vector.broadcast %cst_69 : f32 to vector<16x128xf32>
      %138 = arith.mulf %137, %136 : vector<16x128xf32>
      %139 = math.tanh %138 : vector<16x128xf32>
      %cst_70 = arith.constant 1.000000e+00 : f32
      %140 = vector.broadcast %cst_70 : f32 to vector<16x128xf32>
      %141 = arith.addf %139, %140 : vector<16x128xf32>
      %cst_71 = arith.constant 5.000000e-01 : f32
      %142 = vector.broadcast %cst_71 : f32 to vector<16x128xf32>
      %143 = arith.mulf %142, %141 : vector<16x128xf32>
      %144 = arith.mulf %133, %103 : vector<16x128xf32>
      %145 = arith.mulf %125, %135 : vector<16x128xf32>
      %146 = arith.addf %144, %145 : vector<16x128xf32>
      %147 = math.tanh %146 : vector<16x128xf32>
      %148 = arith.mulf %143, %147 : vector<16x128xf32>
      %149 = arith.index_cast %c2_i32 : i32 to index
      %c0_72 = arith.constant 0 : index
      %c0_73 = arith.constant 0 : index
      %150 = vector.load %arg6[%149, %c0_72, %c0_73] : memref<4x16x128xf32, #tpu.memory_space<vmem>>, vector<1x16x128xf32>
      %151 = vector.shape_cast %150 : vector<1x16x128xf32> to vector<16x128xf32>
      %152 = vector.shape_cast %148 : vector<16x128xf32> to vector<1x16x128xf32>
      tpu.vector_store %arg6[%149, %c0_72, %c0_73], %152 {strides = array<i32>} : memref<4x16x128xf32, #tpu.memory_space<vmem>>, vector<1x16x128xf32>,
      %c3_i32 = arith.constant 3 : i32
      %153 = arith.index_cast %c3_i32 : i32 to index
      %c0_74 = arith.constant 0 : index
      %c0_75 = arith.constant 0 : index
      %154 = vector.load %arg7[%153, %c0_74, %c0_75] : memref<4x16x512xf32, #tpu.memory_space<vmem>>, vector<1x16x512xf32>
      %155 = vector.shape_cast %154 : vector<1x16x512xf32> to vector<16x512xf32>
      %156 = arith.truncf %148 : vector<16x128xf32> to vector<16x128xbf16>
      %c0_76 = arith.constant 0 : index
      %c0_77 = arith.constant 0 : index
      %c0_78 = arith.constant 0 : index
      %157 = vector.load %arg4[%c0_76, %c0_77, %c0_78] : memref<1x128x512xbf16, #tpu.memory_space<vmem>>, vector<1x128x512xbf16>
      %158 = vector.shape_cast %157 : vector<1x128x512xbf16> to vector<128x512xbf16>
      %cst_79 = arith.constant dense<0.000000e+00> : vector<16x512xf32>
      %159 = tpu.matmul %156, %158, %cst_79 {dimension_numbers = #tpu.dot_dimension_numbers<[1], [0], [0], [1], [0, 0, 1, 1], [], []>} : vector<16x128xbf16>, vector<128x512xbf16>, vector<16x512xf32> -> vector<16x512xf32>
      %160 = arith.addf %155, %159 : vector<16x512xf32>
      %161 = vector.extract_strided_slice %160 {offsets = [0, 0], sizes = [16, 128], strides = [1, 1]} : vector<16x512xf32> to vector<16x128xf32>
      %cst_80 = arith.constant 5.000000e-01 : f32
      %162 = vector.broadcast %cst_80 : f32 to vector<16x128xf32>
      %163 = arith.mulf %162, %161 : vector<16x128xf32>
      %164 = math.tanh %163 : vector<16x128xf32>
      %cst_81 = arith.constant 1.000000e+00 : f32
      %165 = vector.broadcast %cst_81 : f32 to vector<16x128xf32>
      %166 = arith.addf %164, %165 : vector<16x128xf32>
      %cst_82 = arith.constant 5.000000e-01 : f32
      %167 = vector.broadcast %cst_82 : f32 to vector<16x128xf32>
      %168 = arith.mulf %167, %166 : vector<16x128xf32>
      %169 = vector.extract_strided_slice %160 {offsets = [0, 128], sizes = [16, 128], strides = [1, 1]} : vector<16x512xf32> to vector<16x128xf32>
      %cst_83 = arith.constant 5.000000e-01 : f32
      %170 = vector.broadcast %cst_83 : f32 to vector<16x128xf32>
      %171 = arith.mulf %170, %169 : vector<16x128xf32>
      %172 = math.tanh %171 : vector<16x128xf32>
      %cst_84 = arith.constant 1.000000e+00 : f32
      %173 = vector.broadcast %cst_84 : f32 to vector<16x128xf32>
      %174 = arith.addf %172, %173 : vector<16x128xf32>
      %cst_85 = arith.constant 5.000000e-01 : f32
      %175 = vector.broadcast %cst_85 : f32 to vector<16x128xf32>
      %176 = arith.mulf %175, %174 : vector<16x128xf32>
      %177 = vector.extract_strided_slice %160 {offsets = [0, 256], sizes = [16, 128], strides = [1, 1]} : vector<16x512xf32> to vector<16x128xf32>
      %178 = math.tanh %177 : vector<16x128xf32>
      %179 = vector.extract_strided_slice %160 {offsets = [0, 384], sizes = [16, 128], strides = [1, 1]} : vector<16x512xf32> to vector<16x128xf32>
      %cst_86 = arith.constant 5.000000e-01 : f32
      %180 = vector.broadcast %cst_86 : f32 to vector<16x128xf32>
      %181 = arith.mulf %180, %179 : vector<16x128xf32>
      %182 = math.tanh %181 : vector<16x128xf32>
      %cst_87 = arith.constant 1.000000e+00 : f32
      %183 = vector.broadcast %cst_87 : f32 to vector<16x128xf32>
      %184 = arith.addf %182, %183 : vector<16x128xf32>
      %cst_88 = arith.constant 5.000000e-01 : f32
      %185 = vector.broadcast %cst_88 : f32 to vector<16x128xf32>
      %186 = arith.mulf %185, %184 : vector<16x128xf32>
      %187 = arith.mulf %176, %146 : vector<16x128xf32>
      %188 = arith.mulf %168, %178 : vector<16x128xf32>
      %189 = arith.addf %187, %188 : vector<16x128xf32>
      %190 = math.tanh %189 : vector<16x128xf32>
      %191 = arith.mulf %186, %190 : vector<16x128xf32>
      %192 = arith.index_cast %c3_i32 : i32 to index
      %c0_89 = arith.constant 0 : index
      %c0_90 = arith.constant 0 : index
      %193 = vector.load %arg6[%192, %c0_89, %c0_90] : memref<4x16x128xf32, #tpu.memory_space<vmem>>, vector<1x16x128xf32>
      %194 = vector.shape_cast %193 : vector<1x16x128xf32> to vector<16x128xf32>
      %195 = vector.shape_cast %191 : vector<16x128xf32> to vector<1x16x128xf32>
      tpu.vector_store %arg6[%192, %c0_89, %c0_90], %195 {strides = array<i32>} : memref<4x16x128xf32, #tpu.memory_space<vmem>>, vector<1x16x128xf32>,
      %c4_i32 = arith.constant 4 : i32
      %c0_91 = arith.constant 0 : index
      %c0_92 = arith.constant 0 : index
      %c0_93 = arith.constant 0 : index
      %196 = vector.load %arg8[%c0_91, %c0_92, %c0_93] : memref<2x16x128xf32, #tpu.memory_space<vmem>>, vector<1x16x128xf32>
      %197 = vector.shape_cast %196 : vector<1x16x128xf32> to vector<16x128xf32>
      %198 = vector.shape_cast %191 : vector<16x128xf32> to vector<1x16x128xf32>
      tpu.vector_store %arg8[%c0_91, %c0_92, %c0_93], %198 {strides = array<i32>} : memref<2x16x128xf32, #tpu.memory_space<vmem>>, vector<1x16x128xf32>,
      %c0_94 = arith.constant 0 : index
      %c0_95 = arith.constant 0 : index
      %c0_96 = arith.constant 0 : index
      %199 = vector.load %arg9[%c0_94, %c0_95, %c0_96] : memref<2x16x128xf32, #tpu.memory_space<vmem>>, vector<1x16x128xf32>
      %200 = vector.shape_cast %199 : vector<1x16x128xf32> to vector<16x128xf32>
      %201 = vector.shape_cast %189 : vector<16x128xf32> to vector<1x16x128xf32>
      tpu.vector_store %arg9[%c0_94, %c0_95, %c0_96], %201 {strides = array<i32>} : memref<2x16x128xf32, #tpu.memory_space<vmem>>, vector<1x16x128xf32>,
    } else {
    }
    %c1_i32 = arith.constant 1 : i32
    %14 = arith.cmpi eq, %arg0, %c1_i32 : i32
    %15 = arith.extui %14 : i1 to i32
    %c0_i32_12 = arith.constant 0 : i32
    %16 = arith.cmpi ne, %15, %c0_i32_12 : i32
    scf.if %16 {
      %c0_i32_13 = arith.constant 0 : i32
      %17 = arith.cmpi eq, %arg1, %c0_i32_13 : i32
      %18 = arith.extui %17 : i1 to i32
      %c0_i32_14 = arith.constant 0 : i32
      %19 = arith.cmpi ne, %18, %c0_i32_14 : i32
      scf.if %19 {
        %cst_100 = arith.constant 0.000000e+00 : f32
        %206 = vector.broadcast %cst_100 : f32 to vector<16x128xf32>
        %c1_101 = arith.constant 1 : index
        %c0_102 = arith.constant 0 : index
        %c0_103 = arith.constant 0 : index
        %207 = vector.load %arg8[%c1_101, %c0_102, %c0_103] : memref<2x16x128xf32, #tpu.memory_space<vmem>>, vector<1x16x128xf32>
        %208 = vector.shape_cast %207 : vector<1x16x128xf32> to vector<16x128xf32>
        %209 = vector.shape_cast %206 : vector<16x128xf32> to vector<1x16x128xf32>
        tpu.vector_store %arg8[%c1_101, %c0_102, %c0_103], %209 {strides = array<i32>} : memref<2x16x128xf32, #tpu.memory_space<vmem>>, vector<1x16x128xf32>,
        %cst_104 = arith.constant 0.000000e+00 : f32
        %210 = vector.broadcast %cst_104 : f32 to vector<16x128xf32>
        %c1_105 = arith.constant 1 : index
        %c0_106 = arith.constant 0 : index
        %c0_107 = arith.constant 0 : index
        %211 = vector.load %arg9[%c1_105, %c0_106, %c0_107] : memref<2x16x128xf32, #tpu.memory_space<vmem>>, vector<1x16x128xf32>
        %212 = vector.shape_cast %211 : vector<1x16x128xf32> to vector<16x128xf32>
        %213 = vector.shape_cast %210 : vector<16x128xf32> to vector<1x16x128xf32>
        tpu.vector_store %arg9[%c1_105, %c0_106, %c0_107], %213 {strides = array<i32>} : memref<2x16x128xf32, #tpu.memory_space<vmem>>, vector<1x16x128xf32>,
      } else {
      }
      %c1 = arith.constant 1 : index
      %c0_15 = arith.constant 0 : index
      %c0_16 = arith.constant 0 : index
      %20 = vector.load %arg8[%c1, %c0_15, %c0_16] : memref<2x16x128xf32, #tpu.memory_space<vmem>>, vector<1x16x128xf32>
      %21 = vector.shape_cast %20 : vector<1x16x128xf32> to vector<16x128xf32>
      %c1_17 = arith.constant 1 : index
      %c0_18 = arith.constant 0 : index
      %c0_19 = arith.constant 0 : index
      %22 = vector.load %arg9[%c1_17, %c0_18, %c0_19] : memref<2x16x128xf32, #tpu.memory_space<vmem>>, vector<1x16x128xf32>
      %23 = vector.shape_cast %22 : vector<1x16x128xf32> to vector<16x128xf32>
      %c0_i32_20 = arith.constant 0 : i32
      %c3_i32 = arith.constant 3 : i32
      %24 = arith.subi %c3_i32, %c0_i32_20 : i32
      %25 = arith.index_cast %24 : i32 to index
      %c0_21 = arith.constant 0 : index
      %c0_22 = arith.constant 0 : index
      %26 = vector.load %arg7[%25, %c0_21, %c0_22] : memref<4x16x512xf32, #tpu.memory_space<vmem>>, vector<1x16x512xf32>
      %27 = vector.shape_cast %26 : vector<1x16x512xf32> to vector<16x512xf32>
      %28 = arith.truncf %21 : vector<16x128xf32> to vector<16x128xbf16>
      %c0_23 = arith.constant 0 : index
      %c0_24 = arith.constant 0 : index
      %c0_25 = arith.constant 0 : index
      %29 = vector.load %arg4[%c0_23, %c0_24, %c0_25] : memref<1x128x512xbf16, #tpu.memory_space<vmem>>, vector<1x128x512xbf16>
      %30 = vector.shape_cast %29 : vector<1x128x512xbf16> to vector<128x512xbf16>
      %cst_26 = arith.constant dense<0.000000e+00> : vector<16x512xf32>
      %31 = tpu.matmul %28, %30, %cst_26 {dimension_numbers = #tpu.dot_dimension_numbers<[1], [0], [0], [1], [0, 0, 1, 1], [], []>} : vector<16x128xbf16>, vector<128x512xbf16>, vector<16x512xf32> -> vector<16x512xf32>
      %32 = arith.addf %27, %31 : vector<16x512xf32>
      %33 = vector.extract_strided_slice %32 {offsets = [0, 0], sizes = [16, 128], strides = [1, 1]} : vector<16x512xf32> to vector<16x128xf32>
      %cst_27 = arith.constant 5.000000e-01 : f32
      %34 = vector.broadcast %cst_27 : f32 to vector<16x128xf32>
      %35 = arith.mulf %34, %33 : vector<16x128xf32>
      %36 = math.tanh %35 : vector<16x128xf32>
      %cst_28 = arith.constant 1.000000e+00 : f32
      %37 = vector.broadcast %cst_28 : f32 to vector<16x128xf32>
      %38 = arith.addf %36, %37 : vector<16x128xf32>
      %cst_29 = arith.constant 5.000000e-01 : f32
      %39 = vector.broadcast %cst_29 : f32 to vector<16x128xf32>
      %40 = arith.mulf %39, %38 : vector<16x128xf32>
      %41 = vector.extract_strided_slice %32 {offsets = [0, 128], sizes = [16, 128], strides = [1, 1]} : vector<16x512xf32> to vector<16x128xf32>
      %cst_30 = arith.constant 5.000000e-01 : f32
      %42 = vector.broadcast %cst_30 : f32 to vector<16x128xf32>
      %43 = arith.mulf %42, %41 : vector<16x128xf32>
      %44 = math.tanh %43 : vector<16x128xf32>
      %cst_31 = arith.constant 1.000000e+00 : f32
      %45 = vector.broadcast %cst_31 : f32 to vector<16x128xf32>
      %46 = arith.addf %44, %45 : vector<16x128xf32>
      %cst_32 = arith.constant 5.000000e-01 : f32
      %47 = vector.broadcast %cst_32 : f32 to vector<16x128xf32>
      %48 = arith.mulf %47, %46 : vector<16x128xf32>
      %49 = vector.extract_strided_slice %32 {offsets = [0, 256], sizes = [16, 128], strides = [1, 1]} : vector<16x512xf32> to vector<16x128xf32>
      %50 = math.tanh %49 : vector<16x128xf32>
      %51 = vector.extract_strided_slice %32 {offsets = [0, 384], sizes = [16, 128], strides = [1, 1]} : vector<16x512xf32> to vector<16x128xf32>
      %cst_33 = arith.constant 5.000000e-01 : f32
      %52 = vector.broadcast %cst_33 : f32 to vector<16x128xf32>
      %53 = arith.mulf %52, %51 : vector<16x128xf32>
      %54 = math.tanh %53 : vector<16x128xf32>
      %cst_34 = arith.constant 1.000000e+00 : f32
      %55 = vector.broadcast %cst_34 : f32 to vector<16x128xf32>
      %56 = arith.addf %54, %55 : vector<16x128xf32>
      %cst_35 = arith.constant 5.000000e-01 : f32
      %57 = vector.broadcast %cst_35 : f32 to vector<16x128xf32>
      %58 = arith.mulf %57, %56 : vector<16x128xf32>
      %59 = arith.mulf %48, %23 : vector<16x128xf32>
      %60 = arith.mulf %40, %50 : vector<16x128xf32>
      %61 = arith.addf %59, %60 : vector<16x128xf32>
      %62 = math.tanh %61 : vector<16x128xf32>
      %63 = arith.mulf %58, %62 : vector<16x128xf32>
      %64 = arith.index_cast %24 : i32 to index
      %c0_36 = arith.constant 0 : index
      %c0_37 = arith.constant 0 : index
      %65 = vector.load %arg6[%64, %c0_36, %c0_37] : memref<4x16x128xf32, #tpu.memory_space<vmem>>, vector<1x16x128xf32>
      %66 = vector.shape_cast %65 : vector<1x16x128xf32> to vector<16x128xf32>
      %67 = vector.shape_cast %63 : vector<16x128xf32> to vector<1x16x128xf32>
      tpu.vector_store %arg6[%64, %c0_36, %c0_37], %67 {strides = array<i32>} : memref<4x16x128xf32, #tpu.memory_space<vmem>>, vector<1x16x128xf32>,
      %c1_i32_38 = arith.constant 1 : i32
      %c3_i32_39 = arith.constant 3 : i32
      %68 = arith.subi %c3_i32_39, %c1_i32_38 : i32
      %69 = arith.index_cast %68 : i32 to index
      %c0_40 = arith.constant 0 : index
      %c0_41 = arith.constant 0 : index
      %70 = vector.load %arg7[%69, %c0_40, %c0_41] : memref<4x16x512xf32, #tpu.memory_space<vmem>>, vector<1x16x512xf32>
      %71 = vector.shape_cast %70 : vector<1x16x512xf32> to vector<16x512xf32>
      %72 = arith.truncf %63 : vector<16x128xf32> to vector<16x128xbf16>
      %c0_42 = arith.constant 0 : index
      %c0_43 = arith.constant 0 : index
      %c0_44 = arith.constant 0 : index
      %73 = vector.load %arg4[%c0_42, %c0_43, %c0_44] : memref<1x128x512xbf16, #tpu.memory_space<vmem>>, vector<1x128x512xbf16>
      %74 = vector.shape_cast %73 : vector<1x128x512xbf16> to vector<128x512xbf16>
      %cst_45 = arith.constant dense<0.000000e+00> : vector<16x512xf32>
      %75 = tpu.matmul %72, %74, %cst_45 {dimension_numbers = #tpu.dot_dimension_numbers<[1], [0], [0], [1], [0, 0, 1, 1], [], []>} : vector<16x128xbf16>, vector<128x512xbf16>, vector<16x512xf32> -> vector<16x512xf32>
      %76 = arith.addf %71, %75 : vector<16x512xf32>
      %77 = vector.extract_strided_slice %76 {offsets = [0, 0], sizes = [16, 128], strides = [1, 1]} : vector<16x512xf32> to vector<16x128xf32>
      %cst_46 = arith.constant 5.000000e-01 : f32
      %78 = vector.broadcast %cst_46 : f32 to vector<16x128xf32>
      %79 = arith.mulf %78, %77 : vector<16x128xf32>
      %80 = math.tanh %79 : vector<16x128xf32>
      %cst_47 = arith.constant 1.000000e+00 : f32
      %81 = vector.broadcast %cst_47 : f32 to vector<16x128xf32>
      %82 = arith.addf %80, %81 : vector<16x128xf32>
      %cst_48 = arith.constant 5.000000e-01 : f32
      %83 = vector.broadcast %cst_48 : f32 to vector<16x128xf32>
      %84 = arith.mulf %83, %82 : vector<16x128xf32>
      %85 = vector.extract_strided_slice %76 {offsets = [0, 128], sizes = [16, 128], strides = [1, 1]} : vector<16x512xf32> to vector<16x128xf32>
      %cst_49 = arith.constant 5.000000e-01 : f32
      %86 = vector.broadcast %cst_49 : f32 to vector<16x128xf32>
      %87 = arith.mulf %86, %85 : vector<16x128xf32>
      %88 = math.tanh %87 : vector<16x128xf32>
      %cst_50 = arith.constant 1.000000e+00 : f32
      %89 = vector.broadcast %cst_50 : f32 to vector<16x128xf32>
      %90 = arith.addf %88, %89 : vector<16x128xf32>
      %cst_51 = arith.constant 5.000000e-01 : f32
      %91 = vector.broadcast %cst_51 : f32 to vector<16x128xf32>
      %92 = arith.mulf %91, %90 : vector<16x128xf32>
      %93 = vector.extract_strided_slice %76 {offsets = [0, 256], sizes = [16, 128], strides = [1, 1]} : vector<16x512xf32> to vector<16x128xf32>
      %94 = math.tanh %93 : vector<16x128xf32>
      %95 = vector.extract_strided_slice %76 {offsets = [0, 384], sizes = [16, 128], strides = [1, 1]} : vector<16x512xf32> to vector<16x128xf32>
      %cst_52 = arith.constant 5.000000e-01 : f32
      %96 = vector.broadcast %cst_52 : f32 to vector<16x128xf32>
      %97 = arith.mulf %96, %95 : vector<16x128xf32>
      %98 = math.tanh %97 : vector<16x128xf32>
      %cst_53 = arith.constant 1.000000e+00 : f32
      %99 = vector.broadcast %cst_53 : f32 to vector<16x128xf32>
      %100 = arith.addf %98, %99 : vector<16x128xf32>
      %cst_54 = arith.constant 5.000000e-01 : f32
      %101 = vector.broadcast %cst_54 : f32 to vector<16x128xf32>
      %102 = arith.mulf %101, %100 : vector<16x128xf32>
      %103 = arith.mulf %92, %61 : vector<16x128xf32>
      %104 = arith.mulf %84, %94 : vector<16x128xf32>
      %105 = arith.addf %103, %104 : vector<16x128xf32>
      %106 = math.tanh %105 : vector<16x128xf32>
      %107 = arith.mulf %102, %106 : vector<16x128xf32>
      %108 = arith.index_cast %68 : i32 to index
      %c0_55 = arith.constant 0 : index
      %c0_56 = arith.constant 0 : index
      %109 = vector.load %arg6[%108, %c0_55, %c0_56] : memref<4x16x128xf32, #tpu.memory_space<vmem>>, vector<1x16x128xf32>
      %110 = vector.shape_cast %109 : vector<1x16x128xf32> to vector<16x128xf32>
      %111 = vector.shape_cast %107 : vector<16x128xf32> to vector<1x16x128xf32>
      tpu.vector_store %arg6[%108, %c0_55, %c0_56], %111 {strides = array<i32>} : memref<4x16x128xf32, #tpu.memory_space<vmem>>, vector<1x16x128xf32>,
      %c2_i32 = arith.constant 2 : i32
      %c3_i32_57 = arith.constant 3 : i32
      %112 = arith.subi %c3_i32_57, %c2_i32 : i32
      %113 = arith.index_cast %112 : i32 to index
      %c0_58 = arith.constant 0 : index
      %c0_59 = arith.constant 0 : index
      %114 = vector.load %arg7[%113, %c0_58, %c0_59] : memref<4x16x512xf32, #tpu.memory_space<vmem>>, vector<1x16x512xf32>
      %115 = vector.shape_cast %114 : vector<1x16x512xf32> to vector<16x512xf32>
      %116 = arith.truncf %107 : vector<16x128xf32> to vector<16x128xbf16>
      %c0_60 = arith.constant 0 : index
      %c0_61 = arith.constant 0 : index
      %c0_62 = arith.constant 0 : index
      %117 = vector.load %arg4[%c0_60, %c0_61, %c0_62] : memref<1x128x512xbf16, #tpu.memory_space<vmem>>, vector<1x128x512xbf16>
      %118 = vector.shape_cast %117 : vector<1x128x512xbf16> to vector<128x512xbf16>
      %cst_63 = arith.constant dense<0.000000e+00> : vector<16x512xf32>
      %119 = tpu.matmul %116, %118, %cst_63 {dimension_numbers = #tpu.dot_dimension_numbers<[1], [0], [0], [1], [0, 0, 1, 1], [], []>} : vector<16x128xbf16>, vector<128x512xbf16>, vector<16x512xf32> -> vector<16x512xf32>
      %120 = arith.addf %115, %119 : vector<16x512xf32>
      %121 = vector.extract_strided_slice %120 {offsets = [0, 0], sizes = [16, 128], strides = [1, 1]} : vector<16x512xf32> to vector<16x128xf32>
      %cst_64 = arith.constant 5.000000e-01 : f32
      %122 = vector.broadcast %cst_64 : f32 to vector<16x128xf32>
      %123 = arith.mulf %122, %121 : vector<16x128xf32>
      %124 = math.tanh %123 : vector<16x128xf32>
      %cst_65 = arith.constant 1.000000e+00 : f32
      %125 = vector.broadcast %cst_65 : f32 to vector<16x128xf32>
      %126 = arith.addf %124, %125 : vector<16x128xf32>
      %cst_66 = arith.constant 5.000000e-01 : f32
      %127 = vector.broadcast %cst_66 : f32 to vector<16x128xf32>
      %128 = arith.mulf %127, %126 : vector<16x128xf32>
      %129 = vector.extract_strided_slice %120 {offsets = [0, 128], sizes = [16, 128], strides = [1, 1]} : vector<16x512xf32> to vector<16x128xf32>
      %cst_67 = arith.constant 5.000000e-01 : f32
      %130 = vector.broadcast %cst_67 : f32 to vector<16x128xf32>
      %131 = arith.mulf %130, %129 : vector<16x128xf32>
      %132 = math.tanh %131 : vector<16x128xf32>
      %cst_68 = arith.constant 1.000000e+00 : f32
      %133 = vector.broadcast %cst_68 : f32 to vector<16x128xf32>
      %134 = arith.addf %132, %133 : vector<16x128xf32>
      %cst_69 = arith.constant 5.000000e-01 : f32
      %135 = vector.broadcast %cst_69 : f32 to vector<16x128xf32>
      %136 = arith.mulf %135, %134 : vector<16x128xf32>
      %137 = vector.extract_strided_slice %120 {offsets = [0, 256], sizes = [16, 128], strides = [1, 1]} : vector<16x512xf32> to vector<16x128xf32>
      %138 = math.tanh %137 : vector<16x128xf32>
      %139 = vector.extract_strided_slice %120 {offsets = [0, 384], sizes = [16, 128], strides = [1, 1]} : vector<16x512xf32> to vector<16x128xf32>
      %cst_70 = arith.constant 5.000000e-01 : f32
      %140 = vector.broadcast %cst_70 : f32 to vector<16x128xf32>
      %141 = arith.mulf %140, %139 : vector<16x128xf32>
      %142 = math.tanh %141 : vector<16x128xf32>
      %cst_71 = arith.constant 1.000000e+00 : f32
      %143 = vector.broadcast %cst_71 : f32 to vector<16x128xf32>
      %144 = arith.addf %142, %143 : vector<16x128xf32>
      %cst_72 = arith.constant 5.000000e-01 : f32
      %145 = vector.broadcast %cst_72 : f32 to vector<16x128xf32>
      %146 = arith.mulf %145, %144 : vector<16x128xf32>
      %147 = arith.mulf %136, %105 : vector<16x128xf32>
      %148 = arith.mulf %128, %138 : vector<16x128xf32>
      %149 = arith.addf %147, %148 : vector<16x128xf32>
      %150 = math.tanh %149 : vector<16x128xf32>
      %151 = arith.mulf %146, %150 : vector<16x128xf32>
      %152 = arith.index_cast %112 : i32 to index
      %c0_73 = arith.constant 0 : index
      %c0_74 = arith.constant 0 : index
      %153 = vector.load %arg6[%152, %c0_73, %c0_74] : memref<4x16x128xf32, #tpu.memory_space<vmem>>, vector<1x16x128xf32>
      %154 = vector.shape_cast %153 : vector<1x16x128xf32> to vector<16x128xf32>
      %155 = vector.shape_cast %151 : vector<16x128xf32> to vector<1x16x128xf32>
      tpu.vector_store %arg6[%152, %c0_73, %c0_74], %155 {strides = array<i32>} : memref<4x16x128xf32, #tpu.memory_space<vmem>>, vector<1x16x128xf32>,
      %c3_i32_75 = arith.constant 3 : i32
      %c3_i32_76 = arith.constant 3 : i32
      %156 = arith.subi %c3_i32_76, %c3_i32_75 : i32
      %157 = arith.index_cast %156 : i32 to index
      %c0_77 = arith.constant 0 : index
      %c0_78 = arith.constant 0 : index
      %158 = vector.load %arg7[%157, %c0_77, %c0_78] : memref<4x16x512xf32, #tpu.memory_space<vmem>>, vector<1x16x512xf32>
      %159 = vector.shape_cast %158 : vector<1x16x512xf32> to vector<16x512xf32>
      %160 = arith.truncf %151 : vector<16x128xf32> to vector<16x128xbf16>
      %c0_79 = arith.constant 0 : index
      %c0_80 = arith.constant 0 : index
      %c0_81 = arith.constant 0 : index
      %161 = vector.load %arg4[%c0_79, %c0_80, %c0_81] : memref<1x128x512xbf16, #tpu.memory_space<vmem>>, vector<1x128x512xbf16>
      %162 = vector.shape_cast %161 : vector<1x128x512xbf16> to vector<128x512xbf16>
      %cst_82 = arith.constant dense<0.000000e+00> : vector<16x512xf32>
      %163 = tpu.matmul %160, %162, %cst_82 {dimension_numbers = #tpu.dot_dimension_numbers<[1], [0], [0], [1], [0, 0, 1, 1], [], []>} : vector<16x128xbf16>, vector<128x512xbf16>, vector<16x512xf32> -> vector<16x512xf32>
      %164 = arith.addf %159, %163 : vector<16x512xf32>
      %165 = vector.extract_strided_slice %164 {offsets = [0, 0], sizes = [16, 128], strides = [1, 1]} : vector<16x512xf32> to vector<16x128xf32>
      %cst_83 = arith.constant 5.000000e-01 : f32
      %166 = vector.broadcast %cst_83 : f32 to vector<16x128xf32>
      %167 = arith.mulf %166, %165 : vector<16x128xf32>
      %168 = math.tanh %167 : vector<16x128xf32>
      %cst_84 = arith.constant 1.000000e+00 : f32
      %169 = vector.broadcast %cst_84 : f32 to vector<16x128xf32>
      %170 = arith.addf %168, %169 : vector<16x128xf32>
      %cst_85 = arith.constant 5.000000e-01 : f32
      %171 = vector.broadcast %cst_85 : f32 to vector<16x128xf32>
      %172 = arith.mulf %171, %170 : vector<16x128xf32>
      %173 = vector.extract_strided_slice %164 {offsets = [0, 128], sizes = [16, 128], strides = [1, 1]} : vector<16x512xf32> to vector<16x128xf32>
      %cst_86 = arith.constant 5.000000e-01 : f32
      %174 = vector.broadcast %cst_86 : f32 to vector<16x128xf32>
      %175 = arith.mulf %174, %173 : vector<16x128xf32>
      %176 = math.tanh %175 : vector<16x128xf32>
      %cst_87 = arith.constant 1.000000e+00 : f32
      %177 = vector.broadcast %cst_87 : f32 to vector<16x128xf32>
      %178 = arith.addf %176, %177 : vector<16x128xf32>
      %cst_88 = arith.constant 5.000000e-01 : f32
      %179 = vector.broadcast %cst_88 : f32 to vector<16x128xf32>
      %180 = arith.mulf %179, %178 : vector<16x128xf32>
      %181 = vector.extract_strided_slice %164 {offsets = [0, 256], sizes = [16, 128], strides = [1, 1]} : vector<16x512xf32> to vector<16x128xf32>
      %182 = math.tanh %181 : vector<16x128xf32>
      %183 = vector.extract_strided_slice %164 {offsets = [0, 384], sizes = [16, 128], strides = [1, 1]} : vector<16x512xf32> to vector<16x128xf32>
      %cst_89 = arith.constant 5.000000e-01 : f32
      %184 = vector.broadcast %cst_89 : f32 to vector<16x128xf32>
      %185 = arith.mulf %184, %183 : vector<16x128xf32>
      %186 = math.tanh %185 : vector<16x128xf32>
      %cst_90 = arith.constant 1.000000e+00 : f32
      %187 = vector.broadcast %cst_90 : f32 to vector<16x128xf32>
      %188 = arith.addf %186, %187 : vector<16x128xf32>
      %cst_91 = arith.constant 5.000000e-01 : f32
      %189 = vector.broadcast %cst_91 : f32 to vector<16x128xf32>
      %190 = arith.mulf %189, %188 : vector<16x128xf32>
      %191 = arith.mulf %180, %149 : vector<16x128xf32>
      %192 = arith.mulf %172, %182 : vector<16x128xf32>
      %193 = arith.addf %191, %192 : vector<16x128xf32>
      %194 = math.tanh %193 : vector<16x128xf32>
      %195 = arith.mulf %190, %194 : vector<16x128xf32>
      %196 = arith.index_cast %156 : i32 to index
      %c0_92 = arith.constant 0 : index
      %c0_93 = arith.constant 0 : index
      %197 = vector.load %arg6[%196, %c0_92, %c0_93] : memref<4x16x128xf32, #tpu.memory_space<vmem>>, vector<1x16x128xf32>
      %198 = vector.shape_cast %197 : vector<1x16x128xf32> to vector<16x128xf32>
      %199 = vector.shape_cast %195 : vector<16x128xf32> to vector<1x16x128xf32>
      tpu.vector_store %arg6[%196, %c0_92, %c0_93], %199 {strides = array<i32>} : memref<4x16x128xf32, #tpu.memory_space<vmem>>, vector<1x16x128xf32>,
      %c4_i32 = arith.constant 4 : i32
      %c1_94 = arith.constant 1 : index
      %c0_95 = arith.constant 0 : index
      %c0_96 = arith.constant 0 : index
      %200 = vector.load %arg8[%c1_94, %c0_95, %c0_96] : memref<2x16x128xf32, #tpu.memory_space<vmem>>, vector<1x16x128xf32>
      %201 = vector.shape_cast %200 : vector<1x16x128xf32> to vector<16x128xf32>
      %202 = vector.shape_cast %195 : vector<16x128xf32> to vector<1x16x128xf32>
      tpu.vector_store %arg8[%c1_94, %c0_95, %c0_96], %202 {strides = array<i32>} : memref<2x16x128xf32, #tpu.memory_space<vmem>>, vector<1x16x128xf32>,
      %c1_97 = arith.constant 1 : index
      %c0_98 = arith.constant 0 : index
      %c0_99 = arith.constant 0 : index
      %203 = vector.load %arg9[%c1_97, %c0_98, %c0_99] : memref<2x16x128xf32, #tpu.memory_space<vmem>>, vector<1x16x128xf32>
      %204 = vector.shape_cast %203 : vector<1x16x128xf32> to vector<16x128xf32>
      %205 = vector.shape_cast %193 : vector<16x128xf32> to vector<1x16x128xf32>
      tpu.vector_store %arg9[%c1_97, %c0_98, %c0_99], %205 {strides = array<i32>} : memref<2x16x128xf32, #tpu.memory_space<vmem>>, vector<1x16x128xf32>,
    } else {
    }
    return
  }
  func.func @transform_0(%arg0: i32, %arg1: i32) -> (i32, i32, i32) {
    %c2_i32 = arith.constant 2 : i32
    %0 = arith.muli %c2_i32, %arg0 : i32
    %c1_i32 = arith.constant 1 : i32
    %1 = arith.subi %c1_i32, %0 : i32
    %2 = arith.muli %arg1, %1 : i32
    %c1_i32_0 = arith.constant 1 : i32
    %3 = arith.muli %arg0, %c1_i32_0 : i32
    %4 = arith.addi %2, %3 : i32
    %c0_i32 = arith.constant 0 : i32
    %c0_i32_1 = arith.constant 0 : i32
    %c0_i32_2 = arith.constant 0 : i32
    return %4, %c0_i32, %c0_i32_1 : i32, i32, i32
  }
  func.func @transform_1(%arg0: i32, %arg1: i32) -> (i32, i32, i32) {
    %c0_i32 = arith.constant 0 : i32
    %c0_i32_0 = arith.constant 0 : i32
    %c0_i32_1 = arith.constant 0 : i32
    return %arg0, %c0_i32, %c0_i32_0 : i32, i32, i32
  }
  func.func @transform_2(%arg0: i32, %arg1: i32) -> (i32, i32, i32) {
    %c0_i32 = arith.constant 0 : i32
    %c0_i32_0 = arith.constant 0 : i32
    %c0_i32_1 = arith.constant 0 : i32
    return %arg0, %c0_i32, %c0_i32_0 : i32, i32, i32
  }
  func.func @transform_3(%arg0: i32, %arg1: i32) -> (i32, i32, i32) {
    %c0_i32 = arith.constant 0 : i32
    %c0_i32_0 = arith.constant 0 : i32
    %c0_i32_1 = arith.constant 0 : i32
    return %arg0, %c0_i32, %c0_i32_0 : i32, i32, i32
  }
  func.func @transform_4(%arg0: i32, %arg1: i32) -> (i32, i32, i32) {
    %c2_i32 = arith.constant 2 : i32
    %0 = arith.muli %c2_i32, %arg0 : i32
    %c1_i32 = arith.constant 1 : i32
    %1 = arith.subi %c1_i32, %0 : i32
    %2 = arith.muli %arg1, %1 : i32
    %c1_i32_0 = arith.constant 1 : i32
    %3 = arith.muli %arg0, %c1_i32_0 : i32
    %4 = arith.addi %2, %3 : i32
    %c0_i32 = arith.constant 0 : i32
    %c0_i32_1 = arith.constant 0 : i32
    return %4, %c0_i32, %arg0 : i32, i32, i32
  }
}

module attributes {stable_mosaic.version = 11 : i64} {
  func.func @_bilstm_fused_kernel(%arg0: i32, %arg1: i32, %arg2: memref<4x16x16xf32, #tpu.memory_space<vmem>>, %arg3: memref<1x16x512xbf16, #tpu.memory_space<vmem>>, %arg4: memref<1x128x512xbf16, #tpu.memory_space<vmem>>, %arg5: memref<1x1x512xf32, #tpu.memory_space<vmem>>, %arg6: memref<4x16x128xbf16, #tpu.memory_space<vmem>>, %arg7: memref<4x16x512xf32, #tpu.memory_space<vmem>>, %arg8: memref<2x16x128xf32, #tpu.memory_space<vmem>>, %arg9: memref<2x16x128xf32, #tpu.memory_space<vmem>>) attributes {dimension_semantics = [#tpu.dimension_semantics<parallel>, #tpu.dimension_semantics<arbitrary>], iteration_bounds = array<i64: 2, 2>, scalar_prefetch = 0 : i64, scratch_operands = 3 : i64, tpu.core_type = #tpu.core_type<tc>, window_params = [{transform_indices = @transform_0, window_bounds = array<i64: 4, 16, 16>}, {transform_indices = @transform_1, window_bounds = array<i64: 1, 16, 512>}, {transform_indices = @transform_2, window_bounds = array<i64: 1, 128, 512>}, {transform_indices = @transform_3, window_bounds = array<i64: 1, 1, 512>}, {transform_indices = @transform_4, window_bounds = array<i64: 4, 16, 128>}]} {
    %c0 = arith.constant 0 : index
    %c0_0 = arith.constant 0 : index
    %c0_1 = arith.constant 0 : index
    %0 = vector.load %arg2[%c0, %c0_0, %c0_1] : memref<4x16x16xf32, #tpu.memory_space<vmem>>, vector<4x16x16xf32>
    %1 = vector.shape_cast %0 : vector<4x16x16xf32> to vector<64x16xf32>
    %2 = arith.truncf %1 : vector<64x16xf32> to vector<64x16xbf16>
    %c0_2 = arith.constant 0 : index
    %c0_3 = arith.constant 0 : index
    %c0_4 = arith.constant 0 : index
    %3 = vector.load %arg3[%c0_2, %c0_3, %c0_4] : memref<1x16x512xbf16, #tpu.memory_space<vmem>>, vector<1x16x512xbf16>
    %4 = vector.shape_cast %3 : vector<1x16x512xbf16> to vector<16x512xbf16>
    %cst = arith.constant dense<0.000000e+00> : vector<64x512xf32>
    %5 = tpu.matmul %2, %4, %cst {dimension_numbers = #tpu.dot_dimension_numbers<[1], [0], [0], [1], [0, 0, 1, 1], [], []>} : vector<64x16xbf16>, vector<16x512xbf16>, vector<64x512xf32> -> vector<64x512xf32>
    %c0_5 = arith.constant 0 : index
    %c0_6 = arith.constant 0 : index
    %c0_7 = arith.constant 0 : index
    %6 = vector.load %arg5[%c0_5, %c0_6, %c0_7] : memref<1x1x512xf32, #tpu.memory_space<vmem>>, vector<1x1x512xf32>
    %7 = vector.shape_cast %6 : vector<1x1x512xf32> to vector<1x512xf32>
    %8 = vector.broadcast %7 : vector<1x512xf32> to vector<64x512xf32>
    %9 = arith.addf %5, %8 : vector<64x512xf32>
    %10 = vector.shape_cast %9 : vector<64x512xf32> to vector<4x16x512xf32>
    %c0_8 = arith.constant 0 : index
    %c0_9 = arith.constant 0 : index
    %c0_10 = arith.constant 0 : index
    %11 = vector.load %arg7[%c0_8, %c0_9, %c0_10] : memref<4x16x512xf32, #tpu.memory_space<vmem>>, vector<4x16x512xf32>
    tpu.vector_store %arg7[%c0_8, %c0_9, %c0_10], %10 {strides = array<i32>} : memref<4x16x512xf32, #tpu.memory_space<vmem>>, vector<4x16x512xf32>,
    %c0_i32 = arith.constant 0 : i32
    %12 = arith.cmpi eq, %arg0, %c0_i32 : i32
    %13 = arith.extui %12 : i1 to i32
    %c0_i32_11 = arith.constant 0 : i32
    %14 = arith.cmpi ne, %13, %c0_i32_11 : i32
    scf.if %14 {
      %c0_i32_13 = arith.constant 0 : i32
      %18 = arith.cmpi eq, %arg1, %c0_i32_13 : i32
      %19 = arith.extui %18 : i1 to i32
      %c0_i32_14 = arith.constant 0 : i32
      %20 = arith.cmpi ne, %19, %c0_i32_14 : i32
      scf.if %20 {
        %cst_97 = arith.constant 0.000000e+00 : f32
        %207 = vector.broadcast %cst_97 : f32 to vector<16x128xf32>
        %c0_98 = arith.constant 0 : index
        %c0_99 = arith.constant 0 : index
        %c0_100 = arith.constant 0 : index
        %208 = vector.load %arg8[%c0_98, %c0_99, %c0_100] : memref<2x16x128xf32, #tpu.memory_space<vmem>>, vector<1x16x128xf32>
        %209 = vector.shape_cast %208 : vector<1x16x128xf32> to vector<16x128xf32>
        %210 = vector.shape_cast %207 : vector<16x128xf32> to vector<1x16x128xf32>
        tpu.vector_store %arg8[%c0_98, %c0_99, %c0_100], %210 {strides = array<i32>} : memref<2x16x128xf32, #tpu.memory_space<vmem>>, vector<1x16x128xf32>,
        %cst_101 = arith.constant 0.000000e+00 : f32
        %211 = vector.broadcast %cst_101 : f32 to vector<16x128xf32>
        %c0_102 = arith.constant 0 : index
        %c0_103 = arith.constant 0 : index
        %c0_104 = arith.constant 0 : index
        %212 = vector.load %arg9[%c0_102, %c0_103, %c0_104] : memref<2x16x128xf32, #tpu.memory_space<vmem>>, vector<1x16x128xf32>
        %213 = vector.shape_cast %212 : vector<1x16x128xf32> to vector<16x128xf32>
        %214 = vector.shape_cast %211 : vector<16x128xf32> to vector<1x16x128xf32>
        tpu.vector_store %arg9[%c0_102, %c0_103, %c0_104], %214 {strides = array<i32>} : memref<2x16x128xf32, #tpu.memory_space<vmem>>, vector<1x16x128xf32>,
      } else {
      }
      %c0_15 = arith.constant 0 : index
      %c0_16 = arith.constant 0 : index
      %c0_17 = arith.constant 0 : index
      %21 = vector.load %arg8[%c0_15, %c0_16, %c0_17] : memref<2x16x128xf32, #tpu.memory_space<vmem>>, vector<1x16x128xf32>
      %22 = vector.shape_cast %21 : vector<1x16x128xf32> to vector<16x128xf32>
      %c0_18 = arith.constant 0 : index
      %c0_19 = arith.constant 0 : index
      %c0_20 = arith.constant 0 : index
      %23 = vector.load %arg9[%c0_18, %c0_19, %c0_20] : memref<2x16x128xf32, #tpu.memory_space<vmem>>, vector<1x16x128xf32>
      %24 = vector.shape_cast %23 : vector<1x16x128xf32> to vector<16x128xf32>
      %c0_i32_21 = arith.constant 0 : i32
      %25 = arith.index_cast %c0_i32_21 : i32 to index
      %c0_22 = arith.constant 0 : index
      %c0_23 = arith.constant 0 : index
      %26 = vector.load %arg7[%25, %c0_22, %c0_23] : memref<4x16x512xf32, #tpu.memory_space<vmem>>, vector<1x16x512xf32>
      %27 = vector.shape_cast %26 : vector<1x16x512xf32> to vector<16x512xf32>
      %28 = arith.truncf %22 : vector<16x128xf32> to vector<16x128xbf16>
      %c0_24 = arith.constant 0 : index
      %c0_25 = arith.constant 0 : index
      %c0_26 = arith.constant 0 : index
      %29 = vector.load %arg4[%c0_24, %c0_25, %c0_26] : memref<1x128x512xbf16, #tpu.memory_space<vmem>>, vector<1x128x512xbf16>
      %30 = vector.shape_cast %29 : vector<1x128x512xbf16> to vector<128x512xbf16>
      %cst_27 = arith.constant dense<0.000000e+00> : vector<16x512xf32>
      %31 = tpu.matmul %28, %30, %cst_27 {dimension_numbers = #tpu.dot_dimension_numbers<[1], [0], [0], [1], [0, 0, 1, 1], [], []>} : vector<16x128xbf16>, vector<128x512xbf16>, vector<16x512xf32> -> vector<16x512xf32>
      %32 = arith.addf %27, %31 : vector<16x512xf32>
      %33 = vector.extract_strided_slice %32 {offsets = [0, 0], sizes = [16, 128], strides = [1, 1]} : vector<16x512xf32> to vector<16x128xf32>
      %cst_28 = arith.constant 5.000000e-01 : f32
      %34 = vector.broadcast %cst_28 : f32 to vector<16x128xf32>
      %35 = arith.mulf %34, %33 : vector<16x128xf32>
      %36 = math.tanh %35 : vector<16x128xf32>
      %cst_29 = arith.constant 1.000000e+00 : f32
      %37 = vector.broadcast %cst_29 : f32 to vector<16x128xf32>
      %38 = arith.addf %36, %37 : vector<16x128xf32>
      %cst_30 = arith.constant 5.000000e-01 : f32
      %39 = vector.broadcast %cst_30 : f32 to vector<16x128xf32>
      %40 = arith.mulf %39, %38 : vector<16x128xf32>
      %41 = vector.extract_strided_slice %32 {offsets = [0, 128], sizes = [16, 128], strides = [1, 1]} : vector<16x512xf32> to vector<16x128xf32>
      %cst_31 = arith.constant 5.000000e-01 : f32
      %42 = vector.broadcast %cst_31 : f32 to vector<16x128xf32>
      %43 = arith.mulf %42, %41 : vector<16x128xf32>
      %44 = math.tanh %43 : vector<16x128xf32>
      %cst_32 = arith.constant 1.000000e+00 : f32
      %45 = vector.broadcast %cst_32 : f32 to vector<16x128xf32>
      %46 = arith.addf %44, %45 : vector<16x128xf32>
      %cst_33 = arith.constant 5.000000e-01 : f32
      %47 = vector.broadcast %cst_33 : f32 to vector<16x128xf32>
      %48 = arith.mulf %47, %46 : vector<16x128xf32>
      %49 = vector.extract_strided_slice %32 {offsets = [0, 256], sizes = [16, 128], strides = [1, 1]} : vector<16x512xf32> to vector<16x128xf32>
      %50 = math.tanh %49 : vector<16x128xf32>
      %51 = vector.extract_strided_slice %32 {offsets = [0, 384], sizes = [16, 128], strides = [1, 1]} : vector<16x512xf32> to vector<16x128xf32>
      %cst_34 = arith.constant 5.000000e-01 : f32
      %52 = vector.broadcast %cst_34 : f32 to vector<16x128xf32>
      %53 = arith.mulf %52, %51 : vector<16x128xf32>
      %54 = math.tanh %53 : vector<16x128xf32>
      %cst_35 = arith.constant 1.000000e+00 : f32
      %55 = vector.broadcast %cst_35 : f32 to vector<16x128xf32>
      %56 = arith.addf %54, %55 : vector<16x128xf32>
      %cst_36 = arith.constant 5.000000e-01 : f32
      %57 = vector.broadcast %cst_36 : f32 to vector<16x128xf32>
      %58 = arith.mulf %57, %56 : vector<16x128xf32>
      %59 = arith.mulf %48, %24 : vector<16x128xf32>
      %60 = arith.mulf %40, %50 : vector<16x128xf32>
      %61 = arith.addf %59, %60 : vector<16x128xf32>
      %62 = math.tanh %61 : vector<16x128xf32>
      %63 = arith.mulf %58, %62 : vector<16x128xf32>
      %64 = arith.truncf %63 : vector<16x128xf32> to vector<16x128xbf16>
      %65 = arith.index_cast %c0_i32_21 : i32 to index
      %c0_37 = arith.constant 0 : index
      %c0_38 = arith.constant 0 : index
      %66 = vector.load %arg6[%65, %c0_37, %c0_38] : memref<4x16x128xbf16, #tpu.memory_space<vmem>>, vector<1x16x128xbf16>
      %67 = vector.shape_cast %66 : vector<1x16x128xbf16> to vector<16x128xbf16>
      %68 = vector.shape_cast %64 : vector<16x128xbf16> to vector<1x16x128xbf16>
      tpu.vector_store %arg6[%65, %c0_37, %c0_38], %68 {strides = array<i32>} : memref<4x16x128xbf16, #tpu.memory_space<vmem>>, vector<1x16x128xbf16>,
      %c1_i32_39 = arith.constant 1 : i32
      %69 = arith.index_cast %c1_i32_39 : i32 to index
      %c0_40 = arith.constant 0 : index
      %c0_41 = arith.constant 0 : index
      %70 = vector.load %arg7[%69, %c0_40, %c0_41] : memref<4x16x512xf32, #tpu.memory_space<vmem>>, vector<1x16x512xf32>
      %71 = vector.shape_cast %70 : vector<1x16x512xf32> to vector<16x512xf32>
      %72 = arith.truncf %63 : vector<16x128xf32> to vector<16x128xbf16>
      %c0_42 = arith.constant 0 : index
      %c0_43 = arith.constant 0 : index
      %c0_44 = arith.constant 0 : index
      %73 = vector.load %arg4[%c0_42, %c0_43, %c0_44] : memref<1x128x512xbf16, #tpu.memory_space<vmem>>, vector<1x128x512xbf16>
      %74 = vector.shape_cast %73 : vector<1x128x512xbf16> to vector<128x512xbf16>
      %cst_45 = arith.constant dense<0.000000e+00> : vector<16x512xf32>
      %75 = tpu.matmul %72, %74, %cst_45 {dimension_numbers = #tpu.dot_dimension_numbers<[1], [0], [0], [1], [0, 0, 1, 1], [], []>} : vector<16x128xbf16>, vector<128x512xbf16>, vector<16x512xf32> -> vector<16x512xf32>
      %76 = arith.addf %71, %75 : vector<16x512xf32>
      %77 = vector.extract_strided_slice %76 {offsets = [0, 0], sizes = [16, 128], strides = [1, 1]} : vector<16x512xf32> to vector<16x128xf32>
      %cst_46 = arith.constant 5.000000e-01 : f32
      %78 = vector.broadcast %cst_46 : f32 to vector<16x128xf32>
      %79 = arith.mulf %78, %77 : vector<16x128xf32>
      %80 = math.tanh %79 : vector<16x128xf32>
      %cst_47 = arith.constant 1.000000e+00 : f32
      %81 = vector.broadcast %cst_47 : f32 to vector<16x128xf32>
      %82 = arith.addf %80, %81 : vector<16x128xf32>
      %cst_48 = arith.constant 5.000000e-01 : f32
      %83 = vector.broadcast %cst_48 : f32 to vector<16x128xf32>
      %84 = arith.mulf %83, %82 : vector<16x128xf32>
      %85 = vector.extract_strided_slice %76 {offsets = [0, 128], sizes = [16, 128], strides = [1, 1]} : vector<16x512xf32> to vector<16x128xf32>
      %cst_49 = arith.constant 5.000000e-01 : f32
      %86 = vector.broadcast %cst_49 : f32 to vector<16x128xf32>
      %87 = arith.mulf %86, %85 : vector<16x128xf32>
      %88 = math.tanh %87 : vector<16x128xf32>
      %cst_50 = arith.constant 1.000000e+00 : f32
      %89 = vector.broadcast %cst_50 : f32 to vector<16x128xf32>
      %90 = arith.addf %88, %89 : vector<16x128xf32>
      %cst_51 = arith.constant 5.000000e-01 : f32
      %91 = vector.broadcast %cst_51 : f32 to vector<16x128xf32>
      %92 = arith.mulf %91, %90 : vector<16x128xf32>
      %93 = vector.extract_strided_slice %76 {offsets = [0, 256], sizes = [16, 128], strides = [1, 1]} : vector<16x512xf32> to vector<16x128xf32>
      %94 = math.tanh %93 : vector<16x128xf32>
      %95 = vector.extract_strided_slice %76 {offsets = [0, 384], sizes = [16, 128], strides = [1, 1]} : vector<16x512xf32> to vector<16x128xf32>
      %cst_52 = arith.constant 5.000000e-01 : f32
      %96 = vector.broadcast %cst_52 : f32 to vector<16x128xf32>
      %97 = arith.mulf %96, %95 : vector<16x128xf32>
      %98 = math.tanh %97 : vector<16x128xf32>
      %cst_53 = arith.constant 1.000000e+00 : f32
      %99 = vector.broadcast %cst_53 : f32 to vector<16x128xf32>
      %100 = arith.addf %98, %99 : vector<16x128xf32>
      %cst_54 = arith.constant 5.000000e-01 : f32
      %101 = vector.broadcast %cst_54 : f32 to vector<16x128xf32>
      %102 = arith.mulf %101, %100 : vector<16x128xf32>
      %103 = arith.mulf %92, %61 : vector<16x128xf32>
      %104 = arith.mulf %84, %94 : vector<16x128xf32>
      %105 = arith.addf %103, %104 : vector<16x128xf32>
      %106 = math.tanh %105 : vector<16x128xf32>
      %107 = arith.mulf %102, %106 : vector<16x128xf32>
      %108 = arith.truncf %107 : vector<16x128xf32> to vector<16x128xbf16>
      %109 = arith.index_cast %c1_i32_39 : i32 to index
      %c0_55 = arith.constant 0 : index
      %c0_56 = arith.constant 0 : index
      %110 = vector.load %arg6[%109, %c0_55, %c0_56] : memref<4x16x128xbf16, #tpu.memory_space<vmem>>, vector<1x16x128xbf16>
      %111 = vector.shape_cast %110 : vector<1x16x128xbf16> to vector<16x128xbf16>
      %112 = vector.shape_cast %108 : vector<16x128xbf16> to vector<1x16x128xbf16>
      tpu.vector_store %arg6[%109, %c0_55, %c0_56], %112 {strides = array<i32>} : memref<4x16x128xbf16, #tpu.memory_space<vmem>>, vector<1x16x128xbf16>,
      %c2_i32 = arith.constant 2 : i32
      %113 = arith.index_cast %c2_i32 : i32 to index
      %c0_57 = arith.constant 0 : index
      %c0_58 = arith.constant 0 : index
      %114 = vector.load %arg7[%113, %c0_57, %c0_58] : memref<4x16x512xf32, #tpu.memory_space<vmem>>, vector<1x16x512xf32>
      %115 = vector.shape_cast %114 : vector<1x16x512xf32> to vector<16x512xf32>
      %116 = arith.truncf %107 : vector<16x128xf32> to vector<16x128xbf16>
      %c0_59 = arith.constant 0 : index
      %c0_60 = arith.constant 0 : index
      %c0_61 = arith.constant 0 : index
      %117 = vector.load %arg4[%c0_59, %c0_60, %c0_61] : memref<1x128x512xbf16, #tpu.memory_space<vmem>>, vector<1x128x512xbf16>
      %118 = vector.shape_cast %117 : vector<1x128x512xbf16> to vector<128x512xbf16>
      %cst_62 = arith.constant dense<0.000000e+00> : vector<16x512xf32>
      %119 = tpu.matmul %116, %118, %cst_62 {dimension_numbers = #tpu.dot_dimension_numbers<[1], [0], [0], [1], [0, 0, 1, 1], [], []>} : vector<16x128xbf16>, vector<128x512xbf16>, vector<16x512xf32> -> vector<16x512xf32>
      %120 = arith.addf %115, %119 : vector<16x512xf32>
      %121 = vector.extract_strided_slice %120 {offsets = [0, 0], sizes = [16, 128], strides = [1, 1]} : vector<16x512xf32> to vector<16x128xf32>
      %cst_63 = arith.constant 5.000000e-01 : f32
      %122 = vector.broadcast %cst_63 : f32 to vector<16x128xf32>
      %123 = arith.mulf %122, %121 : vector<16x128xf32>
      %124 = math.tanh %123 : vector<16x128xf32>
      %cst_64 = arith.constant 1.000000e+00 : f32
      %125 = vector.broadcast %cst_64 : f32 to vector<16x128xf32>
      %126 = arith.addf %124, %125 : vector<16x128xf32>
      %cst_65 = arith.constant 5.000000e-01 : f32
      %127 = vector.broadcast %cst_65 : f32 to vector<16x128xf32>
      %128 = arith.mulf %127, %126 : vector<16x128xf32>
      %129 = vector.extract_strided_slice %120 {offsets = [0, 128], sizes = [16, 128], strides = [1, 1]} : vector<16x512xf32> to vector<16x128xf32>
      %cst_66 = arith.constant 5.000000e-01 : f32
      %130 = vector.broadcast %cst_66 : f32 to vector<16x128xf32>
      %131 = arith.mulf %130, %129 : vector<16x128xf32>
      %132 = math.tanh %131 : vector<16x128xf32>
      %cst_67 = arith.constant 1.000000e+00 : f32
      %133 = vector.broadcast %cst_67 : f32 to vector<16x128xf32>
      %134 = arith.addf %132, %133 : vector<16x128xf32>
      %cst_68 = arith.constant 5.000000e-01 : f32
      %135 = vector.broadcast %cst_68 : f32 to vector<16x128xf32>
      %136 = arith.mulf %135, %134 : vector<16x128xf32>
      %137 = vector.extract_strided_slice %120 {offsets = [0, 256], sizes = [16, 128], strides = [1, 1]} : vector<16x512xf32> to vector<16x128xf32>
      %138 = math.tanh %137 : vector<16x128xf32>
      %139 = vector.extract_strided_slice %120 {offsets = [0, 384], sizes = [16, 128], strides = [1, 1]} : vector<16x512xf32> to vector<16x128xf32>
      %cst_69 = arith.constant 5.000000e-01 : f32
      %140 = vector.broadcast %cst_69 : f32 to vector<16x128xf32>
      %141 = arith.mulf %140, %139 : vector<16x128xf32>
      %142 = math.tanh %141 : vector<16x128xf32>
      %cst_70 = arith.constant 1.000000e+00 : f32
      %143 = vector.broadcast %cst_70 : f32 to vector<16x128xf32>
      %144 = arith.addf %142, %143 : vector<16x128xf32>
      %cst_71 = arith.constant 5.000000e-01 : f32
      %145 = vector.broadcast %cst_71 : f32 to vector<16x128xf32>
      %146 = arith.mulf %145, %144 : vector<16x128xf32>
      %147 = arith.mulf %136, %105 : vector<16x128xf32>
      %148 = arith.mulf %128, %138 : vector<16x128xf32>
      %149 = arith.addf %147, %148 : vector<16x128xf32>
      %150 = math.tanh %149 : vector<16x128xf32>
      %151 = arith.mulf %146, %150 : vector<16x128xf32>
      %152 = arith.truncf %151 : vector<16x128xf32> to vector<16x128xbf16>
      %153 = arith.index_cast %c2_i32 : i32 to index
      %c0_72 = arith.constant 0 : index
      %c0_73 = arith.constant 0 : index
      %154 = vector.load %arg6[%153, %c0_72, %c0_73] : memref<4x16x128xbf16, #tpu.memory_space<vmem>>, vector<1x16x128xbf16>
      %155 = vector.shape_cast %154 : vector<1x16x128xbf16> to vector<16x128xbf16>
      %156 = vector.shape_cast %152 : vector<16x128xbf16> to vector<1x16x128xbf16>
      tpu.vector_store %arg6[%153, %c0_72, %c0_73], %156 {strides = array<i32>} : memref<4x16x128xbf16, #tpu.memory_space<vmem>>, vector<1x16x128xbf16>,
      %c3_i32 = arith.constant 3 : i32
      %157 = arith.index_cast %c3_i32 : i32 to index
      %c0_74 = arith.constant 0 : index
      %c0_75 = arith.constant 0 : index
      %158 = vector.load %arg7[%157, %c0_74, %c0_75] : memref<4x16x512xf32, #tpu.memory_space<vmem>>, vector<1x16x512xf32>
      %159 = vector.shape_cast %158 : vector<1x16x512xf32> to vector<16x512xf32>
      %160 = arith.truncf %151 : vector<16x128xf32> to vector<16x128xbf16>
      %c0_76 = arith.constant 0 : index
      %c0_77 = arith.constant 0 : index
      %c0_78 = arith.constant 0 : index
      %161 = vector.load %arg4[%c0_76, %c0_77, %c0_78] : memref<1x128x512xbf16, #tpu.memory_space<vmem>>, vector<1x128x512xbf16>
      %162 = vector.shape_cast %161 : vector<1x128x512xbf16> to vector<128x512xbf16>
      %cst_79 = arith.constant dense<0.000000e+00> : vector<16x512xf32>
      %163 = tpu.matmul %160, %162, %cst_79 {dimension_numbers = #tpu.dot_dimension_numbers<[1], [0], [0], [1], [0, 0, 1, 1], [], []>} : vector<16x128xbf16>, vector<128x512xbf16>, vector<16x512xf32> -> vector<16x512xf32>
      %164 = arith.addf %159, %163 : vector<16x512xf32>
      %165 = vector.extract_strided_slice %164 {offsets = [0, 0], sizes = [16, 128], strides = [1, 1]} : vector<16x512xf32> to vector<16x128xf32>
      %cst_80 = arith.constant 5.000000e-01 : f32
      %166 = vector.broadcast %cst_80 : f32 to vector<16x128xf32>
      %167 = arith.mulf %166, %165 : vector<16x128xf32>
      %168 = math.tanh %167 : vector<16x128xf32>
      %cst_81 = arith.constant 1.000000e+00 : f32
      %169 = vector.broadcast %cst_81 : f32 to vector<16x128xf32>
      %170 = arith.addf %168, %169 : vector<16x128xf32>
      %cst_82 = arith.constant 5.000000e-01 : f32
      %171 = vector.broadcast %cst_82 : f32 to vector<16x128xf32>
      %172 = arith.mulf %171, %170 : vector<16x128xf32>
      %173 = vector.extract_strided_slice %164 {offsets = [0, 128], sizes = [16, 128], strides = [1, 1]} : vector<16x512xf32> to vector<16x128xf32>
      %cst_83 = arith.constant 5.000000e-01 : f32
      %174 = vector.broadcast %cst_83 : f32 to vector<16x128xf32>
      %175 = arith.mulf %174, %173 : vector<16x128xf32>
      %176 = math.tanh %175 : vector<16x128xf32>
      %cst_84 = arith.constant 1.000000e+00 : f32
      %177 = vector.broadcast %cst_84 : f32 to vector<16x128xf32>
      %178 = arith.addf %176, %177 : vector<16x128xf32>
      %cst_85 = arith.constant 5.000000e-01 : f32
      %179 = vector.broadcast %cst_85 : f32 to vector<16x128xf32>
      %180 = arith.mulf %179, %178 : vector<16x128xf32>
      %181 = vector.extract_strided_slice %164 {offsets = [0, 256], sizes = [16, 128], strides = [1, 1]} : vector<16x512xf32> to vector<16x128xf32>
      %182 = math.tanh %181 : vector<16x128xf32>
      %183 = vector.extract_strided_slice %164 {offsets = [0, 384], sizes = [16, 128], strides = [1, 1]} : vector<16x512xf32> to vector<16x128xf32>
      %cst_86 = arith.constant 5.000000e-01 : f32
      %184 = vector.broadcast %cst_86 : f32 to vector<16x128xf32>
      %185 = arith.mulf %184, %183 : vector<16x128xf32>
      %186 = math.tanh %185 : vector<16x128xf32>
      %cst_87 = arith.constant 1.000000e+00 : f32
      %187 = vector.broadcast %cst_87 : f32 to vector<16x128xf32>
      %188 = arith.addf %186, %187 : vector<16x128xf32>
      %cst_88 = arith.constant 5.000000e-01 : f32
      %189 = vector.broadcast %cst_88 : f32 to vector<16x128xf32>
      %190 = arith.mulf %189, %188 : vector<16x128xf32>
      %191 = arith.mulf %180, %149 : vector<16x128xf32>
      %192 = arith.mulf %172, %182 : vector<16x128xf32>
      %193 = arith.addf %191, %192 : vector<16x128xf32>
      %194 = math.tanh %193 : vector<16x128xf32>
      %195 = arith.mulf %190, %194 : vector<16x128xf32>
      %196 = arith.truncf %195 : vector<16x128xf32> to vector<16x128xbf16>
      %197 = arith.index_cast %c3_i32 : i32 to index
      %c0_89 = arith.constant 0 : index
      %c0_90 = arith.constant 0 : index
      %198 = vector.load %arg6[%197, %c0_89, %c0_90] : memref<4x16x128xbf16, #tpu.memory_space<vmem>>, vector<1x16x128xbf16>
      %199 = vector.shape_cast %198 : vector<1x16x128xbf16> to vector<16x128xbf16>
      %200 = vector.shape_cast %196 : vector<16x128xbf16> to vector<1x16x128xbf16>
      tpu.vector_store %arg6[%197, %c0_89, %c0_90], %200 {strides = array<i32>} : memref<4x16x128xbf16, #tpu.memory_space<vmem>>, vector<1x16x128xbf16>,
      %c4_i32 = arith.constant 4 : i32
      %c0_91 = arith.constant 0 : index
      %c0_92 = arith.constant 0 : index
      %c0_93 = arith.constant 0 : index
      %201 = vector.load %arg8[%c0_91, %c0_92, %c0_93] : memref<2x16x128xf32, #tpu.memory_space<vmem>>, vector<1x16x128xf32>
      %202 = vector.shape_cast %201 : vector<1x16x128xf32> to vector<16x128xf32>
      %203 = vector.shape_cast %195 : vector<16x128xf32> to vector<1x16x128xf32>
      tpu.vector_store %arg8[%c0_91, %c0_92, %c0_93], %203 {strides = array<i32>} : memref<2x16x128xf32, #tpu.memory_space<vmem>>, vector<1x16x128xf32>,
      %c0_94 = arith.constant 0 : index
      %c0_95 = arith.constant 0 : index
      %c0_96 = arith.constant 0 : index
      %204 = vector.load %arg9[%c0_94, %c0_95, %c0_96] : memref<2x16x128xf32, #tpu.memory_space<vmem>>, vector<1x16x128xf32>
      %205 = vector.shape_cast %204 : vector<1x16x128xf32> to vector<16x128xf32>
      %206 = vector.shape_cast %193 : vector<16x128xf32> to vector<1x16x128xf32>
      tpu.vector_store %arg9[%c0_94, %c0_95, %c0_96], %206 {strides = array<i32>} : memref<2x16x128xf32, #tpu.memory_space<vmem>>, vector<1x16x128xf32>,
    } else {
    }
    %c1_i32 = arith.constant 1 : i32
    %15 = arith.cmpi eq, %arg0, %c1_i32 : i32
    %16 = arith.extui %15 : i1 to i32
    %c0_i32_12 = arith.constant 0 : i32
    %17 = arith.cmpi ne, %16, %c0_i32_12 : i32
    scf.if %17 {
      %c0_i32_13 = arith.constant 0 : i32
      %18 = arith.cmpi eq, %arg1, %c0_i32_13 : i32
      %19 = arith.extui %18 : i1 to i32
      %c0_i32_14 = arith.constant 0 : i32
      %20 = arith.cmpi ne, %19, %c0_i32_14 : i32
      scf.if %20 {
        %cst_100 = arith.constant 0.000000e+00 : f32
        %211 = vector.broadcast %cst_100 : f32 to vector<16x128xf32>
        %c1_101 = arith.constant 1 : index
        %c0_102 = arith.constant 0 : index
        %c0_103 = arith.constant 0 : index
        %212 = vector.load %arg8[%c1_101, %c0_102, %c0_103] : memref<2x16x128xf32, #tpu.memory_space<vmem>>, vector<1x16x128xf32>
        %213 = vector.shape_cast %212 : vector<1x16x128xf32> to vector<16x128xf32>
        %214 = vector.shape_cast %211 : vector<16x128xf32> to vector<1x16x128xf32>
        tpu.vector_store %arg8[%c1_101, %c0_102, %c0_103], %214 {strides = array<i32>} : memref<2x16x128xf32, #tpu.memory_space<vmem>>, vector<1x16x128xf32>,
        %cst_104 = arith.constant 0.000000e+00 : f32
        %215 = vector.broadcast %cst_104 : f32 to vector<16x128xf32>
        %c1_105 = arith.constant 1 : index
        %c0_106 = arith.constant 0 : index
        %c0_107 = arith.constant 0 : index
        %216 = vector.load %arg9[%c1_105, %c0_106, %c0_107] : memref<2x16x128xf32, #tpu.memory_space<vmem>>, vector<1x16x128xf32>
        %217 = vector.shape_cast %216 : vector<1x16x128xf32> to vector<16x128xf32>
        %218 = vector.shape_cast %215 : vector<16x128xf32> to vector<1x16x128xf32>
        tpu.vector_store %arg9[%c1_105, %c0_106, %c0_107], %218 {strides = array<i32>} : memref<2x16x128xf32, #tpu.memory_space<vmem>>, vector<1x16x128xf32>,
      } else {
      }
      %c1 = arith.constant 1 : index
      %c0_15 = arith.constant 0 : index
      %c0_16 = arith.constant 0 : index
      %21 = vector.load %arg8[%c1, %c0_15, %c0_16] : memref<2x16x128xf32, #tpu.memory_space<vmem>>, vector<1x16x128xf32>
      %22 = vector.shape_cast %21 : vector<1x16x128xf32> to vector<16x128xf32>
      %c1_17 = arith.constant 1 : index
      %c0_18 = arith.constant 0 : index
      %c0_19 = arith.constant 0 : index
      %23 = vector.load %arg9[%c1_17, %c0_18, %c0_19] : memref<2x16x128xf32, #tpu.memory_space<vmem>>, vector<1x16x128xf32>
      %24 = vector.shape_cast %23 : vector<1x16x128xf32> to vector<16x128xf32>
      %c0_i32_20 = arith.constant 0 : i32
      %c3_i32 = arith.constant 3 : i32
      %25 = arith.subi %c3_i32, %c0_i32_20 : i32
      %26 = arith.index_cast %25 : i32 to index
      %c0_21 = arith.constant 0 : index
      %c0_22 = arith.constant 0 : index
      %27 = vector.load %arg7[%26, %c0_21, %c0_22] : memref<4x16x512xf32, #tpu.memory_space<vmem>>, vector<1x16x512xf32>
      %28 = vector.shape_cast %27 : vector<1x16x512xf32> to vector<16x512xf32>
      %29 = arith.truncf %22 : vector<16x128xf32> to vector<16x128xbf16>
      %c0_23 = arith.constant 0 : index
      %c0_24 = arith.constant 0 : index
      %c0_25 = arith.constant 0 : index
      %30 = vector.load %arg4[%c0_23, %c0_24, %c0_25] : memref<1x128x512xbf16, #tpu.memory_space<vmem>>, vector<1x128x512xbf16>
      %31 = vector.shape_cast %30 : vector<1x128x512xbf16> to vector<128x512xbf16>
      %cst_26 = arith.constant dense<0.000000e+00> : vector<16x512xf32>
      %32 = tpu.matmul %29, %31, %cst_26 {dimension_numbers = #tpu.dot_dimension_numbers<[1], [0], [0], [1], [0, 0, 1, 1], [], []>} : vector<16x128xbf16>, vector<128x512xbf16>, vector<16x512xf32> -> vector<16x512xf32>
      %33 = arith.addf %28, %32 : vector<16x512xf32>
      %34 = vector.extract_strided_slice %33 {offsets = [0, 0], sizes = [16, 128], strides = [1, 1]} : vector<16x512xf32> to vector<16x128xf32>
      %cst_27 = arith.constant 5.000000e-01 : f32
      %35 = vector.broadcast %cst_27 : f32 to vector<16x128xf32>
      %36 = arith.mulf %35, %34 : vector<16x128xf32>
      %37 = math.tanh %36 : vector<16x128xf32>
      %cst_28 = arith.constant 1.000000e+00 : f32
      %38 = vector.broadcast %cst_28 : f32 to vector<16x128xf32>
      %39 = arith.addf %37, %38 : vector<16x128xf32>
      %cst_29 = arith.constant 5.000000e-01 : f32
      %40 = vector.broadcast %cst_29 : f32 to vector<16x128xf32>
      %41 = arith.mulf %40, %39 : vector<16x128xf32>
      %42 = vector.extract_strided_slice %33 {offsets = [0, 128], sizes = [16, 128], strides = [1, 1]} : vector<16x512xf32> to vector<16x128xf32>
      %cst_30 = arith.constant 5.000000e-01 : f32
      %43 = vector.broadcast %cst_30 : f32 to vector<16x128xf32>
      %44 = arith.mulf %43, %42 : vector<16x128xf32>
      %45 = math.tanh %44 : vector<16x128xf32>
      %cst_31 = arith.constant 1.000000e+00 : f32
      %46 = vector.broadcast %cst_31 : f32 to vector<16x128xf32>
      %47 = arith.addf %45, %46 : vector<16x128xf32>
      %cst_32 = arith.constant 5.000000e-01 : f32
      %48 = vector.broadcast %cst_32 : f32 to vector<16x128xf32>
      %49 = arith.mulf %48, %47 : vector<16x128xf32>
      %50 = vector.extract_strided_slice %33 {offsets = [0, 256], sizes = [16, 128], strides = [1, 1]} : vector<16x512xf32> to vector<16x128xf32>
      %51 = math.tanh %50 : vector<16x128xf32>
      %52 = vector.extract_strided_slice %33 {offsets = [0, 384], sizes = [16, 128], strides = [1, 1]} : vector<16x512xf32> to vector<16x128xf32>
      %cst_33 = arith.constant 5.000000e-01 : f32
      %53 = vector.broadcast %cst_33 : f32 to vector<16x128xf32>
      %54 = arith.mulf %53, %52 : vector<16x128xf32>
      %55 = math.tanh %54 : vector<16x128xf32>
      %cst_34 = arith.constant 1.000000e+00 : f32
      %56 = vector.broadcast %cst_34 : f32 to vector<16x128xf32>
      %57 = arith.addf %55, %56 : vector<16x128xf32>
      %cst_35 = arith.constant 5.000000e-01 : f32
      %58 = vector.broadcast %cst_35 : f32 to vector<16x128xf32>
      %59 = arith.mulf %58, %57 : vector<16x128xf32>
      %60 = arith.mulf %49, %24 : vector<16x128xf32>
      %61 = arith.mulf %41, %51 : vector<16x128xf32>
      %62 = arith.addf %60, %61 : vector<16x128xf32>
      %63 = math.tanh %62 : vector<16x128xf32>
      %64 = arith.mulf %59, %63 : vector<16x128xf32>
      %65 = arith.truncf %64 : vector<16x128xf32> to vector<16x128xbf16>
      %66 = arith.index_cast %25 : i32 to index
      %c0_36 = arith.constant 0 : index
      %c0_37 = arith.constant 0 : index
      %67 = vector.load %arg6[%66, %c0_36, %c0_37] : memref<4x16x128xbf16, #tpu.memory_space<vmem>>, vector<1x16x128xbf16>
      %68 = vector.shape_cast %67 : vector<1x16x128xbf16> to vector<16x128xbf16>
      %69 = vector.shape_cast %65 : vector<16x128xbf16> to vector<1x16x128xbf16>
      tpu.vector_store %arg6[%66, %c0_36, %c0_37], %69 {strides = array<i32>} : memref<4x16x128xbf16, #tpu.memory_space<vmem>>, vector<1x16x128xbf16>,
      %c1_i32_38 = arith.constant 1 : i32
      %c3_i32_39 = arith.constant 3 : i32
      %70 = arith.subi %c3_i32_39, %c1_i32_38 : i32
      %71 = arith.index_cast %70 : i32 to index
      %c0_40 = arith.constant 0 : index
      %c0_41 = arith.constant 0 : index
      %72 = vector.load %arg7[%71, %c0_40, %c0_41] : memref<4x16x512xf32, #tpu.memory_space<vmem>>, vector<1x16x512xf32>
      %73 = vector.shape_cast %72 : vector<1x16x512xf32> to vector<16x512xf32>
      %74 = arith.truncf %64 : vector<16x128xf32> to vector<16x128xbf16>
      %c0_42 = arith.constant 0 : index
      %c0_43 = arith.constant 0 : index
      %c0_44 = arith.constant 0 : index
      %75 = vector.load %arg4[%c0_42, %c0_43, %c0_44] : memref<1x128x512xbf16, #tpu.memory_space<vmem>>, vector<1x128x512xbf16>
      %76 = vector.shape_cast %75 : vector<1x128x512xbf16> to vector<128x512xbf16>
      %cst_45 = arith.constant dense<0.000000e+00> : vector<16x512xf32>
      %77 = tpu.matmul %74, %76, %cst_45 {dimension_numbers = #tpu.dot_dimension_numbers<[1], [0], [0], [1], [0, 0, 1, 1], [], []>} : vector<16x128xbf16>, vector<128x512xbf16>, vector<16x512xf32> -> vector<16x512xf32>
      %78 = arith.addf %73, %77 : vector<16x512xf32>
      %79 = vector.extract_strided_slice %78 {offsets = [0, 0], sizes = [16, 128], strides = [1, 1]} : vector<16x512xf32> to vector<16x128xf32>
      %cst_46 = arith.constant 5.000000e-01 : f32
      %80 = vector.broadcast %cst_46 : f32 to vector<16x128xf32>
      %81 = arith.mulf %80, %79 : vector<16x128xf32>
      %82 = math.tanh %81 : vector<16x128xf32>
      %cst_47 = arith.constant 1.000000e+00 : f32
      %83 = vector.broadcast %cst_47 : f32 to vector<16x128xf32>
      %84 = arith.addf %82, %83 : vector<16x128xf32>
      %cst_48 = arith.constant 5.000000e-01 : f32
      %85 = vector.broadcast %cst_48 : f32 to vector<16x128xf32>
      %86 = arith.mulf %85, %84 : vector<16x128xf32>
      %87 = vector.extract_strided_slice %78 {offsets = [0, 128], sizes = [16, 128], strides = [1, 1]} : vector<16x512xf32> to vector<16x128xf32>
      %cst_49 = arith.constant 5.000000e-01 : f32
      %88 = vector.broadcast %cst_49 : f32 to vector<16x128xf32>
      %89 = arith.mulf %88, %87 : vector<16x128xf32>
      %90 = math.tanh %89 : vector<16x128xf32>
      %cst_50 = arith.constant 1.000000e+00 : f32
      %91 = vector.broadcast %cst_50 : f32 to vector<16x128xf32>
      %92 = arith.addf %90, %91 : vector<16x128xf32>
      %cst_51 = arith.constant 5.000000e-01 : f32
      %93 = vector.broadcast %cst_51 : f32 to vector<16x128xf32>
      %94 = arith.mulf %93, %92 : vector<16x128xf32>
      %95 = vector.extract_strided_slice %78 {offsets = [0, 256], sizes = [16, 128], strides = [1, 1]} : vector<16x512xf32> to vector<16x128xf32>
      %96 = math.tanh %95 : vector<16x128xf32>
      %97 = vector.extract_strided_slice %78 {offsets = [0, 384], sizes = [16, 128], strides = [1, 1]} : vector<16x512xf32> to vector<16x128xf32>
      %cst_52 = arith.constant 5.000000e-01 : f32
      %98 = vector.broadcast %cst_52 : f32 to vector<16x128xf32>
      %99 = arith.mulf %98, %97 : vector<16x128xf32>
      %100 = math.tanh %99 : vector<16x128xf32>
      %cst_53 = arith.constant 1.000000e+00 : f32
      %101 = vector.broadcast %cst_53 : f32 to vector<16x128xf32>
      %102 = arith.addf %100, %101 : vector<16x128xf32>
      %cst_54 = arith.constant 5.000000e-01 : f32
      %103 = vector.broadcast %cst_54 : f32 to vector<16x128xf32>
      %104 = arith.mulf %103, %102 : vector<16x128xf32>
      %105 = arith.mulf %94, %62 : vector<16x128xf32>
      %106 = arith.mulf %86, %96 : vector<16x128xf32>
      %107 = arith.addf %105, %106 : vector<16x128xf32>
      %108 = math.tanh %107 : vector<16x128xf32>
      %109 = arith.mulf %104, %108 : vector<16x128xf32>
      %110 = arith.truncf %109 : vector<16x128xf32> to vector<16x128xbf16>
      %111 = arith.index_cast %70 : i32 to index
      %c0_55 = arith.constant 0 : index
      %c0_56 = arith.constant 0 : index
      %112 = vector.load %arg6[%111, %c0_55, %c0_56] : memref<4x16x128xbf16, #tpu.memory_space<vmem>>, vector<1x16x128xbf16>
      %113 = vector.shape_cast %112 : vector<1x16x128xbf16> to vector<16x128xbf16>
      %114 = vector.shape_cast %110 : vector<16x128xbf16> to vector<1x16x128xbf16>
      tpu.vector_store %arg6[%111, %c0_55, %c0_56], %114 {strides = array<i32>} : memref<4x16x128xbf16, #tpu.memory_space<vmem>>, vector<1x16x128xbf16>,
      %c2_i32 = arith.constant 2 : i32
      %c3_i32_57 = arith.constant 3 : i32
      %115 = arith.subi %c3_i32_57, %c2_i32 : i32
      %116 = arith.index_cast %115 : i32 to index
      %c0_58 = arith.constant 0 : index
      %c0_59 = arith.constant 0 : index
      %117 = vector.load %arg7[%116, %c0_58, %c0_59] : memref<4x16x512xf32, #tpu.memory_space<vmem>>, vector<1x16x512xf32>
      %118 = vector.shape_cast %117 : vector<1x16x512xf32> to vector<16x512xf32>
      %119 = arith.truncf %109 : vector<16x128xf32> to vector<16x128xbf16>
      %c0_60 = arith.constant 0 : index
      %c0_61 = arith.constant 0 : index
      %c0_62 = arith.constant 0 : index
      %120 = vector.load %arg4[%c0_60, %c0_61, %c0_62] : memref<1x128x512xbf16, #tpu.memory_space<vmem>>, vector<1x128x512xbf16>
      %121 = vector.shape_cast %120 : vector<1x128x512xbf16> to vector<128x512xbf16>
      %cst_63 = arith.constant dense<0.000000e+00> : vector<16x512xf32>
      %122 = tpu.matmul %119, %121, %cst_63 {dimension_numbers = #tpu.dot_dimension_numbers<[1], [0], [0], [1], [0, 0, 1, 1], [], []>} : vector<16x128xbf16>, vector<128x512xbf16>, vector<16x512xf32> -> vector<16x512xf32>
      %123 = arith.addf %118, %122 : vector<16x512xf32>
      %124 = vector.extract_strided_slice %123 {offsets = [0, 0], sizes = [16, 128], strides = [1, 1]} : vector<16x512xf32> to vector<16x128xf32>
      %cst_64 = arith.constant 5.000000e-01 : f32
      %125 = vector.broadcast %cst_64 : f32 to vector<16x128xf32>
      %126 = arith.mulf %125, %124 : vector<16x128xf32>
      %127 = math.tanh %126 : vector<16x128xf32>
      %cst_65 = arith.constant 1.000000e+00 : f32
      %128 = vector.broadcast %cst_65 : f32 to vector<16x128xf32>
      %129 = arith.addf %127, %128 : vector<16x128xf32>
      %cst_66 = arith.constant 5.000000e-01 : f32
      %130 = vector.broadcast %cst_66 : f32 to vector<16x128xf32>
      %131 = arith.mulf %130, %129 : vector<16x128xf32>
      %132 = vector.extract_strided_slice %123 {offsets = [0, 128], sizes = [16, 128], strides = [1, 1]} : vector<16x512xf32> to vector<16x128xf32>
      %cst_67 = arith.constant 5.000000e-01 : f32
      %133 = vector.broadcast %cst_67 : f32 to vector<16x128xf32>
      %134 = arith.mulf %133, %132 : vector<16x128xf32>
      %135 = math.tanh %134 : vector<16x128xf32>
      %cst_68 = arith.constant 1.000000e+00 : f32
      %136 = vector.broadcast %cst_68 : f32 to vector<16x128xf32>
      %137 = arith.addf %135, %136 : vector<16x128xf32>
      %cst_69 = arith.constant 5.000000e-01 : f32
      %138 = vector.broadcast %cst_69 : f32 to vector<16x128xf32>
      %139 = arith.mulf %138, %137 : vector<16x128xf32>
      %140 = vector.extract_strided_slice %123 {offsets = [0, 256], sizes = [16, 128], strides = [1, 1]} : vector<16x512xf32> to vector<16x128xf32>
      %141 = math.tanh %140 : vector<16x128xf32>
      %142 = vector.extract_strided_slice %123 {offsets = [0, 384], sizes = [16, 128], strides = [1, 1]} : vector<16x512xf32> to vector<16x128xf32>
      %cst_70 = arith.constant 5.000000e-01 : f32
      %143 = vector.broadcast %cst_70 : f32 to vector<16x128xf32>
      %144 = arith.mulf %143, %142 : vector<16x128xf32>
      %145 = math.tanh %144 : vector<16x128xf32>
      %cst_71 = arith.constant 1.000000e+00 : f32
      %146 = vector.broadcast %cst_71 : f32 to vector<16x128xf32>
      %147 = arith.addf %145, %146 : vector<16x128xf32>
      %cst_72 = arith.constant 5.000000e-01 : f32
      %148 = vector.broadcast %cst_72 : f32 to vector<16x128xf32>
      %149 = arith.mulf %148, %147 : vector<16x128xf32>
      %150 = arith.mulf %139, %107 : vector<16x128xf32>
      %151 = arith.mulf %131, %141 : vector<16x128xf32>
      %152 = arith.addf %150, %151 : vector<16x128xf32>
      %153 = math.tanh %152 : vector<16x128xf32>
      %154 = arith.mulf %149, %153 : vector<16x128xf32>
      %155 = arith.truncf %154 : vector<16x128xf32> to vector<16x128xbf16>
      %156 = arith.index_cast %115 : i32 to index
      %c0_73 = arith.constant 0 : index
      %c0_74 = arith.constant 0 : index
      %157 = vector.load %arg6[%156, %c0_73, %c0_74] : memref<4x16x128xbf16, #tpu.memory_space<vmem>>, vector<1x16x128xbf16>
      %158 = vector.shape_cast %157 : vector<1x16x128xbf16> to vector<16x128xbf16>
      %159 = vector.shape_cast %155 : vector<16x128xbf16> to vector<1x16x128xbf16>
      tpu.vector_store %arg6[%156, %c0_73, %c0_74], %159 {strides = array<i32>} : memref<4x16x128xbf16, #tpu.memory_space<vmem>>, vector<1x16x128xbf16>,
      %c3_i32_75 = arith.constant 3 : i32
      %c3_i32_76 = arith.constant 3 : i32
      %160 = arith.subi %c3_i32_76, %c3_i32_75 : i32
      %161 = arith.index_cast %160 : i32 to index
      %c0_77 = arith.constant 0 : index
      %c0_78 = arith.constant 0 : index
      %162 = vector.load %arg7[%161, %c0_77, %c0_78] : memref<4x16x512xf32, #tpu.memory_space<vmem>>, vector<1x16x512xf32>
      %163 = vector.shape_cast %162 : vector<1x16x512xf32> to vector<16x512xf32>
      %164 = arith.truncf %154 : vector<16x128xf32> to vector<16x128xbf16>
      %c0_79 = arith.constant 0 : index
      %c0_80 = arith.constant 0 : index
      %c0_81 = arith.constant 0 : index
      %165 = vector.load %arg4[%c0_79, %c0_80, %c0_81] : memref<1x128x512xbf16, #tpu.memory_space<vmem>>, vector<1x128x512xbf16>
      %166 = vector.shape_cast %165 : vector<1x128x512xbf16> to vector<128x512xbf16>
      %cst_82 = arith.constant dense<0.000000e+00> : vector<16x512xf32>
      %167 = tpu.matmul %164, %166, %cst_82 {dimension_numbers = #tpu.dot_dimension_numbers<[1], [0], [0], [1], [0, 0, 1, 1], [], []>} : vector<16x128xbf16>, vector<128x512xbf16>, vector<16x512xf32> -> vector<16x512xf32>
      %168 = arith.addf %163, %167 : vector<16x512xf32>
      %169 = vector.extract_strided_slice %168 {offsets = [0, 0], sizes = [16, 128], strides = [1, 1]} : vector<16x512xf32> to vector<16x128xf32>
      %cst_83 = arith.constant 5.000000e-01 : f32
      %170 = vector.broadcast %cst_83 : f32 to vector<16x128xf32>
      %171 = arith.mulf %170, %169 : vector<16x128xf32>
      %172 = math.tanh %171 : vector<16x128xf32>
      %cst_84 = arith.constant 1.000000e+00 : f32
      %173 = vector.broadcast %cst_84 : f32 to vector<16x128xf32>
      %174 = arith.addf %172, %173 : vector<16x128xf32>
      %cst_85 = arith.constant 5.000000e-01 : f32
      %175 = vector.broadcast %cst_85 : f32 to vector<16x128xf32>
      %176 = arith.mulf %175, %174 : vector<16x128xf32>
      %177 = vector.extract_strided_slice %168 {offsets = [0, 128], sizes = [16, 128], strides = [1, 1]} : vector<16x512xf32> to vector<16x128xf32>
      %cst_86 = arith.constant 5.000000e-01 : f32
      %178 = vector.broadcast %cst_86 : f32 to vector<16x128xf32>
      %179 = arith.mulf %178, %177 : vector<16x128xf32>
      %180 = math.tanh %179 : vector<16x128xf32>
      %cst_87 = arith.constant 1.000000e+00 : f32
      %181 = vector.broadcast %cst_87 : f32 to vector<16x128xf32>
      %182 = arith.addf %180, %181 : vector<16x128xf32>
      %cst_88 = arith.constant 5.000000e-01 : f32
      %183 = vector.broadcast %cst_88 : f32 to vector<16x128xf32>
      %184 = arith.mulf %183, %182 : vector<16x128xf32>
      %185 = vector.extract_strided_slice %168 {offsets = [0, 256], sizes = [16, 128], strides = [1, 1]} : vector<16x512xf32> to vector<16x128xf32>
      %186 = math.tanh %185 : vector<16x128xf32>
      %187 = vector.extract_strided_slice %168 {offsets = [0, 384], sizes = [16, 128], strides = [1, 1]} : vector<16x512xf32> to vector<16x128xf32>
      %cst_89 = arith.constant 5.000000e-01 : f32
      %188 = vector.broadcast %cst_89 : f32 to vector<16x128xf32>
      %189 = arith.mulf %188, %187 : vector<16x128xf32>
      %190 = math.tanh %189 : vector<16x128xf32>
      %cst_90 = arith.constant 1.000000e+00 : f32
      %191 = vector.broadcast %cst_90 : f32 to vector<16x128xf32>
      %192 = arith.addf %190, %191 : vector<16x128xf32>
      %cst_91 = arith.constant 5.000000e-01 : f32
      %193 = vector.broadcast %cst_91 : f32 to vector<16x128xf32>
      %194 = arith.mulf %193, %192 : vector<16x128xf32>
      %195 = arith.mulf %184, %152 : vector<16x128xf32>
      %196 = arith.mulf %176, %186 : vector<16x128xf32>
      %197 = arith.addf %195, %196 : vector<16x128xf32>
      %198 = math.tanh %197 : vector<16x128xf32>
      %199 = arith.mulf %194, %198 : vector<16x128xf32>
      %200 = arith.truncf %199 : vector<16x128xf32> to vector<16x128xbf16>
      %201 = arith.index_cast %160 : i32 to index
      %c0_92 = arith.constant 0 : index
      %c0_93 = arith.constant 0 : index
      %202 = vector.load %arg6[%201, %c0_92, %c0_93] : memref<4x16x128xbf16, #tpu.memory_space<vmem>>, vector<1x16x128xbf16>
      %203 = vector.shape_cast %202 : vector<1x16x128xbf16> to vector<16x128xbf16>
      %204 = vector.shape_cast %200 : vector<16x128xbf16> to vector<1x16x128xbf16>
      tpu.vector_store %arg6[%201, %c0_92, %c0_93], %204 {strides = array<i32>} : memref<4x16x128xbf16, #tpu.memory_space<vmem>>, vector<1x16x128xbf16>,
      %c4_i32 = arith.constant 4 : i32
      %c1_94 = arith.constant 1 : index
      %c0_95 = arith.constant 0 : index
      %c0_96 = arith.constant 0 : index
      %205 = vector.load %arg8[%c1_94, %c0_95, %c0_96] : memref<2x16x128xf32, #tpu.memory_space<vmem>>, vector<1x16x128xf32>
      %206 = vector.shape_cast %205 : vector<1x16x128xf32> to vector<16x128xf32>
      %207 = vector.shape_cast %199 : vector<16x128xf32> to vector<1x16x128xf32>
      tpu.vector_store %arg8[%c1_94, %c0_95, %c0_96], %207 {strides = array<i32>} : memref<2x16x128xf32, #tpu.memory_space<vmem>>, vector<1x16x128xf32>,
      %c1_97 = arith.constant 1 : index
      %c0_98 = arith.constant 0 : index
      %c0_99 = arith.constant 0 : index
      %208 = vector.load %arg9[%c1_97, %c0_98, %c0_99] : memref<2x16x128xf32, #tpu.memory_space<vmem>>, vector<1x16x128xf32>
      %209 = vector.shape_cast %208 : vector<1x16x128xf32> to vector<16x128xf32>
      %210 = vector.shape_cast %197 : vector<16x128xf32> to vector<1x16x128xf32>
      tpu.vector_store %arg9[%c1_97, %c0_98, %c0_99], %210 {strides = array<i32>} : memref<2x16x128xf32, #tpu.memory_space<vmem>>, vector<1x16x128xf32>,
    } else {
    }
    return
  }
  func.func @transform_0(%arg0: i32, %arg1: i32) -> (i32, i32, i32) {
    %c2_i32 = arith.constant 2 : i32
    %0 = arith.muli %c2_i32, %arg0 : i32
    %c1_i32 = arith.constant 1 : i32
    %1 = arith.subi %c1_i32, %0 : i32
    %2 = arith.muli %arg1, %1 : i32
    %c1_i32_0 = arith.constant 1 : i32
    %3 = arith.muli %arg0, %c1_i32_0 : i32
    %4 = arith.addi %2, %3 : i32
    %c0_i32 = arith.constant 0 : i32
    %c0_i32_1 = arith.constant 0 : i32
    %c0_i32_2 = arith.constant 0 : i32
    return %4, %c0_i32, %c0_i32_1 : i32, i32, i32
  }
  func.func @transform_1(%arg0: i32, %arg1: i32) -> (i32, i32, i32) {
    %c0_i32 = arith.constant 0 : i32
    %c0_i32_0 = arith.constant 0 : i32
    %c0_i32_1 = arith.constant 0 : i32
    return %arg0, %c0_i32, %c0_i32_0 : i32, i32, i32
  }
  func.func @transform_2(%arg0: i32, %arg1: i32) -> (i32, i32, i32) {
    %c0_i32 = arith.constant 0 : i32
    %c0_i32_0 = arith.constant 0 : i32
    %c0_i32_1 = arith.constant 0 : i32
    return %arg0, %c0_i32, %c0_i32_0 : i32, i32, i32
  }
  func.func @transform_3(%arg0: i32, %arg1: i32) -> (i32, i32, i32) {
    %c0_i32 = arith.constant 0 : i32
    %c0_i32_0 = arith.constant 0 : i32
    %c0_i32_1 = arith.constant 0 : i32
    return %arg0, %c0_i32, %c0_i32_0 : i32, i32, i32
  }
  func.func @transform_4(%arg0: i32, %arg1: i32) -> (i32, i32, i32) {
    %c2_i32 = arith.constant 2 : i32
    %0 = arith.muli %c2_i32, %arg0 : i32
    %c1_i32 = arith.constant 1 : i32
    %1 = arith.subi %c1_i32, %0 : i32
    %2 = arith.muli %arg1, %1 : i32
    %c1_i32_0 = arith.constant 1 : i32
    %3 = arith.muli %arg0, %c1_i32_0 : i32
    %4 = arith.addi %2, %3 : i32
    %c0_i32 = arith.constant 0 : i32
    %c0_i32_1 = arith.constant 0 : i32
    return %4, %c0_i32, %arg0 : i32, i32, i32
  }
}

</mosaic_0001>

<llo_original>
// kernel: bilstm_forward.2
$region0: #{bilstm_forward.2}
  #allocation0 [shape = 'u32[]', space=smem, size = 0x4, offset = 0x4, fixed_abs, tag = 'smem constant byte address 0x4 - core index']
  #allocation1 [shape = 'u32[144,128]{1,0:T(1,128)}', space=vmem, size = 0x12000, scoped, tag = 'internal scratch']
  #allocation2 [shape = 'f32[4,16,512]{2,1,0:T(8,128)}', space=vmem, size = 0x20000, scoped, tag = 'scratch operand']
  #allocation3 [shape = 'f32[2,16,128]{2,1,0:T(8,128)}', space=vmem, size = 0x4000, scoped, tag = 'scratch operand']
  #allocation4 [shape = 'f32[2,16,128]{2,1,0:T(8,128)}', space=vmem, size = 0x4000, scoped, tag = 'scratch operand']
  %s0 = inlined_call_operand.vmem [shape: f32[8,16,16], index: 0, kind: input, shape index: {}]
  %s1 = inlined_call_operand.hbm [shape: bf16[2,16,512], index: 1, kind: input, shape index: {}]
  %s2 = inlined_call_operand.hbm [shape: bf16[2,128,512], index: 2, kind: input, shape index: {}]
  %s3 = inlined_call_operand.hbm [shape: f32[2,1,512], index: 3, kind: input, shape index: {}]
  %s4 = inlined_call_operand.vmem [shape: bf16[8,16,256], index: 4, kind: output, shape index: {}]
  %s5 = sld [smem:[#allocation0]]
  $region114: #{bilstm_forward.2} parent=0
    _
  %s7 = ssub.s32 1, %s5
  %s8 = scalar_select 0, %s7, %s5
  $region1: #{bilstm_forward.2} parent=0
    #allocation5 [shape = 'u8[32768]{0}', space=vmem, size = 0x8000, scoped, tag = 'input window, operand 1']
    #allocation6 [shape = 's32[2]{0}', space=sflag, size = 0x8, scoped, tag = 'scoped memory for bilstm_forward.2']
    #allocation7 [shape = 'u8[262144]{0}', space=vmem, size = 0x40000, scoped, tag = 'input window, operand 2']
    #allocation8 [shape = 's32[2]{0}', space=sflag, size = 0x8, scoped, tag = 'scoped memory for bilstm_forward.2']
    #allocation9 [shape = 'u8[4096]{0}', space=vmem, size = 0x1000, scoped, tag = 'input window, operand 3']
    #allocation10 [shape = 'u8[32768]{0}', space=vmem, size = 0x8000, scoped, tag = 'output window, operand 0']
    %9 = vsyncpa [#allocation6], 0
    %s10 = scalar_lea.sflag [#allocation6], 1
    %11 = vsyncpa %s10, 0
    %12 = vsyncpa [#allocation8], 0
    %s13 = scalar_lea.sflag [#allocation8], 1
    %14 = vsyncpa %s13, 0
    loop: start=0, step=1, limit=6
    $region2: #{bilstm_forward.2} parent=1 // loop_pre_header
      _
    $region3: #{bilstm_forward.2} parent=1 // loop_header
      %s16 = sphi 0, %s20
      %p17 = scmp.ge.s32.totalorder %s16, 6
      %s23 = sphi 0, %s35
      %s24 = sphi 0, %s31
      %s25 = sphi 0, %s23
      %s26 = sphi 0, %s24
      %s27 = sphi 0, %s25
      %s28 = sphi 0, %s26
      %s46 = sphi 0, %s48
      %s49 = sphi 0, %s46
      %s50 = sphi 0, %s49
      %s66 = sphi 0, %s50
      %s72 = sphi 0, %s74
      %s75 = sphi 0, %s72
      %s76 = sphi 0, %s75
      %s92 = sphi 0, %s76
      %s98 = sphi 0, %s100
      %s101 = sphi 0, %s98
      %s102 = sphi 0, %s101
      %s118 = sphi 0, %s102
      %s124 = sphi 0, %s126
      %s127 = sphi 0, %s124
      %s128 = sphi 0, %s127
      %s144 = sphi 0, %s128
      %s160 = sphi 0, %s162
      %s163 = sphi 0, %s160
      %s164 = sphi 0, %s163
      %s180 = sphi 0, %s164
    $region4: #{bilstm_forward.2} parent=1 // loop_header_branch
      %19 = sbr.rel (%p17) target = $region8
    $region5: #{bilstm_forward.2} parent=1 // loop_body
      %s21 = ssub.s32 %s16, 1
      %s22 = ssub.s32 %s16, 2
      %s29 = sadd.s32 1, %s24
      %p30 = scmp.ge.s32.totalorder %s29, 2
      %s31 = scalar_select %p30, 0, %s29
      %s32 = sadd.s32 1, %s23
      %s33 = scalar_select %p30, %s32, %s23
      %p34 = scmp.ge.s32.totalorder %s33, 2
      %s35 = scalar_select %p34, 0, %s33
      %s36 = smul.u32 %s23, 2
      %s37 = ssub.s32 1, %s36
      %s38 = smul.u32 %s24, %s37
      %s39 = sadd.s32 %s38, %s23
      %s40 = smul.u32 %s35, 2
      %s41 = ssub.s32 1, %s40
      %s42 = smul.u32 %s31, %s41
      %s43 = sadd.s32 %s42, %s35
      %s44 = ssub.s32 %s39, %s43
      %p45 = scmp.eq.s32.totalorder %s44, 0
      %s47 = sadd.s32 %s46, 1
      %s48 = scalar_select %p45, %s46, %s47
      %p51 = pneg %p45
      %p52 = scmp.eq.s32.totalorder %s16, 3
      %p53 = por %p51, %p52
      %p54 = scmp.ne.s32.totalorder %s46, %s49
      %p55 = scmp.eq.s32.totalorder %s16, 0
      %p56 = por %p54, %p55
      %p57 = scmp.ne.s32.totalorder %s46, %s49
      %p58 = scmp.eq.s32.totalorder %s21, 3
      %p59 = por %p57, %p58
      %p60 = scmp.ne.s32.totalorder %s49, %s50
      %p61 = scmp.eq.s32.totalorder %s21, 0
      %p62 = por %p60, %p61
      %p63 = scmp.ne.s32.totalorder %s49, %s50
      %p64 = scmp.eq.s32.totalorder %s22, 3
      %p65 = por %p63, %p64
      %p67 = scmp.ne.s32.totalorder %s50, %s66
      %p68 = scmp.eq.s32.totalorder %s22, 0
      %p69 = por %p67, %p68
      %s70 = ssub.s32 %s23, %s35
      %p71 = scmp.eq.s32.totalorder %s70, 0
      %s73 = sadd.s32 %s72, 1
      %s74 = scalar_select %p71, %s72, %s73
      %p77 = pneg %p71
      %p78 = scmp.eq.s32.totalorder %s16, 3
      %p79 = por %p77, %p78
      %p80 = scmp.ne.s32.totalorder %s72, %s75
      %p81 = scmp.eq.s32.totalorder %s16, 0
      %p82 = por %p80, %p81
      %p83 = scmp.ne.s32.totalorder %s72, %s75
      %p84 = scmp.eq.s32.totalorder %s21, 3
      %p85 = por %p83, %p84
      %p86 = scmp.ne.s32.totalorder %s75, %s76
      %p87 = scmp.eq.s32.totalorder %s21, 0
      %p88 = por %p86, %p87
      %p89 = scmp.ne.s32.totalorder %s75, %s76
      %p90 = scmp.eq.s32.totalorder %s22, 3
      %p91 = por %p89, %p90
      %p93 = scmp.ne.s32.totalorder %s76, %s92
      %p94 = scmp.eq.s32.totalorder %s22, 0
      %p95 = por %p93, %p94
      %s96 = ssub.s32 %s23, %s35
      %p97 = scmp.eq.s32.totalorder %s96, 0
      %s99 = sadd.s32 %s98, 1
      %s100 = scalar_select %p97, %s98, %s99
      %p103 = pneg %p97
      %p104 = scmp.eq.s32.totalorder %s16, 3
      %p105 = por %p103, %p104
      %p106 = scmp.ne.s32.totalorder %s98, %s101
      %p107 = scmp.eq.s32.totalorder %s16, 0
      %p108 = por %p106, %p107
      %p109 = scmp.ne.s32.totalorder %s98, %s101
      %p110 = scmp.eq.s32.totalorder %s21, 3
      %p111 = por %p109, %p110
      %p112 = scmp.ne.s32.totalorder %s101, %s102
      %p113 = scmp.eq.s32.totalorder %s21, 0
      %p114 = por %p112, %p113
      %p115 = scmp.ne.s32.totalorder %s101, %s102
      %p116 = scmp.eq.s32.totalorder %s22, 3
      %p117 = por %p115, %p116
      %p119 = scmp.ne.s32.totalorder %s102, %s118
      %p120 = scmp.eq.s32.totalorder %s22, 0
      %p121 = por %p119, %p120
      %s122 = ssub.s32 %s23, %s35
      %p123 = scmp.eq.s32.totalorder %s122, 0
      %s125 = sadd.s32 %s124, 1
      %s126 = scalar_select %p123, %s124, %s125
      %p129 = pneg %p123
      %p130 = scmp.eq.s32.totalorder %s16, 3
      %p131 = por %p129, %p130
      %p132 = scmp.ne.s32.totalorder %s124, %s127
      %p133 = scmp.eq.s32.totalorder %s16, 0
      %p134 = por %p132, %p133
      %p135 = scmp.ne.s32.totalorder %s124, %s127
      %p136 = scmp.eq.s32.totalorder %s21, 3
      %p137 = por %p135, %p136
      %p138 = scmp.ne.s32.totalorder %s127, %s128
      %p139 = scmp.eq.s32.totalorder %s21, 0
      %p140 = por %p138, %p139
      %p141 = scmp.ne.s32.totalorder %s127, %s128
      %p142 = scmp.eq.s32.totalorder %s22, 3
      %p143 = por %p141, %p142
      %p145 = scmp.ne.s32.totalorder %s128, %s144
      %p146 = scmp.eq.s32.totalorder %s22, 0
      %p147 = por %p145, %p146
      %s148 = smul.u32 %s23, 2
      %s149 = ssub.s32 1, %s148
      %s150 = smul.u32 %s24, %s149
      %s151 = sadd.s32 %s150, %s23
      %s152 = smul.u32 %s35, 2
      %s153 = ssub.s32 1, %s152
      %s154 = smul.u32 %s31, %s153
      %s155 = sadd.s32 %s154, %s35
      %s156 = ssub.s32 %s151, %s155
      %s157 = ssub.s32 %s23, %s35
      %s158 = sor.u32 %s156, %s157
      %p159 = scmp.eq.s32.totalorder %s158, 0
      %s161 = sadd.s32 %s160, 1
      %s162 = scalar_select %p159, %s160, %s161
      %p165 = pneg %p159
      %p166 = scmp.eq.s32.totalorder %s16, 3
      %p167 = por %p165, %p166
      %p168 = scmp.ne.s32.totalorder %s160, %s163
      %p169 = scmp.eq.s32.totalorder %s16, 0
      %p170 = por %p168, %p169
      %p171 = scmp.ne.s32.totalorder %s160, %s163
      %p172 = scmp.eq.s32.totalorder %s21, 3
      %p173 = por %p171, %p172
      %p174 = scmp.ne.s32.totalorder %s163, %s164
      %p175 = scmp.eq.s32.totalorder %s21, 0
      %p176 = por %p174, %p175
      %p177 = scmp.ne.s32.totalorder %s163, %s164
      %p178 = scmp.eq.s32.totalorder %s22, 3
      %p179 = por %p177, %p178
      %p181 = scmp.ne.s32.totalorder %s164, %s180
      %p182 = scmp.eq.s32.totalorder %s22, 0
      %p183 = por %p181, %p182
      %p184 = scmp.le.s32.totalorder 1, %s16
      %p185 = scmp.lt.s32.totalorder %s16, 5
      %p186 = pnand %p184, %p185
      %p187 = pneg %p186
      // Predicated region
      $region9: #{bilstm_forward.2} parent=5 // pred_check
        _
      $region10: #{bilstm_forward.2} parent=5 // pred_check_branch
        %189 = sbr.rel (%p186) target = $region12
      $region11: #{bilstm_forward.2} parent=5 // pred_region
        %s190 = ssub.s32 %s16, 1
      $region12: #{bilstm_forward.2} parent=5 // pred_fallthru
        _
      %p191 = scmp.lt.s32.totalorder %s16, 4
      // Predicated region
      $region13: #{bilstm_forward.2} parent=5 // pred_check
        %p192 = pneg %p191
      $region14: #{bilstm_forward.2} parent=5 // pred_check_branch
        %194 = sbr.rel (%p192) target = $region16
      $region15: #{bilstm_forward.2} parent=5 // pred_region
        // Predicated region
        $region17: #{bilstm_forward.2} parent=15 // pred_check
          %p195 = pneg %p56
        $region18: #{bilstm_forward.2} parent=15 // pred_check_branch
          %197 = sbr.rel (%p195) target = $region20
        $region19: #{bilstm_forward.2} parent=15 // pred_region
          %s198 = smul.u32 %s23, 2
          %s199 = ssub.s32 1, %s198
          %s200 = smul.u32 %s24, %s199
          %s201 = sadd.s32 %s200, %s23
          %s202 = smul.u32 4, %s201
          %p203 = scmp.lt.s32.totalorder %s202, 7
          %s204 = scalar_select %p203, %s202, 7
          %s205 = smul.addr %s204, 2
          %s206 = smul.addr %s205, 8
          %s207 = scalar_lea.vmem %s0, %s206
          %s208 = smul.u32 %s23, 2
          %s209 = ssub.s32 1, %s208
          %s210 = smul.u32 %s24, %s209
          %s211 = sadd.s32 %s210, %s23
          %s212 = smul.u32 4, %s211
        $region20: #{bilstm_forward.2} parent=15 // pred_fallthru
          _
        // Predicated region
        $region21: #{bilstm_forward.2} parent=15 // pred_check
          %p213 = pneg %p82
        $region22: #{bilstm_forward.2} parent=15 // pred_check_branch
          %215 = sbr.rel (%p213) target = $region24
        $region23: #{bilstm_forward.2} parent=15 // pred_region
          %s216 = sand.u32 %s72, 1
          %s217 = scalar_lea.sflag [#allocation6], %s216
          %s218 = sand.u32 %s72, 1
          %s219 = smul.addr %s218, 32
          %s220 = scalar_lea.vmem [#allocation5], %s219
          %s222 = ssub.s32 512, 512
          %223 = vsyncadd %s217, %s222
          %s224 = smul.addr %s23, 8
          %s225 = smul.addr %s224, 64
          %s226 = scalar_lea.hbm %s1, %s225
          %s227 = sshll.u32 %s220, 4
          %s228 = int_to_ptr.vmem [resolvable:$true] %s227
          %233 = dma.hbm_to_vmem [thread:$0]  %s226, 512, %s228, %s217, 256, 256, 16
        $region24: #{bilstm_forward.2} parent=15 // pred_fallthru
          _
        // Predicated region
        $region25: #{bilstm_forward.2} parent=15 // pred_check
          %p234 = pneg %p108
        $region26: #{bilstm_forward.2} parent=15 // pred_check_branch
          %236 = sbr.rel (%p234) target = $region28
        $region27: #{bilstm_forward.2} parent=15 // pred_region
          %s237 = sand.u32 %s16, 1
          %s238 = scalar_lea.sflag [#allocation8], %s237
          %s239 = sand.u32 %s98, 1
          %s240 = smul.addr %s239, 256
          %s241 = scalar_lea.vmem [#allocation7], %s240
          %s243 = ssub.s32 4096, 4096
          %244 = vsyncadd %s238, %s243
          %s245 = smul.addr %s23, 64
          %s246 = smul.addr %s245, 64
          %s247 = scalar_lea.hbm %s2, %s246
          %s248 = sshll.u32 %s241, 4
          %s249 = int_to_ptr.vmem [resolvable:$true] %s248
          %254 = dma.hbm_to_vmem [thread:$0]  %s247, 4096, %s249, %s238, 256, 256, 16
        $region28: #{bilstm_forward.2} parent=15 // pred_fallthru
          _
        // Predicated region
        $region29: #{bilstm_forward.2} parent=15 // pred_check
          %p255 = pneg %p134
        $region30: #{bilstm_forward.2} parent=15 // pred_check_branch
          %257 = sbr.rel (%p255) target = $region32
        $region31: #{bilstm_forward.2} parent=15 // pred_region
          %s258 = sand.u32 %s16, 1
          %s259 = scalar_lea.sflag [#allocation8], %s258
          %s260 = sand.u32 %s124, 1
          %s261 = smul.addr %s260, 4
          %s262 = scalar_lea.vmem [#allocation9], %s261
          %s264 = ssub.s32 64, 64
          %265 = vsyncadd %s259, %s264
          %s266 = smul.addr %s23, 4
          %s267 = smul.addr %s266, 16
          %s268 = scalar_lea.hbm %s3, %s267
          %s270 = sshll.u32 %s262, 4
          %s271 = int_to_ptr.vmem [resolvable:$true] %s270
          %273 = dma.hbm_to_vmem [thread:$0]  %s268, 64, %s271, %s259
        $region32: #{bilstm_forward.2} parent=15 // pred_fallthru
          _
      $region16: #{bilstm_forward.2} parent=5 // pred_fallthru
        _
      %p274 = scmp.le.s32.totalorder 1, %s16
      %p275 = scmp.lt.s32.totalorder %s16, 5
      %p276 = pnand %p274, %p275
      %p277 = pneg %p276
      // Predicated region
      $region33: #{bilstm_forward.2} parent=5 // pred_check
        _
      $region34: #{bilstm_forward.2} parent=5 // pred_check_branch
        %279 = sbr.rel (%p276) target = $region36
      $region35: #{bilstm_forward.2} parent=5 // pred_region
        %s280 = ssub.s32 %s16, 1
        %s281 = sand.u32 %s75, 1
        %s282 = scalar_lea.sflag [#allocation6], %s281
        %s283 = sand.u32 %s75, 1
        %s284 = smul.addr %s283, 32
        %s285 = scalar_lea.vmem [#allocation5], %s284
        // Predicated region
        $region37: #{bilstm_forward.2} parent=35 // pred_check
          %p286 = pneg %p88
        $region38: #{bilstm_forward.2} parent=35 // pred_check_branch
          %288 = sbr.rel (%p286) target = $region40
        $region39: #{bilstm_forward.2} parent=35 // pred_region
          %289 = dma.done %s282, 512
        $region40: #{bilstm_forward.2} parent=35 // pred_fallthru
          _
        %s290 = sand.u32 %s21, 1
        %s291 = scalar_lea.sflag [#allocation8], %s290
        %s292 = sand.u32 %s101, 1
        %s293 = smul.addr %s292, 256
        %s294 = scalar_lea.vmem [#allocation7], %s293
        // Predicated region
        $region41: #{bilstm_forward.2} parent=35 // pred_check
          %p295 = pneg %p114
        $region42: #{bilstm_forward.2} parent=35 // pred_check_branch
          %297 = sbr.rel (%p295) target = $region44
        $region43: #{bilstm_forward.2} parent=35 // pred_region
          %298 = dma.done %s291, 4096
        $region44: #{bilstm_forward.2} parent=35 // pred_fallthru
          _
        %s299 = sand.u32 %s21, 1
        %s300 = scalar_lea.sflag [#allocation8], %s299
        %s301 = sand.u32 %s127, 1
        %s302 = smul.addr %s301, 4
        %s303 = scalar_lea.vmem [#allocation9], %s302
        // Predicated region
        $region45: #{bilstm_forward.2} parent=35 // pred_check
          %p304 = pneg %p140
        $region46: #{bilstm_forward.2} parent=35 // pred_check_branch
          %306 = sbr.rel (%p304) target = $region48
        $region47: #{bilstm_forward.2} parent=35 // pred_region
          %307 = dma.done %s300, 64
        $region48: #{bilstm_forward.2} parent=35 // pred_fallthru
          _
        %s308 = smul.u32 %s25, 2
        %s309 = ssub.s32 1, %s308
        %s310 = smul.u32 %s26, %s309
        %s311 = sadd.s32 %s310, %s25
        %s312 = smul.u32 4, %s311
        %p313 = scmp.lt.s32.totalorder %s312, 7
        %s314 = scalar_select %p313, %s312, 7
        %s315 = smul.addr %s314, 2
        %s316 = smul.addr %s315, 8
        %s317 = scalar_lea.vmem %s0, %s316
        %p318 = pneg %p62
        %p319 = pneg %p59
        %s320 = sand.u32 %s75, 1
        %s321 = scalar_lea.sflag [#allocation6], %s320
        %s322 = sand.u32 %s75, 1
        %s323 = smul.addr %s322, 32
        %s324 = scalar_lea.vmem [#allocation5], %s323
        %p325 = pneg %p88
        %p326 = pneg %p85
        %s327 = sand.u32 %s21, 1
        %s328 = scalar_lea.sflag [#allocation8], %s327
        %s329 = sand.u32 %s101, 1
        %s330 = smul.addr %s329, 256
        %s331 = scalar_lea.vmem [#allocation7], %s330
        %p332 = pneg %p114
        %p333 = pneg %p111
        %s334 = sand.u32 %s21, 1
        %s335 = scalar_lea.sflag [#allocation8], %s334
        %s336 = sand.u32 %s127, 1
        %s337 = smul.addr %s336, 4
        %s338 = scalar_lea.vmem [#allocation9], %s337
        %p339 = pneg %p140
        %p340 = pneg %p137
        %p341 = pneg %p176
        %p342 = pneg %p173
        %s343 = sand.u32 %s163, 1
        %s344 = sand.u32 %s163, 1
        %s345 = smul.addr %s344, 32
        %s346 = scalar_lea.vmem [#allocation10], %s345
        %s347 = smul.u32 %s25, 2
        %s348 = ssub.s32 1, %s347
        %s349 = smul.u32 %s26, %s348
        %s350 = sadd.s32 %s349, %s25
        %s351 = smul.u32 4, %s350
        %p352 = scmp.lt.s32.totalorder %s351, 7
        %s353 = scalar_select %p352, %s351, 7
        %s354 = smul.addr %s353, 2
        %s355 = smul.addr %s354, 8
        %s356 = scalar_lea.vmem %s0, %s355
        %s357 = smul.u32 %s25, 2
        %s358 = ssub.s32 1, %s357
        %s359 = smul.u32 %s26, %s358
        %s360 = sadd.s32 %s359, %s25
        %s361 = smul.u32 4, %s360
        %s362 = smul.u32 %s25, 2
        %s363 = ssub.s32 1, %s362
        %s364 = smul.u32 %s26, %s363
        %s365 = sadd.s32 %s364, %s25
        %s366 = smul.u32 4, %s365
        %v368 = vld [vmem:[%s356] sm:$0xff]
        %v369 = vld [vmem:[%s356 + $0x8] sm:$0xff]
        %v370 = vld [vmem:[%s356 + $0x10] sm:$0xff]
        %v371 = vld [vmem:[%s356 + $0x18] sm:$0xff]
        %v372 = vld [vmem:[%s356 + $0x20] sm:$0xff]
        %v373 = vld [vmem:[%s356 + $0x28] sm:$0xff]
        %v374 = vld [vmem:[%s356 + $0x30] sm:$0xff]
        %v375 = vld [vmem:[%s356 + $0x38] sm:$0xff]
        %v376 = vpack.c.bf16 %v369, %v368
        %v377 = vpack.c.bf16 %v371, %v370
        %v378 = vpack.c.bf16 %v373, %v372
        %v379 = vpack.c.bf16 %v375, %v374
        %v380 = vld [vmem:[%s285] sm:$0xff]
        %v381 = vld [vmem:[%s285 + $0x8] sm:$0xff]
        %v382 = vld [vmem:[%s285 + $0x10] sm:$0xff]
        %v383 = vld [vmem:[%s285 + $0x18] sm:$0xff]
        %v384 = vld [vmem:[%s303] sm:$0xf]
        %v386 = vlaneseq
        %v387 = vshrl.u32 %v386, 7
        %v388 = vsub.s32 0, %v387
        %v389 = vrot.slane %v384, %v388
        %v390 = vlaneseq
        %v391 = vshrl.u32 %v390, 7
        %v392 = vsub.s32 1, %v391
        %v393 = vrot.slane %v384, %v392
        %v394 = vlaneseq
        %v395 = vshrl.u32 %v394, 7
        %v396 = vsub.s32 2, %v395
        %v397 = vrot.slane %v384, %v396
        %v398 = vlaneseq
        %v399 = vshrl.u32 %v398, 7
        %v400 = vsub.s32 3, %v399
        %v401 = vrot.slane %v384, %v400
        %v410 = vunpack.c.l.b16 %v380
        %v411 = vunpack.c.h.b16 %v380
        %v412 = vunpack.c.l.b16 %v381
        %v413 = vunpack.c.h.b16 %v381
        %v414 = vunpack.c.l.b16 %v382
        %v415 = vunpack.c.h.b16 %v382
        %v416 = vunpack.c.l.b16 %v383
        %v417 = vunpack.c.h.b16 %v383
        %v418 = vpack.c.b16 %v414, %v410
        %v419 = vpack.c.b16 %v415, %v411
        %v420 = vpack.c.b16 %v416, %v412
        %v421 = vpack.c.b16 %v417, %v413
        %vm426 = vcmask 130048
        %v428 = vsel %vm426, %v376, 0
        %v431 = vsel %vm426, %v377, 0
        %v434 = vsel %vm426, %v378, 0
        %v437 = vsel %vm426, %v379, 0
        %439 = vmatprep.subr.bf16.mxu0 0
        %440 = vmatpush1.bf16.msra.mxu0 0
        %441 = vmatprep.subr.bf16.mxu0 0
        %442 = vmatpush1.bf16.msra.mxu0 0
        %443 = vmatprep.subr.bf16.mxu0 0
        %444 = vmatpush1.bf16.msra.mxu0 0
        %445 = vmatprep.subr.bf16.mxu0 0
        %446 = vmatpush1.bf16.msra.mxu0 0
        %447 = vmatprep.subr.bf16.mxu0 0
        %448 = vmatpush1.bf16.msra.mxu0 0
        %449 = vmatprep.subr.bf16.mxu0 0
        %450 = vmatpush1.bf16.msra.mxu0 0
        %451 = vmatprep.subr.bf16.mxu0 0
        %452 = vmatpush1.bf16.msra.mxu0 0
        %453 = vmatprep.subr.bf16.mxu0 %v419
        %454 = vmatpush1.bf16.msra.mxu0 %v418
        %455 = vmatprep.subr.bf16.mxu0 0
        %456 = vmatpush2.bf16.msra.mxu0 0
        %457 = vmatprep.subr.bf16.mxu0 0
        %458 = vmatpush2.bf16.msra.mxu0 0
        %459 = vmatprep.subr.bf16.mxu0 0
        %460 = vmatpush2.bf16.msra.mxu0 0
        %461 = vmatprep.subr.bf16.mxu0 0
        %462 = vmatpush2.bf16.msra.mxu0 0
        %463 = vmatprep.subr.bf16.mxu0 0
        %464 = vmatpush2.bf16.msra.mxu0 0
        %465 = vmatprep.subr.bf16.mxu0 0
        %466 = vmatpush2.bf16.msra.mxu0 0
        %467 = vmatprep.subr.bf16.mxu0 0
        %468 = vmatpush2.bf16.msra.mxu0 0
        %469 = vmatprep.subr.bf16.mxu0 0
        %470 = vmatpush2.bf16.msra.mxu0 0
        %471 = vmatprep.mubr.bf16.mxu0 0
        %472 = vmatmul.mubr.bf16.gmra.mxu0 %v428
        %v473 = vpop.f32.mrf.mxu0
        %v474 = vadd.f32 %v389, %v473
        %v475 = vpop.f32.mrf.mxu0
        %v476 = vadd.f32 %v393, %v475
        %v477 = vpop.f32.mrf.mxu0
        %v478 = vadd.f32 %v389, %v477
        %v479 = vpop.f32.mrf.mxu0
        %v480 = vadd.f32 %v393, %v479
        %481 = vmatprep.mubr.bf16.mxu0 0
        %482 = vmatmul.mubr.bf16.gmra.mxu0 %v431
        %v483 = vpop.f32.mrf.mxu0
        %v484 = vadd.f32 %v389, %v483
        %v485 = vpop.f32.mrf.mxu0
        %v486 = vadd.f32 %v393, %v485
        %v487 = vpop.f32.mrf.mxu0
        %v488 = vadd.f32 %v389, %v487
        %v489 = vpop.f32.mrf.mxu0
        %v490 = vadd.f32 %v393, %v489
        %491 = vmatprep.mubr.bf16.mxu0 0
        %492 = vmatmul.mubr.bf16.gmra.mxu0 %v434
        %v493 = vpop.f32.mrf.mxu0
        %v494 = vadd.f32 %v389, %v493
        %v495 = vpop.f32.mrf.mxu0
        %v496 = vadd.f32 %v393, %v495
        %v497 = vpop.f32.mrf.mxu0
        %v498 = vadd.f32 %v389, %v497
        %v499 = vpop.f32.mrf.mxu0
        %v500 = vadd.f32 %v393, %v499
        %501 = vmatprep.mubr.bf16.mxu0 0
        %502 = vmatmul.mubr.bf16.gmra.mxu0 %v437
        %v503 = vpop.f32.mrf.mxu0
        %v504 = vadd.f32 %v389, %v503
        %v505 = vpop.f32.mrf.mxu0
        %v506 = vadd.f32 %v393, %v505
        %v507 = vpop.f32.mrf.mxu0
        %v508 = vadd.f32 %v389, %v507
        %v509 = vpop.f32.mrf.mxu0
        %v510 = vadd.f32 %v393, %v509
        %511 = vdwg.mxu0
        %512 = vmatprep.subr.bf16.mxu0 0
        %513 = vmatpush1.bf16.msra.mxu0 0
        %514 = vmatprep.subr.bf16.mxu0 0
        %515 = vmatpush1.bf16.msra.mxu0 0
        %516 = vmatprep.subr.bf16.mxu0 0
        %517 = vmatpush1.bf16.msra.mxu0 0
        %518 = vmatprep.subr.bf16.mxu0 0
        %519 = vmatpush1.bf16.msra.mxu0 0
        %520 = vmatprep.subr.bf16.mxu0 0
        %521 = vmatpush1.bf16.msra.mxu0 0
        %522 = vmatprep.subr.bf16.mxu0 0
        %523 = vmatpush1.bf16.msra.mxu0 0
        %524 = vmatprep.subr.bf16.mxu0 0
        %525 = vmatpush1.bf16.msra.mxu0 0
        %526 = vmatprep.subr.bf16.mxu0 %v421
        %527 = vmatpush1.bf16.msra.mxu0 %v420
        %528 = vmatprep.subr.bf16.mxu0 0
        %529 = vmatpush2.bf16.msra.mxu0 0
        %530 = vmatprep.subr.bf16.mxu0 0
        %531 = vmatpush2.bf16.msra.mxu0 0
        %532 = vmatprep.subr.bf16.mxu0 0
        %533 = vmatpush2.bf16.msra.mxu0 0
        %534 = vmatprep.subr.bf16.mxu0 0
        %535 = vmatpush2.bf16.msra.mxu0 0
        %536 = vmatprep.subr.bf16.mxu0 0
        %537 = vmatpush2.bf16.msra.mxu0 0
        %538 = vmatprep.subr.bf16.mxu0 0
        %539 = vmatpush2.bf16.msra.mxu0 0
        %540 = vmatprep.subr.bf16.mxu0 0
        %541 = vmatpush2.bf16.msra.mxu0 0
        %542 = vmatprep.subr.bf16.mxu0 0
        %543 = vmatpush2.bf16.msra.mxu0 0
        %544 = vmatprep.mubr.bf16.mxu0 0
        %545 = vmatmul.mubr.bf16.gmra.mxu0 %v428
        %v546 = vpop.f32.mrf.mxu0
        %v547 = vadd.f32 %v397, %v546
        %v548 = vpop.f32.mrf.mxu0
        %v549 = vadd.f32 %v401, %v548
        %v550 = vpop.f32.mrf.mxu0
        %v551 = vadd.f32 %v397, %v550
        %v552 = vpop.f32.mrf.mxu0
        %v553 = vadd.f32 %v401, %v552
        %554 = vmatprep.mubr.bf16.mxu0 0
        %555 = vmatmul.mubr.bf16.gmra.mxu0 %v431
        %v556 = vpop.f32.mrf.mxu0
        %v557 = vadd.f32 %v397, %v556
        %v558 = vpop.f32.mrf.mxu0
        %v559 = vadd.f32 %v401, %v558
        %v560 = vpop.f32.mrf.mxu0
        %v561 = vadd.f32 %v397, %v560
        %v562 = vpop.f32.mrf.mxu0
        %v563 = vadd.f32 %v401, %v562
        %564 = vmatprep.mubr.bf16.mxu0 0
        %565 = vmatmul.mubr.bf16.gmra.mxu0 %v434
        %v566 = vpop.f32.mrf.mxu0
        %v567 = vadd.f32 %v397, %v566
        %v568 = vpop.f32.mrf.mxu0
        %v569 = vadd.f32 %v401, %v568
        %v570 = vpop.f32.mrf.mxu0
        %v571 = vadd.f32 %v397, %v570
        %v572 = vpop.f32.mrf.mxu0
        %v573 = vadd.f32 %v401, %v572
        %574 = vmatprep.mubr.bf16.mxu0 0
        %575 = vmatmul.mubr.bf16.gmra.mxu0 %v437
        %v576 = vpop.f32.mrf.mxu0
        %v577 = vadd.f32 %v397, %v576
        %v578 = vpop.f32.mrf.mxu0
        %v579 = vadd.f32 %v401, %v578
        %v580 = vpop.f32.mrf.mxu0
        %v581 = vadd.f32 %v397, %v580
        %v582 = vpop.f32.mrf.mxu0
        %v583 = vadd.f32 %v401, %v582
        %584 = vdwg.mxu0
        %585 = vst [vmem:[#allocation2] sm:$0xff] %v474
        %586 = vst [vmem:[#allocation2 + $0x8] sm:$0xff] %v476
        %587 = vst [vmem:[#allocation2 + $0x10] sm:$0xff] %v547
        %588 = vst [vmem:[#allocation2 + $0x18] sm:$0xff] %v549
        %589 = vst [vmem:[#allocation2 + $0x20] sm:$0xff] %v478
        %590 = vst [vmem:[#allocation2 + $0x28] sm:$0xff] %v480
        %591 = vst [vmem:[#allocation2 + $0x30] sm:$0xff] %v551
        %592 = vst [vmem:[#allocation2 + $0x38] sm:$0xff] %v553
        %593 = vst [vmem:[#allocation2 + $0x40] sm:$0xff] %v484
        %594 = vst [vmem:[#allocation2 + $0x48] sm:$0xff] %v486
        %595 = vst [vmem:[#allocation2 + $0x50] sm:$0xff] %v557
        %596 = vst [vmem:[#allocation2 + $0x58] sm:$0xff] %v559
        %597 = vst [vmem:[#allocation2 + $0x60] sm:$0xff] %v488
        %598 = vst [vmem:[#allocation2 + $0x68] sm:$0xff] %v490
        %599 = vst [vmem:[#allocation2 + $0x70] sm:$0xff] %v561
        %600 = vst [vmem:[#allocation2 + $0x78] sm:$0xff] %v563
        %601 = vst [vmem:[#allocation2 + $0x80] sm:$0xff] %v494
        %602 = vst [vmem:[#allocation2 + $0x88] sm:$0xff] %v496
        %603 = vst [vmem:[#allocation2 + $0x90] sm:$0xff] %v567
        %604 = vst [vmem:[#allocation2 + $0x98] sm:$0xff] %v569
        %605 = vst [vmem:[#allocation2 + $0xa0] sm:$0xff] %v498
        %606 = vst [vmem:[#allocation2 + $0xa8] sm:$0xff] %v500
        %607 = vst [vmem:[#allocation2 + $0xb0] sm:$0xff] %v571
        %608 = vst [vmem:[#allocation2 + $0xb8] sm:$0xff] %v573
        %609 = vst [vmem:[#allocation2 + $0xc0] sm:$0xff] %v504
        %610 = vst [vmem:[#allocation2 + $0xc8] sm:$0xff] %v506
        %611 = vst [vmem:[#allocation2 + $0xd0] sm:$0xff] %v577
        %612 = vst [vmem:[#allocation2 + $0xd8] sm:$0xff] %v579
        %613 = vst [vmem:[#allocation2 + $0xe0] sm:$0xff] %v508
        %614 = vst [vmem:[#allocation2 + $0xe8] sm:$0xff] %v510
        %615 = vst [vmem:[#allocation2 + $0xf0] sm:$0xff] %v581
        %616 = vst [vmem:[#allocation2 + $0xf8] sm:$0xff] %v583
        %p617 = scmp.eq.s32.totalorder %s25, 0
        // Predicated region
        $region49: #{bilstm_forward.2} parent=35 // pred_check
          %p618 = pneg %p617
        $region50: #{bilstm_forward.2} parent=35 // pred_check_branch
          %620 = sbr.rel (%p618) target = $region52
        $region51: #{bilstm_forward.2} parent=35 // pred_region
          %p621 = scmp.eq.s32.totalorder %s26, 0
          // Predicated region
          $region53: #{bilstm_forward.2} parent=51 // pred_check
            %p622 = pneg %p621
          $region54: #{bilstm_forward.2} parent=51 // pred_check_branch
            %624 = sbr.rel (%p622) target = $region56
          $region55: #{bilstm_forward.2} parent=51 // pred_region
            %625 = vst [vmem:[#allocation3] sm:$0xff] 0.0
            %626 = vst [vmem:[#allocation3 + $0x8] sm:$0xff] 0.0
            %627 = vst [vmem:[#allocation4] sm:$0xff] 0.0
            %628 = vst [vmem:[#allocation4 + $0x8] sm:$0xff] 0.0
          $region56: #{bilstm_forward.2} parent=51 // pred_fallthru
            _
          %v629 = vld [vmem:[#allocation3] sm:$0xff]
          %v630 = vld [vmem:[#allocation3 + $0x8] sm:$0xff]
          %v631 = vld [vmem:[#allocation4] sm:$0xff]
          %v632 = vld [vmem:[#allocation4 + $0x8] sm:$0xff]
          %v633 = vld [vmem:[#allocation2] sm:$0xff]
          %v634 = vld [vmem:[#allocation2 + $0x8] sm:$0xff]
          %v635 = vld [vmem:[#allocation2 + $0x10] sm:$0xff]
          %v636 = vld [vmem:[#allocation2 + $0x18] sm:$0xff]
          %v637 = vld [vmem:[#allocation2 + $0x20] sm:$0xff]
          %v638 = vld [vmem:[#allocation2 + $0x28] sm:$0xff]
          %v639 = vld [vmem:[#allocation2 + $0x30] sm:$0xff]
          %v640 = vld [vmem:[#allocation2 + $0x38] sm:$0xff]
          %v641 = vpack.c.bf16 %v630, %v629
          %v642 = vld [vmem:[%s294] sm:$0xff]
          %v643 = vld [vmem:[%s294 + $0x8] sm:$0xff]
          %v644 = vld [vmem:[%s294 + $0x10] sm:$0xff]
          %v645 = vld [vmem:[%s294 + $0x18] sm:$0xff]
          %v646 = vld [vmem:[%s294 + $0x20] sm:$0xff]
          %v647 = vld [vmem:[%s294 + $0x28] sm:$0xff]
          %v648 = vld [vmem:[%s294 + $0x30] sm:$0xff]
          %v649 = vld [vmem:[%s294 + $0x38] sm:$0xff]
          %v650 = vld [vmem:[%s294 + $0x40] sm:$0xff]
          %v651 = vld [vmem:[%s294 + $0x48] sm:$0xff]
          %v652 = vld [vmem:[%s294 + $0x50] sm:$0xff]
          %v653 = vld [vmem:[%s294 + $0x58] sm:$0xff]
          %v654 = vld [vmem:[%s294 + $0x60] sm:$0xff]
          %v655 = vld [vmem:[%s294 + $0x68] sm:$0xff]
          %v656 = vld [vmem:[%s294 + $0x70] sm:$0xff]
          %v657 = vld [vmem:[%s294 + $0x78] sm:$0xff]
          %v658 = vld [vmem:[%s294 + $0x80] sm:$0xff]
          %v659 = vld [vmem:[%s294 + $0x88] sm:$0xff]
          %v660 = vld [vmem:[%s294 + $0x90] sm:$0xff]
          %v661 = vld [vmem:[%s294 + $0x98] sm:$0xff]
          %v662 = vld [vmem:[%s294 + $0xa0] sm:$0xff]
          %v663 = vld [vmem:[%s294 + $0xa8] sm:$0xff]
          %v664 = vld [vmem:[%s294 + $0xb0] sm:$0xff]
          %v665 = vld [vmem:[%s294 + $0xb8] sm:$0xff]
          %v666 = vld [vmem:[%s294 + $0xc0] sm:$0xff]
          %v667 = vld [vmem:[%s294 + $0xc8] sm:$0xff]
          %v668 = vld [vmem:[%s294 + $0xd0] sm:$0xff]
          %v669 = vld [vmem:[%s294 + $0xd8] sm:$0xff]
          %v670 = vld [vmem:[%s294 + $0xe0] sm:$0xff]
          %v671 = vld [vmem:[%s294 + $0xe8] sm:$0xff]
          %v672 = vld [vmem:[%s294 + $0xf0] sm:$0xff]
          %v673 = vld [vmem:[%s294 + $0xf8] sm:$0xff]
          %v706 = vunpack.c.l.b16 %v642
          %v707 = vunpack.c.h.b16 %v642
          %v708 = vunpack.c.l.b16 %v643
          %v709 = vunpack.c.h.b16 %v643
          %v710 = vunpack.c.l.b16 %v644
          %v711 = vunpack.c.h.b16 %v644
          %v712 = vunpack.c.l.b16 %v645
          %v713 = vunpack.c.h.b16 %v645
          %v714 = vunpack.c.l.b16 %v646
          %v715 = vunpack.c.h.b16 %v646
          %v716 = vunpack.c.l.b16 %v647
          %v717 = vunpack.c.h.b16 %v647
          %v718 = vunpack.c.l.b16 %v648
          %v719 = vunpack.c.h.b16 %v648
          %v720 = vunpack.c.l.b16 %v649
          %v721 = vunpack.c.h.b16 %v649
          %v722 = vunpack.c.l.b16 %v650
          %v723 = vunpack.c.h.b16 %v650
          %v724 = vunpack.c.l.b16 %v651
          %v725 = vunpack.c.h.b16 %v651
          %v726 = vunpack.c.l.b16 %v652
          %v727 = vunpack.c.h.b16 %v652
          %v728 = vunpack.c.l.b16 %v653
          %v729 = vunpack.c.h.b16 %v653
          %v730 = vunpack.c.l.b16 %v654
          %v731 = vunpack.c.h.b16 %v654
          %v732 = vunpack.c.l.b16 %v655
          %v733 = vunpack.c.h.b16 %v655
          %v734 = vunpack.c.l.b16 %v656
          %v735 = vunpack.c.h.b16 %v656
          %v736 = vunpack.c.l.b16 %v657
          %v737 = vunpack.c.h.b16 %v657
          %v738 = vunpack.c.l.b16 %v658
          %v739 = vunpack.c.h.b16 %v658
          %v740 = vunpack.c.l.b16 %v659
          %v741 = vunpack.c.h.b16 %v659
          %v742 = vunpack.c.l.b16 %v660
          %v743 = vunpack.c.h.b16 %v660
          %v744 = vunpack.c.l.b16 %v661
          %v745 = vunpack.c.h.b16 %v661
          %v746 = vunpack.c.l.b16 %v662
          %v747 = vunpack.c.h.b16 %v662
          %v748 = vunpack.c.l.b16 %v663
          %v749 = vunpack.c.h.b16 %v663
          %v750 = vunpack.c.l.b16 %v664
          %v751 = vunpack.c.h.b16 %v664
          %v752 = vunpack.c.l.b16 %v665
          %v753 = vunpack.c.h.b16 %v665
          %v754 = vunpack.c.l.b16 %v666
          %v755 = vunpack.c.h.b16 %v666
          %v756 = vunpack.c.l.b16 %v667
          %v757 = vunpack.c.h.b16 %v667
          %v758 = vunpack.c.l.b16 %v668
          %v759 = vunpack.c.h.b16 %v668
          %v760 = vunpack.c.l.b16 %v669
          %v761 = vunpack.c.h.b16 %v669
          %v762 = vunpack.c.l.b16 %v670
          %v763 = vunpack.c.h.b16 %v670
          %v764 = vunpack.c.l.b16 %v671
          %v765 = vunpack.c.h.b16 %v671
          %v766 = vunpack.c.l.b16 %v672
          %v767 = vunpack.c.h.b16 %v672
          %v768 = vunpack.c.l.b16 %v673
          %v769 = vunpack.c.h.b16 %v673
          %v770 = vpack.c.b16 %v710, %v706
          %v771 = vpack.c.b16 %v711, %v707
          %v772 = vpack.c.b16 %v712, %v708
          %v773 = vpack.c.b16 %v713, %v709
          %v774 = vpack.c.b16 %v718, %v714
          %v775 = vpack.c.b16 %v719, %v715
          %v776 = vpack.c.b16 %v720, %v716
          %v777 = vpack.c.b16 %v721, %v717
          %v778 = vpack.c.b16 %v726, %v722
          %v779 = vpack.c.b16 %v727, %v723
          %v780 = vpack.c.b16 %v728, %v724
          %v781 = vpack.c.b16 %v729, %v725
          %v782 = vpack.c.b16 %v734, %v730
          %v783 = vpack.c.b16 %v735, %v731
          %v784 = vpack.c.b16 %v736, %v732
          %v785 = vpack.c.b16 %v737, %v733
          %v786 = vpack.c.b16 %v742, %v738
          %v787 = vpack.c.b16 %v743, %v739
          %v788 = vpack.c.b16 %v744, %v740
          %v789 = vpack.c.b16 %v745, %v741
          %v790 = vpack.c.b16 %v750, %v746
          %v791 = vpack.c.b16 %v751, %v747
          %v792 = vpack.c.b16 %v752, %v748
          %v793 = vpack.c.b16 %v753, %v749
          %v794 = vpack.c.b16 %v758, %v754
          %v795 = vpack.c.b16 %v759, %v755
          %v796 = vpack.c.b16 %v760, %v756
          %v797 = vpack.c.b16 %v761, %v757
          %v798 = vpack.c.b16 %v766, %v762
          %v799 = vpack.c.b16 %v767, %v763
          %v800 = vpack.c.b16 %v768, %v764
          %v801 = vpack.c.b16 %v769, %v765
          %834 = vmatprep.subr.bf16.mxu0 %v799
          %835 = vmatpush1.bf16.msra.mxu0 %v798
          %836 = vmatprep.subr.bf16.mxu0 %v795
          %837 = vmatpush1.bf16.msra.mxu0 %v794
          %838 = vmatprep.subr.bf16.mxu0 %v791
          %839 = vmatpush1.bf16.msra.mxu0 %v790
          %840 = vmatprep.subr.bf16.mxu0 %v787
          %841 = vmatpush1.bf16.msra.mxu0 %v786
          %842 = vmatprep.subr.bf16.mxu0 %v783
          %843 = vmatpush1.bf16.msra.mxu0 %v782
          %844 = vmatprep.subr.bf16.mxu0 %v779
          %845 = vmatpush1.bf16.msra.mxu0 %v778
          %846 = vmatprep.subr.bf16.mxu0 %v775
          %847 = vmatpush1.bf16.msra.mxu0 %v774
          %848 = vmatprep.subr.bf16.mxu0 %v771
          %849 = vmatpush1.bf16.msra.mxu0 %v770
          %850 = vmatprep.subr.bf16.mxu0 0
          %851 = vmatpush2.bf16.msra.mxu0 0
          %852 = vmatprep.subr.bf16.mxu0 0
          %853 = vmatpush2.bf16.msra.mxu0 0
          %854 = vmatprep.subr.bf16.mxu0 0
          %855 = vmatpush2.bf16.msra.mxu0 0
          %856 = vmatprep.subr.bf16.mxu0 0
          %857 = vmatpush2.bf16.msra.mxu0 0
          %858 = vmatprep.subr.bf16.mxu0 0
          %859 = vmatpush2.bf16.msra.mxu0 0
          %860 = vmatprep.subr.bf16.mxu0 0
          %861 = vmatpush2.bf16.msra.mxu0 0
          %862 = vmatprep.subr.bf16.mxu0 0
          %863 = vmatpush2.bf16.msra.mxu0 0
          %864 = vmatprep.subr.bf16.mxu0 0
          %865 = vmatpush2.bf16.msra.mxu0 0
          %866 = vmatprep.mubr.bf16.mxu0 0
          %867 = vmatmul.mubr.bf16.gmra.mxu0 %v641
          %v868 = vpop.f32.mrf.mxu0
          %v869 = vadd.f32 0.0, %v868
          %v870 = vpop.f32.mrf.mxu0
          %v871 = vadd.f32 0.0, %v870
          %v872 = vpop.f32.mrf.mxu0
          %v873 = vadd.f32 0.0, %v872
          %v874 = vpop.f32.mrf.mxu0
          %v875 = vadd.f32 0.0, %v874
          %876 = vdwg.mxu0
          %877 = vmatprep.subr.bf16.mxu0 %v801
          %878 = vmatpush1.bf16.msra.mxu0 %v800
          %879 = vmatprep.subr.bf16.mxu0 %v797
          %880 = vmatpush1.bf16.msra.mxu0 %v796
          %881 = vmatprep.subr.bf16.mxu0 %v793
          %882 = vmatpush1.bf16.msra.mxu0 %v792
          %883 = vmatprep.subr.bf16.mxu0 %v789
          %884 = vmatpush1.bf16.msra.mxu0 %v788
          %885 = vmatprep.subr.bf16.mxu0 %v785
          %886 = vmatpush1.bf16.msra.mxu0 %v784
          %887 = vmatprep.subr.bf16.mxu0 %v781
          %888 = vmatpush1.bf16.msra.mxu0 %v780
          %889 = vmatprep.subr.bf16.mxu0 %v777
          %890 = vmatpush1.bf16.msra.mxu0 %v776
          %891 = vmatprep.subr.bf16.mxu0 %v773
          %892 = vmatpush1.bf16.msra.mxu0 %v772
          %893 = vmatprep.subr.bf16.mxu0 0
          %894 = vmatpush2.bf16.msra.mxu0 0
          %895 = vmatprep.subr.bf16.mxu0 0
          %896 = vmatpush2.bf16.msra.mxu0 0
          %897 = vmatprep.subr.bf16.mxu0 0
          %898 = vmatpush2.bf16.msra.mxu0 0
          %899 = vmatprep.subr.bf16.mxu0 0
          %900 = vmatpush2.bf16.msra.mxu0 0
          %901 = vmatprep.subr.bf16.mxu0 0
          %902 = vmatpush2.bf16.msra.mxu0 0
          %903 = vmatprep.subr.bf16.mxu0 0
          %904 = vmatpush2.bf16.msra.mxu0 0
          %905 = vmatprep.subr.bf16.mxu0 0
          %906 = vmatpush2.bf16.msra.mxu0 0
          %907 = vmatprep.subr.bf16.mxu0 0
          %908 = vmatpush2.bf16.msra.mxu0 0
          %909 = vmatprep.mubr.bf16.mxu0 0
          %910 = vmatmul.mubr.bf16.gmra.mxu0 %v641
          %v911 = vpop.f32.mrf.mxu0
          %v912 = vadd.f32 0.0, %v911
          %v913 = vpop.f32.mrf.mxu0
          %v914 = vadd.f32 0.0, %v913
          %v915 = vpop.f32.mrf.mxu0
          %v916 = vadd.f32 0.0, %v915
          %v917 = vpop.f32.mrf.mxu0
          %v918 = vadd.f32 0.0, %v917
          %919 = vdwg.mxu0
          %v920 = vadd.f32 %v633, %v869
          %v921 = vadd.f32 %v634, %v871
          %v922 = vadd.f32 %v635, %v912
          %v923 = vadd.f32 %v636, %v914
          %v924 = vadd.f32 %v637, %v873
          %v925 = vadd.f32 %v638, %v875
          %v926 = vadd.f32 %v639, %v916
          %v927 = vadd.f32 %v640, %v918
          %v928 = vmul.f32 %v920, 0.5
          %v929 = vmul.f32 %v924, 0.5
          %v930 = vtanh.pop %v928
          %v931 = vtanh.pop %v929
          %v932 = vadd.f32 %v930, 1.0
          %v933 = vadd.f32 %v931, 1.0
          %v934 = vmul.f32 %v932, 0.5
          %v935 = vmul.f32 %v933, 0.5
          %v936 = vmul.f32 %v921, 0.5
          %v937 = vmul.f32 %v925, 0.5
          %v938 = vtanh.pop %v936
          %v939 = vtanh.pop %v937
          %v940 = vadd.f32 %v938, 1.0
          %v941 = vadd.f32 %v939, 1.0
          %v942 = vmul.f32 %v940, 0.5
          %v943 = vmul.f32 %v941, 0.5
          %v944 = vtanh.pop %v922
          %v945 = vtanh.pop %v926
          %v946 = vmul.f32 %v923, 0.5
          %v947 = vmul.f32 %v927, 0.5
          %v948 = vtanh.pop %v946
          %v949 = vtanh.pop %v947
          %v950 = vadd.f32 %v948, 1.0
          %v951 = vadd.f32 %v949, 1.0
          %v952 = vmul.f32 %v950, 0.5
          %v953 = vmul.f32 %v951, 0.5
          %v954 = vmul.f32 %v942, %v631
          %v955 = vmul.f32 %v943, %v632
          %v956 = vmul.f32 %v934, %v944
          %v957 = vmul.f32 %v935, %v945
          %v958 = vadd.f32 %v954, %v956
          %v959 = vadd.f32 %v955, %v957
          %v960 = vtanh.pop %v958
          %v961 = vtanh.pop %v959
          %v962 = vmul.f32 %v952, %v960
          %v963 = vmul.f32 %v953, %v961
          %v964 = vpack.c.bf16 %v963, %v962
          %v966 = vunpack.c.l.b16 %v964
          %v967 = vunpack.c.h.b16 %v964
          %v968 = vpack.c.b16 %v966, %v966
          %v969 = vpack.c.b16 %v967, %v967
          %972 = vst [vmem:[%s346] sm:$0xf] %v968
          %973 = vst [vmem:[%s346 + $0x4] sm:$0xf] %v969
          %s974 = scalar_lea.vmem [#allocation2], 64
          %v975 = vld [vmem:[%s974] sm:$0xff]
          %v976 = vld [vmem:[%s974 + $0x8] sm:$0xff]
          %v977 = vld [vmem:[%s974 + $0x10] sm:$0xff]
          %v978 = vld [vmem:[%s974 + $0x18] sm:$0xff]
          %v979 = vld [vmem:[%s974 + $0x20] sm:$0xff]
          %v980 = vld [vmem:[%s974 + $0x28] sm:$0xff]
          %v981 = vld [vmem:[%s974 + $0x30] sm:$0xff]
          %v982 = vld [vmem:[%s974 + $0x38] sm:$0xff]
          %v983 = vld [vmem:[%s294] sm:$0xff]
          %v984 = vld [vmem:[%s294 + $0x8] sm:$0xff]
          %v985 = vld [vmem:[%s294 + $0x10] sm:$0xff]
          %v986 = vld [vmem:[%s294 + $0x18] sm:$0xff]
          %v987 = vld [vmem:[%s294 + $0x20] sm:$0xff]
          %v988 = vld [vmem:[%s294 + $0x28] sm:$0xff]
          %v989 = vld [vmem:[%s294 + $0x30] sm:$0xff]
          %v990 = vld [vmem:[%s294 + $0x38] sm:$0xff]
          %v991 = vld [vmem:[%s294 + $0x40] sm:$0xff]
          %v992 = vld [vmem:[%s294 + $0x48] sm:$0xff]
          %v993 = vld [vmem:[%s294 + $0x50] sm:$0xff]
          %v994 = vld [vmem:[%s294 + $0x58] sm:$0xff]
          %v995 = vld [vmem:[%s294 + $0x60] sm:$0xff]
          %v996 = vld [vmem:[%s294 + $0x68] sm:$0xff]
          %v997 = vld [vmem:[%s294 + $0x70] sm:$0xff]
          %v998 = vld [vmem:[%s294 + $0x78] sm:$0xff]
          %v999 = vld [vmem:[%s294 + $0x80] sm:$0xff]
          %v1000 = vld [vmem:[%s294 + $0x88] sm:$0xff]
          %v1001 = vld [vmem:[%s294 + $0x90] sm:$0xff]
          %v1002 = vld [vmem:[%s294 + $0x98] sm:$0xff]
          %v1003 = vld [vmem:[%s294 + $0xa0] sm:$0xff]
          %v1004 = vld [vmem:[%s294 + $0xa8] sm:$0xff]
          %v1005 = vld [vmem:[%s294 + $0xb0] sm:$0xff]
          %v1006 = vld [vmem:[%s294 + $0xb8] sm:$0xff]
          %v1007 = vld [vmem:[%s294 + $0xc0] sm:$0xff]
          %v1008 = vld [vmem:[%s294 + $0xc8] sm:$0xff]
          %v1009 = vld [vmem:[%s294 + $0xd0] sm:$0xff]
          %v1010 = vld [vmem:[%s294 + $0xd8] sm:$0xff]
          %v1011 = vld [vmem:[%s294 + $0xe0] sm:$0xff]
          %v1012 = vld [vmem:[%s294 + $0xe8] sm:$0xff]
          %v1013 = vld [vmem:[%s294 + $0xf0] sm:$0xff]
          %v1014 = vld [vmem:[%s294 + $0xf8] sm:$0xff]
          %v1047 = vunpack.c.l.b16 %v983
          %v1048 = vunpack.c.h.b16 %v983
          %v1049 = vunpack.c.l.b16 %v984
          %v1050 = vunpack.c.h.b16 %v984
          %v1051 = vunpack.c.l.b16 %v985
          %v1052 = vunpack.c.h.b16 %v985
          %v1053 = vunpack.c.l.b16 %v986
          %v1054 = vunpack.c.h.b16 %v986
          %v1055 = vunpack.c.l.b16 %v987
          %v1056 = vunpack.c.h.b16 %v987
          %v1057 = vunpack.c.l.b16 %v988
          %v1058 = vunpack.c.h.b16 %v988
          %v1059 = vunpack.c.l.b16 %v989
          %v1060 = vunpack.c.h.b16 %v989
          %v1061 = vunpack.c.l.b16 %v990
          %v1062 = vunpack.c.h.b16 %v990
          %v1063 = vunpack.c.l.b16 %v991
          %v1064 = vunpack.c.h.b16 %v991
          %v1065 = vunpack.c.l.b16 %v992
          %v1066 = vunpack.c.h.b16 %v992
          %v1067 = vunpack.c.l.b16 %v993
          %v1068 = vunpack.c.h.b16 %v993
          %v1069 = vunpack.c.l.b16 %v994
          %v1070 = vunpack.c.h.b16 %v994
          %v1071 = vunpack.c.l.b16 %v995
          %v1072 = vunpack.c.h.b16 %v995
          %v1073 = vunpack.c.l.b16 %v996
          %v1074 = vunpack.c.h.b16 %v996
          %v1075 = vunpack.c.l.b16 %v997
          %v1076 = vunpack.c.h.b16 %v997
          %v1077 = vunpack.c.l.b16 %v998
          %v1078 = vunpack.c.h.b16 %v998
          %v1079 = vunpack.c.l.b16 %v999
          %v1080 = vunpack.c.h.b16 %v999
          %v1081 = vunpack.c.l.b16 %v1000
          %v1082 = vunpack.c.h.b16 %v1000
          %v1083 = vunpack.c.l.b16 %v1001
          %v1084 = vunpack.c.h.b16 %v1001
          %v1085 = vunpack.c.l.b16 %v1002
          %v1086 = vunpack.c.h.b16 %v1002
          %v1087 = vunpack.c.l.b16 %v1003
          %v1088 = vunpack.c.h.b16 %v1003
          %v1089 = vunpack.c.l.b16 %v1004
          %v1090 = vunpack.c.h.b16 %v1004
          %v1091 = vunpack.c.l.b16 %v1005
          %v1092 = vunpack.c.h.b16 %v1005
          %v1093 = vunpack.c.l.b16 %v1006
          %v1094 = vunpack.c.h.b16 %v1006
          %v1095 = vunpack.c.l.b16 %v1007
          %v1096 = vunpack.c.h.b16 %v1007
          %v1097 = vunpack.c.l.b16 %v1008
          %v1098 = vunpack.c.h.b16 %v1008
          %v1099 = vunpack.c.l.b16 %v1009
          %v1100 = vunpack.c.h.b16 %v1009
          %v1101 = vunpack.c.l.b16 %v1010
          %v1102 = vunpack.c.h.b16 %v1010
          %v1103 = vunpack.c.l.b16 %v1011
          %v1104 = vunpack.c.h.b16 %v1011
          %v1105 = vunpack.c.l.b16 %v1012
          %v1106 = vunpack.c.h.b16 %v1012
          %v1107 = vunpack.c.l.b16 %v1013
          %v1108 = vunpack.c.h.b16 %v1013
          %v1109 = vunpack.c.l.b16 %v1014
          %v1110 = vunpack.c.h.b16 %v1014
          %v1111 = vpack.c.b16 %v1051, %v1047
          %v1112 = vpack.c.b16 %v1052, %v1048
          %v1113 = vpack.c.b16 %v1053, %v1049
          %v1114 = vpack.c.b16 %v1054, %v1050
          %v1115 = vpack.c.b16 %v1059, %v1055
          %v1116 = vpack.c.b16 %v1060, %v1056
          %v1117 = vpack.c.b16 %v1061, %v1057
          %v1118 = vpack.c.b16 %v1062, %v1058
          %v1119 = vpack.c.b16 %v1067, %v1063
          %v1120 = vpack.c.b16 %v1068, %v1064
          %v1121 = vpack.c.b16 %v1069, %v1065
          %v1122 = vpack.c.b16 %v1070, %v1066
          %v1123 = vpack.c.b16 %v1075, %v1071
          %v1124 = vpack.c.b16 %v1076, %v1072
          %v1125 = vpack.c.b16 %v1077, %v1073
          %v1126 = vpack.c.b16 %v1078, %v1074
          %v1127 = vpack.c.b16 %v1083, %v1079
          %v1128 = vpack.c.b16 %v1084, %v1080
          %v1129 = vpack.c.b16 %v1085, %v1081
          %v1130 = vpack.c.b16 %v1086, %v1082
          %v1131 = vpack.c.b16 %v1091, %v1087
          %v1132 = vpack.c.b16 %v1092, %v1088
          %v1133 = vpack.c.b16 %v1093, %v1089
          %v1134 = vpack.c.b16 %v1094, %v1090
          %v1135 = vpack.c.b16 %v1099, %v1095
          %v1136 = vpack.c.b16 %v1100, %v1096
          %v1137 = vpack.c.b16 %v1101, %v1097
          %v1138 = vpack.c.b16 %v1102, %v1098
          %v1139 = vpack.c.b16 %v1107, %v1103
          %v1140 = vpack.c.b16 %v1108, %v1104
          %v1141 = vpack.c.b16 %v1109, %v1105
          %v1142 = vpack.c.b16 %v1110, %v1106
          %1175 = vmatprep.subr.bf16.mxu0 %v1140
          %1176 = vmatpush1.bf16.msra.mxu0 %v1139
          %1177 = vmatprep.subr.bf16.mxu0 %v1136
          %1178 = vmatpush1.bf16.msra.mxu0 %v1135
          %1179 = vmatprep.subr.bf16.mxu0 %v1132
          %1180 = vmatpush1.bf16.msra.mxu0 %v1131
          %1181 = vmatprep.subr.bf16.mxu0 %v1128
          %1182 = vmatpush1.bf16.msra.mxu0 %v1127
          %1183 = vmatprep.subr.bf16.mxu0 %v1124
          %1184 = vmatpush1.bf16.msra.mxu0 %v1123
          %1185 = vmatprep.subr.bf16.mxu0 %v1120
          %1186 = vmatpush1.bf16.msra.mxu0 %v1119
          %1187 = vmatprep.subr.bf16.mxu0 %v1116
          %1188 = vmatpush1.bf16.msra.mxu0 %v1115
          %1189 = vmatprep.subr.bf16.mxu0 %v1112
          %1190 = vmatpush1.bf16.msra.mxu0 %v1111
          %1191 = vmatprep.subr.bf16.mxu0 0
          %1192 = vmatpush2.bf16.msra.mxu0 0
          %1193 = vmatprep.subr.bf16.mxu0 0
          %1194 = vmatpush2.bf16.msra.mxu0 0
          %1195 = vmatprep.subr.bf16.mxu0 0
          %1196 = vmatpush2.bf16.msra.mxu0 0
          %1197 = vmatprep.subr.bf16.mxu0 0
          %1198 = vmatpush2.bf16.msra.mxu0 0
          %1199 = vmatprep.subr.bf16.mxu0 0
          %1200 = vmatpush2.bf16.msra.mxu0 0
          %1201 = vmatprep.subr.bf16.mxu0 0
          %1202 = vmatpush2.bf16.msra.mxu0 0
          %1203 = vmatprep.subr.bf16.mxu0 0
          %1204 = vmatpush2.bf16.msra.mxu0 0
          %1205 = vmatprep.subr.bf16.mxu0 0
          %1206 = vmatpush2.bf16.msra.mxu0 0
          %1207 = vmatprep.mubr.bf16.mxu0 0
          %1208 = vmatmul.mubr.bf16.gmra.mxu0 %v964
          %v1209 = vpop.f32.mrf.mxu0
          %v1210 = vadd.f32 0.0, %v1209
          %v1211 = vpop.f32.mrf.mxu0
          %v1212 = vadd.f32 0.0, %v1211
          %v1213 = vpop.f32.mrf.mxu0
          %v1214 = vadd.f32 0.0, %v1213
          %v1215 = vpop.f32.mrf.mxu0
          %v1216 = vadd.f32 0.0, %v1215
          %1217 = vdwg.mxu0
          %1218 = vmatprep.subr.bf16.mxu0 %v1142
          %1219 = vmatpush1.bf16.msra.mxu0 %v1141
          %1220 = vmatprep.subr.bf16.mxu0 %v1138
          %1221 = vmatpush1.bf16.msra.mxu0 %v1137
          %1222 = vmatprep.subr.bf16.mxu0 %v1134
          %1223 = vmatpush1.bf16.msra.mxu0 %v1133
          %1224 = vmatprep.subr.bf16.mxu0 %v1130
          %1225 = vmatpush1.bf16.msra.mxu0 %v1129
          %1226 = vmatprep.subr.bf16.mxu0 %v1126
          %1227 = vmatpush1.bf16.msra.mxu0 %v1125
          %1228 = vmatprep.subr.bf16.mxu0 %v1122
          %1229 = vmatpush1.bf16.msra.mxu0 %v1121
          %1230 = vmatprep.subr.bf16.mxu0 %v1118
          %1231 = vmatpush1.bf16.msra.mxu0 %v1117
          %1232 = vmatprep.subr.bf16.mxu0 %v1114
          %1233 = vmatpush1.bf16.msra.mxu0 %v1113
          %1234 = vmatprep.subr.bf16.mxu0 0
          %1235 = vmatpush2.bf16.msra.mxu0 0
          %1236 = vmatprep.subr.bf16.mxu0 0
          %1237 = vmatpush2.bf16.msra.mxu0 0
          %1238 = vmatprep.subr.bf16.mxu0 0
          %1239 = vmatpush2.bf16.msra.mxu0 0
          %1240 = vmatprep.subr.bf16.mxu0 0
          %1241 = vmatpush2.bf16.msra.mxu0 0
          %1242 = vmatprep.subr.bf16.mxu0 0
          %1243 = vmatpush2.bf16.msra.mxu0 0
          %1244 = vmatprep.subr.bf16.mxu0 0
          %1245 = vmatpush2.bf16.msra.mxu0 0
          %1246 = vmatprep.subr.bf16.mxu0 0
          %1247 = vmatpush2.bf16.msra.mxu0 0
          %1248 = vmatprep.subr.bf16.mxu0 0
          %1249 = vmatpush2.bf16.msra.mxu0 0
          %1250 = vmatprep.mubr.bf16.mxu0 0
          %1251 = vmatmul.mubr.bf16.gmra.mxu0 %v964
          %v1252 = vpop.f32.mrf.mxu0
          %v1253 = vadd.f32 0.0, %v1252
          %v1254 = vpop.f32.mrf.mxu0
          %v1255 = vadd.f32 0.0, %v1254
          %v1256 = vpop.f32.mrf.mxu0
          %v1257 = vadd.f32 0.0, %v1256
          %v1258 = vpop.f32.mrf.mxu0
          %v1259 = vadd.f32 0.0, %v1258
          %1260 = vdwg.mxu0
          %v1261 = vadd.f32 %v975, %v1210
          %v1262 = vadd.f32 %v976, %v1212
          %v1263 = vadd.f32 %v977, %v1253
          %v1264 = vadd.f32 %v978, %v1255
          %v1265 = vadd.f32 %v979, %v1214
          %v1266 = vadd.f32 %v980, %v1216
          %v1267 = vadd.f32 %v981, %v1257
          %v1268 = vadd.f32 %v982, %v1259
          %v1269 = vmul.f32 %v1261, 0.5
          %v1270 = vmul.f32 %v1265, 0.5
          %v1271 = vtanh.pop %v1269
          %v1272 = vtanh.pop %v1270
          %v1273 = vadd.f32 %v1271, 1.0
          %v1274 = vadd.f32 %v1272, 1.0
          %v1275 = vmul.f32 %v1273, 0.5
          %v1276 = vmul.f32 %v1274, 0.5
          %v1277 = vmul.f32 %v1262, 0.5
          %v1278 = vmul.f32 %v1266, 0.5
          %v1279 = vtanh.pop %v1277
          %v1280 = vtanh.pop %v1278
          %v1281 = vadd.f32 %v1279, 1.0
          %v1282 = vadd.f32 %v1280, 1.0
          %v1283 = vmul.f32 %v1281, 0.5
          %v1284 = vmul.f32 %v1282, 0.5
          %v1285 = vtanh.pop %v1263
          %v1286 = vtanh.pop %v1267
          %v1287 = vmul.f32 %v1264, 0.5
          %v1288 = vmul.f32 %v1268, 0.5
          %v1289 = vtanh.pop %v1287
          %v1290 = vtanh.pop %v1288
          %v1291 = vadd.f32 %v1289, 1.0
          %v1292 = vadd.f32 %v1290, 1.0
          %v1293 = vmul.f32 %v1291, 0.5
          %v1294 = vmul.f32 %v1292, 0.5
          %v1295 = vmul.f32 %v1283, %v958
          %v1296 = vmul.f32 %v1284, %v959
          %v1297 = vmul.f32 %v1275, %v1285
          %v1298 = vmul.f32 %v1276, %v1286
          %v1299 = vadd.f32 %v1295, %v1297
          %v1300 = vadd.f32 %v1296, %v1298
          %v1301 = vtanh.pop %v1299
          %v1302 = vtanh.pop %v1300
          %v1303 = vmul.f32 %v1293, %v1301
          %v1304 = vmul.f32 %v1294, %v1302
          %v1305 = vpack.c.bf16 %v1304, %v1303
          %v1307 = vunpack.c.l.b16 %v1305
          %v1308 = vunpack.c.h.b16 %v1305
          %v1309 = vpack.c.b16 %v1307, %v1307
          %v1310 = vpack.c.b16 %v1308, %v1308
          %s1313 = scalar_lea.vmem %s346, 8 [#allocation10]
          %1314 = vst [vmem:[%s1313] sm:$0xf] %v1309
          %1315 = vst [vmem:[%s1313 + $0x4] sm:$0xf] %v1310
          %s1316 = scalar_lea.vmem [#allocation2], 128
          %v1317 = vld [vmem:[%s1316] sm:$0xff]
          %v1318 = vld [vmem:[%s1316 + $0x8] sm:$0xff]
          %v1319 = vld [vmem:[%s1316 + $0x10] sm:$0xff]
          %v1320 = vld [vmem:[%s1316 + $0x18] sm:$0xff]
          %v1321 = vld [vmem:[%s1316 + $0x20] sm:$0xff]
          %v1322 = vld [vmem:[%s1316 + $0x28] sm:$0xff]
          %v1323 = vld [vmem:[%s1316 + $0x30] sm:$0xff]
          %v1324 = vld [vmem:[%s1316 + $0x38] sm:$0xff]
          %v1325 = vld [vmem:[%s294] sm:$0xff]
          %v1326 = vld [vmem:[%s294 + $0x8] sm:$0xff]
          %v1327 = vld [vmem:[%s294 + $0x10] sm:$0xff]
          %v1328 = vld [vmem:[%s294 + $0x18] sm:$0xff]
          %v1329 = vld [vmem:[%s294 + $0x20] sm:$0xff]
          %v1330 = vld [vmem:[%s294 + $0x28] sm:$0xff]
          %v1331 = vld [vmem:[%s294 + $0x30] sm:$0xff]
          %v1332 = vld [vmem:[%s294 + $0x38] sm:$0xff]
          %v1333 = vld [vmem:[%s294 + $0x40] sm:$0xff]
          %v1334 = vld [vmem:[%s294 + $0x48] sm:$0xff]
          %v1335 = vld [vmem:[%s294 + $0x50] sm:$0xff]
          %v1336 = vld [vmem:[%s294 + $0x58] sm:$0xff]
          %v1337 = vld [vmem:[%s294 + $0x60] sm:$0xff]
          %v1338 = vld [vmem:[%s294 + $0x68] sm:$0xff]
          %v1339 = vld [vmem:[%s294 + $0x70] sm:$0xff]
          %v1340 = vld [vmem:[%s294 + $0x78] sm:$0xff]
          %v1341 = vld [vmem:[%s294 + $0x80] sm:$0xff]
          %v1342 = vld [vmem:[%s294 + $0x88] sm:$0xff]
          %v1343 = vld [vmem:[%s294 + $0x90] sm:$0xff]
          %v1344 = vld [vmem:[%s294 + $0x98] sm:$0xff]
          %v1345 = vld [vmem:[%s294 + $0xa0] sm:$0xff]
          %v1346 = vld [vmem:[%s294 + $0xa8] sm:$0xff]
          %v1347 = vld [vmem:[%s294 + $0xb0] sm:$0xff]
          %v1348 = vld [vmem:[%s294 + $0xb8] sm:$0xff]
          %v1349 = vld [vmem:[%s294 + $0xc0] sm:$0xff]
          %v1350 = vld [vmem:[%s294 + $0xc8] sm:$0xff]
          %v1351 = vld [vmem:[%s294 + $0xd0] sm:$0xff]
          %v1352 = vld [vmem:[%s294 + $0xd8] sm:$0xff]
          %v1353 = vld [vmem:[%s294 + $0xe0] sm:$0xff]
          %v1354 = vld [vmem:[%s294 + $0xe8] sm:$0xff]
          %v1355 = vld [vmem:[%s294 + $0xf0] sm:$0xff]
          %v1356 = vld [vmem:[%s294 + $0xf8] sm:$0xff]
          %v1389 = vunpack.c.l.b16 %v1325
          %v1390 = vunpack.c.h.b16 %v1325
          %v1391 = vunpack.c.l.b16 %v1326
          %v1392 = vunpack.c.h.b16 %v1326
          %v1393 = vunpack.c.l.b16 %v1327
          %v1394 = vunpack.c.h.b16 %v1327
          %v1395 = vunpack.c.l.b16 %v1328
          %v1396 = vunpack.c.h.b16 %v1328
          %v1397 = vunpack.c.l.b16 %v1329
          %v1398 = vunpack.c.h.b16 %v1329
          %v1399 = vunpack.c.l.b16 %v1330
          %v1400 = vunpack.c.h.b16 %v1330
          %v1401 = vunpack.c.l.b16 %v1331
          %v1402 = vunpack.c.h.b16 %v1331
          %v1403 = vunpack.c.l.b16 %v1332
          %v1404 = vunpack.c.h.b16 %v1332
          %v1405 = vunpack.c.l.b16 %v1333
          %v1406 = vunpack.c.h.b16 %v1333
          %v1407 = vunpack.c.l.b16 %v1334
          %v1408 = vunpack.c.h.b16 %v1334
          %v1409 = vunpack.c.l.b16 %v1335
          %v1410 = vunpack.c.h.b16 %v1335
          %v1411 = vunpack.c.l.b16 %v1336
          %v1412 = vunpack.c.h.b16 %v1336
          %v1413 = vunpack.c.l.b16 %v1337
          %v1414 = vunpack.c.h.b16 %v1337
          %v1415 = vunpack.c.l.b16 %v1338
          %v1416 = vunpack.c.h.b16 %v1338
          %v1417 = vunpack.c.l.b16 %v1339
          %v1418 = vunpack.c.h.b16 %v1339
          %v1419 = vunpack.c.l.b16 %v1340
          %v1420 = vunpack.c.h.b16 %v1340
          %v1421 = vunpack.c.l.b16 %v1341
          %v1422 = vunpack.c.h.b16 %v1341
          %v1423 = vunpack.c.l.b16 %v1342
          %v1424 = vunpack.c.h.b16 %v1342
          %v1425 = vunpack.c.l.b16 %v1343
          %v1426 = vunpack.c.h.b16 %v1343
          %v1427 = vunpack.c.l.b16 %v1344
          %v1428 = vunpack.c.h.b16 %v1344
          %v1429 = vunpack.c.l.b16 %v1345
          %v1430 = vunpack.c.h.b16 %v1345
          %v1431 = vunpack.c.l.b16 %v1346
          %v1432 = vunpack.c.h.b16 %v1346
          %v1433 = vunpack.c.l.b16 %v1347
          %v1434 = vunpack.c.h.b16 %v1347
          %v1435 = vunpack.c.l.b16 %v1348
          %v1436 = vunpack.c.h.b16 %v1348
          %v1437 = vunpack.c.l.b16 %v1349
          %v1438 = vunpack.c.h.b16 %v1349
          %v1439 = vunpack.c.l.b16 %v1350
          %v1440 = vunpack.c.h.b16 %v1350
          %v1441 = vunpack.c.l.b16 %v1351
          %v1442 = vunpack.c.h.b16 %v1351
          %v1443 = vunpack.c.l.b16 %v1352
          %v1444 = vunpack.c.h.b16 %v1352
          %v1445 = vunpack.c.l.b16 %v1353
          %v1446 = vunpack.c.h.b16 %v1353
          %v1447 = vunpack.c.l.b16 %v1354
          %v1448 = vunpack.c.h.b16 %v1354
          %v1449 = vunpack.c.l.b16 %v1355
          %v1450 = vunpack.c.h.b16 %v1355
          %v1451 = vunpack.c.l.b16 %v1356
          %v1452 = vunpack.c.h.b16 %v1356
          %v1453 = vpack.c.b16 %v1393, %v1389
          %v1454 = vpack.c.b16 %v1394, %v1390
          %v1455 = vpack.c.b16 %v1395, %v1391
          %v1456 = vpack.c.b16 %v1396, %v1392
          %v1457 = vpack.c.b16 %v1401, %v1397
          %v1458 = vpack.c.b16 %v1402, %v1398
          %v1459 = vpack.c.b16 %v1403, %v1399
          %v1460 = vpack.c.b16 %v1404, %v1400
          %v1461 = vpack.c.b16 %v1409, %v1405
          %v1462 = vpack.c.b16 %v1410, %v1406
          %v1463 = vpack.c.b16 %v1411, %v1407
          %v1464 = vpack.c.b16 %v1412, %v1408
          %v1465 = vpack.c.b16 %v1417, %v1413
          %v1466 = vpack.c.b16 %v1418, %v1414
          %v1467 = vpack.c.b16 %v1419, %v1415
          %v1468 = vpack.c.b16 %v1420, %v1416
          %v1469 = vpack.c.b16 %v1425, %v1421
          %v1470 = vpack.c.b16 %v1426, %v1422
          %v1471 = vpack.c.b16 %v1427, %v1423
          %v1472 = vpack.c.b16 %v1428, %v1424
          %v1473 = vpack.c.b16 %v1433, %v1429
          %v1474 = vpack.c.b16 %v1434, %v1430
          %v1475 = vpack.c.b16 %v1435, %v1431
          %v1476 = vpack.c.b16 %v1436, %v1432
          %v1477 = vpack.c.b16 %v1441, %v1437
          %v1478 = vpack.c.b16 %v1442, %v1438
          %v1479 = vpack.c.b16 %v1443, %v1439
          %v1480 = vpack.c.b16 %v1444, %v1440
          %v1481 = vpack.c.b16 %v1449, %v1445
          %v1482 = vpack.c.b16 %v1450, %v1446
          %v1483 = vpack.c.b16 %v1451, %v1447
          %v1484 = vpack.c.b16 %v1452, %v1448
          %1517 = vmatprep.subr.bf16.mxu0 %v1482
          %1518 = vmatpush1.bf16.msra.mxu0 %v1481
          %1519 = vmatprep.subr.bf16.mxu0 %v1478
          %1520 = vmatpush1.bf16.msra.mxu0 %v1477
          %1521 = vmatprep.subr.bf16.mxu0 %v1474
          %1522 = vmatpush1.bf16.msra.mxu0 %v1473
          %1523 = vmatprep.subr.bf16.mxu0 %v1470
          %1524 = vmatpush1.bf16.msra.mxu0 %v1469
          %1525 = vmatprep.subr.bf16.mxu0 %v1466
          %1526 = vmatpush1.bf16.msra.mxu0 %v1465
          %1527 = vmatprep.subr.bf16.mxu0 %v1462
          %1528 = vmatpush1.bf16.msra.mxu0 %v1461
          %1529 = vmatprep.subr.bf16.mxu0 %v1458
          %1530 = vmatpush1.bf16.msra.mxu0 %v1457
          %1531 = vmatprep.subr.bf16.mxu0 %v1454
          %1532 = vmatpush1.bf16.msra.mxu0 %v1453
          %1533 = vmatprep.subr.bf16.mxu0 0
          %1534 = vmatpush2.bf16.msra.mxu0 0
          %1535 = vmatprep.subr.bf16.mxu0 0
          %1536 = vmatpush2.bf16.msra.mxu0 0
          %1537 = vmatprep.subr.bf16.mxu0 0
          %1538 = vmatpush2.bf16.msra.mxu0 0
          %1539 = vmatprep.subr.bf16.mxu0 0
          %1540 = vmatpush2.bf16.msra.mxu0 0
          %1541 = vmatprep.subr.bf16.mxu0 0
          %1542 = vmatpush2.bf16.msra.mxu0 0
          %1543 = vmatprep.subr.bf16.mxu0 0
          %1544 = vmatpush2.bf16.msra.mxu0 0
          %1545 = vmatprep.subr.bf16.mxu0 0
          %1546 = vmatpush2.bf16.msra.mxu0 0
          %1547 = vmatprep.subr.bf16.mxu0 0
          %1548 = vmatpush2.bf16.msra.mxu0 0
          %1549 = vmatprep.mubr.bf16.mxu0 0
          %1550 = vmatmul.mubr.bf16.gmra.mxu0 %v1305
          %v1551 = vpop.f32.mrf.mxu0
          %v1552 = vadd.f32 0.0, %v1551
          %v1553 = vpop.f32.mrf.mxu0
          %v1554 = vadd.f32 0.0, %v1553
          %v1555 = vpop.f32.mrf.mxu0
          %v1556 = vadd.f32 0.0, %v1555
          %v1557 = vpop.f32.mrf.mxu0
          %v1558 = vadd.f32 0.0, %v1557
          %1559 = vdwg.mxu0
          %1560 = vmatprep.subr.bf16.mxu0 %v1484
          %1561 = vmatpush1.bf16.msra.mxu0 %v1483
          %1562 = vmatprep.subr.bf16.mxu0 %v1480
          %1563 = vmatpush1.bf16.msra.mxu0 %v1479
          %1564 = vmatprep.subr.bf16.mxu0 %v1476
          %1565 = vmatpush1.bf16.msra.mxu0 %v1475
          %1566 = vmatprep.subr.bf16.mxu0 %v1472
          %1567 = vmatpush1.bf16.msra.mxu0 %v1471
          %1568 = vmatprep.subr.bf16.mxu0 %v1468
          %1569 = vmatpush1.bf16.msra.mxu0 %v1467
          %1570 = vmatprep.subr.bf16.mxu0 %v1464
          %1571 = vmatpush1.bf16.msra.mxu0 %v1463
          %1572 = vmatprep.subr.bf16.mxu0 %v1460
          %1573 = vmatpush1.bf16.msra.mxu0 %v1459
          %1574 = vmatprep.subr.bf16.mxu0 %v1456
          %1575 = vmatpush1.bf16.msra.mxu0 %v1455
          %1576 = vmatprep.subr.bf16.mxu0 0
          %1577 = vmatpush2.bf16.msra.mxu0 0
          %1578 = vmatprep.subr.bf16.mxu0 0
          %1579 = vmatpush2.bf16.msra.mxu0 0
          %1580 = vmatprep.subr.bf16.mxu0 0
          %1581 = vmatpush2.bf16.msra.mxu0 0
          %1582 = vmatprep.subr.bf16.mxu0 0
          %1583 = vmatpush2.bf16.msra.mxu0 0
          %1584 = vmatprep.subr.bf16.mxu0 0
          %1585 = vmatpush2.bf16.msra.mxu0 0
          %1586 = vmatprep.subr.bf16.mxu0 0
          %1587 = vmatpush2.bf16.msra.mxu0 0
          %1588 = vmatprep.subr.bf16.mxu0 0
          %1589 = vmatpush2.bf16.msra.mxu0 0
          %1590 = vmatprep.subr.bf16.mxu0 0
          %1591 = vmatpush2.bf16.msra.mxu0 0
          %1592 = vmatprep.mubr.bf16.mxu0 0
          %1593 = vmatmul.mubr.bf16.gmra.mxu0 %v1305
          %v1594 = vpop.f32.mrf.mxu0
          %v1595 = vadd.f32 0.0, %v1594
          %v1596 = vpop.f32.mrf.mxu0
          %v1597 = vadd.f32 0.0, %v1596
          %v1598 = vpop.f32.mrf.mxu0
          %v1599 = vadd.f32 0.0, %v1598
          %v1600 = vpop.f32.mrf.mxu0
          %v1601 = vadd.f32 0.0, %v1600
          %1602 = vdwg.mxu0
          %v1603 = vadd.f32 %v1317, %v1552
          %v1604 = vadd.f32 %v1318, %v1554
          %v1605 = vadd.f32 %v1319, %v1595
          %v1606 = vadd.f32 %v1320, %v1597
          %v1607 = vadd.f32 %v1321, %v1556
          %v1608 = vadd.f32 %v1322, %v1558
          %v1609 = vadd.f32 %v1323, %v1599
          %v1610 = vadd.f32 %v1324, %v1601
          %v1611 = vmul.f32 %v1603, 0.5
          %v1612 = vmul.f32 %v1607, 0.5
          %v1613 = vtanh.pop %v1611
          %v1614 = vtanh.pop %v1612
          %v1615 = vadd.f32 %v1613, 1.0
          %v1616 = vadd.f32 %v1614, 1.0
          %v1617 = vmul.f32 %v1615, 0.5
          %v1618 = vmul.f32 %v1616, 0.5
          %v1619 = vmul.f32 %v1604, 0.5
          %v1620 = vmul.f32 %v1608, 0.5
          %v1621 = vtanh.pop %v1619
          %v1622 = vtanh.pop %v1620
          %v1623 = vadd.f32 %v1621, 1.0
          %v1624 = vadd.f32 %v1622, 1.0
          %v1625 = vmul.f32 %v1623, 0.5
          %v1626 = vmul.f32 %v1624, 0.5
          %v1627 = vtanh.pop %v1605
          %v1628 = vtanh.pop %v1609
          %v1629 = vmul.f32 %v1606, 0.5
          %v1630 = vmul.f32 %v1610, 0.5
          %v1631 = vtanh.pop %v1629
          %v1632 = vtanh.pop %v1630
          %v1633 = vadd.f32 %v1631, 1.0
          %v1634 = vadd.f32 %v1632, 1.0
          %v1635 = vmul.f32 %v1633, 0.5
          %v1636 = vmul.f32 %v1634, 0.5
          %v1637 = vmul.f32 %v1625, %v1299
          %v1638 = vmul.f32 %v1626, %v1300
          %v1639 = vmul.f32 %v1617, %v1627
          %v1640 = vmul.f32 %v1618, %v1628
          %v1641 = vadd.f32 %v1637, %v1639
          %v1642 = vadd.f32 %v1638, %v1640
          %v1643 = vtanh.pop %v1641
          %v1644 = vtanh.pop %v1642
          %v1645 = vmul.f32 %v1635, %v1643
          %v1646 = vmul.f32 %v1636, %v1644
          %v1647 = vpack.c.bf16 %v1646, %v1645
          %v1649 = vunpack.c.l.b16 %v1647
          %v1650 = vunpack.c.h.b16 %v1647
          %v1651 = vpack.c.b16 %v1649, %v1649
          %v1652 = vpack.c.b16 %v1650, %v1650
          %s1655 = scalar_lea.vmem %s346, 16 [#allocation10]
          %1656 = vst [vmem:[%s1655] sm:$0xf] %v1651
          %1657 = vst [vmem:[%s1655 + $0x4] sm:$0xf] %v1652
          %s1658 = scalar_lea.vmem [#allocation2], 192
          %v1659 = vld [vmem:[%s1658] sm:$0xff]
          %v1660 = vld [vmem:[%s1658 + $0x8] sm:$0xff]
          %v1661 = vld [vmem:[%s1658 + $0x10] sm:$0xff]
          %v1662 = vld [vmem:[%s1658 + $0x18] sm:$0xff]
          %v1663 = vld [vmem:[%s1658 + $0x20] sm:$0xff]
          %v1664 = vld [vmem:[%s1658 + $0x28] sm:$0xff]
          %v1665 = vld [vmem:[%s1658 + $0x30] sm:$0xff]
          %v1666 = vld [vmem:[%s1658 + $0x38] sm:$0xff]
          %v1667 = vld [vmem:[%s294] sm:$0xff]
          %v1668 = vld [vmem:[%s294 + $0x8] sm:$0xff]
          %v1669 = vld [vmem:[%s294 + $0x10] sm:$0xff]
          %v1670 = vld [vmem:[%s294 + $0x18] sm:$0xff]
          %v1671 = vld [vmem:[%s294 + $0x20] sm:$0xff]
          %v1672 = vld [vmem:[%s294 + $0x28] sm:$0xff]
          %v1673 = vld [vmem:[%s294 + $0x30] sm:$0xff]
          %v1674 = vld [vmem:[%s294 + $0x38] sm:$0xff]
          %v1675 = vld [vmem:[%s294 + $0x40] sm:$0xff]
          %v1676 = vld [vmem:[%s294 + $0x48] sm:$0xff]
          %v1677 = vld [vmem:[%s294 + $0x50] sm:$0xff]
          %v1678 = vld [vmem:[%s294 + $0x58] sm:$0xff]
          %v1679 = vld [vmem:[%s294 + $0x60] sm:$0xff]
          %v1680 = vld [vmem:[%s294 + $0x68] sm:$0xff]
          %v1681 = vld [vmem:[%s294 + $0x70] sm:$0xff]
          %v1682 = vld [vmem:[%s294 + $0x78] sm:$0xff]
          %v1683 = vld [vmem:[%s294 + $0x80] sm:$0xff]
          %v1684 = vld [vmem:[%s294 + $0x88] sm:$0xff]
          %v1685 = vld [vmem:[%s294 + $0x90] sm:$0xff]
          %v1686 = vld [vmem:[%s294 + $0x98] sm:$0xff]
          %v1687 = vld [vmem:[%s294 + $0xa0] sm:$0xff]
          %v1688 = vld [vmem:[%s294 + $0xa8] sm:$0xff]
          %v1689 = vld [vmem:[%s294 + $0xb0] sm:$0xff]
          %v1690 = vld [vmem:[%s294 + $0xb8] sm:$0xff]
          %v1691 = vld [vmem:[%s294 + $0xc0] sm:$0xff]
          %v1692 = vld [vmem:[%s294 + $0xc8] sm:$0xff]
          %v1693 = vld [vmem:[%s294 + $0xd0] sm:$0xff]
          %v1694 = vld [vmem:[%s294 + $0xd8] sm:$0xff]
          %v1695 = vld [vmem:[%s294 + $0xe0] sm:$0xff]
          %v1696 = vld [vmem:[%s294 + $0xe8] sm:$0xff]
          %v1697 = vld [vmem:[%s294 + $0xf0] sm:$0xff]
          %v1698 = vld [vmem:[%s294 + $0xf8] sm:$0xff]
          %v1731 = vunpack.c.l.b16 %v1667
          %v1732 = vunpack.c.h.b16 %v1667
          %v1733 = vunpack.c.l.b16 %v1668
          %v1734 = vunpack.c.h.b16 %v1668
          %v1735 = vunpack.c.l.b16 %v1669
          %v1736 = vunpack.c.h.b16 %v1669
          %v1737 = vunpack.c.l.b16 %v1670
          %v1738 = vunpack.c.h.b16 %v1670
          %v1739 = vunpack.c.l.b16 %v1671
          %v1740 = vunpack.c.h.b16 %v1671
          %v1741 = vunpack.c.l.b16 %v1672
          %v1742 = vunpack.c.h.b16 %v1672
          %v1743 = vunpack.c.l.b16 %v1673
          %v1744 = vunpack.c.h.b16 %v1673
          %v1745 = vunpack.c.l.b16 %v1674
          %v1746 = vunpack.c.h.b16 %v1674
          %v1747 = vunpack.c.l.b16 %v1675
          %v1748 = vunpack.c.h.b16 %v1675
          %v1749 = vunpack.c.l.b16 %v1676
          %v1750 = vunpack.c.h.b16 %v1676
          %v1751 = vunpack.c.l.b16 %v1677
          %v1752 = vunpack.c.h.b16 %v1677
          %v1753 = vunpack.c.l.b16 %v1678
          %v1754 = vunpack.c.h.b16 %v1678
          %v1755 = vunpack.c.l.b16 %v1679
          %v1756 = vunpack.c.h.b16 %v1679
          %v1757 = vunpack.c.l.b16 %v1680
          %v1758 = vunpack.c.h.b16 %v1680
          %v1759 = vunpack.c.l.b16 %v1681
          %v1760 = vunpack.c.h.b16 %v1681
          %v1761 = vunpack.c.l.b16 %v1682
          %v1762 = vunpack.c.h.b16 %v1682
          %v1763 = vunpack.c.l.b16 %v1683
          %v1764 = vunpack.c.h.b16 %v1683
          %v1765 = vunpack.c.l.b16 %v1684
          %v1766 = vunpack.c.h.b16 %v1684
          %v1767 = vunpack.c.l.b16 %v1685
          %v1768 = vunpack.c.h.b16 %v1685
          %v1769 = vunpack.c.l.b16 %v1686
          %v1770 = vunpack.c.h.b16 %v1686
          %v1771 = vunpack.c.l.b16 %v1687
          %v1772 = vunpack.c.h.b16 %v1687
          %v1773 = vunpack.c.l.b16 %v1688
          %v1774 = vunpack.c.h.b16 %v1688
          %v1775 = vunpack.c.l.b16 %v1689
          %v1776 = vunpack.c.h.b16 %v1689
          %v1777 = vunpack.c.l.b16 %v1690
          %v1778 = vunpack.c.h.b16 %v1690
          %v1779 = vunpack.c.l.b16 %v1691
          %v1780 = vunpack.c.h.b16 %v1691
          %v1781 = vunpack.c.l.b16 %v1692
          %v1782 = vunpack.c.h.b16 %v1692
          %v1783 = vunpack.c.l.b16 %v1693
          %v1784 = vunpack.c.h.b16 %v1693
          %v1785 = vunpack.c.l.b16 %v1694
          %v1786 = vunpack.c.h.b16 %v1694
          %v1787 = vunpack.c.l.b16 %v1695
          %v1788 = vunpack.c.h.b16 %v1695
          %v1789 = vunpack.c.l.b16 %v1696
          %v1790 = vunpack.c.h.b16 %v1696
          %v1791 = vunpack.c.l.b16 %v1697
          %v1792 = vunpack.c.h.b16 %v1697
          %v1793 = vunpack.c.l.b16 %v1698
          %v1794 = vunpack.c.h.b16 %v1698
          %v1795 = vpack.c.b16 %v1735, %v1731
          %v1796 = vpack.c.b16 %v1736, %v1732
          %v1797 = vpack.c.b16 %v1737, %v1733
          %v1798 = vpack.c.b16 %v1738, %v1734
          %v1799 = vpack.c.b16 %v1743, %v1739
          %v1800 = vpack.c.b16 %v1744, %v1740
          %v1801 = vpack.c.b16 %v1745, %v1741
          %v1802 = vpack.c.b16 %v1746, %v1742
          %v1803 = vpack.c.b16 %v1751, %v1747
          %v1804 = vpack.c.b16 %v1752, %v1748
          %v1805 = vpack.c.b16 %v1753, %v1749
          %v1806 = vpack.c.b16 %v1754, %v1750
          %v1807 = vpack.c.b16 %v1759, %v1755
          %v1808 = vpack.c.b16 %v1760, %v1756
          %v1809 = vpack.c.b16 %v1761, %v1757
          %v1810 = vpack.c.b16 %v1762, %v1758
          %v1811 = vpack.c.b16 %v1767, %v1763
          %v1812 = vpack.c.b16 %v1768, %v1764
          %v1813 = vpack.c.b16 %v1769, %v1765
          %v1814 = vpack.c.b16 %v1770, %v1766
          %v1815 = vpack.c.b16 %v1775, %v1771
          %v1816 = vpack.c.b16 %v1776, %v1772
          %v1817 = vpack.c.b16 %v1777, %v1773
          %v1818 = vpack.c.b16 %v1778, %v1774
          %v1819 = vpack.c.b16 %v1783, %v1779
          %v1820 = vpack.c.b16 %v1784, %v1780
          %v1821 = vpack.c.b16 %v1785, %v1781
          %v1822 = vpack.c.b16 %v1786, %v1782
          %v1823 = vpack.c.b16 %v1791, %v1787
          %v1824 = vpack.c.b16 %v1792, %v1788
          %v1825 = vpack.c.b16 %v1793, %v1789
          %v1826 = vpack.c.b16 %v1794, %v1790
          %1859 = vmatprep.subr.bf16.mxu0 %v1824
          %1860 = vmatpush1.bf16.msra.mxu0 %v1823
          %1861 = vmatprep.subr.bf16.mxu0 %v1820
          %1862 = vmatpush1.bf16.msra.mxu0 %v1819
          %1863 = vmatprep.subr.bf16.mxu0 %v1816
          %1864 = vmatpush1.bf16.msra.mxu0 %v1815
          %1865 = vmatprep.subr.bf16.mxu0 %v1812
          %1866 = vmatpush1.bf16.msra.mxu0 %v1811
          %1867 = vmatprep.subr.bf16.mxu0 %v1808
          %1868 = vmatpush1.bf16.msra.mxu0 %v1807
          %1869 = vmatprep.subr.bf16.mxu0 %v1804
          %1870 = vmatpush1.bf16.msra.mxu0 %v1803
          %1871 = vmatprep.subr.bf16.mxu0 %v1800
          %1872 = vmatpush1.bf16.msra.mxu0 %v1799
          %1873 = vmatprep.subr.bf16.mxu0 %v1796
          %1874 = vmatpush1.bf16.msra.mxu0 %v1795
          %1875 = vmatprep.subr.bf16.mxu0 0
          %1876 = vmatpush2.bf16.msra.mxu0 0
          %1877 = vmatprep.subr.bf16.mxu0 0
          %1878 = vmatpush2.bf16.msra.mxu0 0
          %1879 = vmatprep.subr.bf16.mxu0 0
          %1880 = vmatpush2.bf16.msra.mxu0 0
          %1881 = vmatprep.subr.bf16.mxu0 0
          %1882 = vmatpush2.bf16.msra.mxu0 0
          %1883 = vmatprep.subr.bf16.mxu0 0
          %1884 = vmatpush2.bf16.msra.mxu0 0
          %1885 = vmatprep.subr.bf16.mxu0 0
          %1886 = vmatpush2.bf16.msra.mxu0 0
          %1887 = vmatprep.subr.bf16.mxu0 0
          %1888 = vmatpush2.bf16.msra.mxu0 0
          %1889 = vmatprep.subr.bf16.mxu0 0
          %1890 = vmatpush2.bf16.msra.mxu0 0
          %1891 = vmatprep.mubr.bf16.mxu0 0
          %1892 = vmatmul.mubr.bf16.gmra.mxu0 %v1647
          %v1893 = vpop.f32.mrf.mxu0
          %v1894 = vadd.f32 0.0, %v1893
          %v1895 = vpop.f32.mrf.mxu0
          %v1896 = vadd.f32 0.0, %v1895
          %v1897 = vpop.f32.mrf.mxu0
          %v1898 = vadd.f32 0.0, %v1897
          %v1899 = vpop.f32.mrf.mxu0
          %v1900 = vadd.f32 0.0, %v1899
          %1901 = vdwg.mxu0
          %1902 = vmatprep.subr.bf16.mxu0 %v1826
          %1903 = vmatpush1.bf16.msra.mxu0 %v1825
          %1904 = vmatprep.subr.bf16.mxu0 %v1822
          %1905 = vmatpush1.bf16.msra.mxu0 %v1821
          %1906 = vmatprep.subr.bf16.mxu0 %v1818
          %1907 = vmatpush1.bf16.msra.mxu0 %v1817
          %1908 = vmatprep.subr.bf16.mxu0 %v1814
          %1909 = vmatpush1.bf16.msra.mxu0 %v1813
          %1910 = vmatprep.subr.bf16.mxu0 %v1810
          %1911 = vmatpush1.bf16.msra.mxu0 %v1809
          %1912 = vmatprep.subr.bf16.mxu0 %v1806
          %1913 = vmatpush1.bf16.msra.mxu0 %v1805
          %1914 = vmatprep.subr.bf16.mxu0 %v1802
          %1915 = vmatpush1.bf16.msra.mxu0 %v1801
          %1916 = vmatprep.subr.bf16.mxu0 %v1798
          %1917 = vmatpush1.bf16.msra.mxu0 %v1797
          %1918 = vmatprep.subr.bf16.mxu0 0
          %1919 = vmatpush2.bf16.msra.mxu0 0
          %1920 = vmatprep.subr.bf16.mxu0 0
          %1921 = vmatpush2.bf16.msra.mxu0 0
          %1922 = vmatprep.subr.bf16.mxu0 0
          %1923 = vmatpush2.bf16.msra.mxu0 0
          %1924 = vmatprep.subr.bf16.mxu0 0
          %1925 = vmatpush2.bf16.msra.mxu0 0
          %1926 = vmatprep.subr.bf16.mxu0 0
          %1927 = vmatpush2.bf16.msra.mxu0 0
          %1928 = vmatprep.subr.bf16.mxu0 0
          %1929 = vmatpush2.bf16.msra.mxu0 0
          %1930 = vmatprep.subr.bf16.mxu0 0
          %1931 = vmatpush2.bf16.msra.mxu0 0
          %1932 = vmatprep.subr.bf16.mxu0 0
          %1933 = vmatpush2.bf16.msra.mxu0 0
          %1934 = vmatprep.mubr.bf16.mxu0 0
          %1935 = vmatmul.mubr.bf16.gmra.mxu0 %v1647
          %v1936 = vpop.f32.mrf.mxu0
          %v1937 = vadd.f32 0.0, %v1936
          %v1938 = vpop.f32.mrf.mxu0
          %v1939 = vadd.f32 0.0, %v1938
          %v1940 = vpop.f32.mrf.mxu0
          %v1941 = vadd.f32 0.0, %v1940
          %v1942 = vpop.f32.mrf.mxu0
          %v1943 = vadd.f32 0.0, %v1942
          %1944 = vdwg.mxu0
          %v1945 = vadd.f32 %v1659, %v1894
          %v1946 = vadd.f32 %v1660, %v1896
          %v1947 = vadd.f32 %v1661, %v1937
          %v1948 = vadd.f32 %v1662, %v1939
          %v1949 = vadd.f32 %v1663, %v1898
          %v1950 = vadd.f32 %v1664, %v1900
          %v1951 = vadd.f32 %v1665, %v1941
          %v1952 = vadd.f32 %v1666, %v1943
          %v1953 = vmul.f32 %v1945, 0.5
          %v1954 = vmul.f32 %v1949, 0.5
          %v1955 = vtanh.pop %v1953
          %v1956 = vtanh.pop %v1954
          %v1957 = vadd.f32 %v1955, 1.0
          %v1958 = vadd.f32 %v1956, 1.0
          %v1959 = vmul.f32 %v1957, 0.5
          %v1960 = vmul.f32 %v1958, 0.5
          %v1961 = vmul.f32 %v1946, 0.5
          %v1962 = vmul.f32 %v1950, 0.5
          %v1963 = vtanh.pop %v1961
          %v1964 = vtanh.pop %v1962
          %v1965 = vadd.f32 %v1963, 1.0
          %v1966 = vadd.f32 %v1964, 1.0
          %v1967 = vmul.f32 %v1965, 0.5
          %v1968 = vmul.f32 %v1966, 0.5
          %v1969 = vtanh.pop %v1947
          %v1970 = vtanh.pop %v1951
          %v1971 = vmul.f32 %v1948, 0.5
          %v1972 = vmul.f32 %v1952, 0.5
          %v1973 = vtanh.pop %v1971
          %v1974 = vtanh.pop %v1972
          %v1975 = vadd.f32 %v1973, 1.0
          %v1976 = vadd.f32 %v1974, 1.0
          %v1977 = vmul.f32 %v1975, 0.5
          %v1978 = vmul.f32 %v1976, 0.5
          %v1979 = vmul.f32 %v1967, %v1641
          %v1980 = vmul.f32 %v1968, %v1642
          %v1981 = vmul.f32 %v1959, %v1969
          %v1982 = vmul.f32 %v1960, %v1970
          %v1983 = vadd.f32 %v1979, %v1981
          %v1984 = vadd.f32 %v1980, %v1982
          %v1985 = vtanh.pop %v1983
          %v1986 = vtanh.pop %v1984
          %v1987 = vmul.f32 %v1977, %v1985
          %v1988 = vmul.f32 %v1978, %v1986
          %v1989 = vpack.c.bf16 %v1988, %v1987
          %v1991 = vunpack.c.l.b16 %v1989
          %v1992 = vunpack.c.h.b16 %v1989
          %v1993 = vpack.c.b16 %v1991, %v1991
          %v1994 = vpack.c.b16 %v1992, %v1992
          %s1997 = scalar_lea.vmem %s346, 24 [#allocation10]
          %1998 = vst [vmem:[%s1997] sm:$0xf] %v1993
          %1999 = vst [vmem:[%s1997 + $0x4] sm:$0xf] %v1994
          %2000 = vst [vmem:[#allocation3] sm:$0xff] %v1987
          %2001 = vst [vmem:[#allocation3 + $0x8] sm:$0xff] %v1988
          %2002 = vst [vmem:[#allocation4] sm:$0xff] %v1983
          %2003 = vst [vmem:[#allocation4 + $0x8] sm:$0xff] %v1984
        $region52: #{bilstm_forward.2} parent=35 // pred_fallthru
          _
        %p2004 = scmp.eq.s32.totalorder %s25, 1
        // Predicated region
        $region57: #{bilstm_forward.2} parent=35 // pred_check
          %p2005 = pneg %p2004
        $region58: #{bilstm_forward.2} parent=35 // pred_check_branch
          %2007 = sbr.rel (%p2005) target = $region60
        $region59: #{bilstm_forward.2} parent=35 // pred_region
          %p2008 = scmp.eq.s32.totalorder %s26, 0
          // Predicated region
          $region61: #{bilstm_forward.2} parent=59 // pred_check
            %p2009 = pneg %p2008
          $region62: #{bilstm_forward.2} parent=59 // pred_check_branch
            %2011 = sbr.rel (%p2009) target = $region64
          $region63: #{bilstm_forward.2} parent=59 // pred_region
            %s2012 = scalar_lea.vmem [#allocation3], 16
            %2013 = vst [vmem:[%s2012] sm:$0xff] 0.0
            %2014 = vst [vmem:[%s2012 + $0x8] sm:$0xff] 0.0
            %s2015 = scalar_lea.vmem [#allocation4], 16
            %2016 = vst [vmem:[%s2015] sm:$0xff] 0.0
            %2017 = vst [vmem:[%s2015 + $0x8] sm:$0xff] 0.0
          $region64: #{bilstm_forward.2} parent=59 // pred_fallthru
            _
          %s2018 = scalar_lea.vmem [#allocation3], 16
          %v2019 = vld [vmem:[%s2018] sm:$0xff]
          %v2020 = vld [vmem:[%s2018 + $0x8] sm:$0xff]
          %s2021 = scalar_lea.vmem [#allocation4], 16
          %v2022 = vld [vmem:[%s2021] sm:$0xff]
          %v2023 = vld [vmem:[%s2021 + $0x8] sm:$0xff]
          %s2024 = scalar_lea.vmem [#allocation2], 192
          %v2025 = vld [vmem:[%s2024] sm:$0xff]
          %v2026 = vld [vmem:[%s2024 + $0x8] sm:$0xff]
          %v2027 = vld [vmem:[%s2024 + $0x10] sm:$0xff]
          %v2028 = vld [vmem:[%s2024 + $0x18] sm:$0xff]
          %v2029 = vld [vmem:[%s2024 + $0x20] sm:$0xff]
          %v2030 = vld [vmem:[%s2024 + $0x28] sm:$0xff]
          %v2031 = vld [vmem:[%s2024 + $0x30] sm:$0xff]
          %v2032 = vld [vmem:[%s2024 + $0x38] sm:$0xff]
          %v2033 = vpack.c.bf16 %v2020, %v2019
          %v2034 = vld [vmem:[%s294] sm:$0xff]
          %v2035 = vld [vmem:[%s294 + $0x8] sm:$0xff]
          %v2036 = vld [vmem:[%s294 + $0x10] sm:$0xff]
          %v2037 = vld [vmem:[%s294 + $0x18] sm:$0xff]
          %v2038 = vld [vmem:[%s294 + $0x20] sm:$0xff]
          %v2039 = vld [vmem:[%s294 + $0x28] sm:$0xff]
          %v2040 = vld [vmem:[%s294 + $0x30] sm:$0xff]
          %v2041 = vld [vmem:[%s294 + $0x38] sm:$0xff]
          %v2042 = vld [vmem:[%s294 + $0x40] sm:$0xff]
          %v2043 = vld [vmem:[%s294 + $0x48] sm:$0xff]
          %v2044 = vld [vmem:[%s294 + $0x50] sm:$0xff]
          %v2045 = vld [vmem:[%s294 + $0x58] sm:$0xff]
          %v2046 = vld [vmem:[%s294 + $0x60] sm:$0xff]
          %v2047 = vld [vmem:[%s294 + $0x68] sm:$0xff]
          %v2048 = vld [vmem:[%s294 + $0x70] sm:$0xff]
          %v2049 = vld [vmem:[%s294 + $0x78] sm:$0xff]
          %v2050 = vld [vmem:[%s294 + $0x80] sm:$0xff]
          %v2051 = vld [vmem:[%s294 + $0x88] sm:$0xff]
          %v2052 = vld [vmem:[%s294 + $0x90] sm:$0xff]
          %v2053 = vld [vmem:[%s294 + $0x98] sm:$0xff]
          %v2054 = vld [vmem:[%s294 + $0xa0] sm:$0xff]
          %v2055 = vld [vmem:[%s294 + $0xa8] sm:$0xff]
          %v2056 = vld [vmem:[%s294 + $0xb0] sm:$0xff]
          %v2057 = vld [vmem:[%s294 + $0xb8] sm:$0xff]
          %v2058 = vld [vmem:[%s294 + $0xc0] sm:$0xff]
          %v2059 = vld [vmem:[%s294 + $0xc8] sm:$0xff]
          %v2060 = vld [vmem:[%s294 + $0xd0] sm:$0xff]
          %v2061 = vld [vmem:[%s294 + $0xd8] sm:$0xff]
          %v2062 = vld [vmem:[%s294 + $0xe0] sm:$0xff]
          %v2063 = vld [vmem:[%s294 + $0xe8] sm:$0xff]
          %v2064 = vld [vmem:[%s294 + $0xf0] sm:$0xff]
          %v2065 = vld [vmem:[%s294 + $0xf8] sm:$0xff]
          %v2098 = vunpack.c.l.b16 %v2034
          %v2099 = vunpack.c.h.b16 %v2034
          %v2100 = vunpack.c.l.b16 %v2035
          %v2101 = vunpack.c.h.b16 %v2035
          %v2102 = vunpack.c.l.b16 %v2036
          %v2103 = vunpack.c.h.b16 %v2036
          %v2104 = vunpack.c.l.b16 %v2037
          %v2105 = vunpack.c.h.b16 %v2037
          %v2106 = vunpack.c.l.b16 %v2038
          %v2107 = vunpack.c.h.b16 %v2038
          %v2108 = vunpack.c.l.b16 %v2039
          %v2109 = vunpack.c.h.b16 %v2039
          %v2110 = vunpack.c.l.b16 %v2040
          %v2111 = vunpack.c.h.b16 %v2040
          %v2112 = vunpack.c.l.b16 %v2041
          %v2113 = vunpack.c.h.b16 %v2041
          %v2114 = vunpack.c.l.b16 %v2042
          %v2115 = vunpack.c.h.b16 %v2042
          %v2116 = vunpack.c.l.b16 %v2043
          %v2117 = vunpack.c.h.b16 %v2043
          %v2118 = vunpack.c.l.b16 %v2044
          %v2119 = vunpack.c.h.b16 %v2044
          %v2120 = vunpack.c.l.b16 %v2045
          %v2121 = vunpack.c.h.b16 %v2045
          %v2122 = vunpack.c.l.b16 %v2046
          %v2123 = vunpack.c.h.b16 %v2046
          %v2124 = vunpack.c.l.b16 %v2047
          %v2125 = vunpack.c.h.b16 %v2047
          %v2126 = vunpack.c.l.b16 %v2048
          %v2127 = vunpack.c.h.b16 %v2048
          %v2128 = vunpack.c.l.b16 %v2049
          %v2129 = vunpack.c.h.b16 %v2049
          %v2130 = vunpack.c.l.b16 %v2050
          %v2131 = vunpack.c.h.b16 %v2050
          %v2132 = vunpack.c.l.b16 %v2051
          %v2133 = vunpack.c.h.b16 %v2051
          %v2134 = vunpack.c.l.b16 %v2052
          %v2135 = vunpack.c.h.b16 %v2052
          %v2136 = vunpack.c.l.b16 %v2053
          %v2137 = vunpack.c.h.b16 %v2053
          %v2138 = vunpack.c.l.b16 %v2054
          %v2139 = vunpack.c.h.b16 %v2054
          %v2140 = vunpack.c.l.b16 %v2055
          %v2141 = vunpack.c.h.b16 %v2055
          %v2142 = vunpack.c.l.b16 %v2056
          %v2143 = vunpack.c.h.b16 %v2056
          %v2144 = vunpack.c.l.b16 %v2057
          %v2145 = vunpack.c.h.b16 %v2057
          %v2146 = vunpack.c.l.b16 %v2058
          %v2147 = vunpack.c.h.b16 %v2058
          %v2148 = vunpack.c.l.b16 %v2059
          %v2149 = vunpack.c.h.b16 %v2059
          %v2150 = vunpack.c.l.b16 %v2060
          %v2151 = vunpack.c.h.b16 %v2060
          %v2152 = vunpack.c.l.b16 %v2061
          %v2153 = vunpack.c.h.b16 %v2061
          %v2154 = vunpack.c.l.b16 %v2062
          %v2155 = vunpack.c.h.b16 %v2062
          %v2156 = vunpack.c.l.b16 %v2063
          %v2157 = vunpack.c.h.b16 %v2063
          %v2158 = vunpack.c.l.b16 %v2064
          %v2159 = vunpack.c.h.b16 %v2064
          %v2160 = vunpack.c.l.b16 %v2065
          %v2161 = vunpack.c.h.b16 %v2065
          %v2162 = vpack.c.b16 %v2102, %v2098
          %v2163 = vpack.c.b16 %v2103, %v2099
          %v2164 = vpack.c.b16 %v2104, %v2100
          %v2165 = vpack.c.b16 %v2105, %v2101
          %v2166 = vpack.c.b16 %v2110, %v2106
          %v2167 = vpack.c.b16 %v2111, %v2107
          %v2168 = vpack.c.b16 %v2112, %v2108
          %v2169 = vpack.c.b16 %v2113, %v2109
          %v2170 = vpack.c.b16 %v2118, %v2114
          %v2171 = vpack.c.b16 %v2119, %v2115
          %v2172 = vpack.c.b16 %v2120, %v2116
          %v2173 = vpack.c.b16 %v2121, %v2117
          %v2174 = vpack.c.b16 %v2126, %v2122
          %v2175 = vpack.c.b16 %v2127, %v2123
          %v2176 = vpack.c.b16 %v2128, %v2124
          %v2177 = vpack.c.b16 %v2129, %v2125
          %v2178 = vpack.c.b16 %v2134, %v2130
          %v2179 = vpack.c.b16 %v2135, %v2131
          %v2180 = vpack.c.b16 %v2136, %v2132
          %v2181 = vpack.c.b16 %v2137, %v2133
          %v2182 = vpack.c.b16 %v2142, %v2138
          %v2183 = vpack.c.b16 %v2143, %v2139
          %v2184 = vpack.c.b16 %v2144, %v2140
          %v2185 = vpack.c.b16 %v2145, %v2141
          %v2186 = vpack.c.b16 %v2150, %v2146
          %v2187 = vpack.c.b16 %v2151, %v2147
          %v2188 = vpack.c.b16 %v2152, %v2148
          %v2189 = vpack.c.b16 %v2153, %v2149
          %v2190 = vpack.c.b16 %v2158, %v2154
          %v2191 = vpack.c.b16 %v2159, %v2155
          %v2192 = vpack.c.b16 %v2160, %v2156
          %v2193 = vpack.c.b16 %v2161, %v2157
          %2226 = vmatprep.subr.bf16.mxu0 %v2191
          %2227 = vmatpush1.bf16.msra.mxu0 %v2190
          %2228 = vmatprep.subr.bf16.mxu0 %v2187
          %2229 = vmatpush1.bf16.msra.mxu0 %v2186
          %2230 = vmatprep.subr.bf16.mxu0 %v2183
          %2231 = vmatpush1.bf16.msra.mxu0 %v2182
          %2232 = vmatprep.subr.bf16.mxu0 %v2179
          %2233 = vmatpush1.bf16.msra.mxu0 %v2178
          %2234 = vmatprep.subr.bf16.mxu0 %v2175
          %2235 = vmatpush1.bf16.msra.mxu0 %v2174
          %2236 = vmatprep.subr.bf16.mxu0 %v2171
          %2237 = vmatpush1.bf16.msra.mxu0 %v2170
          %2238 = vmatprep.subr.bf16.mxu0 %v2167
          %2239 = vmatpush1.bf16.msra.mxu0 %v2166
          %2240 = vmatprep.subr.bf16.mxu0 %v2163
          %2241 = vmatpush1.bf16.msra.mxu0 %v2162
          %2242 = vmatprep.subr.bf16.mxu0 0
          %2243 = vmatpush2.bf16.msra.mxu0 0
          %2244 = vmatprep.subr.bf16.mxu0 0
          %2245 = vmatpush2.bf16.msra.mxu0 0
          %2246 = vmatprep.subr.bf16.mxu0 0
          %2247 = vmatpush2.bf16.msra.mxu0 0
          %2248 = vmatprep.subr.bf16.mxu0 0
          %2249 = vmatpush2.bf16.msra.mxu0 0
          %2250 = vmatprep.subr.bf16.mxu0 0
          %2251 = vmatpush2.bf16.msra.mxu0 0
          %2252 = vmatprep.subr.bf16.mxu0 0
          %2253 = vmatpush2.bf16.msra.mxu0 0
          %2254 = vmatprep.subr.bf16.mxu0 0
          %2255 = vmatpush2.bf16.msra.mxu0 0
          %2256 = vmatprep.subr.bf16.mxu0 0
          %2257 = vmatpush2.bf16.msra.mxu0 0
          %2258 = vmatprep.mubr.bf16.mxu0 0
          %2259 = vmatmul.mubr.bf16.gmra.mxu0 %v2033
          %v2260 = vpop.f32.mrf.mxu0
          %v2261 = vadd.f32 0.0, %v2260
          %v2262 = vpop.f32.mrf.mxu0
          %v2263 = vadd.f32 0.0, %v2262
          %v2264 = vpop.f32.mrf.mxu0
          %v2265 = vadd.f32 0.0, %v2264
          %v2266 = vpop.f32.mrf.mxu0
          %v2267 = vadd.f32 0.0, %v2266
          %2268 = vdwg.mxu0
          %2269 = vmatprep.subr.bf16.mxu0 %v2193
          %2270 = vmatpush1.bf16.msra.mxu0 %v2192
          %2271 = vmatprep.subr.bf16.mxu0 %v2189
          %2272 = vmatpush1.bf16.msra.mxu0 %v2188
          %2273 = vmatprep.subr.bf16.mxu0 %v2185
          %2274 = vmatpush1.bf16.msra.mxu0 %v2184
          %2275 = vmatprep.subr.bf16.mxu0 %v2181
          %2276 = vmatpush1.bf16.msra.mxu0 %v2180
          %2277 = vmatprep.subr.bf16.mxu0 %v2177
          %2278 = vmatpush1.bf16.msra.mxu0 %v2176
          %2279 = vmatprep.subr.bf16.mxu0 %v2173
          %2280 = vmatpush1.bf16.msra.mxu0 %v2172
          %2281 = vmatprep.subr.bf16.mxu0 %v2169
          %2282 = vmatpush1.bf16.msra.mxu0 %v2168
          %2283 = vmatprep.subr.bf16.mxu0 %v2165
          %2284 = vmatpush1.bf16.msra.mxu0 %v2164
          %2285 = vmatprep.subr.bf16.mxu0 0
          %2286 = vmatpush2.bf16.msra.mxu0 0
          %2287 = vmatprep.subr.bf16.mxu0 0
          %2288 = vmatpush2.bf16.msra.mxu0 0
          %2289 = vmatprep.subr.bf16.mxu0 0
          %2290 = vmatpush2.bf16.msra.mxu0 0
          %2291 = vmatprep.subr.bf16.mxu0 0
          %2292 = vmatpush2.bf16.msra.mxu0 0
          %2293 = vmatprep.subr.bf16.mxu0 0
          %2294 = vmatpush2.bf16.msra.mxu0 0
          %2295 = vmatprep.subr.bf16.mxu0 0
          %2296 = vmatpush2.bf16.msra.mxu0 0
          %2297 = vmatprep.subr.bf16.mxu0 0
          %2298 = vmatpush2.bf16.msra.mxu0 0
          %2299 = vmatprep.subr.bf16.mxu0 0
          %2300 = vmatpush2.bf16.msra.mxu0 0
          %2301 = vmatprep.mubr.bf16.mxu0 0
          %2302 = vmatmul.mubr.bf16.gmra.mxu0 %v2033
          %v2303 = vpop.f32.mrf.mxu0
          %v2304 = vadd.f32 0.0, %v2303
          %v2305 = vpop.f32.mrf.mxu0
          %v2306 = vadd.f32 0.0, %v2305
          %v2307 = vpop.f32.mrf.mxu0
          %v2308 = vadd.f32 0.0, %v2307
          %v2309 = vpop.f32.mrf.mxu0
          %v2310 = vadd.f32 0.0, %v2309
          %2311 = vdwg.mxu0
          %v2312 = vadd.f32 %v2025, %v2261
          %v2313 = vadd.f32 %v2026, %v2263
          %v2314 = vadd.f32 %v2027, %v2304
          %v2315 = vadd.f32 %v2028, %v2306
          %v2316 = vadd.f32 %v2029, %v2265
          %v2317 = vadd.f32 %v2030, %v2267
          %v2318 = vadd.f32 %v2031, %v2308
          %v2319 = vadd.f32 %v2032, %v2310
          %v2320 = vmul.f32 %v2312, 0.5
          %v2321 = vmul.f32 %v2316, 0.5
          %v2322 = vtanh.pop %v2320
          %v2323 = vtanh.pop %v2321
          %v2324 = vadd.f32 %v2322, 1.0
          %v2325 = vadd.f32 %v2323, 1.0
          %v2326 = vmul.f32 %v2324, 0.5
          %v2327 = vmul.f32 %v2325, 0.5
          %v2328 = vmul.f32 %v2313, 0.5
          %v2329 = vmul.f32 %v2317, 0.5
          %v2330 = vtanh.pop %v2328
          %v2331 = vtanh.pop %v2329
          %v2332 = vadd.f32 %v2330, 1.0
          %v2333 = vadd.f32 %v2331, 1.0
          %v2334 = vmul.f32 %v2332, 0.5
          %v2335 = vmul.f32 %v2333, 0.5
          %v2336 = vtanh.pop %v2314
          %v2337 = vtanh.pop %v2318
          %v2338 = vmul.f32 %v2315, 0.5
          %v2339 = vmul.f32 %v2319, 0.5
          %v2340 = vtanh.pop %v2338
          %v2341 = vtanh.pop %v2339
          %v2342 = vadd.f32 %v2340, 1.0
          %v2343 = vadd.f32 %v2341, 1.0
          %v2344 = vmul.f32 %v2342, 0.5
          %v2345 = vmul.f32 %v2343, 0.5
          %v2346 = vmul.f32 %v2334, %v2022
          %v2347 = vmul.f32 %v2335, %v2023
          %v2348 = vmul.f32 %v2326, %v2336
          %v2349 = vmul.f32 %v2327, %v2337
          %v2350 = vadd.f32 %v2346, %v2348
          %v2351 = vadd.f32 %v2347, %v2349
          %v2352 = vtanh.pop %v2350
          %v2353 = vtanh.pop %v2351
          %v2354 = vmul.f32 %v2344, %v2352
          %v2355 = vmul.f32 %v2345, %v2353
          %v2356 = vpack.c.bf16 %v2355, %v2354
          %v2358 = vunpack.c.l.b16 %v2356
          %v2359 = vunpack.c.h.b16 %v2356
          %v2360 = vpack.c.b16 %v2358, %v2358
          %v2361 = vpack.c.b16 %v2359, %v2359
          %s2364 = scalar_lea.vmem %s346, 24 [#allocation10]
          %2365 = vst [vmem:[%s2364] sm:$0xf] %v2360
          %2366 = vst [vmem:[%s2364 + $0x4] sm:$0xf] %v2361
          %s2367 = scalar_lea.vmem [#allocation2], 128
          %v2368 = vld [vmem:[%s2367] sm:$0xff]
          %v2369 = vld [vmem:[%s2367 + $0x8] sm:$0xff]
          %v2370 = vld [vmem:[%s2367 + $0x10] sm:$0xff]
          %v2371 = vld [vmem:[%s2367 + $0x18] sm:$0xff]
          %v2372 = vld [vmem:[%s2367 + $0x20] sm:$0xff]
          %v2373 = vld [vmem:[%s2367 + $0x28] sm:$0xff]
          %v2374 = vld [vmem:[%s2367 + $0x30] sm:$0xff]
          %v2375 = vld [vmem:[%s2367 + $0x38] sm:$0xff]
          %v2376 = vld [vmem:[%s294] sm:$0xff]
          %v2377 = vld [vmem:[%s294 + $0x8] sm:$0xff]
          %v2378 = vld [vmem:[%s294 + $0x10] sm:$0xff]
          %v2379 = vld [vmem:[%s294 + $0x18] sm:$0xff]
          %v2380 = vld [vmem:[%s294 + $0x20] sm:$0xff]
          %v2381 = vld [vmem:[%s294 + $0x28] sm:$0xff]
          %v2382 = vld [vmem:[%s294 + $0x30] sm:$0xff]
          %v2383 = vld [vmem:[%s294 + $0x38] sm:$0xff]
          %v2384 = vld [vmem:[%s294 + $0x40] sm:$0xff]
          %v2385 = vld [vmem:[%s294 + $0x48] sm:$0xff]
          %v2386 = vld [vmem:[%s294 + $0x50] sm:$0xff]
          %v2387 = vld [vmem:[%s294 + $0x58] sm:$0xff]
          %v2388 = vld [vmem:[%s294 + $0x60] sm:$0xff]
          %v2389 = vld [vmem:[%s294 + $0x68] sm:$0xff]
          %v2390 = vld [vmem:[%s294 + $0x70] sm:$0xff]
          %v2391 = vld [vmem:[%s294 + $0x78] sm:$0xff]
          %v2392 = vld [vmem:[%s294 + $0x80] sm:$0xff]
          %v2393 = vld [vmem:[%s294 + $0x88] sm:$0xff]
          %v2394 = vld [vmem:[%s294 + $0x90] sm:$0xff]
          %v2395 = vld [vmem:[%s294 + $0x98] sm:$0xff]
          %v2396 = vld [vmem:[%s294 + $0xa0] sm:$0xff]
          %v2397 = vld [vmem:[%s294 + $0xa8] sm:$0xff]
          %v2398 = vld [vmem:[%s294 + $0xb0] sm:$0xff]
          %v2399 = vld [vmem:[%s294 + $0xb8] sm:$0xff]
          %v2400 = vld [vmem:[%s294 + $0xc0] sm:$0xff]
          %v2401 = vld [vmem:[%s294 + $0xc8] sm:$0xff]
          %v2402 = vld [vmem:[%s294 + $0xd0] sm:$0xff]
          %v2403 = vld [vmem:[%s294 + $0xd8] sm:$0xff]
          %v2404 = vld [vmem:[%s294 + $0xe0] sm:$0xff]
          %v2405 = vld [vmem:[%s294 + $0xe8] sm:$0xff]
          %v2406 = vld [vmem:[%s294 + $0xf0] sm:$0xff]
          %v2407 = vld [vmem:[%s294 + $0xf8] sm:$0xff]
          %v2440 = vunpack.c.l.b16 %v2376
          %v2441 = vunpack.c.h.b16 %v2376
          %v2442 = vunpack.c.l.b16 %v2377
          %v2443 = vunpack.c.h.b16 %v2377
          %v2444 = vunpack.c.l.b16 %v2378
          %v2445 = vunpack.c.h.b16 %v2378
          %v2446 = vunpack.c.l.b16 %v2379
          %v2447 = vunpack.c.h.b16 %v2379
          %v2448 = vunpack.c.l.b16 %v2380
          %v2449 = vunpack.c.h.b16 %v2380
          %v2450 = vunpack.c.l.b16 %v2381
          %v2451 = vunpack.c.h.b16 %v2381
          %v2452 = vunpack.c.l.b16 %v2382
          %v2453 = vunpack.c.h.b16 %v2382
          %v2454 = vunpack.c.l.b16 %v2383
          %v2455 = vunpack.c.h.b16 %v2383
          %v2456 = vunpack.c.l.b16 %v2384
          %v2457 = vunpack.c.h.b16 %v2384
          %v2458 = vunpack.c.l.b16 %v2385
          %v2459 = vunpack.c.h.b16 %v2385
          %v2460 = vunpack.c.l.b16 %v2386
          %v2461 = vunpack.c.h.b16 %v2386
          %v2462 = vunpack.c.l.b16 %v2387
          %v2463 = vunpack.c.h.b16 %v2387
          %v2464 = vunpack.c.l.b16 %v2388
          %v2465 = vunpack.c.h.b16 %v2388
          %v2466 = vunpack.c.l.b16 %v2389
          %v2467 = vunpack.c.h.b16 %v2389
          %v2468 = vunpack.c.l.b16 %v2390
          %v2469 = vunpack.c.h.b16 %v2390
          %v2470 = vunpack.c.l.b16 %v2391
          %v2471 = vunpack.c.h.b16 %v2391
          %v2472 = vunpack.c.l.b16 %v2392
          %v2473 = vunpack.c.h.b16 %v2392
          %v2474 = vunpack.c.l.b16 %v2393
          %v2475 = vunpack.c.h.b16 %v2393
          %v2476 = vunpack.c.l.b16 %v2394
          %v2477 = vunpack.c.h.b16 %v2394
          %v2478 = vunpack.c.l.b16 %v2395
          %v2479 = vunpack.c.h.b16 %v2395
          %v2480 = vunpack.c.l.b16 %v2396
          %v2481 = vunpack.c.h.b16 %v2396
          %v2482 = vunpack.c.l.b16 %v2397
          %v2483 = vunpack.c.h.b16 %v2397
          %v2484 = vunpack.c.l.b16 %v2398
          %v2485 = vunpack.c.h.b16 %v2398
          %v2486 = vunpack.c.l.b16 %v2399
          %v2487 = vunpack.c.h.b16 %v2399
          %v2488 = vunpack.c.l.b16 %v2400
          %v2489 = vunpack.c.h.b16 %v2400
          %v2490 = vunpack.c.l.b16 %v2401
          %v2491 = vunpack.c.h.b16 %v2401
          %v2492 = vunpack.c.l.b16 %v2402
          %v2493 = vunpack.c.h.b16 %v2402
          %v2494 = vunpack.c.l.b16 %v2403
          %v2495 = vunpack.c.h.b16 %v2403
          %v2496 = vunpack.c.l.b16 %v2404
          %v2497 = vunpack.c.h.b16 %v2404
          %v2498 = vunpack.c.l.b16 %v2405
          %v2499 = vunpack.c.h.b16 %v2405
          %v2500 = vunpack.c.l.b16 %v2406
          %v2501 = vunpack.c.h.b16 %v2406
          %v2502 = vunpack.c.l.b16 %v2407
          %v2503 = vunpack.c.h.b16 %v2407
          %v2504 = vpack.c.b16 %v2444, %v2440
          %v2505 = vpack.c.b16 %v2445, %v2441
          %v2506 = vpack.c.b16 %v2446, %v2442
          %v2507 = vpack.c.b16 %v2447, %v2443
          %v2508 = vpack.c.b16 %v2452, %v2448
          %v2509 = vpack.c.b16 %v2453, %v2449
          %v2510 = vpack.c.b16 %v2454, %v2450
          %v2511 = vpack.c.b16 %v2455, %v2451
          %v2512 = vpack.c.b16 %v2460, %v2456
          %v2513 = vpack.c.b16 %v2461, %v2457
          %v2514 = vpack.c.b16 %v2462, %v2458
          %v2515 = vpack.c.b16 %v2463, %v2459
          %v2516 = vpack.c.b16 %v2468, %v2464
          %v2517 = vpack.c.b16 %v2469, %v2465
          %v2518 = vpack.c.b16 %v2470, %v2466
          %v2519 = vpack.c.b16 %v2471, %v2467
          %v2520 = vpack.c.b16 %v2476, %v2472
          %v2521 = vpack.c.b16 %v2477, %v2473
          %v2522 = vpack.c.b16 %v2478, %v2474
          %v2523 = vpack.c.b16 %v2479, %v2475
          %v2524 = vpack.c.b16 %v2484, %v2480
          %v2525 = vpack.c.b16 %v2485, %v2481
          %v2526 = vpack.c.b16 %v2486, %v2482
          %v2527 = vpack.c.b16 %v2487, %v2483
          %v2528 = vpack.c.b16 %v2492, %v2488
          %v2529 = vpack.c.b16 %v2493, %v2489
          %v2530 = vpack.c.b16 %v2494, %v2490
          %v2531 = vpack.c.b16 %v2495, %v2491
          %v2532 = vpack.c.b16 %v2500, %v2496
          %v2533 = vpack.c.b16 %v2501, %v2497
          %v2534 = vpack.c.b16 %v2502, %v2498
          %v2535 = vpack.c.b16 %v2503, %v2499
          %2568 = vmatprep.subr.bf16.mxu0 %v2533
          %2569 = vmatpush1.bf16.msra.mxu0 %v2532
          %2570 = vmatprep.subr.bf16.mxu0 %v2529
          %2571 = vmatpush1.bf16.msra.mxu0 %v2528
          %2572 = vmatprep.subr.bf16.mxu0 %v2525
          %2573 = vmatpush1.bf16.msra.mxu0 %v2524
          %2574 = vmatprep.subr.bf16.mxu0 %v2521
          %2575 = vmatpush1.bf16.msra.mxu0 %v2520
          %2576 = vmatprep.subr.bf16.mxu0 %v2517
          %2577 = vmatpush1.bf16.msra.mxu0 %v2516
          %2578 = vmatprep.subr.bf16.mxu0 %v2513
          %2579 = vmatpush1.bf16.msra.mxu0 %v2512
          %2580 = vmatprep.subr.bf16.mxu0 %v2509
          %2581 = vmatpush1.bf16.msra.mxu0 %v2508
          %2582 = vmatprep.subr.bf16.mxu0 %v2505
          %2583 = vmatpush1.bf16.msra.mxu0 %v2504
          %2584 = vmatprep.subr.bf16.mxu0 0
          %2585 = vmatpush2.bf16.msra.mxu0 0
          %2586 = vmatprep.subr.bf16.mxu0 0
          %2587 = vmatpush2.bf16.msra.mxu0 0
          %2588 = vmatprep.subr.bf16.mxu0 0
          %2589 = vmatpush2.bf16.msra.mxu0 0
          %2590 = vmatprep.subr.bf16.mxu0 0
          %2591 = vmatpush2.bf16.msra.mxu0 0
          %2592 = vmatprep.subr.bf16.mxu0 0
          %2593 = vmatpush2.bf16.msra.mxu0 0
          %2594 = vmatprep.subr.bf16.mxu0 0
          %2595 = vmatpush2.bf16.msra.mxu0 0
          %2596 = vmatprep.subr.bf16.mxu0 0
          %2597 = vmatpush2.bf16.msra.mxu0 0
          %2598 = vmatprep.subr.bf16.mxu0 0
          %2599 = vmatpush2.bf16.msra.mxu0 0
          %2600 = vmatprep.mubr.bf16.mxu0 0
          %2601 = vmatmul.mubr.bf16.gmra.mxu0 %v2356
          %v2602 = vpop.f32.mrf.mxu0
          %v2603 = vadd.f32 0.0, %v2602
          %v2604 = vpop.f32.mrf.mxu0
          %v2605 = vadd.f32 0.0, %v2604
          %v2606 = vpop.f32.mrf.mxu0
          %v2607 = vadd.f32 0.0, %v2606
          %v2608 = vpop.f32.mrf.mxu0
          %v2609 = vadd.f32 0.0, %v2608
          %2610 = vdwg.mxu0
          %2611 = vmatprep.subr.bf16.mxu0 %v2535
          %2612 = vmatpush1.bf16.msra.mxu0 %v2534
          %2613 = vmatprep.subr.bf16.mxu0 %v2531
          %2614 = vmatpush1.bf16.msra.mxu0 %v2530
          %2615 = vmatprep.subr.bf16.mxu0 %v2527
          %2616 = vmatpush1.bf16.msra.mxu0 %v2526
          %2617 = vmatprep.subr.bf16.mxu0 %v2523
          %2618 = vmatpush1.bf16.msra.mxu0 %v2522
          %2619 = vmatprep.subr.bf16.mxu0 %v2519
          %2620 = vmatpush1.bf16.msra.mxu0 %v2518
          %2621 = vmatprep.subr.bf16.mxu0 %v2515
          %2622 = vmatpush1.bf16.msra.mxu0 %v2514
          %2623 = vmatprep.subr.bf16.mxu0 %v2511
          %2624 = vmatpush1.bf16.msra.mxu0 %v2510
          %2625 = vmatprep.subr.bf16.mxu0 %v2507
          %2626 = vmatpush1.bf16.msra.mxu0 %v2506
          %2627 = vmatprep.subr.bf16.mxu0 0
          %2628 = vmatpush2.bf16.msra.mxu0 0
          %2629 = vmatprep.subr.bf16.mxu0 0
          %2630 = vmatpush2.bf16.msra.mxu0 0
          %2631 = vmatprep.subr.bf16.mxu0 0
          %2632 = vmatpush2.bf16.msra.mxu0 0
          %2633 = vmatprep.subr.bf16.mxu0 0
          %2634 = vmatpush2.bf16.msra.mxu0 0
          %2635 = vmatprep.subr.bf16.mxu0 0
          %2636 = vmatpush2.bf16.msra.mxu0 0
          %2637 = vmatprep.subr.bf16.mxu0 0
          %2638 = vmatpush2.bf16.msra.mxu0 0
          %2639 = vmatprep.subr.bf16.mxu0 0
          %2640 = vmatpush2.bf16.msra.mxu0 0
          %2641 = vmatprep.subr.bf16.mxu0 0
          %2642 = vmatpush2.bf16.msra.mxu0 0
          %2643 = vmatprep.mubr.bf16.mxu0 0
          %2644 = vmatmul.mubr.bf16.gmra.mxu0 %v2356
          %v2645 = vpop.f32.mrf.mxu0
          %v2646 = vadd.f32 0.0, %v2645
          %v2647 = vpop.f32.mrf.mxu0
          %v2648 = vadd.f32 0.0, %v2647
          %v2649 = vpop.f32.mrf.mxu0
          %v2650 = vadd.f32 0.0, %v2649
          %v2651 = vpop.f32.mrf.mxu0
          %v2652 = vadd.f32 0.0, %v2651
          %2653 = vdwg.mxu0
          %v2654 = vadd.f32 %v2368, %v2603
          %v2655 = vadd.f32 %v2369, %v2605
          %v2656 = vadd.f32 %v2370, %v2646
          %v2657 = vadd.f32 %v2371, %v2648
          %v2658 = vadd.f32 %v2372, %v2607
          %v2659 = vadd.f32 %v2373, %v2609
          %v2660 = vadd.f32 %v2374, %v2650
          %v2661 = vadd.f32 %v2375, %v2652
          %v2662 = vmul.f32 %v2654, 0.5
          %v2663 = vmul.f32 %v2658, 0.5
          %v2664 = vtanh.pop %v2662
          %v2665 = vtanh.pop %v2663
          %v2666 = vadd.f32 %v2664, 1.0
          %v2667 = vadd.f32 %v2665, 1.0
          %v2668 = vmul.f32 %v2666, 0.5
          %v2669 = vmul.f32 %v2667, 0.5
          %v2670 = vmul.f32 %v2655, 0.5
          %v2671 = vmul.f32 %v2659, 0.5
          %v2672 = vtanh.pop %v2670
          %v2673 = vtanh.pop %v2671
          %v2674 = vadd.f32 %v2672, 1.0
          %v2675 = vadd.f32 %v2673, 1.0
          %v2676 = vmul.f32 %v2674, 0.5
          %v2677 = vmul.f32 %v2675, 0.5
          %v2678 = vtanh.pop %v2656
          %v2679 = vtanh.pop %v2660
          %v2680 = vmul.f32 %v2657, 0.5
          %v2681 = vmul.f32 %v2661, 0.5
          %v2682 = vtanh.pop %v2680
          %v2683 = vtanh.pop %v2681
          %v2684 = vadd.f32 %v2682, 1.0
          %v2685 = vadd.f32 %v2683, 1.0
          %v2686 = vmul.f32 %v2684, 0.5
          %v2687 = vmul.f32 %v2685, 0.5
          %v2688 = vmul.f32 %v2676, %v2350
          %v2689 = vmul.f32 %v2677, %v2351
          %v2690 = vmul.f32 %v2668, %v2678
          %v2691 = vmul.f32 %v2669, %v2679
          %v2692 = vadd.f32 %v2688, %v2690
          %v2693 = vadd.f32 %v2689, %v2691
          %v2694 = vtanh.pop %v2692
          %v2695 = vtanh.pop %v2693
          %v2696 = vmul.f32 %v2686, %v2694
          %v2697 = vmul.f32 %v2687, %v2695
          %v2698 = vpack.c.bf16 %v2697, %v2696
          %v2700 = vunpack.c.l.b16 %v2698
          %v2701 = vunpack.c.h.b16 %v2698
          %v2702 = vpack.c.b16 %v2700, %v2700
          %v2703 = vpack.c.b16 %v2701, %v2701
          %s2706 = scalar_lea.vmem %s346, 16 [#allocation10]
          %2707 = vst [vmem:[%s2706] sm:$0xf] %v2702
          %2708 = vst [vmem:[%s2706 + $0x4] sm:$0xf] %v2703
          %s2709 = scalar_lea.vmem [#allocation2], 64
          %v2710 = vld [vmem:[%s2709] sm:$0xff]
          %v2711 = vld [vmem:[%s2709 + $0x8] sm:$0xff]
          %v2712 = vld [vmem:[%s2709 + $0x10] sm:$0xff]
          %v2713 = vld [vmem:[%s2709 + $0x18] sm:$0xff]
          %v2714 = vld [vmem:[%s2709 + $0x20] sm:$0xff]
          %v2715 = vld [vmem:[%s2709 + $0x28] sm:$0xff]
          %v2716 = vld [vmem:[%s2709 + $0x30] sm:$0xff]
          %v2717 = vld [vmem:[%s2709 + $0x38] sm:$0xff]
          %v2718 = vld [vmem:[%s294] sm:$0xff]
          %v2719 = vld [vmem:[%s294 + $0x8] sm:$0xff]
          %v2720 = vld [vmem:[%s294 + $0x10] sm:$0xff]
          %v2721 = vld [vmem:[%s294 + $0x18] sm:$0xff]
          %v2722 = vld [vmem:[%s294 + $0x20] sm:$0xff]
          %v2723 = vld [vmem:[%s294 + $0x28] sm:$0xff]
          %v2724 = vld [vmem:[%s294 + $0x30] sm:$0xff]
          %v2725 = vld [vmem:[%s294 + $0x38] sm:$0xff]
          %v2726 = vld [vmem:[%s294 + $0x40] sm:$0xff]
          %v2727 = vld [vmem:[%s294 + $0x48] sm:$0xff]
          %v2728 = vld [vmem:[%s294 + $0x50] sm:$0xff]
          %v2729 = vld [vmem:[%s294 + $0x58] sm:$0xff]
          %v2730 = vld [vmem:[%s294 + $0x60] sm:$0xff]
          %v2731 = vld [vmem:[%s294 + $0x68] sm:$0xff]
          %v2732 = vld [vmem:[%s294 + $0x70] sm:$0xff]
          %v2733 = vld [vmem:[%s294 + $0x78] sm:$0xff]
          %v2734 = vld [vmem:[%s294 + $0x80] sm:$0xff]
          %v2735 = vld [vmem:[%s294 + $0x88] sm:$0xff]
          %v2736 = vld [vmem:[%s294 + $0x90] sm:$0xff]
          %v2737 = vld [vmem:[%s294 + $0x98] sm:$0xff]
          %v2738 = vld [vmem:[%s294 + $0xa0] sm:$0xff]
          %v2739 = vld [vmem:[%s294 + $0xa8] sm:$0xff]
          %v2740 = vld [vmem:[%s294 + $0xb0] sm:$0xff]
          %v2741 = vld [vmem:[%s294 + $0xb8] sm:$0xff]
          %v2742 = vld [vmem:[%s294 + $0xc0] sm:$0xff]
          %v2743 = vld [vmem:[%s294 + $0xc8] sm:$0xff]
          %v2744 = vld [vmem:[%s294 + $0xd0] sm:$0xff]
          %v2745 = vld [vmem:[%s294 + $0xd8] sm:$0xff]
          %v2746 = vld [vmem:[%s294 + $0xe0] sm:$0xff]
          %v2747 = vld [vmem:[%s294 + $0xe8] sm:$0xff]
          %v2748 = vld [vmem:[%s294 + $0xf0] sm:$0xff]
          %v2749 = vld [vmem:[%s294 + $0xf8] sm:$0xff]
          %v2782 = vunpack.c.l.b16 %v2718
          %v2783 = vunpack.c.h.b16 %v2718
          %v2784 = vunpack.c.l.b16 %v2719
          %v2785 = vunpack.c.h.b16 %v2719
          %v2786 = vunpack.c.l.b16 %v2720
          %v2787 = vunpack.c.h.b16 %v2720
          %v2788 = vunpack.c.l.b16 %v2721
          %v2789 = vunpack.c.h.b16 %v2721
          %v2790 = vunpack.c.l.b16 %v2722
          %v2791 = vunpack.c.h.b16 %v2722
          %v2792 = vunpack.c.l.b16 %v2723
          %v2793 = vunpack.c.h.b16 %v2723
          %v2794 = vunpack.c.l.b16 %v2724
          %v2795 = vunpack.c.h.b16 %v2724
          %v2796 = vunpack.c.l.b16 %v2725
          %v2797 = vunpack.c.h.b16 %v2725
          %v2798 = vunpack.c.l.b16 %v2726
          %v2799 = vunpack.c.h.b16 %v2726
          %v2800 = vunpack.c.l.b16 %v2727
          %v2801 = vunpack.c.h.b16 %v2727
          %v2802 = vunpack.c.l.b16 %v2728
          %v2803 = vunpack.c.h.b16 %v2728
          %v2804 = vunpack.c.l.b16 %v2729
          %v2805 = vunpack.c.h.b16 %v2729
          %v2806 = vunpack.c.l.b16 %v2730
          %v2807 = vunpack.c.h.b16 %v2730
          %v2808 = vunpack.c.l.b16 %v2731
          %v2809 = vunpack.c.h.b16 %v2731
          %v2810 = vunpack.c.l.b16 %v2732
          %v2811 = vunpack.c.h.b16 %v2732
          %v2812 = vunpack.c.l.b16 %v2733
          %v2813 = vunpack.c.h.b16 %v2733
          %v2814 = vunpack.c.l.b16 %v2734
          %v2815 = vunpack.c.h.b16 %v2734
          %v2816 = vunpack.c.l.b16 %v2735
          %v2817 = vunpack.c.h.b16 %v2735
          %v2818 = vunpack.c.l.b16 %v2736
          %v2819 = vunpack.c.h.b16 %v2736
          %v2820 = vunpack.c.l.b16 %v2737
          %v2821 = vunpack.c.h.b16 %v2737
          %v2822 = vunpack.c.l.b16 %v2738
          %v2823 = vunpack.c.h.b16 %v2738
          %v2824 = vunpack.c.l.b16 %v2739
          %v2825 = vunpack.c.h.b16 %v2739
          %v2826 = vunpack.c.l.b16 %v2740
          %v2827 = vunpack.c.h.b16 %v2740
          %v2828 = vunpack.c.l.b16 %v2741
          %v2829 = vunpack.c.h.b16 %v2741
          %v2830 = vunpack.c.l.b16 %v2742
          %v2831 = vunpack.c.h.b16 %v2742
          %v2832 = vunpack.c.l.b16 %v2743
          %v2833 = vunpack.c.h.b16 %v2743
          %v2834 = vunpack.c.l.b16 %v2744
          %v2835 = vunpack.c.h.b16 %v2744
          %v2836 = vunpack.c.l.b16 %v2745
          %v2837 = vunpack.c.h.b16 %v2745
          %v2838 = vunpack.c.l.b16 %v2746
          %v2839 = vunpack.c.h.b16 %v2746
          %v2840 = vunpack.c.l.b16 %v2747
          %v2841 = vunpack.c.h.b16 %v2747
          %v2842 = vunpack.c.l.b16 %v2748
          %v2843 = vunpack.c.h.b16 %v2748
          %v2844 = vunpack.c.l.b16 %v2749
          %v2845 = vunpack.c.h.b16 %v2749
          %v2846 = vpack.c.b16 %v2786, %v2782
          %v2847 = vpack.c.b16 %v2787, %v2783
          %v2848 = vpack.c.b16 %v2788, %v2784
          %v2849 = vpack.c.b16 %v2789, %v2785
          %v2850 = vpack.c.b16 %v2794, %v2790
          %v2851 = vpack.c.b16 %v2795, %v2791
          %v2852 = vpack.c.b16 %v2796, %v2792
          %v2853 = vpack.c.b16 %v2797, %v2793
          %v2854 = vpack.c.b16 %v2802, %v2798
          %v2855 = vpack.c.b16 %v2803, %v2799
          %v2856 = vpack.c.b16 %v2804, %v2800
          %v2857 = vpack.c.b16 %v2805, %v2801
          %v2858 = vpack.c.b16 %v2810, %v2806
          %v2859 = vpack.c.b16 %v2811, %v2807
          %v2860 = vpack.c.b16 %v2812, %v2808
          %v2861 = vpack.c.b16 %v2813, %v2809
          %v2862 = vpack.c.b16 %v2818, %v2814
          %v2863 = vpack.c.b16 %v2819, %v2815
          %v2864 = vpack.c.b16 %v2820, %v2816
          %v2865 = vpack.c.b16 %v2821, %v2817
          %v2866 = vpack.c.b16 %v2826, %v2822
          %v2867 = vpack.c.b16 %v2827, %v2823
          %v2868 = vpack.c.b16 %v2828, %v2824
          %v2869 = vpack.c.b16 %v2829, %v2825
          %v2870 = vpack.c.b16 %v2834, %v2830
          %v2871 = vpack.c.b16 %v2835, %v2831
          %v2872 = vpack.c.b16 %v2836, %v2832
          %v2873 = vpack.c.b16 %v2837, %v2833
          %v2874 = vpack.c.b16 %v2842, %v2838
          %v2875 = vpack.c.b16 %v2843, %v2839
          %v2876 = vpack.c.b16 %v2844, %v2840
          %v2877 = vpack.c.b16 %v2845, %v2841
          %2910 = vmatprep.subr.bf16.mxu0 %v2875
          %2911 = vmatpush1.bf16.msra.mxu0 %v2874
          %2912 = vmatprep.subr.bf16.mxu0 %v2871
          %2913 = vmatpush1.bf16.msra.mxu0 %v2870
          %2914 = vmatprep.subr.bf16.mxu0 %v2867
          %2915 = vmatpush1.bf16.msra.mxu0 %v2866
          %2916 = vmatprep.subr.bf16.mxu0 %v2863
          %2917 = vmatpush1.bf16.msra.mxu0 %v2862
          %2918 = vmatprep.subr.bf16.mxu0 %v2859
          %2919 = vmatpush1.bf16.msra.mxu0 %v2858
          %2920 = vmatprep.subr.bf16.mxu0 %v2855
          %2921 = vmatpush1.bf16.msra.mxu0 %v2854
          %2922 = vmatprep.subr.bf16.mxu0 %v2851
          %2923 = vmatpush1.bf16.msra.mxu0 %v2850
          %2924 = vmatprep.subr.bf16.mxu0 %v2847
          %2925 = vmatpush1.bf16.msra.mxu0 %v2846
          %2926 = vmatprep.subr.bf16.mxu0 0
          %2927 = vmatpush2.bf16.msra.mxu0 0
          %2928 = vmatprep.subr.bf16.mxu0 0
          %2929 = vmatpush2.bf16.msra.mxu0 0
          %2930 = vmatprep.subr.bf16.mxu0 0
          %2931 = vmatpush2.bf16.msra.mxu0 0
          %2932 = vmatprep.subr.bf16.mxu0 0
          %2933 = vmatpush2.bf16.msra.mxu0 0
          %2934 = vmatprep.subr.bf16.mxu0 0
          %2935 = vmatpush2.bf16.msra.mxu0 0
          %2936 = vmatprep.subr.bf16.mxu0 0
          %2937 = vmatpush2.bf16.msra.mxu0 0
          %2938 = vmatprep.subr.bf16.mxu0 0
          %2939 = vmatpush2.bf16.msra.mxu0 0
          %2940 = vmatprep.subr.bf16.mxu0 0
          %2941 = vmatpush2.bf16.msra.mxu0 0
          %2942 = vmatprep.mubr.bf16.mxu0 0
          %2943 = vmatmul.mubr.bf16.gmra.mxu0 %v2698
          %v2944 = vpop.f32.mrf.mxu0
          %v2945 = vadd.f32 0.0, %v2944
          %v2946 = vpop.f32.mrf.mxu0
          %v2947 = vadd.f32 0.0, %v2946
          %v2948 = vpop.f32.mrf.mxu0
          %v2949 = vadd.f32 0.0, %v2948
          %v2950 = vpop.f32.mrf.mxu0
          %v2951 = vadd.f32 0.0, %v2950
          %2952 = vdwg.mxu0
          %2953 = vmatprep.subr.bf16.mxu0 %v2877
          %2954 = vmatpush1.bf16.msra.mxu0 %v2876
          %2955 = vmatprep.subr.bf16.mxu0 %v2873
          %2956 = vmatpush1.bf16.msra.mxu0 %v2872
          %2957 = vmatprep.subr.bf16.mxu0 %v2869
          %2958 = vmatpush1.bf16.msra.mxu0 %v2868
          %2959 = vmatprep.subr.bf16.mxu0 %v2865
          %2960 = vmatpush1.bf16.msra.mxu0 %v2864
          %2961 = vmatprep.subr.bf16.mxu0 %v2861
          %2962 = vmatpush1.bf16.msra.mxu0 %v2860
          %2963 = vmatprep.subr.bf16.mxu0 %v2857
          %2964 = vmatpush1.bf16.msra.mxu0 %v2856
          %2965 = vmatprep.subr.bf16.mxu0 %v2853
          %2966 = vmatpush1.bf16.msra.mxu0 %v2852
          %2967 = vmatprep.subr.bf16.mxu0 %v2849
          %2968 = vmatpush1.bf16.msra.mxu0 %v2848
          %2969 = vmatprep.subr.bf16.mxu0 0
          %2970 = vmatpush2.bf16.msra.mxu0 0
          %2971 = vmatprep.subr.bf16.mxu0 0
          %2972 = vmatpush2.bf16.msra.mxu0 0
          %2973 = vmatprep.subr.bf16.mxu0 0
          %2974 = vmatpush2.bf16.msra.mxu0 0
          %2975 = vmatprep.subr.bf16.mxu0 0
          %2976 = vmatpush2.bf16.msra.mxu0 0
          %2977 = vmatprep.subr.bf16.mxu0 0
          %2978 = vmatpush2.bf16.msra.mxu0 0
          %2979 = vmatprep.subr.bf16.mxu0 0
          %2980 = vmatpush2.bf16.msra.mxu0 0
          %2981 = vmatprep.subr.bf16.mxu0 0
          %2982 = vmatpush2.bf16.msra.mxu0 0
          %2983 = vmatprep.subr.bf16.mxu0 0
          %2984 = vmatpush2.bf16.msra.mxu0 0
          %2985 = vmatprep.mubr.bf16.mxu0 0
          %2986 = vmatmul.mubr.bf16.gmra.mxu0 %v2698
          %v2987 = vpop.f32.mrf.mxu0
          %v2988 = vadd.f32 0.0, %v2987
          %v2989 = vpop.f32.mrf.mxu0
          %v2990 = vadd.f32 0.0, %v2989
          %v2991 = vpop.f32.mrf.mxu0
          %v2992 = vadd.f32 0.0, %v2991
          %v2993 = vpop.f32.mrf.mxu0
          %v2994 = vadd.f32 0.0, %v2993
          %2995 = vdwg.mxu0
          %v2996 = vadd.f32 %v2710, %v2945
          %v2997 = vadd.f32 %v2711, %v2947
          %v2998 = vadd.f32 %v2712, %v2988
          %v2999 = vadd.f32 %v2713, %v2990
          %v3000 = vadd.f32 %v2714, %v2949
          %v3001 = vadd.f32 %v2715, %v2951
          %v3002 = vadd.f32 %v2716, %v2992
          %v3003 = vadd.f32 %v2717, %v2994
          %v3004 = vmul.f32 %v2996, 0.5
          %v3005 = vmul.f32 %v3000, 0.5
          %v3006 = vtanh.pop %v3004
          %v3007 = vtanh.pop %v3005
          %v3008 = vadd.f32 %v3006, 1.0
          %v3009 = vadd.f32 %v3007, 1.0
          %v3010 = vmul.f32 %v3008, 0.5
          %v3011 = vmul.f32 %v3009, 0.5
          %v3012 = vmul.f32 %v2997, 0.5
          %v3013 = vmul.f32 %v3001, 0.5
          %v3014 = vtanh.pop %v3012
          %v3015 = vtanh.pop %v3013
          %v3016 = vadd.f32 %v3014, 1.0
          %v3017 = vadd.f32 %v3015, 1.0
          %v3018 = vmul.f32 %v3016, 0.5
          %v3019 = vmul.f32 %v3017, 0.5
          %v3020 = vtanh.pop %v2998
          %v3021 = vtanh.pop %v3002
          %v3022 = vmul.f32 %v2999, 0.5
          %v3023 = vmul.f32 %v3003, 0.5
          %v3024 = vtanh.pop %v3022
          %v3025 = vtanh.pop %v3023
          %v3026 = vadd.f32 %v3024, 1.0
          %v3027 = vadd.f32 %v3025, 1.0
          %v3028 = vmul.f32 %v3026, 0.5
          %v3029 = vmul.f32 %v3027, 0.5
          %v3030 = vmul.f32 %v3018, %v2692
          %v3031 = vmul.f32 %v3019, %v2693
          %v3032 = vmul.f32 %v3010, %v3020
          %v3033 = vmul.f32 %v3011, %v3021
          %v3034 = vadd.f32 %v3030, %v3032
          %v3035 = vadd.f32 %v3031, %v3033
          %v3036 = vtanh.pop %v3034
          %v3037 = vtanh.pop %v3035
          %v3038 = vmul.f32 %v3028, %v3036
          %v3039 = vmul.f32 %v3029, %v3037
          %v3040 = vpack.c.bf16 %v3039, %v3038
          %v3042 = vunpack.c.l.b16 %v3040
          %v3043 = vunpack.c.h.b16 %v3040
          %v3044 = vpack.c.b16 %v3042, %v3042
          %v3045 = vpack.c.b16 %v3043, %v3043
          %s3048 = scalar_lea.vmem %s346, 8 [#allocation10]
          %3049 = vst [vmem:[%s3048] sm:$0xf] %v3044
          %3050 = vst [vmem:[%s3048 + $0x4] sm:$0xf] %v3045
          %v3051 = vld [vmem:[#allocation2] sm:$0xff]
          %v3052 = vld [vmem:[#allocation2 + $0x8] sm:$0xff]
          %v3053 = vld [vmem:[#allocation2 + $0x10] sm:$0xff]
          %v3054 = vld [vmem:[#allocation2 + $0x18] sm:$0xff]
          %v3055 = vld [vmem:[#allocation2 + $0x20] sm:$0xff]
          %v3056 = vld [vmem:[#allocation2 + $0x28] sm:$0xff]
          %v3057 = vld [vmem:[#allocation2 + $0x30] sm:$0xff]
          %v3058 = vld [vmem:[#allocation2 + $0x38] sm:$0xff]
          %v3059 = vld [vmem:[%s294] sm:$0xff]
          %v3060 = vld [vmem:[%s294 + $0x8] sm:$0xff]
          %v3061 = vld [vmem:[%s294 + $0x10] sm:$0xff]
          %v3062 = vld [vmem:[%s294 + $0x18] sm:$0xff]
          %v3063 = vld [vmem:[%s294 + $0x20] sm:$0xff]
          %v3064 = vld [vmem:[%s294 + $0x28] sm:$0xff]
          %v3065 = vld [vmem:[%s294 + $0x30] sm:$0xff]
          %v3066 = vld [vmem:[%s294 + $0x38] sm:$0xff]
          %v3067 = vld [vmem:[%s294 + $0x40] sm:$0xff]
          %v3068 = vld [vmem:[%s294 + $0x48] sm:$0xff]
          %v3069 = vld [vmem:[%s294 + $0x50] sm:$0xff]
          %v3070 = vld [vmem:[%s294 + $0x58] sm:$0xff]
          %v3071 = vld [vmem:[%s294 + $0x60] sm:$0xff]
          %v3072 = vld [vmem:[%s294 + $0x68] sm:$0xff]
          %v3073 = vld [vmem:[%s294 + $0x70] sm:$0xff]
          %v3074 = vld [vmem:[%s294 + $0x78] sm:$0xff]
          %v3075 = vld [vmem:[%s294 + $0x80] sm:$0xff]
          %v3076 = vld [vmem:[%s294 + $0x88] sm:$0xff]
          %v3077 = vld [vmem:[%s294 + $0x90] sm:$0xff]
          %v3078 = vld [vmem:[%s294 + $0x98] sm:$0xff]
          %v3079 = vld [vmem:[%s294 + $0xa0] sm:$0xff]
          %v3080 = vld [vmem:[%s294 + $0xa8] sm:$0xff]
          %v3081 = vld [vmem:[%s294 + $0xb0] sm:$0xff]
          %v3082 = vld [vmem:[%s294 + $0xb8] sm:$0xff]
          %v3083 = vld [vmem:[%s294 + $0xc0] sm:$0xff]
          %v3084 = vld [vmem:[%s294 + $0xc8] sm:$0xff]
          %v3085 = vld [vmem:[%s294 + $0xd0] sm:$0xff]
          %v3086 = vld [vmem:[%s294 + $0xd8] sm:$0xff]
          %v3087 = vld [vmem:[%s294 + $0xe0] sm:$0xff]
          %v3088 = vld [vmem:[%s294 + $0xe8] sm:$0xff]
          %v3089 = vld [vmem:[%s294 + $0xf0] sm:$0xff]
          %v3090 = vld [vmem:[%s294 + $0xf8] sm:$0xff]
          %v3123 = vunpack.c.l.b16 %v3059
          %v3124 = vunpack.c.h.b16 %v3059
          %v3125 = vunpack.c.l.b16 %v3060
          %v3126 = vunpack.c.h.b16 %v3060
          %v3127 = vunpack.c.l.b16 %v3061
          %v3128 = vunpack.c.h.b16 %v3061
          %v3129 = vunpack.c.l.b16 %v3062
          %v3130 = vunpack.c.h.b16 %v3062
          %v3131 = vunpack.c.l.b16 %v3063
          %v3132 = vunpack.c.h.b16 %v3063
          %v3133 = vunpack.c.l.b16 %v3064
          %v3134 = vunpack.c.h.b16 %v3064
          %v3135 = vunpack.c.l.b16 %v3065
          %v3136 = vunpack.c.h.b16 %v3065
          %v3137 = vunpack.c.l.b16 %v3066
          %v3138 = vunpack.c.h.b16 %v3066
          %v3139 = vunpack.c.l.b16 %v3067
          %v3140 = vunpack.c.h.b16 %v3067
          %v3141 = vunpack.c.l.b16 %v3068
          %v3142 = vunpack.c.h.b16 %v3068
          %v3143 = vunpack.c.l.b16 %v3069
          %v3144 = vunpack.c.h.b16 %v3069
          %v3145 = vunpack.c.l.b16 %v3070
          %v3146 = vunpack.c.h.b16 %v3070
          %v3147 = vunpack.c.l.b16 %v3071
          %v3148 = vunpack.c.h.b16 %v3071
          %v3149 = vunpack.c.l.b16 %v3072
          %v3150 = vunpack.c.h.b16 %v3072
          %v3151 = vunpack.c.l.b16 %v3073
          %v3152 = vunpack.c.h.b16 %v3073
          %v3153 = vunpack.c.l.b16 %v3074
          %v3154 = vunpack.c.h.b16 %v3074
          %v3155 = vunpack.c.l.b16 %v3075
          %v3156 = vunpack.c.h.b16 %v3075
          %v3157 = vunpack.c.l.b16 %v3076
          %v3158 = vunpack.c.h.b16 %v3076
          %v3159 = vunpack.c.l.b16 %v3077
          %v3160 = vunpack.c.h.b16 %v3077
          %v3161 = vunpack.c.l.b16 %v3078
          %v3162 = vunpack.c.h.b16 %v3078
          %v3163 = vunpack.c.l.b16 %v3079
          %v3164 = vunpack.c.h.b16 %v3079
          %v3165 = vunpack.c.l.b16 %v3080
          %v3166 = vunpack.c.h.b16 %v3080
          %v3167 = vunpack.c.l.b16 %v3081
          %v3168 = vunpack.c.h.b16 %v3081
          %v3169 = vunpack.c.l.b16 %v3082
          %v3170 = vunpack.c.h.b16 %v3082
          %v3171 = vunpack.c.l.b16 %v3083
          %v3172 = vunpack.c.h.b16 %v3083
          %v3173 = vunpack.c.l.b16 %v3084
          %v3174 = vunpack.c.h.b16 %v3084
          %v3175 = vunpack.c.l.b16 %v3085
          %v3176 = vunpack.c.h.b16 %v3085
          %v3177 = vunpack.c.l.b16 %v3086
          %v3178 = vunpack.c.h.b16 %v3086
          %v3179 = vunpack.c.l.b16 %v3087
          %v3180 = vunpack.c.h.b16 %v3087
          %v3181 = vunpack.c.l.b16 %v3088
          %v3182 = vunpack.c.h.b16 %v3088
          %v3183 = vunpack.c.l.b16 %v3089
          %v3184 = vunpack.c.h.b16 %v3089
          %v3185 = vunpack.c.l.b16 %v3090
          %v3186 = vunpack.c.h.b16 %v3090
          %v3187 = vpack.c.b16 %v3127, %v3123
          %v3188 = vpack.c.b16 %v3128, %v3124
          %v3189 = vpack.c.b16 %v3129, %v3125
          %v3190 = vpack.c.b16 %v3130, %v3126
          %v3191 = vpack.c.b16 %v3135, %v3131
          %v3192 = vpack.c.b16 %v3136, %v3132
          %v3193 = vpack.c.b16 %v3137, %v3133
          %v3194 = vpack.c.b16 %v3138, %v3134
          %v3195 = vpack.c.b16 %v3143, %v3139
          %v3196 = vpack.c.b16 %v3144, %v3140
          %v3197 = vpack.c.b16 %v3145, %v3141
          %v3198 = vpack.c.b16 %v3146, %v3142
          %v3199 = vpack.c.b16 %v3151, %v3147
          %v3200 = vpack.c.b16 %v3152, %v3148
          %v3201 = vpack.c.b16 %v3153, %v3149
          %v3202 = vpack.c.b16 %v3154, %v3150
          %v3203 = vpack.c.b16 %v3159, %v3155
          %v3204 = vpack.c.b16 %v3160, %v3156
          %v3205 = vpack.c.b16 %v3161, %v3157
          %v3206 = vpack.c.b16 %v3162, %v3158
          %v3207 = vpack.c.b16 %v3167, %v3163
          %v3208 = vpack.c.b16 %v3168, %v3164
          %v3209 = vpack.c.b16 %v3169, %v3165
          %v3210 = vpack.c.b16 %v3170, %v3166
          %v3211 = vpack.c.b16 %v3175, %v3171
          %v3212 = vpack.c.b16 %v3176, %v3172
          %v3213 = vpack.c.b16 %v3177, %v3173
          %v3214 = vpack.c.b16 %v3178, %v3174
          %v3215 = vpack.c.b16 %v3183, %v3179
          %v3216 = vpack.c.b16 %v3184, %v3180
          %v3217 = vpack.c.b16 %v3185, %v3181
          %v3218 = vpack.c.b16 %v3186, %v3182
          %3251 = vmatprep.subr.bf16.mxu0 %v3216
          %3252 = vmatpush1.bf16.msra.mxu0 %v3215
          %3253 = vmatprep.subr.bf16.mxu0 %v3212
          %3254 = vmatpush1.bf16.msra.mxu0 %v3211
          %3255 = vmatprep.subr.bf16.mxu0 %v3208
          %3256 = vmatpush1.bf16.msra.mxu0 %v3207
          %3257 = vmatprep.subr.bf16.mxu0 %v3204
          %3258 = vmatpush1.bf16.msra.mxu0 %v3203
          %3259 = vmatprep.subr.bf16.mxu0 %v3200
          %3260 = vmatpush1.bf16.msra.mxu0 %v3199
          %3261 = vmatprep.subr.bf16.mxu0 %v3196
          %3262 = vmatpush1.bf16.msra.mxu0 %v3195
          %3263 = vmatprep.subr.bf16.mxu0 %v3192
          %3264 = vmatpush1.bf16.msra.mxu0 %v3191
          %3265 = vmatprep.subr.bf16.mxu0 %v3188
          %3266 = vmatpush1.bf16.msra.mxu0 %v3187
          %3267 = vmatprep.subr.bf16.mxu0 0
          %3268 = vmatpush2.bf16.msra.mxu0 0
          %3269 = vmatprep.subr.bf16.mxu0 0
          %3270 = vmatpush2.bf16.msra.mxu0 0
          %3271 = vmatprep.subr.bf16.mxu0 0
          %3272 = vmatpush2.bf16.msra.mxu0 0
          %3273 = vmatprep.subr.bf16.mxu0 0
          %3274 = vmatpush2.bf16.msra.mxu0 0
          %3275 = vmatprep.subr.bf16.mxu0 0
          %3276 = vmatpush2.bf16.msra.mxu0 0
          %3277 = vmatprep.subr.bf16.mxu0 0
          %3278 = vmatpush2.bf16.msra.mxu0 0
          %3279 = vmatprep.subr.bf16.mxu0 0
          %3280 = vmatpush2.bf16.msra.mxu0 0
          %3281 = vmatprep.subr.bf16.mxu0 0
          %3282 = vmatpush2.bf16.msra.mxu0 0
          %3283 = vmatprep.mubr.bf16.mxu0 0
          %3284 = vmatmul.mubr.bf16.gmra.mxu0 %v3040
          %v3285 = vpop.f32.mrf.mxu0
          %v3286 = vadd.f32 0.0, %v3285
          %v3287 = vpop.f32.mrf.mxu0
          %v3288 = vadd.f32 0.0, %v3287
          %v3289 = vpop.f32.mrf.mxu0
          %v3290 = vadd.f32 0.0, %v3289
          %v3291 = vpop.f32.mrf.mxu0
          %v3292 = vadd.f32 0.0, %v3291
          %3293 = vdwg.mxu0
          %3294 = vmatprep.subr.bf16.mxu0 %v3218
          %3295 = vmatpush1.bf16.msra.mxu0 %v3217
          %3296 = vmatprep.subr.bf16.mxu0 %v3214
          %3297 = vmatpush1.bf16.msra.mxu0 %v3213
          %3298 = vmatprep.subr.bf16.mxu0 %v3210
          %3299 = vmatpush1.bf16.msra.mxu0 %v3209
          %3300 = vmatprep.subr.bf16.mxu0 %v3206
          %3301 = vmatpush1.bf16.msra.mxu0 %v3205
          %3302 = vmatprep.subr.bf16.mxu0 %v3202
          %3303 = vmatpush1.bf16.msra.mxu0 %v3201
          %3304 = vmatprep.subr.bf16.mxu0 %v3198
          %3305 = vmatpush1.bf16.msra.mxu0 %v3197
          %3306 = vmatprep.subr.bf16.mxu0 %v3194
          %3307 = vmatpush1.bf16.msra.mxu0 %v3193
          %3308 = vmatprep.subr.bf16.mxu0 %v3190
          %3309 = vmatpush1.bf16.msra.mxu0 %v3189
          %3310 = vmatprep.subr.bf16.mxu0 0
          %3311 = vmatpush2.bf16.msra.mxu0 0
          %3312 = vmatprep.subr.bf16.mxu0 0
          %3313 = vmatpush2.bf16.msra.mxu0 0
          %3314 = vmatprep.subr.bf16.mxu0 0
          %3315 = vmatpush2.bf16.msra.mxu0 0
          %3316 = vmatprep.subr.bf16.mxu0 0
          %3317 = vmatpush2.bf16.msra.mxu0 0
          %3318 = vmatprep.subr.bf16.mxu0 0
          %3319 = vmatpush2.bf16.msra.mxu0 0
          %3320 = vmatprep.subr.bf16.mxu0 0
          %3321 = vmatpush2.bf16.msra.mxu0 0
          %3322 = vmatprep.subr.bf16.mxu0 0
          %3323 = vmatpush2.bf16.msra.mxu0 0
          %3324 = vmatprep.subr.bf16.mxu0 0
          %3325 = vmatpush2.bf16.msra.mxu0 0
          %3326 = vmatprep.mubr.bf16.mxu0 0
          %3327 = vmatmul.mubr.bf16.gmra.mxu0 %v3040
          %v3328 = vpop.f32.mrf.mxu0
          %v3329 = vadd.f32 0.0, %v3328
          %v3330 = vpop.f32.mrf.mxu0
          %v3331 = vadd.f32 0.0, %v3330
          %v3332 = vpop.f32.mrf.mxu0
          %v3333 = vadd.f32 0.0, %v3332
          %v3334 = vpop.f32.mrf.mxu0
          %v3335 = vadd.f32 0.0, %v3334
          %3336 = vdwg.mxu0
          %v3337 = vadd.f32 %v3051, %v3286
          %v3338 = vadd.f32 %v3052, %v3288
          %v3339 = vadd.f32 %v3053, %v3329
          %v3340 = vadd.f32 %v3054, %v3331
          %v3341 = vadd.f32 %v3055, %v3290
          %v3342 = vadd.f32 %v3056, %v3292
          %v3343 = vadd.f32 %v3057, %v3333
          %v3344 = vadd.f32 %v3058, %v3335
          %v3345 = vmul.f32 %v3337, 0.5
          %v3346 = vmul.f32 %v3341, 0.5
          %v3347 = vtanh.pop %v3345
          %v3348 = vtanh.pop %v3346
          %v3349 = vadd.f32 %v3347, 1.0
          %v3350 = vadd.f32 %v3348, 1.0
          %v3351 = vmul.f32 %v3349, 0.5
          %v3352 = vmul.f32 %v3350, 0.5
          %v3353 = vmul.f32 %v3338, 0.5
          %v3354 = vmul.f32 %v3342, 0.5
          %v3355 = vtanh.pop %v3353
          %v3356 = vtanh.pop %v3354
          %v3357 = vadd.f32 %v3355, 1.0
          %v3358 = vadd.f32 %v3356, 1.0
          %v3359 = vmul.f32 %v3357, 0.5
          %v3360 = vmul.f32 %v3358, 0.5
          %v3361 = vtanh.pop %v3339
          %v3362 = vtanh.pop %v3343
          %v3363 = vmul.f32 %v3340, 0.5
          %v3364 = vmul.f32 %v3344, 0.5
          %v3365 = vtanh.pop %v3363
          %v3366 = vtanh.pop %v3364
          %v3367 = vadd.f32 %v3365, 1.0
          %v3368 = vadd.f32 %v3366, 1.0
          %v3369 = vmul.f32 %v3367, 0.5
          %v3370 = vmul.f32 %v3368, 0.5
          %v3371 = vmul.f32 %v3359, %v3034
          %v3372 = vmul.f32 %v3360, %v3035
          %v3373 = vmul.f32 %v3351, %v3361
          %v3374 = vmul.f32 %v3352, %v3362
          %v3375 = vadd.f32 %v3371, %v3373
          %v3376 = vadd.f32 %v3372, %v3374
          %v3377 = vtanh.pop %v3375
          %v3378 = vtanh.pop %v3376
          %v3379 = vmul.f32 %v3369, %v3377
          %v3380 = vmul.f32 %v3370, %v3378
          %v3381 = vpack.c.bf16 %v3380, %v3379
          %v3383 = vunpack.c.l.b16 %v3381
          %v3384 = vunpack.c.h.b16 %v3381
          %v3385 = vpack.c.b16 %v3383, %v3383
          %v3386 = vpack.c.b16 %v3384, %v3384
          %3389 = vst [vmem:[%s346] sm:$0xf] %v3385
          %3390 = vst [vmem:[%s346 + $0x4] sm:$0xf] %v3386
          %3391 = vst [vmem:[%s2018] sm:$0xff] %v3379
          %3392 = vst [vmem:[%s2018 + $0x8] sm:$0xff] %v3380
          %3393 = vst [vmem:[%s2021] sm:$0xff] %v3375
          %3394 = vst [vmem:[%s2021 + $0x8] sm:$0xff] %v3376
        $region60: #{bilstm_forward.2} parent=35 // pred_fallthru
          _
        %s3395 = sand.u32 %s163, 1
        %s3396 = sand.u32 %s163, 1
        %s3397 = smul.addr %s3396, 32
        %s3398 = scalar_lea.vmem [#allocation10], %s3397
        // Predicated region
        $region65: #{bilstm_forward.2} parent=35 // pred_check
          %p3399 = pneg %p173
        $region66: #{bilstm_forward.2} parent=35 // pred_check_branch
          %3401 = sbr.rel (%p3399) target = $region68
        $region67: #{bilstm_forward.2} parent=35 // pred_region
          %s3402 = smul.u32 %s25, 2
          %s3403 = ssub.s32 1, %s3402
          %s3404 = smul.u32 %s26, %s3403
          %s3405 = sadd.s32 %s3404, %s25
          %s3406 = smul.u32 4, %s3405
          %s3407 = smul.addr %s3406, 4
          %s3408 = sadd.s32 %s25, %s3407
          %s3409 = smul.addr %s3408, 4
          %s3410 = scalar_lea.vmem %s4, %s3409
          // Predicated region
          $region69: #{bilstm_forward.2} parent=67 // pred_check
            _
          $region70: #{bilstm_forward.2} parent=67 // pred_check_branch
            %3412 = sbr.rel (0) target = $region72
          $region71: #{bilstm_forward.2} parent=67 // pred_region
            // Predicated region
            $region73: #{bilstm_forward.2} parent=71 // pred_check
              _
            $region74: #{bilstm_forward.2} parent=71 // pred_check_branch
              %3414 = sbr.rel target = $region76
            $region75: #{bilstm_forward.2} parent=71 // pred_region
              // Predicated region
              $region88: #{bilstm_forward.2} parent=75 // pred_check
                _
              $region89: #{bilstm_forward.2} parent=75 // pred_check_branch
                %3444 = sbr.rel (0) target = $region91
              $region90: #{bilstm_forward.2} parent=75 // pred_region
                loop: start=0, step=1, limit=1
                $region92: #{bilstm_forward.2} parent=90 // loop_pre_header
                  _
                $region93: #{bilstm_forward.2} parent=90 // loop_header
                  %s3446 = sphi 0, %s3450
                  %p3447 = scmp.ge.s32.totalorder %s3446, 1
                  %s3451 = sphi %s3398, %s3398
                  %s3452 = sphi %s3410, %s3410
                $region94: #{bilstm_forward.2} parent=90 // loop_header_branch
                  %3449 = sbr.rel (%p3447) target = $region98
                $region95: #{bilstm_forward.2} parent=90 // loop_body
                  _
                $region96: #{bilstm_forward.2} parent=90 // loop_footer
                  %s3450 = sadd.s32 1, %s3446
                $region97: #{bilstm_forward.2} parent=90 // loop_footer_branch
                  %3445 = sbr.rel target = $region93
                $region98: #{bilstm_forward.2} parent=90 // loop_exit
                  _
                %s3454 = ssub.s32 16, 1
                loop: start=0, step=1, limit=1
                $region99: #{bilstm_forward.2} parent=90 // loop_pre_header
                  _
                $region100: #{bilstm_forward.2} parent=90 // loop_header
                  %s3456 = sphi 0, %s3460
                  %p3457 = scmp.ge.s32.totalorder %s3456, 1
                  %s3461 = sphi %s3398, %s3398
                  %s3462 = sphi %s3410, %s3410
                $region101: #{bilstm_forward.2} parent=90 // loop_header_branch
                  %3459 = sbr.rel (%p3457) target = $region105
                $region102: #{bilstm_forward.2} parent=90 // loop_body
                  %v3463 = vld [vmem:[%s3461] sm:%s3454]
                  %3464 = vst [vmem:[%s3462] sm:%s3454] %v3463
                  %v3465 = vld [vmem:[%s3461 + $0x4] sm:%s3454]
                  %3466 = vst [vmem:[%s3462 + $0x8] sm:%s3454] %v3465
                  %v3467 = vld [vmem:[%s3461 + $0x8] sm:%s3454]
                  %3468 = vst [vmem:[%s3462 + $0x10] sm:%s3454] %v3467
                  %v3469 = vld [vmem:[%s3461 + $0xc] sm:%s3454]
                  %3470 = vst [vmem:[%s3462 + $0x18] sm:%s3454] %v3469
                  %v3471 = vld [vmem:[%s3461 + $0x10] sm:%s3454]
                  %3472 = vst [vmem:[%s3462 + $0x20] sm:%s3454] %v3471
                  %v3473 = vld [vmem:[%s3461 + $0x14] sm:%s3454]
                  %3474 = vst [vmem:[%s3462 + $0x28] sm:%s3454] %v3473
                  %v3475 = vld [vmem:[%s3461 + $0x18] sm:%s3454]
                  %3476 = vst [vmem:[%s3462 + $0x30] sm:%s3454] %v3475
                  %v3477 = vld [vmem:[%s3461 + $0x1c] sm:%s3454]
                  %3478 = vst [vmem:[%s3462 + $0x38] sm:%s3454] %v3477
                $region103: #{bilstm_forward.2} parent=90 // loop_footer
                  %s3460 = sadd.s32 1, %s3456
                $region104: #{bilstm_forward.2} parent=90 // loop_footer_branch
                  %3455 = sbr.rel target = $region100
                $region105: #{bilstm_forward.2} parent=90 // loop_exit
                  _
              $region91: #{bilstm_forward.2} parent=75 // pred_fallthru
                _
            $region76: #{bilstm_forward.2} parent=71 // pred_fallthru
              _
            // Predicated region
            $region77: #{bilstm_forward.2} parent=71 // pred_check
              _
            $region78: #{bilstm_forward.2} parent=71 // pred_check_branch
              %3416 = sbr.rel (0) target = $region80
            $region79: #{bilstm_forward.2} parent=71 // pred_region
              %s3418 = ssub.s32 16, 1
              loop: start=0, step=1, limit=1
              $region81: #{bilstm_forward.2} parent=79 // loop_pre_header
                _
              $region82: #{bilstm_forward.2} parent=79 // loop_header
                %s3420 = sphi 0, %s3424
                %p3421 = scmp.ge.s32.totalorder %s3420, 1
                %s3425 = sphi %s3398, %s3398
                %s3426 = sphi %s3410, %s3410
              $region83: #{bilstm_forward.2} parent=79 // loop_header_branch
                %3423 = sbr.rel (%p3421) target = $region87
              $region84: #{bilstm_forward.2} parent=79 // loop_body
                %v3427 = vld [vmem:[%s3425] sm:%s3418]
                %3428 = vst [vmem:[%s3426] sm:%s3418] %v3427
                %v3429 = vld [vmem:[%s3425 + $0x4] sm:%s3418]
                %3430 = vst [vmem:[%s3426 + $0x8] sm:%s3418] %v3429
                %v3431 = vld [vmem:[%s3425 + $0x8] sm:%s3418]
                %3432 = vst [vmem:[%s3426 + $0x10] sm:%s3418] %v3431
                %v3433 = vld [vmem:[%s3425 + $0xc] sm:%s3418]
                %3434 = vst [vmem:[%s3426 + $0x18] sm:%s3418] %v3433
                %v3435 = vld [vmem:[%s3425 + $0x10] sm:%s3418]
                %3436 = vst [vmem:[%s3426 + $0x20] sm:%s3418] %v3435
                %v3437 = vld [vmem:[%s3425 + $0x14] sm:%s3418]
                %3438 = vst [vmem:[%s3426 + $0x28] sm:%s3418] %v3437
                %v3439 = vld [vmem:[%s3425 + $0x18] sm:%s3418]
                %3440 = vst [vmem:[%s3426 + $0x30] sm:%s3418] %v3439
                %v3441 = vld [vmem:[%s3425 + $0x1c] sm:%s3418]
                %3442 = vst [vmem:[%s3426 + $0x38] sm:%s3418] %v3441
              $region85: #{bilstm_forward.2} parent=79 // loop_footer
                %s3424 = sadd.s32 1, %s3420
              $region86: #{bilstm_forward.2} parent=79 // loop_footer_branch
                %3419 = sbr.rel target = $region82
              $region87: #{bilstm_forward.2} parent=79 // loop_exit
                _
            $region80: #{bilstm_forward.2} parent=71 // pred_fallthru
              _
          $region72: #{bilstm_forward.2} parent=67 // pred_fallthru
            _
          %3479 = vnop
        $region68: #{bilstm_forward.2} parent=35 // pred_fallthru
          _
      $region36: #{bilstm_forward.2} parent=5 // pred_fallthru
        _
      %p3480 = scmp.le.s32.totalorder 2, %s16
      // Predicated region
      $region106: #{bilstm_forward.2} parent=5 // pred_check
        %p3481 = pneg %p3480
      $region107: #{bilstm_forward.2} parent=5 // pred_check_branch
        %3483 = sbr.rel (%p3481) target = $region109
      $region108: #{bilstm_forward.2} parent=5 // pred_region
        %s3484 = ssub.s32 %s16, 2
        // Predicated region
        $region110: #{bilstm_forward.2} parent=108 // pred_check
          %p3485 = pneg %p179
        $region111: #{bilstm_forward.2} parent=108 // pred_check_branch
          %3487 = sbr.rel (%p3485) target = $region113
        $region112: #{bilstm_forward.2} parent=108 // pred_region
          %s3488 = sand.u32 %s164, 1
          %s3489 = sand.u32 %s164, 1
          %s3490 = smul.addr %s3489, 32
          %s3491 = scalar_lea.vmem [#allocation10], %s3490
        $region113: #{bilstm_forward.2} parent=108 // pred_fallthru
          _
      $region109: #{bilstm_forward.2} parent=5 // pred_fallthru
        _
    $region6: #{bilstm_forward.2} parent=1 // loop_footer
      %s20 = sadd.s32 1, %s16
    $region7: #{bilstm_forward.2} parent=1 // loop_footer_branch
      %15 = sbr.rel target = $region3
    $region8: #{bilstm_forward.2} parent=1 // loop_exit
      _
    %3492 = vsyncpa [#allocation6], 1
    %s3493 = scalar_lea.sflag [#allocation6], 1
    %3494 = vsyncpa %s3493, 1
    %3495 = vsyncpa [#allocation8], 1
    %s3496 = scalar_lea.sflag [#allocation8], 1
    %3497 = vsyncpa %s3496, 1

// kernel: bilstm_forward.3
$region0: #{bilstm_forward.3}
  #allocation0 [shape = 'u32[]', space=smem, size = 0x4, offset = 0x4, fixed_abs, tag = 'smem constant byte address 0x4 - core index']
  #allocation1 [shape = 'u32[144,128]{1,0:T(1,128)}', space=vmem, size = 0x12000, scoped, tag = 'internal scratch']
  #allocation2 [shape = 'f32[4,16,512]{2,1,0:T(8,128)}', space=vmem, size = 0x20000, scoped, tag = 'scratch operand']
  #allocation3 [shape = 'f32[2,16,128]{2,1,0:T(8,128)}', space=vmem, size = 0x4000, scoped, tag = 'scratch operand']
  #allocation4 [shape = 'f32[2,16,128]{2,1,0:T(8,128)}', space=vmem, size = 0x4000, scoped, tag = 'scratch operand']
  %s0 = inlined_call_operand.vmem [shape: bf16[8,16,256], index: 0, kind: input, shape index: {}]
  %s1 = inlined_call_operand.vmem [shape: bf16[2,256,512], index: 1, kind: input, shape index: {}]
  %s2 = inlined_call_operand.hbm [shape: bf16[2,128,512], index: 2, kind: input, shape index: {}]
  %s3 = inlined_call_operand.hbm [shape: f32[2,1,512], index: 3, kind: input, shape index: {}]
  %s4 = inlined_call_operand.vmem [shape: f32[8,16,256], index: 4, kind: output, shape index: {}]
  %s5 = sld [smem:[#allocation0]]
  $region107: #{bilstm_forward.3} parent=0
    _
  %s7 = ssub.s32 1, %s5
  %s8 = scalar_select 0, %s7, %s5
  $region1: #{bilstm_forward.3} parent=0
    #allocation5 [shape = 'u8[262144]{0}', space=vmem, size = 0x40000, scoped, tag = 'input window, operand 2']
    #allocation6 [shape = 's32[2]{0}', space=sflag, size = 0x8, scoped, tag = 'scoped memory for bilstm_forward.3']
    #allocation7 [shape = 'u8[4096]{0}', space=vmem, size = 0x1000, scoped, tag = 'input window, operand 3']
    #allocation8 [shape = 's32[2]{0}', space=sflag, size = 0x8, scoped, tag = 'scoped memory for bilstm_forward.3']
    #allocation9 [shape = 'u8[65536]{0}', space=vmem, size = 0x10000, scoped, tag = 'output window, operand 0']
    %9 = vsyncpa [#allocation6], 0
    %s10 = scalar_lea.sflag [#allocation6], 1
    %11 = vsyncpa %s10, 0
    %12 = vsyncpa [#allocation8], 0
    %s13 = scalar_lea.sflag [#allocation8], 1
    %14 = vsyncpa %s13, 0
    loop: start=0, step=1, limit=6
    $region2: #{bilstm_forward.3} parent=1 // loop_pre_header
      _
    $region3: #{bilstm_forward.3} parent=1 // loop_header
      %s16 = sphi 0, %s20
      %p17 = scmp.ge.s32.totalorder %s16, 6
      %s23 = sphi 0, %s35
      %s24 = sphi 0, %s31
      %s25 = sphi 0, %s23
      %s26 = sphi 0, %s24
      %s27 = sphi 0, %s25
      %s28 = sphi 0, %s26
      %s46 = sphi 0, %s48
      %s49 = sphi 0, %s46
      %s50 = sphi 0, %s49
      %s66 = sphi 0, %s50
      %s72 = sphi 0, %s74
      %s75 = sphi 0, %s72
      %s76 = sphi 0, %s75
      %s92 = sphi 0, %s76
      %s98 = sphi 0, %s100
      %s101 = sphi 0, %s98
      %s102 = sphi 0, %s101
      %s118 = sphi 0, %s102
      %s124 = sphi 0, %s126
      %s127 = sphi 0, %s124
      %s128 = sphi 0, %s127
      %s144 = sphi 0, %s128
      %s160 = sphi 0, %s162
      %s163 = sphi 0, %s160
      %s164 = sphi 0, %s163
      %s180 = sphi 0, %s164
    $region4: #{bilstm_forward.3} parent=1 // loop_header_branch
      %19 = sbr.rel (%p17) target = $region8
    $region5: #{bilstm_forward.3} parent=1 // loop_body
      %s21 = ssub.s32 %s16, 1
      %s22 = ssub.s32 %s16, 2
      %s29 = sadd.s32 1, %s24
      %p30 = scmp.ge.s32.totalorder %s29, 2
      %s31 = scalar_select %p30, 0, %s29
      %s32 = sadd.s32 1, %s23
      %s33 = scalar_select %p30, %s32, %s23
      %p34 = scmp.ge.s32.totalorder %s33, 2
      %s35 = scalar_select %p34, 0, %s33
      %s36 = smul.u32 %s23, 2
      %s37 = ssub.s32 1, %s36
      %s38 = smul.u32 %s24, %s37
      %s39 = sadd.s32 %s38, %s23
      %s40 = smul.u32 %s35, 2
      %s41 = ssub.s32 1, %s40
      %s42 = smul.u32 %s31, %s41
      %s43 = sadd.s32 %s42, %s35
      %s44 = ssub.s32 %s39, %s43
      %p45 = scmp.eq.s32.totalorder %s44, 0
      %s47 = sadd.s32 %s46, 1
      %s48 = scalar_select %p45, %s46, %s47
      %p51 = pneg %p45
      %p52 = scmp.eq.s32.totalorder %s16, 3
      %p53 = por %p51, %p52
      %p54 = scmp.ne.s32.totalorder %s46, %s49
      %p55 = scmp.eq.s32.totalorder %s16, 0
      %p56 = por %p54, %p55
      %p57 = scmp.ne.s32.totalorder %s46, %s49
      %p58 = scmp.eq.s32.totalorder %s21, 3
      %p59 = por %p57, %p58
      %p60 = scmp.ne.s32.totalorder %s49, %s50
      %p61 = scmp.eq.s32.totalorder %s21, 0
      %p62 = por %p60, %p61
      %p63 = scmp.ne.s32.totalorder %s49, %s50
      %p64 = scmp.eq.s32.totalorder %s22, 3
      %p65 = por %p63, %p64
      %p67 = scmp.ne.s32.totalorder %s50, %s66
      %p68 = scmp.eq.s32.totalorder %s22, 0
      %p69 = por %p67, %p68
      %s70 = ssub.s32 %s23, %s35
      %p71 = scmp.eq.s32.totalorder %s70, 0
      %s73 = sadd.s32 %s72, 1
      %s74 = scalar_select %p71, %s72, %s73
      %p77 = pneg %p71
      %p78 = scmp.eq.s32.totalorder %s16, 3
      %p79 = por %p77, %p78
      %p80 = scmp.ne.s32.totalorder %s72, %s75
      %p81 = scmp.eq.s32.totalorder %s16, 0
      %p82 = por %p80, %p81
      %p83 = scmp.ne.s32.totalorder %s72, %s75
      %p84 = scmp.eq.s32.totalorder %s21, 3
      %p85 = por %p83, %p84
      %p86 = scmp.ne.s32.totalorder %s75, %s76
      %p87 = scmp.eq.s32.totalorder %s21, 0
      %p88 = por %p86, %p87
      %p89 = scmp.ne.s32.totalorder %s75, %s76
      %p90 = scmp.eq.s32.totalorder %s22, 3
      %p91 = por %p89, %p90
      %p93 = scmp.ne.s32.totalorder %s76, %s92
      %p94 = scmp.eq.s32.totalorder %s22, 0
      %p95 = por %p93, %p94
      %s96 = ssub.s32 %s23, %s35
      %p97 = scmp.eq.s32.totalorder %s96, 0
      %s99 = sadd.s32 %s98, 1
      %s100 = scalar_select %p97, %s98, %s99
      %p103 = pneg %p97
      %p104 = scmp.eq.s32.totalorder %s16, 3
      %p105 = por %p103, %p104
      %p106 = scmp.ne.s32.totalorder %s98, %s101
      %p107 = scmp.eq.s32.totalorder %s16, 0
      %p108 = por %p106, %p107
      %p109 = scmp.ne.s32.totalorder %s98, %s101
      %p110 = scmp.eq.s32.totalorder %s21, 3
      %p111 = por %p109, %p110
      %p112 = scmp.ne.s32.totalorder %s101, %s102
      %p113 = scmp.eq.s32.totalorder %s21, 0
      %p114 = por %p112, %p113
      %p115 = scmp.ne.s32.totalorder %s101, %s102
      %p116 = scmp.eq.s32.totalorder %s22, 3
      %p117 = por %p115, %p116
      %p119 = scmp.ne.s32.totalorder %s102, %s118
      %p120 = scmp.eq.s32.totalorder %s22, 0
      %p121 = por %p119, %p120
      %s122 = ssub.s32 %s23, %s35
      %p123 = scmp.eq.s32.totalorder %s122, 0
      %s125 = sadd.s32 %s124, 1
      %s126 = scalar_select %p123, %s124, %s125
      %p129 = pneg %p123
      %p130 = scmp.eq.s32.totalorder %s16, 3
      %p131 = por %p129, %p130
      %p132 = scmp.ne.s32.totalorder %s124, %s127
      %p133 = scmp.eq.s32.totalorder %s16, 0
      %p134 = por %p132, %p133
      %p135 = scmp.ne.s32.totalorder %s124, %s127
      %p136 = scmp.eq.s32.totalorder %s21, 3
      %p137 = por %p135, %p136
      %p138 = scmp.ne.s32.totalorder %s127, %s128
      %p139 = scmp.eq.s32.totalorder %s21, 0
      %p140 = por %p138, %p139
      %p141 = scmp.ne.s32.totalorder %s127, %s128
      %p142 = scmp.eq.s32.totalorder %s22, 3
      %p143 = por %p141, %p142
      %p145 = scmp.ne.s32.totalorder %s128, %s144
      %p146 = scmp.eq.s32.totalorder %s22, 0
      %p147 = por %p145, %p146
      %s148 = smul.u32 %s23, 2
      %s149 = ssub.s32 1, %s148
      %s150 = smul.u32 %s24, %s149
      %s151 = sadd.s32 %s150, %s23
      %s152 = smul.u32 %s35, 2
      %s153 = ssub.s32 1, %s152
      %s154 = smul.u32 %s31, %s153
      %s155 = sadd.s32 %s154, %s35
      %s156 = ssub.s32 %s151, %s155
      %s157 = ssub.s32 %s23, %s35
      %s158 = sor.u32 %s156, %s157
      %p159 = scmp.eq.s32.totalorder %s158, 0
      %s161 = sadd.s32 %s160, 1
      %s162 = scalar_select %p159, %s160, %s161
      %p165 = pneg %p159
      %p166 = scmp.eq.s32.totalorder %s16, 3
      %p167 = por %p165, %p166
      %p168 = scmp.ne.s32.totalorder %s160, %s163
      %p169 = scmp.eq.s32.totalorder %s16, 0
      %p170 = por %p168, %p169
      %p171 = scmp.ne.s32.totalorder %s160, %s163
      %p172 = scmp.eq.s32.totalorder %s21, 3
      %p173 = por %p171, %p172
      %p174 = scmp.ne.s32.totalorder %s163, %s164
      %p175 = scmp.eq.s32.totalorder %s21, 0
      %p176 = por %p174, %p175
      %p177 = scmp.ne.s32.totalorder %s163, %s164
      %p178 = scmp.eq.s32.totalorder %s22, 3
      %p179 = por %p177, %p178
      %p181 = scmp.ne.s32.totalorder %s164, %s180
      %p182 = scmp.eq.s32.totalorder %s22, 0
      %p183 = por %p181, %p182
      %p184 = scmp.le.s32.totalorder 1, %s16
      %p185 = scmp.lt.s32.totalorder %s16, 5
      %p186 = pnand %p184, %p185
      %p187 = pneg %p186
      // Predicated region
      $region9: #{bilstm_forward.3} parent=5 // pred_check
        _
      $region10: #{bilstm_forward.3} parent=5 // pred_check_branch
        %189 = sbr.rel (%p186) target = $region12
      $region11: #{bilstm_forward.3} parent=5 // pred_region
        %s190 = ssub.s32 %s16, 1
      $region12: #{bilstm_forward.3} parent=5 // pred_fallthru
        _
      %p191 = scmp.lt.s32.totalorder %s16, 4
      // Predicated region
      $region13: #{bilstm_forward.3} parent=5 // pred_check
        %p192 = pneg %p191
      $region14: #{bilstm_forward.3} parent=5 // pred_check_branch
        %194 = sbr.rel (%p192) target = $region16
      $region15: #{bilstm_forward.3} parent=5 // pred_region
        // Predicated region
        $region17: #{bilstm_forward.3} parent=15 // pred_check
          %p195 = pneg %p56
        $region18: #{bilstm_forward.3} parent=15 // pred_check_branch
          %197 = sbr.rel (%p195) target = $region20
        $region19: #{bilstm_forward.3} parent=15 // pred_region
          %s198 = smul.u32 %s23, 2
          %s199 = ssub.s32 1, %s198
          %s200 = smul.u32 %s24, %s199
          %s201 = sadd.s32 %s200, %s23
          %s202 = smul.u32 4, %s201
          %p203 = scmp.lt.s32.totalorder %s202, 7
          %s204 = scalar_select %p203, %s202, 7
          %s205 = smul.addr %s204, 4
          %s206 = smul.addr %s205, 4
          %s207 = scalar_lea.vmem %s0, %s206
          %s208 = smul.u32 %s23, 2
          %s209 = ssub.s32 1, %s208
          %s210 = smul.u32 %s24, %s209
          %s211 = sadd.s32 %s210, %s23
          %s212 = smul.u32 4, %s211
        $region20: #{bilstm_forward.3} parent=15 // pred_fallthru
          _
        // Predicated region
        $region21: #{bilstm_forward.3} parent=15 // pred_check
          %p213 = pneg %p82
        $region22: #{bilstm_forward.3} parent=15 // pred_check_branch
          %215 = sbr.rel (%p213) target = $region24
        $region23: #{bilstm_forward.3} parent=15 // pred_region
          %p216 = scmp.lt.s32.totalorder %s23, 1
          %s217 = scalar_select %p216, %s23, 1
          %s218 = smul.addr %s217, 128
          %s219 = smul.addr %s218, 4
          %s220 = scalar_lea.vmem %s1, %s219
        $region24: #{bilstm_forward.3} parent=15 // pred_fallthru
          _
        // Predicated region
        $region25: #{bilstm_forward.3} parent=15 // pred_check
          %p221 = pneg %p108
        $region26: #{bilstm_forward.3} parent=15 // pred_check_branch
          %223 = sbr.rel (%p221) target = $region28
        $region27: #{bilstm_forward.3} parent=15 // pred_region
          %s224 = sand.u32 %s98, 1
          %s225 = scalar_lea.sflag [#allocation6], %s224
          %s226 = sand.u32 %s98, 1
          %s227 = smul.addr %s226, 256
          %s228 = scalar_lea.vmem [#allocation5], %s227
          %s230 = ssub.s32 4096, 4096
          %231 = vsyncadd %s225, %s230
          %s232 = smul.addr %s23, 64
          %s233 = smul.addr %s232, 64
          %s234 = scalar_lea.hbm %s2, %s233
          %s235 = sshll.u32 %s228, 4
          %s236 = int_to_ptr.vmem [resolvable:$true] %s235
          %241 = dma.hbm_to_vmem [thread:$0]  %s234, 4096, %s236, %s225, 256, 256, 16
        $region28: #{bilstm_forward.3} parent=15 // pred_fallthru
          _
        // Predicated region
        $region29: #{bilstm_forward.3} parent=15 // pred_check
          %p242 = pneg %p134
        $region30: #{bilstm_forward.3} parent=15 // pred_check_branch
          %244 = sbr.rel (%p242) target = $region32
        $region31: #{bilstm_forward.3} parent=15 // pred_region
          %s245 = sand.u32 %s124, 1
          %s246 = scalar_lea.sflag [#allocation8], %s245
          %s247 = sand.u32 %s124, 1
          %s248 = smul.addr %s247, 4
          %s249 = scalar_lea.vmem [#allocation7], %s248
          %s251 = ssub.s32 64, 64
          %252 = vsyncadd %s246, %s251
          %s253 = smul.addr %s23, 4
          %s254 = smul.addr %s253, 16
          %s255 = scalar_lea.hbm %s3, %s254
          %s257 = sshll.u32 %s249, 4
          %s258 = int_to_ptr.vmem [resolvable:$true] %s257
          %260 = dma.hbm_to_vmem [thread:$0]  %s255, 64, %s258, %s246
        $region32: #{bilstm_forward.3} parent=15 // pred_fallthru
          _
      $region16: #{bilstm_forward.3} parent=5 // pred_fallthru
        _
      %p261 = scmp.le.s32.totalorder 1, %s16
      %p262 = scmp.lt.s32.totalorder %s16, 5
      %p263 = pnand %p261, %p262
      %p264 = pneg %p263
      // Predicated region
      $region33: #{bilstm_forward.3} parent=5 // pred_check
        _
      $region34: #{bilstm_forward.3} parent=5 // pred_check_branch
        %266 = sbr.rel (%p263) target = $region36
      $region35: #{bilstm_forward.3} parent=5 // pred_region
        %s267 = ssub.s32 %s16, 1
        %s268 = sand.u32 %s101, 1
        %s269 = scalar_lea.sflag [#allocation6], %s268
        %s270 = sand.u32 %s101, 1
        %s271 = smul.addr %s270, 256
        %s272 = scalar_lea.vmem [#allocation5], %s271
        // Predicated region
        $region37: #{bilstm_forward.3} parent=35 // pred_check
          %p273 = pneg %p114
        $region38: #{bilstm_forward.3} parent=35 // pred_check_branch
          %275 = sbr.rel (%p273) target = $region40
        $region39: #{bilstm_forward.3} parent=35 // pred_region
          %276 = dma.done %s269, 4096
        $region40: #{bilstm_forward.3} parent=35 // pred_fallthru
          _
        %s277 = sand.u32 %s127, 1
        %s278 = scalar_lea.sflag [#allocation8], %s277
        %s279 = sand.u32 %s127, 1
        %s280 = smul.addr %s279, 4
        %s281 = scalar_lea.vmem [#allocation7], %s280
        // Predicated region
        $region41: #{bilstm_forward.3} parent=35 // pred_check
          %p282 = pneg %p140
        $region42: #{bilstm_forward.3} parent=35 // pred_check_branch
          %284 = sbr.rel (%p282) target = $region44
        $region43: #{bilstm_forward.3} parent=35 // pred_region
          %285 = dma.done %s278, 64
        $region44: #{bilstm_forward.3} parent=35 // pred_fallthru
          _
        %s286 = smul.u32 %s25, 2
        %s287 = ssub.s32 1, %s286
        %s288 = smul.u32 %s26, %s287
        %s289 = sadd.s32 %s288, %s25
        %s290 = smul.u32 4, %s289
        %p291 = scmp.lt.s32.totalorder %s290, 7
        %s292 = scalar_select %p291, %s290, 7
        %s293 = smul.addr %s292, 4
        %s294 = smul.addr %s293, 4
        %s295 = scalar_lea.vmem %s0, %s294
        %p296 = pneg %p62
        %p297 = pneg %p59
        %p298 = scmp.lt.s32.totalorder %s25, 1
        %s299 = scalar_select %p298, %s25, 1
        %s300 = smul.addr %s299, 128
        %s301 = smul.addr %s300, 4
        %s302 = scalar_lea.vmem %s1, %s301
        %p303 = pneg %p88
        %p304 = pneg %p85
        %s305 = sand.u32 %s101, 1
        %s306 = scalar_lea.sflag [#allocation6], %s305
        %s307 = sand.u32 %s101, 1
        %s308 = smul.addr %s307, 256
        %s309 = scalar_lea.vmem [#allocation5], %s308
        %p310 = pneg %p114
        %p311 = pneg %p111
        %s312 = sand.u32 %s127, 1
        %s313 = scalar_lea.sflag [#allocation8], %s312
        %s314 = sand.u32 %s127, 1
        %s315 = smul.addr %s314, 4
        %s316 = scalar_lea.vmem [#allocation7], %s315
        %p317 = pneg %p140
        %p318 = pneg %p137
        %p319 = pneg %p176
        %p320 = pneg %p173
        %s321 = sand.u32 %s163, 1
        %s322 = sand.u32 %s163, 1
        %s323 = smul.addr %s322, 64
        %s324 = scalar_lea.vmem [#allocation9], %s323
        %s325 = smul.u32 %s25, 2
        %s326 = ssub.s32 1, %s325
        %s327 = smul.u32 %s26, %s326
        %s328 = sadd.s32 %s327, %s25
        %s329 = smul.u32 4, %s328
        %p330 = scmp.lt.s32.totalorder %s329, 7
        %s331 = scalar_select %p330, %s329, 7
        %s332 = smul.addr %s331, 4
        %s333 = smul.addr %s332, 4
        %s334 = scalar_lea.vmem %s0, %s333
        %s335 = smul.u32 %s25, 2
        %s336 = ssub.s32 1, %s335
        %s337 = smul.u32 %s26, %s336
        %s338 = sadd.s32 %s337, %s25
        %s339 = smul.u32 4, %s338
        %p340 = scmp.lt.s32.totalorder %s25, 1
        %s341 = scalar_select %p340, %s25, 1
        %s342 = smul.addr %s341, 128
        %s343 = smul.addr %s342, 4
        %s344 = scalar_lea.vmem %s1, %s343
        %s345 = smul.u32 %s25, 2
        %s346 = ssub.s32 1, %s345
        %s347 = smul.u32 %s26, %s346
        %s348 = sadd.s32 %s347, %s25
        %s349 = smul.u32 4, %s348
        %v351 = vld [vmem:[%s334] sm:$0xff]
        %v352 = vld [vmem:[%s334 + $0x8] sm:$0xff]
        %v353 = vld [vmem:[%s334 + $0x10] sm:$0xff]
        %v354 = vld [vmem:[%s334 + $0x18] sm:$0xff]
        %v355 = vld [vmem:[%s334 + $0x20] sm:$0xff]
        %v356 = vld [vmem:[%s334 + $0x28] sm:$0xff]
        %v357 = vld [vmem:[%s334 + $0x30] sm:$0xff]
        %v358 = vld [vmem:[%s334 + $0x38] sm:$0xff]
        %v359 = vld [vmem:[%s344] sm:$0xff]
        %v360 = vld [vmem:[%s344 + $0x8] sm:$0xff]
        %v361 = vld [vmem:[%s344 + $0x10] sm:$0xff]
        %v362 = vld [vmem:[%s344 + $0x18] sm:$0xff]
        %v363 = vld [vmem:[%s344 + $0x20] sm:$0xff]
        %v364 = vld [vmem:[%s344 + $0x28] sm:$0xff]
        %v365 = vld [vmem:[%s344 + $0x30] sm:$0xff]
        %v366 = vld [vmem:[%s344 + $0x38] sm:$0xff]
        %v367 = vld [vmem:[%s344 + $0x40] sm:$0xff]
        %v368 = vld [vmem:[%s344 + $0x48] sm:$0xff]
        %v369 = vld [vmem:[%s344 + $0x50] sm:$0xff]
        %v370 = vld [vmem:[%s344 + $0x58] sm:$0xff]
        %v371 = vld [vmem:[%s344 + $0x60] sm:$0xff]
        %v372 = vld [vmem:[%s344 + $0x68] sm:$0xff]
        %v373 = vld [vmem:[%s344 + $0x70] sm:$0xff]
        %v374 = vld [vmem:[%s344 + $0x78] sm:$0xff]
        %v375 = vld [vmem:[%s344 + $0x80] sm:$0xff]
        %v376 = vld [vmem:[%s344 + $0x88] sm:$0xff]
        %v377 = vld [vmem:[%s344 + $0x90] sm:$0xff]
        %v378 = vld [vmem:[%s344 + $0x98] sm:$0xff]
        %v379 = vld [vmem:[%s344 + $0xa0] sm:$0xff]
        %v380 = vld [vmem:[%s344 + $0xa8] sm:$0xff]
        %v381 = vld [vmem:[%s344 + $0xb0] sm:$0xff]
        %v382 = vld [vmem:[%s344 + $0xb8] sm:$0xff]
        %v383 = vld [vmem:[%s344 + $0xc0] sm:$0xff]
        %v384 = vld [vmem:[%s344 + $0xc8] sm:$0xff]
        %v385 = vld [vmem:[%s344 + $0xd0] sm:$0xff]
        %v386 = vld [vmem:[%s344 + $0xd8] sm:$0xff]
        %v387 = vld [vmem:[%s344 + $0xe0] sm:$0xff]
        %v388 = vld [vmem:[%s344 + $0xe8] sm:$0xff]
        %v389 = vld [vmem:[%s344 + $0xf0] sm:$0xff]
        %v390 = vld [vmem:[%s344 + $0xf8] sm:$0xff]
        %v391 = vld [vmem:[%s344 + $0x100] sm:$0xff]
        %v392 = vld [vmem:[%s344 + $0x108] sm:$0xff]
        %v393 = vld [vmem:[%s344 + $0x110] sm:$0xff]
        %v394 = vld [vmem:[%s344 + $0x118] sm:$0xff]
        %v395 = vld [vmem:[%s344 + $0x120] sm:$0xff]
        %v396 = vld [vmem:[%s344 + $0x128] sm:$0xff]
        %v397 = vld [vmem:[%s344 + $0x130] sm:$0xff]
        %v398 = vld [vmem:[%s344 + $0x138] sm:$0xff]
        %v399 = vld [vmem:[%s344 + $0x140] sm:$0xff]
        %v400 = vld [vmem:[%s344 + $0x148] sm:$0xff]
        %v401 = vld [vmem:[%s344 + $0x150] sm:$0xff]
        %v402 = vld [vmem:[%s344 + $0x158] sm:$0xff]
        %v403 = vld [vmem:[%s344 + $0x160] sm:$0xff]
        %v404 = vld [vmem:[%s344 + $0x168] sm:$0xff]
        %v405 = vld [vmem:[%s344 + $0x170] sm:$0xff]
        %v406 = vld [vmem:[%s344 + $0x178] sm:$0xff]
        %v407 = vld [vmem:[%s344 + $0x180] sm:$0xff]
        %v408 = vld [vmem:[%s344 + $0x188] sm:$0xff]
        %v409 = vld [vmem:[%s344 + $0x190] sm:$0xff]
        %v410 = vld [vmem:[%s344 + $0x198] sm:$0xff]
        %v411 = vld [vmem:[%s344 + $0x1a0] sm:$0xff]
        %v412 = vld [vmem:[%s344 + $0x1a8] sm:$0xff]
        %v413 = vld [vmem:[%s344 + $0x1b0] sm:$0xff]
        %v414 = vld [vmem:[%s344 + $0x1b8] sm:$0xff]
        %v415 = vld [vmem:[%s344 + $0x1c0] sm:$0xff]
        %v416 = vld [vmem:[%s344 + $0x1c8] sm:$0xff]
        %v417 = vld [vmem:[%s344 + $0x1d0] sm:$0xff]
        %v418 = vld [vmem:[%s344 + $0x1d8] sm:$0xff]
        %v419 = vld [vmem:[%s344 + $0x1e0] sm:$0xff]
        %v420 = vld [vmem:[%s344 + $0x1e8] sm:$0xff]
        %v421 = vld [vmem:[%s344 + $0x1f0] sm:$0xff]
        %v422 = vld [vmem:[%s344 + $0x1f8] sm:$0xff]
        %v423 = vld [vmem:[%s281] sm:$0xf]
        %v425 = vlaneseq
        %v426 = vshrl.u32 %v425, 7
        %v427 = vsub.s32 0, %v426
        %v428 = vrot.slane %v423, %v427
        %v429 = vlaneseq
        %v430 = vshrl.u32 %v429, 7
        %v431 = vsub.s32 1, %v430
        %v432 = vrot.slane %v423, %v431
        %v433 = vlaneseq
        %v434 = vshrl.u32 %v433, 7
        %v435 = vsub.s32 2, %v434
        %v436 = vrot.slane %v423, %v435
        %v437 = vlaneseq
        %v438 = vshrl.u32 %v437, 7
        %v439 = vsub.s32 3, %v438
        %v440 = vrot.slane %v423, %v439
        %v453 = vunpack.c.l.b16 %v351
        %v454 = vunpack.c.h.b16 %v351
        %v455 = vunpack.c.l.b16 %v352
        %v456 = vunpack.c.h.b16 %v352
        %v457 = vunpack.c.l.b16 %v353
        %v458 = vunpack.c.h.b16 %v353
        %v459 = vunpack.c.l.b16 %v354
        %v460 = vunpack.c.h.b16 %v354
        %v461 = vunpack.c.l.b16 %v355
        %v462 = vunpack.c.h.b16 %v355
        %v463 = vunpack.c.l.b16 %v356
        %v464 = vunpack.c.h.b16 %v356
        %v465 = vunpack.c.l.b16 %v357
        %v466 = vunpack.c.h.b16 %v357
        %v467 = vunpack.c.l.b16 %v358
        %v468 = vunpack.c.h.b16 %v358
        %v469 = vpack.c.b16 %v455, %v453
        %v470 = vpack.c.b16 %v456, %v454
        %v471 = vpack.c.b16 %v459, %v457
        %v472 = vpack.c.b16 %v460, %v458
        %v473 = vpack.c.b16 %v463, %v461
        %v474 = vpack.c.b16 %v464, %v462
        %v475 = vpack.c.b16 %v467, %v465
        %v476 = vpack.c.b16 %v468, %v466
        %v549 = vunpack.c.l.b16 %v359
        %v550 = vunpack.c.h.b16 %v359
        %v551 = vunpack.c.l.b16 %v360
        %v552 = vunpack.c.h.b16 %v360
        %v553 = vunpack.c.l.b16 %v361
        %v554 = vunpack.c.h.b16 %v361
        %v555 = vunpack.c.l.b16 %v362
        %v556 = vunpack.c.h.b16 %v362
        %v557 = vunpack.c.l.b16 %v363
        %v558 = vunpack.c.h.b16 %v363
        %v559 = vunpack.c.l.b16 %v364
        %v560 = vunpack.c.h.b16 %v364
        %v561 = vunpack.c.l.b16 %v365
        %v562 = vunpack.c.h.b16 %v365
        %v563 = vunpack.c.l.b16 %v366
        %v564 = vunpack.c.h.b16 %v366
        %v565 = vunpack.c.l.b16 %v367
        %v566 = vunpack.c.h.b16 %v367
        %v567 = vunpack.c.l.b16 %v368
        %v568 = vunpack.c.h.b16 %v368
        %v569 = vunpack.c.l.b16 %v369
        %v570 = vunpack.c.h.b16 %v369
        %v571 = vunpack.c.l.b16 %v370
        %v572 = vunpack.c.h.b16 %v370
        %v573 = vunpack.c.l.b16 %v371
        %v574 = vunpack.c.h.b16 %v371
        %v575 = vunpack.c.l.b16 %v372
        %v576 = vunpack.c.h.b16 %v372
        %v577 = vunpack.c.l.b16 %v373
        %v578 = vunpack.c.h.b16 %v373
        %v579 = vunpack.c.l.b16 %v374
        %v580 = vunpack.c.h.b16 %v374
        %v581 = vunpack.c.l.b16 %v375
        %v582 = vunpack.c.h.b16 %v375
        %v583 = vunpack.c.l.b16 %v376
        %v584 = vunpack.c.h.b16 %v376
        %v585 = vunpack.c.l.b16 %v377
        %v586 = vunpack.c.h.b16 %v377
        %v587 = vunpack.c.l.b16 %v378
        %v588 = vunpack.c.h.b16 %v378
        %v589 = vunpack.c.l.b16 %v379
        %v590 = vunpack.c.h.b16 %v379
        %v591 = vunpack.c.l.b16 %v380
        %v592 = vunpack.c.h.b16 %v380
        %v593 = vunpack.c.l.b16 %v381
        %v594 = vunpack.c.h.b16 %v381
        %v595 = vunpack.c.l.b16 %v382
        %v596 = vunpack.c.h.b16 %v382
        %v597 = vunpack.c.l.b16 %v383
        %v598 = vunpack.c.h.b16 %v383
        %v599 = vunpack.c.l.b16 %v384
        %v600 = vunpack.c.h.b16 %v384
        %v601 = vunpack.c.l.b16 %v385
        %v602 = vunpack.c.h.b16 %v385
        %v603 = vunpack.c.l.b16 %v386
        %v604 = vunpack.c.h.b16 %v386
        %v605 = vunpack.c.l.b16 %v387
        %v606 = vunpack.c.h.b16 %v387
        %v607 = vunpack.c.l.b16 %v388
        %v608 = vunpack.c.h.b16 %v388
        %v609 = vunpack.c.l.b16 %v389
        %v610 = vunpack.c.h.b16 %v389
        %v611 = vunpack.c.l.b16 %v390
        %v612 = vunpack.c.h.b16 %v390
        %v613 = vunpack.c.l.b16 %v391
        %v614 = vunpack.c.h.b16 %v391
        %v615 = vunpack.c.l.b16 %v392
        %v616 = vunpack.c.h.b16 %v392
        %v617 = vunpack.c.l.b16 %v393
        %v618 = vunpack.c.h.b16 %v393
        %v619 = vunpack.c.l.b16 %v394
        %v620 = vunpack.c.h.b16 %v394
        %v621 = vunpack.c.l.b16 %v395
        %v622 = vunpack.c.h.b16 %v395
        %v623 = vunpack.c.l.b16 %v396
        %v624 = vunpack.c.h.b16 %v396
        %v625 = vunpack.c.l.b16 %v397
        %v626 = vunpack.c.h.b16 %v397
        %v627 = vunpack.c.l.b16 %v398
        %v628 = vunpack.c.h.b16 %v398
        %v629 = vunpack.c.l.b16 %v399
        %v630 = vunpack.c.h.b16 %v399
        %v631 = vunpack.c.l.b16 %v400
        %v632 = vunpack.c.h.b16 %v400
        %v633 = vunpack.c.l.b16 %v401
        %v634 = vunpack.c.h.b16 %v401
        %v635 = vunpack.c.l.b16 %v402
        %v636 = vunpack.c.h.b16 %v402
        %v637 = vunpack.c.l.b16 %v403
        %v638 = vunpack.c.h.b16 %v403
        %v639 = vunpack.c.l.b16 %v404
        %v640 = vunpack.c.h.b16 %v404
        %v641 = vunpack.c.l.b16 %v405
        %v642 = vunpack.c.h.b16 %v405
        %v643 = vunpack.c.l.b16 %v406
        %v644 = vunpack.c.h.b16 %v406
        %v645 = vunpack.c.l.b16 %v407
        %v646 = vunpack.c.h.b16 %v407
        %v647 = vunpack.c.l.b16 %v408
        %v648 = vunpack.c.h.b16 %v408
        %v649 = vunpack.c.l.b16 %v409
        %v650 = vunpack.c.h.b16 %v409
        %v651 = vunpack.c.l.b16 %v410
        %v652 = vunpack.c.h.b16 %v410
        %v653 = vunpack.c.l.b16 %v411
        %v654 = vunpack.c.h.b16 %v411
        %v655 = vunpack.c.l.b16 %v412
        %v656 = vunpack.c.h.b16 %v412
        %v657 = vunpack.c.l.b16 %v413
        %v658 = vunpack.c.h.b16 %v413
        %v659 = vunpack.c.l.b16 %v414
        %v660 = vunpack.c.h.b16 %v414
        %v661 = vunpack.c.l.b16 %v415
        %v662 = vunpack.c.h.b16 %v415
        %v663 = vunpack.c.l.b16 %v416
        %v664 = vunpack.c.h.b16 %v416
        %v665 = vunpack.c.l.b16 %v417
        %v666 = vunpack.c.h.b16 %v417
        %v667 = vunpack.c.l.b16 %v418
        %v668 = vunpack.c.h.b16 %v418
        %v669 = vunpack.c.l.b16 %v419
        %v670 = vunpack.c.h.b16 %v419
        %v671 = vunpack.c.l.b16 %v420
        %v672 = vunpack.c.h.b16 %v420
        %v673 = vunpack.c.l.b16 %v421
        %v674 = vunpack.c.h.b16 %v421
        %v675 = vunpack.c.l.b16 %v422
        %v676 = vunpack.c.h.b16 %v422
        %v677 = vpack.c.b16 %v553, %v549
        %v678 = vpack.c.b16 %v554, %v550
        %v679 = vpack.c.b16 %v555, %v551
        %v680 = vpack.c.b16 %v556, %v552
        %v681 = vpack.c.b16 %v561, %v557
        %v682 = vpack.c.b16 %v562, %v558
        %v683 = vpack.c.b16 %v563, %v559
        %v684 = vpack.c.b16 %v564, %v560
        %v685 = vpack.c.b16 %v569, %v565
        %v686 = vpack.c.b16 %v570, %v566
        %v687 = vpack.c.b16 %v571, %v567
        %v688 = vpack.c.b16 %v572, %v568
        %v689 = vpack.c.b16 %v577, %v573
        %v690 = vpack.c.b16 %v578, %v574
        %v691 = vpack.c.b16 %v579, %v575
        %v692 = vpack.c.b16 %v580, %v576
        %v693 = vpack.c.b16 %v585, %v581
        %v694 = vpack.c.b16 %v586, %v582
        %v695 = vpack.c.b16 %v587, %v583
        %v696 = vpack.c.b16 %v588, %v584
        %v697 = vpack.c.b16 %v593, %v589
        %v698 = vpack.c.b16 %v594, %v590
        %v699 = vpack.c.b16 %v595, %v591
        %v700 = vpack.c.b16 %v596, %v592
        %v701 = vpack.c.b16 %v601, %v597
        %v702 = vpack.c.b16 %v602, %v598
        %v703 = vpack.c.b16 %v603, %v599
        %v704 = vpack.c.b16 %v604, %v600
        %v705 = vpack.c.b16 %v609, %v605
        %v706 = vpack.c.b16 %v610, %v606
        %v707 = vpack.c.b16 %v611, %v607
        %v708 = vpack.c.b16 %v612, %v608
        %v709 = vpack.c.b16 %v617, %v613
        %v710 = vpack.c.b16 %v618, %v614
        %v711 = vpack.c.b16 %v619, %v615
        %v712 = vpack.c.b16 %v620, %v616
        %v713 = vpack.c.b16 %v625, %v621
        %v714 = vpack.c.b16 %v626, %v622
        %v715 = vpack.c.b16 %v627, %v623
        %v716 = vpack.c.b16 %v628, %v624
        %v717 = vpack.c.b16 %v633, %v629
        %v718 = vpack.c.b16 %v634, %v630
        %v719 = vpack.c.b16 %v635, %v631
        %v720 = vpack.c.b16 %v636, %v632
        %v721 = vpack.c.b16 %v641, %v637
        %v722 = vpack.c.b16 %v642, %v638
        %v723 = vpack.c.b16 %v643, %v639
        %v724 = vpack.c.b16 %v644, %v640
        %v725 = vpack.c.b16 %v649, %v645
        %v726 = vpack.c.b16 %v650, %v646
        %v727 = vpack.c.b16 %v651, %v647
        %v728 = vpack.c.b16 %v652, %v648
        %v729 = vpack.c.b16 %v657, %v653
        %v730 = vpack.c.b16 %v658, %v654
        %v731 = vpack.c.b16 %v659, %v655
        %v732 = vpack.c.b16 %v660, %v656
        %v733 = vpack.c.b16 %v665, %v661
        %v734 = vpack.c.b16 %v666, %v662
        %v735 = vpack.c.b16 %v667, %v663
        %v736 = vpack.c.b16 %v668, %v664
        %v737 = vpack.c.b16 %v673, %v669
        %v738 = vpack.c.b16 %v674, %v670
        %v739 = vpack.c.b16 %v675, %v671
        %v740 = vpack.c.b16 %v676, %v672
        %805 = vmatprep.subr.bf16.mxu0 %v706
        %806 = vmatpush1.bf16.msra.mxu0 %v705
        %807 = vmatprep.subr.bf16.mxu0 %v702
        %808 = vmatpush1.bf16.msra.mxu0 %v701
        %809 = vmatprep.subr.bf16.mxu0 %v698
        %810 = vmatpush1.bf16.msra.mxu0 %v697
        %811 = vmatprep.subr.bf16.mxu0 %v694
        %812 = vmatpush1.bf16.msra.mxu0 %v693
        %813 = vmatprep.subr.bf16.mxu0 %v690
        %814 = vmatpush1.bf16.msra.mxu0 %v689
        %815 = vmatprep.subr.bf16.mxu0 %v686
        %816 = vmatpush1.bf16.msra.mxu0 %v685
        %817 = vmatprep.subr.bf16.mxu0 %v682
        %818 = vmatpush1.bf16.msra.mxu0 %v681
        %819 = vmatprep.subr.bf16.mxu0 %v678
        %820 = vmatpush1.bf16.msra.mxu0 %v677
        %821 = vmatprep.subr.bf16.mxu0 %v738
        %822 = vmatpush2.bf16.msra.mxu0 %v737
        %823 = vmatprep.subr.bf16.mxu0 %v734
        %824 = vmatpush2.bf16.msra.mxu0 %v733
        %825 = vmatprep.subr.bf16.mxu0 %v730
        %826 = vmatpush2.bf16.msra.mxu0 %v729
        %827 = vmatprep.subr.bf16.mxu0 %v726
        %828 = vmatpush2.bf16.msra.mxu0 %v725
        %829 = vmatprep.subr.bf16.mxu0 %v722
        %830 = vmatpush2.bf16.msra.mxu0 %v721
        %831 = vmatprep.subr.bf16.mxu0 %v718
        %832 = vmatpush2.bf16.msra.mxu0 %v717
        %833 = vmatprep.subr.bf16.mxu0 %v714
        %834 = vmatpush2.bf16.msra.mxu0 %v713
        %835 = vmatprep.subr.bf16.mxu0 %v710
        %836 = vmatpush2.bf16.msra.mxu0 %v709
        %837 = vmatprep.mubr.bf16.mxu0 %v470
        %838 = vmatmul.mubr.bf16.gmra.mxu0 %v469
        %v839 = vpop.f32.mrf.mxu0
        %v840 = vadd.f32 %v428, %v839
        %v841 = vpop.f32.mrf.mxu0
        %v842 = vadd.f32 %v432, %v841
        %v843 = vpop.f32.mrf.mxu0
        %v844 = vadd.f32 %v428, %v843
        %v845 = vpop.f32.mrf.mxu0
        %v846 = vadd.f32 %v432, %v845
        %847 = vmatprep.mubr.bf16.mxu0 %v472
        %848 = vmatmul.mubr.bf16.gmra.mxu0 %v471
        %v849 = vpop.f32.mrf.mxu0
        %v850 = vadd.f32 %v428, %v849
        %v851 = vpop.f32.mrf.mxu0
        %v852 = vadd.f32 %v432, %v851
        %v853 = vpop.f32.mrf.mxu0
        %v854 = vadd.f32 %v428, %v853
        %v855 = vpop.f32.mrf.mxu0
        %v856 = vadd.f32 %v432, %v855
        %857 = vmatprep.mubr.bf16.mxu0 %v474
        %858 = vmatmul.mubr.bf16.gmra.mxu0 %v473
        %v859 = vpop.f32.mrf.mxu0
        %v860 = vadd.f32 %v428, %v859
        %v861 = vpop.f32.mrf.mxu0
        %v862 = vadd.f32 %v432, %v861
        %v863 = vpop.f32.mrf.mxu0
        %v864 = vadd.f32 %v428, %v863
        %v865 = vpop.f32.mrf.mxu0
        %v866 = vadd.f32 %v432, %v865
        %867 = vmatprep.mubr.bf16.mxu0 %v476
        %868 = vmatmul.mubr.bf16.gmra.mxu0 %v475
        %v869 = vpop.f32.mrf.mxu0
        %v870 = vadd.f32 %v428, %v869
        %v871 = vpop.f32.mrf.mxu0
        %v872 = vadd.f32 %v432, %v871
        %v873 = vpop.f32.mrf.mxu0
        %v874 = vadd.f32 %v428, %v873
        %v875 = vpop.f32.mrf.mxu0
        %v876 = vadd.f32 %v432, %v875
        %877 = vdwg.mxu0
        %878 = vmatprep.subr.bf16.mxu0 %v708
        %879 = vmatpush1.bf16.msra.mxu0 %v707
        %880 = vmatprep.subr.bf16.mxu0 %v704
        %881 = vmatpush1.bf16.msra.mxu0 %v703
        %882 = vmatprep.subr.bf16.mxu0 %v700
        %883 = vmatpush1.bf16.msra.mxu0 %v699
        %884 = vmatprep.subr.bf16.mxu0 %v696
        %885 = vmatpush1.bf16.msra.mxu0 %v695
        %886 = vmatprep.subr.bf16.mxu0 %v692
        %887 = vmatpush1.bf16.msra.mxu0 %v691
        %888 = vmatprep.subr.bf16.mxu0 %v688
        %889 = vmatpush1.bf16.msra.mxu0 %v687
        %890 = vmatprep.subr.bf16.mxu0 %v684
        %891 = vmatpush1.bf16.msra.mxu0 %v683
        %892 = vmatprep.subr.bf16.mxu0 %v680
        %893 = vmatpush1.bf16.msra.mxu0 %v679
        %894 = vmatprep.subr.bf16.mxu0 %v740
        %895 = vmatpush2.bf16.msra.mxu0 %v739
        %896 = vmatprep.subr.bf16.mxu0 %v736
        %897 = vmatpush2.bf16.msra.mxu0 %v735
        %898 = vmatprep.subr.bf16.mxu0 %v732
        %899 = vmatpush2.bf16.msra.mxu0 %v731
        %900 = vmatprep.subr.bf16.mxu0 %v728
        %901 = vmatpush2.bf16.msra.mxu0 %v727
        %902 = vmatprep.subr.bf16.mxu0 %v724
        %903 = vmatpush2.bf16.msra.mxu0 %v723
        %904 = vmatprep.subr.bf16.mxu0 %v720
        %905 = vmatpush2.bf16.msra.mxu0 %v719
        %906 = vmatprep.subr.bf16.mxu0 %v716
        %907 = vmatpush2.bf16.msra.mxu0 %v715
        %908 = vmatprep.subr.bf16.mxu0 %v712
        %909 = vmatpush2.bf16.msra.mxu0 %v711
        %910 = vmatprep.mubr.bf16.mxu0 %v470
        %911 = vmatmul.mubr.bf16.gmra.mxu0 %v469
        %v912 = vpop.f32.mrf.mxu0
        %v913 = vadd.f32 %v436, %v912
        %v914 = vpop.f32.mrf.mxu0
        %v915 = vadd.f32 %v440, %v914
        %v916 = vpop.f32.mrf.mxu0
        %v917 = vadd.f32 %v436, %v916
        %v918 = vpop.f32.mrf.mxu0
        %v919 = vadd.f32 %v440, %v918
        %920 = vmatprep.mubr.bf16.mxu0 %v472
        %921 = vmatmul.mubr.bf16.gmra.mxu0 %v471
        %v922 = vpop.f32.mrf.mxu0
        %v923 = vadd.f32 %v436, %v922
        %v924 = vpop.f32.mrf.mxu0
        %v925 = vadd.f32 %v440, %v924
        %v926 = vpop.f32.mrf.mxu0
        %v927 = vadd.f32 %v436, %v926
        %v928 = vpop.f32.mrf.mxu0
        %v929 = vadd.f32 %v440, %v928
        %930 = vmatprep.mubr.bf16.mxu0 %v474
        %931 = vmatmul.mubr.bf16.gmra.mxu0 %v473
        %v932 = vpop.f32.mrf.mxu0
        %v933 = vadd.f32 %v436, %v932
        %v934 = vpop.f32.mrf.mxu0
        %v935 = vadd.f32 %v440, %v934
        %v936 = vpop.f32.mrf.mxu0
        %v937 = vadd.f32 %v436, %v936
        %v938 = vpop.f32.mrf.mxu0
        %v939 = vadd.f32 %v440, %v938
        %940 = vmatprep.mubr.bf16.mxu0 %v476
        %941 = vmatmul.mubr.bf16.gmra.mxu0 %v475
        %v942 = vpop.f32.mrf.mxu0
        %v943 = vadd.f32 %v436, %v942
        %v944 = vpop.f32.mrf.mxu0
        %v945 = vadd.f32 %v440, %v944
        %v946 = vpop.f32.mrf.mxu0
        %v947 = vadd.f32 %v436, %v946
        %v948 = vpop.f32.mrf.mxu0
        %v949 = vadd.f32 %v440, %v948
        %950 = vdwg.mxu0
        %951 = vst [vmem:[#allocation2] sm:$0xff] %v840
        %952 = vst [vmem:[#allocation2 + $0x8] sm:$0xff] %v842
        %953 = vst [vmem:[#allocation2 + $0x10] sm:$0xff] %v913
        %954 = vst [vmem:[#allocation2 + $0x18] sm:$0xff] %v915
        %955 = vst [vmem:[#allocation2 + $0x20] sm:$0xff] %v844
        %956 = vst [vmem:[#allocation2 + $0x28] sm:$0xff] %v846
        %957 = vst [vmem:[#allocation2 + $0x30] sm:$0xff] %v917
        %958 = vst [vmem:[#allocation2 + $0x38] sm:$0xff] %v919
        %959 = vst [vmem:[#allocation2 + $0x40] sm:$0xff] %v850
        %960 = vst [vmem:[#allocation2 + $0x48] sm:$0xff] %v852
        %961 = vst [vmem:[#allocation2 + $0x50] sm:$0xff] %v923
        %962 = vst [vmem:[#allocation2 + $0x58] sm:$0xff] %v925
        %963 = vst [vmem:[#allocation2 + $0x60] sm:$0xff] %v854
        %964 = vst [vmem:[#allocation2 + $0x68] sm:$0xff] %v856
        %965 = vst [vmem:[#allocation2 + $0x70] sm:$0xff] %v927
        %966 = vst [vmem:[#allocation2 + $0x78] sm:$0xff] %v929
        %967 = vst [vmem:[#allocation2 + $0x80] sm:$0xff] %v860
        %968 = vst [vmem:[#allocation2 + $0x88] sm:$0xff] %v862
        %969 = vst [vmem:[#allocation2 + $0x90] sm:$0xff] %v933
        %970 = vst [vmem:[#allocation2 + $0x98] sm:$0xff] %v935
        %971 = vst [vmem:[#allocation2 + $0xa0] sm:$0xff] %v864
        %972 = vst [vmem:[#allocation2 + $0xa8] sm:$0xff] %v866
        %973 = vst [vmem:[#allocation2 + $0xb0] sm:$0xff] %v937
        %974 = vst [vmem:[#allocation2 + $0xb8] sm:$0xff] %v939
        %975 = vst [vmem:[#allocation2 + $0xc0] sm:$0xff] %v870
        %976 = vst [vmem:[#allocation2 + $0xc8] sm:$0xff] %v872
        %977 = vst [vmem:[#allocation2 + $0xd0] sm:$0xff] %v943
        %978 = vst [vmem:[#allocation2 + $0xd8] sm:$0xff] %v945
        %979 = vst [vmem:[#allocation2 + $0xe0] sm:$0xff] %v874
        %980 = vst [vmem:[#allocation2 + $0xe8] sm:$0xff] %v876
        %981 = vst [vmem:[#allocation2 + $0xf0] sm:$0xff] %v947
        %982 = vst [vmem:[#allocation2 + $0xf8] sm:$0xff] %v949
        %p983 = scmp.eq.s32.totalorder %s25, 0
        // Predicated region
        $region45: #{bilstm_forward.3} parent=35 // pred_check
          %p984 = pneg %p983
        $region46: #{bilstm_forward.3} parent=35 // pred_check_branch
          %986 = sbr.rel (%p984) target = $region48
        $region47: #{bilstm_forward.3} parent=35 // pred_region
          %p987 = scmp.eq.s32.totalorder %s26, 0
          // Predicated region
          $region49: #{bilstm_forward.3} parent=47 // pred_check
            %p988 = pneg %p987
          $region50: #{bilstm_forward.3} parent=47 // pred_check_branch
            %990 = sbr.rel (%p988) target = $region52
          $region51: #{bilstm_forward.3} parent=47 // pred_region
            %991 = vst [vmem:[#allocation3] sm:$0xff] 0.0
            %992 = vst [vmem:[#allocation3 + $0x8] sm:$0xff] 0.0
            %993 = vst [vmem:[#allocation4] sm:$0xff] 0.0
            %994 = vst [vmem:[#allocation4 + $0x8] sm:$0xff] 0.0
          $region52: #{bilstm_forward.3} parent=47 // pred_fallthru
            _
          %v995 = vld [vmem:[#allocation3] sm:$0xff]
          %v996 = vld [vmem:[#allocation3 + $0x8] sm:$0xff]
          %v997 = vld [vmem:[#allocation4] sm:$0xff]
          %v998 = vld [vmem:[#allocation4 + $0x8] sm:$0xff]
          %v999 = vld [vmem:[#allocation2] sm:$0xff]
          %v1000 = vld [vmem:[#allocation2 + $0x8] sm:$0xff]
          %v1001 = vld [vmem:[#allocation2 + $0x10] sm:$0xff]
          %v1002 = vld [vmem:[#allocation2 + $0x18] sm:$0xff]
          %v1003 = vld [vmem:[#allocation2 + $0x20] sm:$0xff]
          %v1004 = vld [vmem:[#allocation2 + $0x28] sm:$0xff]
          %v1005 = vld [vmem:[#allocation2 + $0x30] sm:$0xff]
          %v1006 = vld [vmem:[#allocation2 + $0x38] sm:$0xff]
          %v1007 = vpack.c.bf16 %v996, %v995
          %v1008 = vld [vmem:[%s272] sm:$0xff]
          %v1009 = vld [vmem:[%s272 + $0x8] sm:$0xff]
          %v1010 = vld [vmem:[%s272 + $0x10] sm:$0xff]
          %v1011 = vld [vmem:[%s272 + $0x18] sm:$0xff]
          %v1012 = vld [vmem:[%s272 + $0x20] sm:$0xff]
          %v1013 = vld [vmem:[%s272 + $0x28] sm:$0xff]
          %v1014 = vld [vmem:[%s272 + $0x30] sm:$0xff]
          %v1015 = vld [vmem:[%s272 + $0x38] sm:$0xff]
          %v1016 = vld [vmem:[%s272 + $0x40] sm:$0xff]
          %v1017 = vld [vmem:[%s272 + $0x48] sm:$0xff]
          %v1018 = vld [vmem:[%s272 + $0x50] sm:$0xff]
          %v1019 = vld [vmem:[%s272 + $0x58] sm:$0xff]
          %v1020 = vld [vmem:[%s272 + $0x60] sm:$0xff]
          %v1021 = vld [vmem:[%s272 + $0x68] sm:$0xff]
          %v1022 = vld [vmem:[%s272 + $0x70] sm:$0xff]
          %v1023 = vld [vmem:[%s272 + $0x78] sm:$0xff]
          %v1024 = vld [vmem:[%s272 + $0x80] sm:$0xff]
          %v1025 = vld [vmem:[%s272 + $0x88] sm:$0xff]
          %v1026 = vld [vmem:[%s272 + $0x90] sm:$0xff]
          %v1027 = vld [vmem:[%s272 + $0x98] sm:$0xff]
          %v1028 = vld [vmem:[%s272 + $0xa0] sm:$0xff]
          %v1029 = vld [vmem:[%s272 + $0xa8] sm:$0xff]
          %v1030 = vld [vmem:[%s272 + $0xb0] sm:$0xff]
          %v1031 = vld [vmem:[%s272 + $0xb8] sm:$0xff]
          %v1032 = vld [vmem:[%s272 + $0xc0] sm:$0xff]
          %v1033 = vld [vmem:[%s272 + $0xc8] sm:$0xff]
          %v1034 = vld [vmem:[%s272 + $0xd0] sm:$0xff]
          %v1035 = vld [vmem:[%s272 + $0xd8] sm:$0xff]
          %v1036 = vld [vmem:[%s272 + $0xe0] sm:$0xff]
          %v1037 = vld [vmem:[%s272 + $0xe8] sm:$0xff]
          %v1038 = vld [vmem:[%s272 + $0xf0] sm:$0xff]
          %v1039 = vld [vmem:[%s272 + $0xf8] sm:$0xff]
          %v1072 = vunpack.c.l.b16 %v1008
          %v1073 = vunpack.c.h.b16 %v1008
          %v1074 = vunpack.c.l.b16 %v1009
          %v1075 = vunpack.c.h.b16 %v1009
          %v1076 = vunpack.c.l.b16 %v1010
          %v1077 = vunpack.c.h.b16 %v1010
          %v1078 = vunpack.c.l.b16 %v1011
          %v1079 = vunpack.c.h.b16 %v1011
          %v1080 = vunpack.c.l.b16 %v1012
          %v1081 = vunpack.c.h.b16 %v1012
          %v1082 = vunpack.c.l.b16 %v1013
          %v1083 = vunpack.c.h.b16 %v1013
          %v1084 = vunpack.c.l.b16 %v1014
          %v1085 = vunpack.c.h.b16 %v1014
          %v1086 = vunpack.c.l.b16 %v1015
          %v1087 = vunpack.c.h.b16 %v1015
          %v1088 = vunpack.c.l.b16 %v1016
          %v1089 = vunpack.c.h.b16 %v1016
          %v1090 = vunpack.c.l.b16 %v1017
          %v1091 = vunpack.c.h.b16 %v1017
          %v1092 = vunpack.c.l.b16 %v1018
          %v1093 = vunpack.c.h.b16 %v1018
          %v1094 = vunpack.c.l.b16 %v1019
          %v1095 = vunpack.c.h.b16 %v1019
          %v1096 = vunpack.c.l.b16 %v1020
          %v1097 = vunpack.c.h.b16 %v1020
          %v1098 = vunpack.c.l.b16 %v1021
          %v1099 = vunpack.c.h.b16 %v1021
          %v1100 = vunpack.c.l.b16 %v1022
          %v1101 = vunpack.c.h.b16 %v1022
          %v1102 = vunpack.c.l.b16 %v1023
          %v1103 = vunpack.c.h.b16 %v1023
          %v1104 = vunpack.c.l.b16 %v1024
          %v1105 = vunpack.c.h.b16 %v1024
          %v1106 = vunpack.c.l.b16 %v1025
          %v1107 = vunpack.c.h.b16 %v1025
          %v1108 = vunpack.c.l.b16 %v1026
          %v1109 = vunpack.c.h.b16 %v1026
          %v1110 = vunpack.c.l.b16 %v1027
          %v1111 = vunpack.c.h.b16 %v1027
          %v1112 = vunpack.c.l.b16 %v1028
          %v1113 = vunpack.c.h.b16 %v1028
          %v1114 = vunpack.c.l.b16 %v1029
          %v1115 = vunpack.c.h.b16 %v1029
          %v1116 = vunpack.c.l.b16 %v1030
          %v1117 = vunpack.c.h.b16 %v1030
          %v1118 = vunpack.c.l.b16 %v1031
          %v1119 = vunpack.c.h.b16 %v1031
          %v1120 = vunpack.c.l.b16 %v1032
          %v1121 = vunpack.c.h.b16 %v1032
          %v1122 = vunpack.c.l.b16 %v1033
          %v1123 = vunpack.c.h.b16 %v1033
          %v1124 = vunpack.c.l.b16 %v1034
          %v1125 = vunpack.c.h.b16 %v1034
          %v1126 = vunpack.c.l.b16 %v1035
          %v1127 = vunpack.c.h.b16 %v1035
          %v1128 = vunpack.c.l.b16 %v1036
          %v1129 = vunpack.c.h.b16 %v1036
          %v1130 = vunpack.c.l.b16 %v1037
          %v1131 = vunpack.c.h.b16 %v1037
          %v1132 = vunpack.c.l.b16 %v1038
          %v1133 = vunpack.c.h.b16 %v1038
          %v1134 = vunpack.c.l.b16 %v1039
          %v1135 = vunpack.c.h.b16 %v1039
          %v1136 = vpack.c.b16 %v1076, %v1072
          %v1137 = vpack.c.b16 %v1077, %v1073
          %v1138 = vpack.c.b16 %v1078, %v1074
          %v1139 = vpack.c.b16 %v1079, %v1075
          %v1140 = vpack.c.b16 %v1084, %v1080
          %v1141 = vpack.c.b16 %v1085, %v1081
          %v1142 = vpack.c.b16 %v1086, %v1082
          %v1143 = vpack.c.b16 %v1087, %v1083
          %v1144 = vpack.c.b16 %v1092, %v1088
          %v1145 = vpack.c.b16 %v1093, %v1089
          %v1146 = vpack.c.b16 %v1094, %v1090
          %v1147 = vpack.c.b16 %v1095, %v1091
          %v1148 = vpack.c.b16 %v1100, %v1096
          %v1149 = vpack.c.b16 %v1101, %v1097
          %v1150 = vpack.c.b16 %v1102, %v1098
          %v1151 = vpack.c.b16 %v1103, %v1099
          %v1152 = vpack.c.b16 %v1108, %v1104
          %v1153 = vpack.c.b16 %v1109, %v1105
          %v1154 = vpack.c.b16 %v1110, %v1106
          %v1155 = vpack.c.b16 %v1111, %v1107
          %v1156 = vpack.c.b16 %v1116, %v1112
          %v1157 = vpack.c.b16 %v1117, %v1113
          %v1158 = vpack.c.b16 %v1118, %v1114
          %v1159 = vpack.c.b16 %v1119, %v1115
          %v1160 = vpack.c.b16 %v1124, %v1120
          %v1161 = vpack.c.b16 %v1125, %v1121
          %v1162 = vpack.c.b16 %v1126, %v1122
          %v1163 = vpack.c.b16 %v1127, %v1123
          %v1164 = vpack.c.b16 %v1132, %v1128
          %v1165 = vpack.c.b16 %v1133, %v1129
          %v1166 = vpack.c.b16 %v1134, %v1130
          %v1167 = vpack.c.b16 %v1135, %v1131
          %1200 = vmatprep.subr.bf16.mxu0 %v1165
          %1201 = vmatpush1.bf16.msra.mxu0 %v1164
          %1202 = vmatprep.subr.bf16.mxu0 %v1161
          %1203 = vmatpush1.bf16.msra.mxu0 %v1160
          %1204 = vmatprep.subr.bf16.mxu0 %v1157
          %1205 = vmatpush1.bf16.msra.mxu0 %v1156
          %1206 = vmatprep.subr.bf16.mxu0 %v1153
          %1207 = vmatpush1.bf16.msra.mxu0 %v1152
          %1208 = vmatprep.subr.bf16.mxu0 %v1149
          %1209 = vmatpush1.bf16.msra.mxu0 %v1148
          %1210 = vmatprep.subr.bf16.mxu0 %v1145
          %1211 = vmatpush1.bf16.msra.mxu0 %v1144
          %1212 = vmatprep.subr.bf16.mxu0 %v1141
          %1213 = vmatpush1.bf16.msra.mxu0 %v1140
          %1214 = vmatprep.subr.bf16.mxu0 %v1137
          %1215 = vmatpush1.bf16.msra.mxu0 %v1136
          %1216 = vmatprep.subr.bf16.mxu0 0
          %1217 = vmatpush2.bf16.msra.mxu0 0
          %1218 = vmatprep.subr.bf16.mxu0 0
          %1219 = vmatpush2.bf16.msra.mxu0 0
          %1220 = vmatprep.subr.bf16.mxu0 0
          %1221 = vmatpush2.bf16.msra.mxu0 0
          %1222 = vmatprep.subr.bf16.mxu0 0
          %1223 = vmatpush2.bf16.msra.mxu0 0
          %1224 = vmatprep.subr.bf16.mxu0 0
          %1225 = vmatpush2.bf16.msra.mxu0 0
          %1226 = vmatprep.subr.bf16.mxu0 0
          %1227 = vmatpush2.bf16.msra.mxu0 0
          %1228 = vmatprep.subr.bf16.mxu0 0
          %1229 = vmatpush2.bf16.msra.mxu0 0
          %1230 = vmatprep.subr.bf16.mxu0 0
          %1231 = vmatpush2.bf16.msra.mxu0 0
          %1232 = vmatprep.mubr.bf16.mxu0 0
          %1233 = vmatmul.mubr.bf16.gmra.mxu0 %v1007
          %v1234 = vpop.f32.mrf.mxu0
          %v1235 = vadd.f32 0.0, %v1234
          %v1236 = vpop.f32.mrf.mxu0
          %v1237 = vadd.f32 0.0, %v1236
          %v1238 = vpop.f32.mrf.mxu0
          %v1239 = vadd.f32 0.0, %v1238
          %v1240 = vpop.f32.mrf.mxu0
          %v1241 = vadd.f32 0.0, %v1240
          %1242 = vdwg.mxu0
          %1243 = vmatprep.subr.bf16.mxu0 %v1167
          %1244 = vmatpush1.bf16.msra.mxu0 %v1166
          %1245 = vmatprep.subr.bf16.mxu0 %v1163
          %1246 = vmatpush1.bf16.msra.mxu0 %v1162
          %1247 = vmatprep.subr.bf16.mxu0 %v1159
          %1248 = vmatpush1.bf16.msra.mxu0 %v1158
          %1249 = vmatprep.subr.bf16.mxu0 %v1155
          %1250 = vmatpush1.bf16.msra.mxu0 %v1154
          %1251 = vmatprep.subr.bf16.mxu0 %v1151
          %1252 = vmatpush1.bf16.msra.mxu0 %v1150
          %1253 = vmatprep.subr.bf16.mxu0 %v1147
          %1254 = vmatpush1.bf16.msra.mxu0 %v1146
          %1255 = vmatprep.subr.bf16.mxu0 %v1143
          %1256 = vmatpush1.bf16.msra.mxu0 %v1142
          %1257 = vmatprep.subr.bf16.mxu0 %v1139
          %1258 = vmatpush1.bf16.msra.mxu0 %v1138
          %1259 = vmatprep.subr.bf16.mxu0 0
          %1260 = vmatpush2.bf16.msra.mxu0 0
          %1261 = vmatprep.subr.bf16.mxu0 0
          %1262 = vmatpush2.bf16.msra.mxu0 0
          %1263 = vmatprep.subr.bf16.mxu0 0
          %1264 = vmatpush2.bf16.msra.mxu0 0
          %1265 = vmatprep.subr.bf16.mxu0 0
          %1266 = vmatpush2.bf16.msra.mxu0 0
          %1267 = vmatprep.subr.bf16.mxu0 0
          %1268 = vmatpush2.bf16.msra.mxu0 0
          %1269 = vmatprep.subr.bf16.mxu0 0
          %1270 = vmatpush2.bf16.msra.mxu0 0
          %1271 = vmatprep.subr.bf16.mxu0 0
          %1272 = vmatpush2.bf16.msra.mxu0 0
          %1273 = vmatprep.subr.bf16.mxu0 0
          %1274 = vmatpush2.bf16.msra.mxu0 0
          %1275 = vmatprep.mubr.bf16.mxu0 0
          %1276 = vmatmul.mubr.bf16.gmra.mxu0 %v1007
          %v1277 = vpop.f32.mrf.mxu0
          %v1278 = vadd.f32 0.0, %v1277
          %v1279 = vpop.f32.mrf.mxu0
          %v1280 = vadd.f32 0.0, %v1279
          %v1281 = vpop.f32.mrf.mxu0
          %v1282 = vadd.f32 0.0, %v1281
          %v1283 = vpop.f32.mrf.mxu0
          %v1284 = vadd.f32 0.0, %v1283
          %1285 = vdwg.mxu0
          %v1286 = vadd.f32 %v999, %v1235
          %v1287 = vadd.f32 %v1000, %v1237
          %v1288 = vadd.f32 %v1001, %v1278
          %v1289 = vadd.f32 %v1002, %v1280
          %v1290 = vadd.f32 %v1003, %v1239
          %v1291 = vadd.f32 %v1004, %v1241
          %v1292 = vadd.f32 %v1005, %v1282
          %v1293 = vadd.f32 %v1006, %v1284
          %v1294 = vmul.f32 %v1286, 0.5
          %v1295 = vmul.f32 %v1290, 0.5
          %v1296 = vtanh.pop %v1294
          %v1297 = vtanh.pop %v1295
          %v1298 = vadd.f32 %v1296, 1.0
          %v1299 = vadd.f32 %v1297, 1.0
          %v1300 = vmul.f32 %v1298, 0.5
          %v1301 = vmul.f32 %v1299, 0.5
          %v1302 = vmul.f32 %v1287, 0.5
          %v1303 = vmul.f32 %v1291, 0.5
          %v1304 = vtanh.pop %v1302
          %v1305 = vtanh.pop %v1303
          %v1306 = vadd.f32 %v1304, 1.0
          %v1307 = vadd.f32 %v1305, 1.0
          %v1308 = vmul.f32 %v1306, 0.5
          %v1309 = vmul.f32 %v1307, 0.5
          %v1310 = vtanh.pop %v1288
          %v1311 = vtanh.pop %v1292
          %v1312 = vmul.f32 %v1289, 0.5
          %v1313 = vmul.f32 %v1293, 0.5
          %v1314 = vtanh.pop %v1312
          %v1315 = vtanh.pop %v1313
          %v1316 = vadd.f32 %v1314, 1.0
          %v1317 = vadd.f32 %v1315, 1.0
          %v1318 = vmul.f32 %v1316, 0.5
          %v1319 = vmul.f32 %v1317, 0.5
          %v1320 = vmul.f32 %v1308, %v997
          %v1321 = vmul.f32 %v1309, %v998
          %v1322 = vmul.f32 %v1300, %v1310
          %v1323 = vmul.f32 %v1301, %v1311
          %v1324 = vadd.f32 %v1320, %v1322
          %v1325 = vadd.f32 %v1321, %v1323
          %v1326 = vtanh.pop %v1324
          %v1327 = vtanh.pop %v1325
          %v1328 = vmul.f32 %v1318, %v1326
          %v1329 = vmul.f32 %v1319, %v1327
          %1330 = vst [vmem:[%s324] sm:$0xff] %v1328
          %1331 = vst [vmem:[%s324 + $0x8] sm:$0xff] %v1329
          %s1332 = scalar_lea.vmem [#allocation2], 64
          %v1333 = vld [vmem:[%s1332] sm:$0xff]
          %v1334 = vld [vmem:[%s1332 + $0x8] sm:$0xff]
          %v1335 = vld [vmem:[%s1332 + $0x10] sm:$0xff]
          %v1336 = vld [vmem:[%s1332 + $0x18] sm:$0xff]
          %v1337 = vld [vmem:[%s1332 + $0x20] sm:$0xff]
          %v1338 = vld [vmem:[%s1332 + $0x28] sm:$0xff]
          %v1339 = vld [vmem:[%s1332 + $0x30] sm:$0xff]
          %v1340 = vld [vmem:[%s1332 + $0x38] sm:$0xff]
          %v1341 = vpack.c.bf16 %v1329, %v1328
          %v1342 = vld [vmem:[%s272] sm:$0xff]
          %v1343 = vld [vmem:[%s272 + $0x8] sm:$0xff]
          %v1344 = vld [vmem:[%s272 + $0x10] sm:$0xff]
          %v1345 = vld [vmem:[%s272 + $0x18] sm:$0xff]
          %v1346 = vld [vmem:[%s272 + $0x20] sm:$0xff]
          %v1347 = vld [vmem:[%s272 + $0x28] sm:$0xff]
          %v1348 = vld [vmem:[%s272 + $0x30] sm:$0xff]
          %v1349 = vld [vmem:[%s272 + $0x38] sm:$0xff]
          %v1350 = vld [vmem:[%s272 + $0x40] sm:$0xff]
          %v1351 = vld [vmem:[%s272 + $0x48] sm:$0xff]
          %v1352 = vld [vmem:[%s272 + $0x50] sm:$0xff]
          %v1353 = vld [vmem:[%s272 + $0x58] sm:$0xff]
          %v1354 = vld [vmem:[%s272 + $0x60] sm:$0xff]
          %v1355 = vld [vmem:[%s272 + $0x68] sm:$0xff]
          %v1356 = vld [vmem:[%s272 + $0x70] sm:$0xff]
          %v1357 = vld [vmem:[%s272 + $0x78] sm:$0xff]
          %v1358 = vld [vmem:[%s272 + $0x80] sm:$0xff]
          %v1359 = vld [vmem:[%s272 + $0x88] sm:$0xff]
          %v1360 = vld [vmem:[%s272 + $0x90] sm:$0xff]
          %v1361 = vld [vmem:[%s272 + $0x98] sm:$0xff]
          %v1362 = vld [vmem:[%s272 + $0xa0] sm:$0xff]
          %v1363 = vld [vmem:[%s272 + $0xa8] sm:$0xff]
          %v1364 = vld [vmem:[%s272 + $0xb0] sm:$0xff]
          %v1365 = vld [vmem:[%s272 + $0xb8] sm:$0xff]
          %v1366 = vld [vmem:[%s272 + $0xc0] sm:$0xff]
          %v1367 = vld [vmem:[%s272 + $0xc8] sm:$0xff]
          %v1368 = vld [vmem:[%s272 + $0xd0] sm:$0xff]
          %v1369 = vld [vmem:[%s272 + $0xd8] sm:$0xff]
          %v1370 = vld [vmem:[%s272 + $0xe0] sm:$0xff]
          %v1371 = vld [vmem:[%s272 + $0xe8] sm:$0xff]
          %v1372 = vld [vmem:[%s272 + $0xf0] sm:$0xff]
          %v1373 = vld [vmem:[%s272 + $0xf8] sm:$0xff]
          %v1406 = vunpack.c.l.b16 %v1342
          %v1407 = vunpack.c.h.b16 %v1342
          %v1408 = vunpack.c.l.b16 %v1343
          %v1409 = vunpack.c.h.b16 %v1343
          %v1410 = vunpack.c.l.b16 %v1344
          %v1411 = vunpack.c.h.b16 %v1344
          %v1412 = vunpack.c.l.b16 %v1345
          %v1413 = vunpack.c.h.b16 %v1345
          %v1414 = vunpack.c.l.b16 %v1346
          %v1415 = vunpack.c.h.b16 %v1346
          %v1416 = vunpack.c.l.b16 %v1347
          %v1417 = vunpack.c.h.b16 %v1347
          %v1418 = vunpack.c.l.b16 %v1348
          %v1419 = vunpack.c.h.b16 %v1348
          %v1420 = vunpack.c.l.b16 %v1349
          %v1421 = vunpack.c.h.b16 %v1349
          %v1422 = vunpack.c.l.b16 %v1350
          %v1423 = vunpack.c.h.b16 %v1350
          %v1424 = vunpack.c.l.b16 %v1351
          %v1425 = vunpack.c.h.b16 %v1351
          %v1426 = vunpack.c.l.b16 %v1352
          %v1427 = vunpack.c.h.b16 %v1352
          %v1428 = vunpack.c.l.b16 %v1353
          %v1429 = vunpack.c.h.b16 %v1353
          %v1430 = vunpack.c.l.b16 %v1354
          %v1431 = vunpack.c.h.b16 %v1354
          %v1432 = vunpack.c.l.b16 %v1355
          %v1433 = vunpack.c.h.b16 %v1355
          %v1434 = vunpack.c.l.b16 %v1356
          %v1435 = vunpack.c.h.b16 %v1356
          %v1436 = vunpack.c.l.b16 %v1357
          %v1437 = vunpack.c.h.b16 %v1357
          %v1438 = vunpack.c.l.b16 %v1358
          %v1439 = vunpack.c.h.b16 %v1358
          %v1440 = vunpack.c.l.b16 %v1359
          %v1441 = vunpack.c.h.b16 %v1359
          %v1442 = vunpack.c.l.b16 %v1360
          %v1443 = vunpack.c.h.b16 %v1360
          %v1444 = vunpack.c.l.b16 %v1361
          %v1445 = vunpack.c.h.b16 %v1361
          %v1446 = vunpack.c.l.b16 %v1362
          %v1447 = vunpack.c.h.b16 %v1362
          %v1448 = vunpack.c.l.b16 %v1363
          %v1449 = vunpack.c.h.b16 %v1363
          %v1450 = vunpack.c.l.b16 %v1364
          %v1451 = vunpack.c.h.b16 %v1364
          %v1452 = vunpack.c.l.b16 %v1365
          %v1453 = vunpack.c.h.b16 %v1365
          %v1454 = vunpack.c.l.b16 %v1366
          %v1455 = vunpack.c.h.b16 %v1366
          %v1456 = vunpack.c.l.b16 %v1367
          %v1457 = vunpack.c.h.b16 %v1367
          %v1458 = vunpack.c.l.b16 %v1368
          %v1459 = vunpack.c.h.b16 %v1368
          %v1460 = vunpack.c.l.b16 %v1369
          %v1461 = vunpack.c.h.b16 %v1369
          %v1462 = vunpack.c.l.b16 %v1370
          %v1463 = vunpack.c.h.b16 %v1370
          %v1464 = vunpack.c.l.b16 %v1371
          %v1465 = vunpack.c.h.b16 %v1371
          %v1466 = vunpack.c.l.b16 %v1372
          %v1467 = vunpack.c.h.b16 %v1372
          %v1468 = vunpack.c.l.b16 %v1373
          %v1469 = vunpack.c.h.b16 %v1373
          %v1470 = vpack.c.b16 %v1410, %v1406
          %v1471 = vpack.c.b16 %v1411, %v1407
          %v1472 = vpack.c.b16 %v1412, %v1408
          %v1473 = vpack.c.b16 %v1413, %v1409
          %v1474 = vpack.c.b16 %v1418, %v1414
          %v1475 = vpack.c.b16 %v1419, %v1415
          %v1476 = vpack.c.b16 %v1420, %v1416
          %v1477 = vpack.c.b16 %v1421, %v1417
          %v1478 = vpack.c.b16 %v1426, %v1422
          %v1479 = vpack.c.b16 %v1427, %v1423
          %v1480 = vpack.c.b16 %v1428, %v1424
          %v1481 = vpack.c.b16 %v1429, %v1425
          %v1482 = vpack.c.b16 %v1434, %v1430
          %v1483 = vpack.c.b16 %v1435, %v1431
          %v1484 = vpack.c.b16 %v1436, %v1432
          %v1485 = vpack.c.b16 %v1437, %v1433
          %v1486 = vpack.c.b16 %v1442, %v1438
          %v1487 = vpack.c.b16 %v1443, %v1439
          %v1488 = vpack.c.b16 %v1444, %v1440
          %v1489 = vpack.c.b16 %v1445, %v1441
          %v1490 = vpack.c.b16 %v1450, %v1446
          %v1491 = vpack.c.b16 %v1451, %v1447
          %v1492 = vpack.c.b16 %v1452, %v1448
          %v1493 = vpack.c.b16 %v1453, %v1449
          %v1494 = vpack.c.b16 %v1458, %v1454
          %v1495 = vpack.c.b16 %v1459, %v1455
          %v1496 = vpack.c.b16 %v1460, %v1456
          %v1497 = vpack.c.b16 %v1461, %v1457
          %v1498 = vpack.c.b16 %v1466, %v1462
          %v1499 = vpack.c.b16 %v1467, %v1463
          %v1500 = vpack.c.b16 %v1468, %v1464
          %v1501 = vpack.c.b16 %v1469, %v1465
          %1534 = vmatprep.subr.bf16.mxu0 %v1499
          %1535 = vmatpush1.bf16.msra.mxu0 %v1498
          %1536 = vmatprep.subr.bf16.mxu0 %v1495
          %1537 = vmatpush1.bf16.msra.mxu0 %v1494
          %1538 = vmatprep.subr.bf16.mxu0 %v1491
          %1539 = vmatpush1.bf16.msra.mxu0 %v1490
          %1540 = vmatprep.subr.bf16.mxu0 %v1487
          %1541 = vmatpush1.bf16.msra.mxu0 %v1486
          %1542 = vmatprep.subr.bf16.mxu0 %v1483
          %1543 = vmatpush1.bf16.msra.mxu0 %v1482
          %1544 = vmatprep.subr.bf16.mxu0 %v1479
          %1545 = vmatpush1.bf16.msra.mxu0 %v1478
          %1546 = vmatprep.subr.bf16.mxu0 %v1475
          %1547 = vmatpush1.bf16.msra.mxu0 %v1474
          %1548 = vmatprep.subr.bf16.mxu0 %v1471
          %1549 = vmatpush1.bf16.msra.mxu0 %v1470
          %1550 = vmatprep.subr.bf16.mxu0 0
          %1551 = vmatpush2.bf16.msra.mxu0 0
          %1552 = vmatprep.subr.bf16.mxu0 0
          %1553 = vmatpush2.bf16.msra.mxu0 0
          %1554 = vmatprep.subr.bf16.mxu0 0
          %1555 = vmatpush2.bf16.msra.mxu0 0
          %1556 = vmatprep.subr.bf16.mxu0 0
          %1557 = vmatpush2.bf16.msra.mxu0 0
          %1558 = vmatprep.subr.bf16.mxu0 0
          %1559 = vmatpush2.bf16.msra.mxu0 0
          %1560 = vmatprep.subr.bf16.mxu0 0
          %1561 = vmatpush2.bf16.msra.mxu0 0
          %1562 = vmatprep.subr.bf16.mxu0 0
          %1563 = vmatpush2.bf16.msra.mxu0 0
          %1564 = vmatprep.subr.bf16.mxu0 0
          %1565 = vmatpush2.bf16.msra.mxu0 0
          %1566 = vmatprep.mubr.bf16.mxu0 0
          %1567 = vmatmul.mubr.bf16.gmra.mxu0 %v1341
          %v1568 = vpop.f32.mrf.mxu0
          %v1569 = vadd.f32 0.0, %v1568
          %v1570 = vpop.f32.mrf.mxu0
          %v1571 = vadd.f32 0.0, %v1570
          %v1572 = vpop.f32.mrf.mxu0
          %v1573 = vadd.f32 0.0, %v1572
          %v1574 = vpop.f32.mrf.mxu0
          %v1575 = vadd.f32 0.0, %v1574
          %1576 = vdwg.mxu0
          %1577 = vmatprep.subr.bf16.mxu0 %v1501
          %1578 = vmatpush1.bf16.msra.mxu0 %v1500
          %1579 = vmatprep.subr.bf16.mxu0 %v1497
          %1580 = vmatpush1.bf16.msra.mxu0 %v1496
          %1581 = vmatprep.subr.bf16.mxu0 %v1493
          %1582 = vmatpush1.bf16.msra.mxu0 %v1492
          %1583 = vmatprep.subr.bf16.mxu0 %v1489
          %1584 = vmatpush1.bf16.msra.mxu0 %v1488
          %1585 = vmatprep.subr.bf16.mxu0 %v1485
          %1586 = vmatpush1.bf16.msra.mxu0 %v1484
          %1587 = vmatprep.subr.bf16.mxu0 %v1481
          %1588 = vmatpush1.bf16.msra.mxu0 %v1480
          %1589 = vmatprep.subr.bf16.mxu0 %v1477
          %1590 = vmatpush1.bf16.msra.mxu0 %v1476
          %1591 = vmatprep.subr.bf16.mxu0 %v1473
          %1592 = vmatpush1.bf16.msra.mxu0 %v1472
          %1593 = vmatprep.subr.bf16.mxu0 0
          %1594 = vmatpush2.bf16.msra.mxu0 0
          %1595 = vmatprep.subr.bf16.mxu0 0
          %1596 = vmatpush2.bf16.msra.mxu0 0
          %1597 = vmatprep.subr.bf16.mxu0 0
          %1598 = vmatpush2.bf16.msra.mxu0 0
          %1599 = vmatprep.subr.bf16.mxu0 0
          %1600 = vmatpush2.bf16.msra.mxu0 0
          %1601 = vmatprep.subr.bf16.mxu0 0
          %1602 = vmatpush2.bf16.msra.mxu0 0
          %1603 = vmatprep.subr.bf16.mxu0 0
          %1604 = vmatpush2.bf16.msra.mxu0 0
          %1605 = vmatprep.subr.bf16.mxu0 0
          %1606 = vmatpush2.bf16.msra.mxu0 0
          %1607 = vmatprep.subr.bf16.mxu0 0
          %1608 = vmatpush2.bf16.msra.mxu0 0
          %1609 = vmatprep.mubr.bf16.mxu0 0
          %1610 = vmatmul.mubr.bf16.gmra.mxu0 %v1341
          %v1611 = vpop.f32.mrf.mxu0
          %v1612 = vadd.f32 0.0, %v1611
          %v1613 = vpop.f32.mrf.mxu0
          %v1614 = vadd.f32 0.0, %v1613
          %v1615 = vpop.f32.mrf.mxu0
          %v1616 = vadd.f32 0.0, %v1615
          %v1617 = vpop.f32.mrf.mxu0
          %v1618 = vadd.f32 0.0, %v1617
          %1619 = vdwg.mxu0
          %v1620 = vadd.f32 %v1333, %v1569
          %v1621 = vadd.f32 %v1334, %v1571
          %v1622 = vadd.f32 %v1335, %v1612
          %v1623 = vadd.f32 %v1336, %v1614
          %v1624 = vadd.f32 %v1337, %v1573
          %v1625 = vadd.f32 %v1338, %v1575
          %v1626 = vadd.f32 %v1339, %v1616
          %v1627 = vadd.f32 %v1340, %v1618
          %v1628 = vmul.f32 %v1620, 0.5
          %v1629 = vmul.f32 %v1624, 0.5
          %v1630 = vtanh.pop %v1628
          %v1631 = vtanh.pop %v1629
          %v1632 = vadd.f32 %v1630, 1.0
          %v1633 = vadd.f32 %v1631, 1.0
          %v1634 = vmul.f32 %v1632, 0.5
          %v1635 = vmul.f32 %v1633, 0.5
          %v1636 = vmul.f32 %v1621, 0.5
          %v1637 = vmul.f32 %v1625, 0.5
          %v1638 = vtanh.pop %v1636
          %v1639 = vtanh.pop %v1637
          %v1640 = vadd.f32 %v1638, 1.0
          %v1641 = vadd.f32 %v1639, 1.0
          %v1642 = vmul.f32 %v1640, 0.5
          %v1643 = vmul.f32 %v1641, 0.5
          %v1644 = vtanh.pop %v1622
          %v1645 = vtanh.pop %v1626
          %v1646 = vmul.f32 %v1623, 0.5
          %v1647 = vmul.f32 %v1627, 0.5
          %v1648 = vtanh.pop %v1646
          %v1649 = vtanh.pop %v1647
          %v1650 = vadd.f32 %v1648, 1.0
          %v1651 = vadd.f32 %v1649, 1.0
          %v1652 = vmul.f32 %v1650, 0.5
          %v1653 = vmul.f32 %v1651, 0.5
          %v1654 = vmul.f32 %v1642, %v1324
          %v1655 = vmul.f32 %v1643, %v1325
          %v1656 = vmul.f32 %v1634, %v1644
          %v1657 = vmul.f32 %v1635, %v1645
          %v1658 = vadd.f32 %v1654, %v1656
          %v1659 = vadd.f32 %v1655, %v1657
          %v1660 = vtanh.pop %v1658
          %v1661 = vtanh.pop %v1659
          %v1662 = vmul.f32 %v1652, %v1660
          %v1663 = vmul.f32 %v1653, %v1661
          %s1664 = scalar_lea.vmem %s324, 16 [#allocation9]
          %1665 = vst [vmem:[%s1664] sm:$0xff] %v1662
          %1666 = vst [vmem:[%s1664 + $0x8] sm:$0xff] %v1663
          %s1667 = scalar_lea.vmem [#allocation2], 128
          %v1668 = vld [vmem:[%s1667] sm:$0xff]
          %v1669 = vld [vmem:[%s1667 + $0x8] sm:$0xff]
          %v1670 = vld [vmem:[%s1667 + $0x10] sm:$0xff]
          %v1671 = vld [vmem:[%s1667 + $0x18] sm:$0xff]
          %v1672 = vld [vmem:[%s1667 + $0x20] sm:$0xff]
          %v1673 = vld [vmem:[%s1667 + $0x28] sm:$0xff]
          %v1674 = vld [vmem:[%s1667 + $0x30] sm:$0xff]
          %v1675 = vld [vmem:[%s1667 + $0x38] sm:$0xff]
          %v1676 = vpack.c.bf16 %v1663, %v1662
          %v1677 = vld [vmem:[%s272] sm:$0xff]
          %v1678 = vld [vmem:[%s272 + $0x8] sm:$0xff]
          %v1679 = vld [vmem:[%s272 + $0x10] sm:$0xff]
          %v1680 = vld [vmem:[%s272 + $0x18] sm:$0xff]
          %v1681 = vld [vmem:[%s272 + $0x20] sm:$0xff]
          %v1682 = vld [vmem:[%s272 + $0x28] sm:$0xff]
          %v1683 = vld [vmem:[%s272 + $0x30] sm:$0xff]
          %v1684 = vld [vmem:[%s272 + $0x38] sm:$0xff]
          %v1685 = vld [vmem:[%s272 + $0x40] sm:$0xff]
          %v1686 = vld [vmem:[%s272 + $0x48] sm:$0xff]
          %v1687 = vld [vmem:[%s272 + $0x50] sm:$0xff]
          %v1688 = vld [vmem:[%s272 + $0x58] sm:$0xff]
          %v1689 = vld [vmem:[%s272 + $0x60] sm:$0xff]
          %v1690 = vld [vmem:[%s272 + $0x68] sm:$0xff]
          %v1691 = vld [vmem:[%s272 + $0x70] sm:$0xff]
          %v1692 = vld [vmem:[%s272 + $0x78] sm:$0xff]
          %v1693 = vld [vmem:[%s272 + $0x80] sm:$0xff]
          %v1694 = vld [vmem:[%s272 + $0x88] sm:$0xff]
          %v1695 = vld [vmem:[%s272 + $0x90] sm:$0xff]
          %v1696 = vld [vmem:[%s272 + $0x98] sm:$0xff]
          %v1697 = vld [vmem:[%s272 + $0xa0] sm:$0xff]
          %v1698 = vld [vmem:[%s272 + $0xa8] sm:$0xff]
          %v1699 = vld [vmem:[%s272 + $0xb0] sm:$0xff]
          %v1700 = vld [vmem:[%s272 + $0xb8] sm:$0xff]
          %v1701 = vld [vmem:[%s272 + $0xc0] sm:$0xff]
          %v1702 = vld [vmem:[%s272 + $0xc8] sm:$0xff]
          %v1703 = vld [vmem:[%s272 + $0xd0] sm:$0xff]
          %v1704 = vld [vmem:[%s272 + $0xd8] sm:$0xff]
          %v1705 = vld [vmem:[%s272 + $0xe0] sm:$0xff]
          %v1706 = vld [vmem:[%s272 + $0xe8] sm:$0xff]
          %v1707 = vld [vmem:[%s272 + $0xf0] sm:$0xff]
          %v1708 = vld [vmem:[%s272 + $0xf8] sm:$0xff]
          %v1741 = vunpack.c.l.b16 %v1677
          %v1742 = vunpack.c.h.b16 %v1677
          %v1743 = vunpack.c.l.b16 %v1678
          %v1744 = vunpack.c.h.b16 %v1678
          %v1745 = vunpack.c.l.b16 %v1679
          %v1746 = vunpack.c.h.b16 %v1679
          %v1747 = vunpack.c.l.b16 %v1680
          %v1748 = vunpack.c.h.b16 %v1680
          %v1749 = vunpack.c.l.b16 %v1681
          %v1750 = vunpack.c.h.b16 %v1681
          %v1751 = vunpack.c.l.b16 %v1682
          %v1752 = vunpack.c.h.b16 %v1682
          %v1753 = vunpack.c.l.b16 %v1683
          %v1754 = vunpack.c.h.b16 %v1683
          %v1755 = vunpack.c.l.b16 %v1684
          %v1756 = vunpack.c.h.b16 %v1684
          %v1757 = vunpack.c.l.b16 %v1685
          %v1758 = vunpack.c.h.b16 %v1685
          %v1759 = vunpack.c.l.b16 %v1686
          %v1760 = vunpack.c.h.b16 %v1686
          %v1761 = vunpack.c.l.b16 %v1687
          %v1762 = vunpack.c.h.b16 %v1687
          %v1763 = vunpack.c.l.b16 %v1688
          %v1764 = vunpack.c.h.b16 %v1688
          %v1765 = vunpack.c.l.b16 %v1689
          %v1766 = vunpack.c.h.b16 %v1689
          %v1767 = vunpack.c.l.b16 %v1690
          %v1768 = vunpack.c.h.b16 %v1690
          %v1769 = vunpack.c.l.b16 %v1691
          %v1770 = vunpack.c.h.b16 %v1691
          %v1771 = vunpack.c.l.b16 %v1692
          %v1772 = vunpack.c.h.b16 %v1692
          %v1773 = vunpack.c.l.b16 %v1693
          %v1774 = vunpack.c.h.b16 %v1693
          %v1775 = vunpack.c.l.b16 %v1694
          %v1776 = vunpack.c.h.b16 %v1694
          %v1777 = vunpack.c.l.b16 %v1695
          %v1778 = vunpack.c.h.b16 %v1695
          %v1779 = vunpack.c.l.b16 %v1696
          %v1780 = vunpack.c.h.b16 %v1696
          %v1781 = vunpack.c.l.b16 %v1697
          %v1782 = vunpack.c.h.b16 %v1697
          %v1783 = vunpack.c.l.b16 %v1698
          %v1784 = vunpack.c.h.b16 %v1698
          %v1785 = vunpack.c.l.b16 %v1699
          %v1786 = vunpack.c.h.b16 %v1699
          %v1787 = vunpack.c.l.b16 %v1700
          %v1788 = vunpack.c.h.b16 %v1700
          %v1789 = vunpack.c.l.b16 %v1701
          %v1790 = vunpack.c.h.b16 %v1701
          %v1791 = vunpack.c.l.b16 %v1702
          %v1792 = vunpack.c.h.b16 %v1702
          %v1793 = vunpack.c.l.b16 %v1703
          %v1794 = vunpack.c.h.b16 %v1703
          %v1795 = vunpack.c.l.b16 %v1704
          %v1796 = vunpack.c.h.b16 %v1704
          %v1797 = vunpack.c.l.b16 %v1705
          %v1798 = vunpack.c.h.b16 %v1705
          %v1799 = vunpack.c.l.b16 %v1706
          %v1800 = vunpack.c.h.b16 %v1706
          %v1801 = vunpack.c.l.b16 %v1707
          %v1802 = vunpack.c.h.b16 %v1707
          %v1803 = vunpack.c.l.b16 %v1708
          %v1804 = vunpack.c.h.b16 %v1708
          %v1805 = vpack.c.b16 %v1745, %v1741
          %v1806 = vpack.c.b16 %v1746, %v1742
          %v1807 = vpack.c.b16 %v1747, %v1743
          %v1808 = vpack.c.b16 %v1748, %v1744
          %v1809 = vpack.c.b16 %v1753, %v1749
          %v1810 = vpack.c.b16 %v1754, %v1750
          %v1811 = vpack.c.b16 %v1755, %v1751
          %v1812 = vpack.c.b16 %v1756, %v1752
          %v1813 = vpack.c.b16 %v1761, %v1757
          %v1814 = vpack.c.b16 %v1762, %v1758
          %v1815 = vpack.c.b16 %v1763, %v1759
          %v1816 = vpack.c.b16 %v1764, %v1760
          %v1817 = vpack.c.b16 %v1769, %v1765
          %v1818 = vpack.c.b16 %v1770, %v1766
          %v1819 = vpack.c.b16 %v1771, %v1767
          %v1820 = vpack.c.b16 %v1772, %v1768
          %v1821 = vpack.c.b16 %v1777, %v1773
          %v1822 = vpack.c.b16 %v1778, %v1774
          %v1823 = vpack.c.b16 %v1779, %v1775
          %v1824 = vpack.c.b16 %v1780, %v1776
          %v1825 = vpack.c.b16 %v1785, %v1781
          %v1826 = vpack.c.b16 %v1786, %v1782
          %v1827 = vpack.c.b16 %v1787, %v1783
          %v1828 = vpack.c.b16 %v1788, %v1784
          %v1829 = vpack.c.b16 %v1793, %v1789
          %v1830 = vpack.c.b16 %v1794, %v1790
          %v1831 = vpack.c.b16 %v1795, %v1791
          %v1832 = vpack.c.b16 %v1796, %v1792
          %v1833 = vpack.c.b16 %v1801, %v1797
          %v1834 = vpack.c.b16 %v1802, %v1798
          %v1835 = vpack.c.b16 %v1803, %v1799
          %v1836 = vpack.c.b16 %v1804, %v1800
          %1869 = vmatprep.subr.bf16.mxu0 %v1834
          %1870 = vmatpush1.bf16.msra.mxu0 %v1833
          %1871 = vmatprep.subr.bf16.mxu0 %v1830
          %1872 = vmatpush1.bf16.msra.mxu0 %v1829
          %1873 = vmatprep.subr.bf16.mxu0 %v1826
          %1874 = vmatpush1.bf16.msra.mxu0 %v1825
          %1875 = vmatprep.subr.bf16.mxu0 %v1822
          %1876 = vmatpush1.bf16.msra.mxu0 %v1821
          %1877 = vmatprep.subr.bf16.mxu0 %v1818
          %1878 = vmatpush1.bf16.msra.mxu0 %v1817
          %1879 = vmatprep.subr.bf16.mxu0 %v1814
          %1880 = vmatpush1.bf16.msra.mxu0 %v1813
          %1881 = vmatprep.subr.bf16.mxu0 %v1810
          %1882 = vmatpush1.bf16.msra.mxu0 %v1809
          %1883 = vmatprep.subr.bf16.mxu0 %v1806
          %1884 = vmatpush1.bf16.msra.mxu0 %v1805
          %1885 = vmatprep.subr.bf16.mxu0 0
          %1886 = vmatpush2.bf16.msra.mxu0 0
          %1887 = vmatprep.subr.bf16.mxu0 0
          %1888 = vmatpush2.bf16.msra.mxu0 0
          %1889 = vmatprep.subr.bf16.mxu0 0
          %1890 = vmatpush2.bf16.msra.mxu0 0
          %1891 = vmatprep.subr.bf16.mxu0 0
          %1892 = vmatpush2.bf16.msra.mxu0 0
          %1893 = vmatprep.subr.bf16.mxu0 0
          %1894 = vmatpush2.bf16.msra.mxu0 0
          %1895 = vmatprep.subr.bf16.mxu0 0
          %1896 = vmatpush2.bf16.msra.mxu0 0
          %1897 = vmatprep.subr.bf16.mxu0 0
          %1898 = vmatpush2.bf16.msra.mxu0 0
          %1899 = vmatprep.subr.bf16.mxu0 0
          %1900 = vmatpush2.bf16.msra.mxu0 0
          %1901 = vmatprep.mubr.bf16.mxu0 0
          %1902 = vmatmul.mubr.bf16.gmra.mxu0 %v1676
          %v1903 = vpop.f32.mrf.mxu0
          %v1904 = vadd.f32 0.0, %v1903
          %v1905 = vpop.f32.mrf.mxu0
          %v1906 = vadd.f32 0.0, %v1905
          %v1907 = vpop.f32.mrf.mxu0
          %v1908 = vadd.f32 0.0, %v1907
          %v1909 = vpop.f32.mrf.mxu0
          %v1910 = vadd.f32 0.0, %v1909
          %1911 = vdwg.mxu0
          %1912 = vmatprep.subr.bf16.mxu0 %v1836
          %1913 = vmatpush1.bf16.msra.mxu0 %v1835
          %1914 = vmatprep.subr.bf16.mxu0 %v1832
          %1915 = vmatpush1.bf16.msra.mxu0 %v1831
          %1916 = vmatprep.subr.bf16.mxu0 %v1828
          %1917 = vmatpush1.bf16.msra.mxu0 %v1827
          %1918 = vmatprep.subr.bf16.mxu0 %v1824
          %1919 = vmatpush1.bf16.msra.mxu0 %v1823
          %1920 = vmatprep.subr.bf16.mxu0 %v1820
          %1921 = vmatpush1.bf16.msra.mxu0 %v1819
          %1922 = vmatprep.subr.bf16.mxu0 %v1816
          %1923 = vmatpush1.bf16.msra.mxu0 %v1815
          %1924 = vmatprep.subr.bf16.mxu0 %v1812
          %1925 = vmatpush1.bf16.msra.mxu0 %v1811
          %1926 = vmatprep.subr.bf16.mxu0 %v1808
          %1927 = vmatpush1.bf16.msra.mxu0 %v1807
          %1928 = vmatprep.subr.bf16.mxu0 0
          %1929 = vmatpush2.bf16.msra.mxu0 0
          %1930 = vmatprep.subr.bf16.mxu0 0
          %1931 = vmatpush2.bf16.msra.mxu0 0
          %1932 = vmatprep.subr.bf16.mxu0 0
          %1933 = vmatpush2.bf16.msra.mxu0 0
          %1934 = vmatprep.subr.bf16.mxu0 0
          %1935 = vmatpush2.bf16.msra.mxu0 0
          %1936 = vmatprep.subr.bf16.mxu0 0
          %1937 = vmatpush2.bf16.msra.mxu0 0
          %1938 = vmatprep.subr.bf16.mxu0 0
          %1939 = vmatpush2.bf16.msra.mxu0 0
          %1940 = vmatprep.subr.bf16.mxu0 0
          %1941 = vmatpush2.bf16.msra.mxu0 0
          %1942 = vmatprep.subr.bf16.mxu0 0
          %1943 = vmatpush2.bf16.msra.mxu0 0
          %1944 = vmatprep.mubr.bf16.mxu0 0
          %1945 = vmatmul.mubr.bf16.gmra.mxu0 %v1676
          %v1946 = vpop.f32.mrf.mxu0
          %v1947 = vadd.f32 0.0, %v1946
          %v1948 = vpop.f32.mrf.mxu0
          %v1949 = vadd.f32 0.0, %v1948
          %v1950 = vpop.f32.mrf.mxu0
          %v1951 = vadd.f32 0.0, %v1950
          %v1952 = vpop.f32.mrf.mxu0
          %v1953 = vadd.f32 0.0, %v1952
          %1954 = vdwg.mxu0
          %v1955 = vadd.f32 %v1668, %v1904
          %v1956 = vadd.f32 %v1669, %v1906
          %v1957 = vadd.f32 %v1670, %v1947
          %v1958 = vadd.f32 %v1671, %v1949
          %v1959 = vadd.f32 %v1672, %v1908
          %v1960 = vadd.f32 %v1673, %v1910
          %v1961 = vadd.f32 %v1674, %v1951
          %v1962 = vadd.f32 %v1675, %v1953
          %v1963 = vmul.f32 %v1955, 0.5
          %v1964 = vmul.f32 %v1959, 0.5
          %v1965 = vtanh.pop %v1963
          %v1966 = vtanh.pop %v1964
          %v1967 = vadd.f32 %v1965, 1.0
          %v1968 = vadd.f32 %v1966, 1.0
          %v1969 = vmul.f32 %v1967, 0.5
          %v1970 = vmul.f32 %v1968, 0.5
          %v1971 = vmul.f32 %v1956, 0.5
          %v1972 = vmul.f32 %v1960, 0.5
          %v1973 = vtanh.pop %v1971
          %v1974 = vtanh.pop %v1972
          %v1975 = vadd.f32 %v1973, 1.0
          %v1976 = vadd.f32 %v1974, 1.0
          %v1977 = vmul.f32 %v1975, 0.5
          %v1978 = vmul.f32 %v1976, 0.5
          %v1979 = vtanh.pop %v1957
          %v1980 = vtanh.pop %v1961
          %v1981 = vmul.f32 %v1958, 0.5
          %v1982 = vmul.f32 %v1962, 0.5
          %v1983 = vtanh.pop %v1981
          %v1984 = vtanh.pop %v1982
          %v1985 = vadd.f32 %v1983, 1.0
          %v1986 = vadd.f32 %v1984, 1.0
          %v1987 = vmul.f32 %v1985, 0.5
          %v1988 = vmul.f32 %v1986, 0.5
          %v1989 = vmul.f32 %v1977, %v1658
          %v1990 = vmul.f32 %v1978, %v1659
          %v1991 = vmul.f32 %v1969, %v1979
          %v1992 = vmul.f32 %v1970, %v1980
          %v1993 = vadd.f32 %v1989, %v1991
          %v1994 = vadd.f32 %v1990, %v1992
          %v1995 = vtanh.pop %v1993
          %v1996 = vtanh.pop %v1994
          %v1997 = vmul.f32 %v1987, %v1995
          %v1998 = vmul.f32 %v1988, %v1996
          %s1999 = scalar_lea.vmem %s324, 32 [#allocation9]
          %2000 = vst [vmem:[%s1999] sm:$0xff] %v1997
          %2001 = vst [vmem:[%s1999 + $0x8] sm:$0xff] %v1998
          %s2002 = scalar_lea.vmem [#allocation2], 192
          %v2003 = vld [vmem:[%s2002] sm:$0xff]
          %v2004 = vld [vmem:[%s2002 + $0x8] sm:$0xff]
          %v2005 = vld [vmem:[%s2002 + $0x10] sm:$0xff]
          %v2006 = vld [vmem:[%s2002 + $0x18] sm:$0xff]
          %v2007 = vld [vmem:[%s2002 + $0x20] sm:$0xff]
          %v2008 = vld [vmem:[%s2002 + $0x28] sm:$0xff]
          %v2009 = vld [vmem:[%s2002 + $0x30] sm:$0xff]
          %v2010 = vld [vmem:[%s2002 + $0x38] sm:$0xff]
          %v2011 = vpack.c.bf16 %v1998, %v1997
          %v2012 = vld [vmem:[%s272] sm:$0xff]
          %v2013 = vld [vmem:[%s272 + $0x8] sm:$0xff]
          %v2014 = vld [vmem:[%s272 + $0x10] sm:$0xff]
          %v2015 = vld [vmem:[%s272 + $0x18] sm:$0xff]
          %v2016 = vld [vmem:[%s272 + $0x20] sm:$0xff]
          %v2017 = vld [vmem:[%s272 + $0x28] sm:$0xff]
          %v2018 = vld [vmem:[%s272 + $0x30] sm:$0xff]
          %v2019 = vld [vmem:[%s272 + $0x38] sm:$0xff]
          %v2020 = vld [vmem:[%s272 + $0x40] sm:$0xff]
          %v2021 = vld [vmem:[%s272 + $0x48] sm:$0xff]
          %v2022 = vld [vmem:[%s272 + $0x50] sm:$0xff]
          %v2023 = vld [vmem:[%s272 + $0x58] sm:$0xff]
          %v2024 = vld [vmem:[%s272 + $0x60] sm:$0xff]
          %v2025 = vld [vmem:[%s272 + $0x68] sm:$0xff]
          %v2026 = vld [vmem:[%s272 + $0x70] sm:$0xff]
          %v2027 = vld [vmem:[%s272 + $0x78] sm:$0xff]
          %v2028 = vld [vmem:[%s272 + $0x80] sm:$0xff]
          %v2029 = vld [vmem:[%s272 + $0x88] sm:$0xff]
          %v2030 = vld [vmem:[%s272 + $0x90] sm:$0xff]
          %v2031 = vld [vmem:[%s272 + $0x98] sm:$0xff]
          %v2032 = vld [vmem:[%s272 + $0xa0] sm:$0xff]
          %v2033 = vld [vmem:[%s272 + $0xa8] sm:$0xff]
          %v2034 = vld [vmem:[%s272 + $0xb0] sm:$0xff]
          %v2035 = vld [vmem:[%s272 + $0xb8] sm:$0xff]
          %v2036 = vld [vmem:[%s272 + $0xc0] sm:$0xff]
          %v2037 = vld [vmem:[%s272 + $0xc8] sm:$0xff]
          %v2038 = vld [vmem:[%s272 + $0xd0] sm:$0xff]
          %v2039 = vld [vmem:[%s272 + $0xd8] sm:$0xff]
          %v2040 = vld [vmem:[%s272 + $0xe0] sm:$0xff]
          %v2041 = vld [vmem:[%s272 + $0xe8] sm:$0xff]
          %v2042 = vld [vmem:[%s272 + $0xf0] sm:$0xff]
          %v2043 = vld [vmem:[%s272 + $0xf8] sm:$0xff]
          %v2076 = vunpack.c.l.b16 %v2012
          %v2077 = vunpack.c.h.b16 %v2012
          %v2078 = vunpack.c.l.b16 %v2013
          %v2079 = vunpack.c.h.b16 %v2013
          %v2080 = vunpack.c.l.b16 %v2014
          %v2081 = vunpack.c.h.b16 %v2014
          %v2082 = vunpack.c.l.b16 %v2015
          %v2083 = vunpack.c.h.b16 %v2015
          %v2084 = vunpack.c.l.b16 %v2016
          %v2085 = vunpack.c.h.b16 %v2016
          %v2086 = vunpack.c.l.b16 %v2017
          %v2087 = vunpack.c.h.b16 %v2017
          %v2088 = vunpack.c.l.b16 %v2018
          %v2089 = vunpack.c.h.b16 %v2018
          %v2090 = vunpack.c.l.b16 %v2019
          %v2091 = vunpack.c.h.b16 %v2019
          %v2092 = vunpack.c.l.b16 %v2020
          %v2093 = vunpack.c.h.b16 %v2020
          %v2094 = vunpack.c.l.b16 %v2021
          %v2095 = vunpack.c.h.b16 %v2021
          %v2096 = vunpack.c.l.b16 %v2022
          %v2097 = vunpack.c.h.b16 %v2022
          %v2098 = vunpack.c.l.b16 %v2023
          %v2099 = vunpack.c.h.b16 %v2023
          %v2100 = vunpack.c.l.b16 %v2024
          %v2101 = vunpack.c.h.b16 %v2024
          %v2102 = vunpack.c.l.b16 %v2025
          %v2103 = vunpack.c.h.b16 %v2025
          %v2104 = vunpack.c.l.b16 %v2026
          %v2105 = vunpack.c.h.b16 %v2026
          %v2106 = vunpack.c.l.b16 %v2027
          %v2107 = vunpack.c.h.b16 %v2027
          %v2108 = vunpack.c.l.b16 %v2028
          %v2109 = vunpack.c.h.b16 %v2028
          %v2110 = vunpack.c.l.b16 %v2029
          %v2111 = vunpack.c.h.b16 %v2029
          %v2112 = vunpack.c.l.b16 %v2030
          %v2113 = vunpack.c.h.b16 %v2030
          %v2114 = vunpack.c.l.b16 %v2031
          %v2115 = vunpack.c.h.b16 %v2031
          %v2116 = vunpack.c.l.b16 %v2032
          %v2117 = vunpack.c.h.b16 %v2032
          %v2118 = vunpack.c.l.b16 %v2033
          %v2119 = vunpack.c.h.b16 %v2033
          %v2120 = vunpack.c.l.b16 %v2034
          %v2121 = vunpack.c.h.b16 %v2034
          %v2122 = vunpack.c.l.b16 %v2035
          %v2123 = vunpack.c.h.b16 %v2035
          %v2124 = vunpack.c.l.b16 %v2036
          %v2125 = vunpack.c.h.b16 %v2036
          %v2126 = vunpack.c.l.b16 %v2037
          %v2127 = vunpack.c.h.b16 %v2037
          %v2128 = vunpack.c.l.b16 %v2038
          %v2129 = vunpack.c.h.b16 %v2038
          %v2130 = vunpack.c.l.b16 %v2039
          %v2131 = vunpack.c.h.b16 %v2039
          %v2132 = vunpack.c.l.b16 %v2040
          %v2133 = vunpack.c.h.b16 %v2040
          %v2134 = vunpack.c.l.b16 %v2041
          %v2135 = vunpack.c.h.b16 %v2041
          %v2136 = vunpack.c.l.b16 %v2042
          %v2137 = vunpack.c.h.b16 %v2042
          %v2138 = vunpack.c.l.b16 %v2043
          %v2139 = vunpack.c.h.b16 %v2043
          %v2140 = vpack.c.b16 %v2080, %v2076
          %v2141 = vpack.c.b16 %v2081, %v2077
          %v2142 = vpack.c.b16 %v2082, %v2078
          %v2143 = vpack.c.b16 %v2083, %v2079
          %v2144 = vpack.c.b16 %v2088, %v2084
          %v2145 = vpack.c.b16 %v2089, %v2085
          %v2146 = vpack.c.b16 %v2090, %v2086
          %v2147 = vpack.c.b16 %v2091, %v2087
          %v2148 = vpack.c.b16 %v2096, %v2092
          %v2149 = vpack.c.b16 %v2097, %v2093
          %v2150 = vpack.c.b16 %v2098, %v2094
          %v2151 = vpack.c.b16 %v2099, %v2095
          %v2152 = vpack.c.b16 %v2104, %v2100
          %v2153 = vpack.c.b16 %v2105, %v2101
          %v2154 = vpack.c.b16 %v2106, %v2102
          %v2155 = vpack.c.b16 %v2107, %v2103
          %v2156 = vpack.c.b16 %v2112, %v2108
          %v2157 = vpack.c.b16 %v2113, %v2109
          %v2158 = vpack.c.b16 %v2114, %v2110
          %v2159 = vpack.c.b16 %v2115, %v2111
          %v2160 = vpack.c.b16 %v2120, %v2116
          %v2161 = vpack.c.b16 %v2121, %v2117
          %v2162 = vpack.c.b16 %v2122, %v2118
          %v2163 = vpack.c.b16 %v2123, %v2119
          %v2164 = vpack.c.b16 %v2128, %v2124
          %v2165 = vpack.c.b16 %v2129, %v2125
          %v2166 = vpack.c.b16 %v2130, %v2126
          %v2167 = vpack.c.b16 %v2131, %v2127
          %v2168 = vpack.c.b16 %v2136, %v2132
          %v2169 = vpack.c.b16 %v2137, %v2133
          %v2170 = vpack.c.b16 %v2138, %v2134
          %v2171 = vpack.c.b16 %v2139, %v2135
          %2204 = vmatprep.subr.bf16.mxu0 %v2169
          %2205 = vmatpush1.bf16.msra.mxu0 %v2168
          %2206 = vmatprep.subr.bf16.mxu0 %v2165
          %2207 = vmatpush1.bf16.msra.mxu0 %v2164
          %2208 = vmatprep.subr.bf16.mxu0 %v2161
          %2209 = vmatpush1.bf16.msra.mxu0 %v2160
          %2210 = vmatprep.subr.bf16.mxu0 %v2157
          %2211 = vmatpush1.bf16.msra.mxu0 %v2156
          %2212 = vmatprep.subr.bf16.mxu0 %v2153
          %2213 = vmatpush1.bf16.msra.mxu0 %v2152
          %2214 = vmatprep.subr.bf16.mxu0 %v2149
          %2215 = vmatpush1.bf16.msra.mxu0 %v2148
          %2216 = vmatprep.subr.bf16.mxu0 %v2145
          %2217 = vmatpush1.bf16.msra.mxu0 %v2144
          %2218 = vmatprep.subr.bf16.mxu0 %v2141
          %2219 = vmatpush1.bf16.msra.mxu0 %v2140
          %2220 = vmatprep.subr.bf16.mxu0 0
          %2221 = vmatpush2.bf16.msra.mxu0 0
          %2222 = vmatprep.subr.bf16.mxu0 0
          %2223 = vmatpush2.bf16.msra.mxu0 0
          %2224 = vmatprep.subr.bf16.mxu0 0
          %2225 = vmatpush2.bf16.msra.mxu0 0
          %2226 = vmatprep.subr.bf16.mxu0 0
          %2227 = vmatpush2.bf16.msra.mxu0 0
          %2228 = vmatprep.subr.bf16.mxu0 0
          %2229 = vmatpush2.bf16.msra.mxu0 0
          %2230 = vmatprep.subr.bf16.mxu0 0
          %2231 = vmatpush2.bf16.msra.mxu0 0
          %2232 = vmatprep.subr.bf16.mxu0 0
          %2233 = vmatpush2.bf16.msra.mxu0 0
          %2234 = vmatprep.subr.bf16.mxu0 0
          %2235 = vmatpush2.bf16.msra.mxu0 0
          %2236 = vmatprep.mubr.bf16.mxu0 0
          %2237 = vmatmul.mubr.bf16.gmra.mxu0 %v2011
          %v2238 = vpop.f32.mrf.mxu0
          %v2239 = vadd.f32 0.0, %v2238
          %v2240 = vpop.f32.mrf.mxu0
          %v2241 = vadd.f32 0.0, %v2240
          %v2242 = vpop.f32.mrf.mxu0
          %v2243 = vadd.f32 0.0, %v2242
          %v2244 = vpop.f32.mrf.mxu0
          %v2245 = vadd.f32 0.0, %v2244
          %2246 = vdwg.mxu0
          %2247 = vmatprep.subr.bf16.mxu0 %v2171
          %2248 = vmatpush1.bf16.msra.mxu0 %v2170
          %2249 = vmatprep.subr.bf16.mxu0 %v2167
          %2250 = vmatpush1.bf16.msra.mxu0 %v2166
          %2251 = vmatprep.subr.bf16.mxu0 %v2163
          %2252 = vmatpush1.bf16.msra.mxu0 %v2162
          %2253 = vmatprep.subr.bf16.mxu0 %v2159
          %2254 = vmatpush1.bf16.msra.mxu0 %v2158
          %2255 = vmatprep.subr.bf16.mxu0 %v2155
          %2256 = vmatpush1.bf16.msra.mxu0 %v2154
          %2257 = vmatprep.subr.bf16.mxu0 %v2151
          %2258 = vmatpush1.bf16.msra.mxu0 %v2150
          %2259 = vmatprep.subr.bf16.mxu0 %v2147
          %2260 = vmatpush1.bf16.msra.mxu0 %v2146
          %2261 = vmatprep.subr.bf16.mxu0 %v2143
          %2262 = vmatpush1.bf16.msra.mxu0 %v2142
          %2263 = vmatprep.subr.bf16.mxu0 0
          %2264 = vmatpush2.bf16.msra.mxu0 0
          %2265 = vmatprep.subr.bf16.mxu0 0
          %2266 = vmatpush2.bf16.msra.mxu0 0
          %2267 = vmatprep.subr.bf16.mxu0 0
          %2268 = vmatpush2.bf16.msra.mxu0 0
          %2269 = vmatprep.subr.bf16.mxu0 0
          %2270 = vmatpush2.bf16.msra.mxu0 0
          %2271 = vmatprep.subr.bf16.mxu0 0
          %2272 = vmatpush2.bf16.msra.mxu0 0
          %2273 = vmatprep.subr.bf16.mxu0 0
          %2274 = vmatpush2.bf16.msra.mxu0 0
          %2275 = vmatprep.subr.bf16.mxu0 0
          %2276 = vmatpush2.bf16.msra.mxu0 0
          %2277 = vmatprep.subr.bf16.mxu0 0
          %2278 = vmatpush2.bf16.msra.mxu0 0
          %2279 = vmatprep.mubr.bf16.mxu0 0
          %2280 = vmatmul.mubr.bf16.gmra.mxu0 %v2011
          %v2281 = vpop.f32.mrf.mxu0
          %v2282 = vadd.f32 0.0, %v2281
          %v2283 = vpop.f32.mrf.mxu0
          %v2284 = vadd.f32 0.0, %v2283
          %v2285 = vpop.f32.mrf.mxu0
          %v2286 = vadd.f32 0.0, %v2285
          %v2287 = vpop.f32.mrf.mxu0
          %v2288 = vadd.f32 0.0, %v2287
          %2289 = vdwg.mxu0
          %v2290 = vadd.f32 %v2003, %v2239
          %v2291 = vadd.f32 %v2004, %v2241
          %v2292 = vadd.f32 %v2005, %v2282
          %v2293 = vadd.f32 %v2006, %v2284
          %v2294 = vadd.f32 %v2007, %v2243
          %v2295 = vadd.f32 %v2008, %v2245
          %v2296 = vadd.f32 %v2009, %v2286
          %v2297 = vadd.f32 %v2010, %v2288
          %v2298 = vmul.f32 %v2290, 0.5
          %v2299 = vmul.f32 %v2294, 0.5
          %v2300 = vtanh.pop %v2298
          %v2301 = vtanh.pop %v2299
          %v2302 = vadd.f32 %v2300, 1.0
          %v2303 = vadd.f32 %v2301, 1.0
          %v2304 = vmul.f32 %v2302, 0.5
          %v2305 = vmul.f32 %v2303, 0.5
          %v2306 = vmul.f32 %v2291, 0.5
          %v2307 = vmul.f32 %v2295, 0.5
          %v2308 = vtanh.pop %v2306
          %v2309 = vtanh.pop %v2307
          %v2310 = vadd.f32 %v2308, 1.0
          %v2311 = vadd.f32 %v2309, 1.0
          %v2312 = vmul.f32 %v2310, 0.5
          %v2313 = vmul.f32 %v2311, 0.5
          %v2314 = vtanh.pop %v2292
          %v2315 = vtanh.pop %v2296
          %v2316 = vmul.f32 %v2293, 0.5
          %v2317 = vmul.f32 %v2297, 0.5
          %v2318 = vtanh.pop %v2316
          %v2319 = vtanh.pop %v2317
          %v2320 = vadd.f32 %v2318, 1.0
          %v2321 = vadd.f32 %v2319, 1.0
          %v2322 = vmul.f32 %v2320, 0.5
          %v2323 = vmul.f32 %v2321, 0.5
          %v2324 = vmul.f32 %v2312, %v1993
          %v2325 = vmul.f32 %v2313, %v1994
          %v2326 = vmul.f32 %v2304, %v2314
          %v2327 = vmul.f32 %v2305, %v2315
          %v2328 = vadd.f32 %v2324, %v2326
          %v2329 = vadd.f32 %v2325, %v2327
          %v2330 = vtanh.pop %v2328
          %v2331 = vtanh.pop %v2329
          %v2332 = vmul.f32 %v2322, %v2330
          %v2333 = vmul.f32 %v2323, %v2331
          %s2334 = scalar_lea.vmem %s324, 48 [#allocation9]
          %2335 = vst [vmem:[%s2334] sm:$0xff] %v2332
          %2336 = vst [vmem:[%s2334 + $0x8] sm:$0xff] %v2333
          %2337 = vst [vmem:[#allocation3] sm:$0xff] %v2332
          %2338 = vst [vmem:[#allocation3 + $0x8] sm:$0xff] %v2333
          %2339 = vst [vmem:[#allocation4] sm:$0xff] %v2328
          %2340 = vst [vmem:[#allocation4 + $0x8] sm:$0xff] %v2329
        $region48: #{bilstm_forward.3} parent=35 // pred_fallthru
          _
        %p2341 = scmp.eq.s32.totalorder %s25, 1
        // Predicated region
        $region53: #{bilstm_forward.3} parent=35 // pred_check
          %p2342 = pneg %p2341
        $region54: #{bilstm_forward.3} parent=35 // pred_check_branch
          %2344 = sbr.rel (%p2342) target = $region56
        $region55: #{bilstm_forward.3} parent=35 // pred_region
          %p2345 = scmp.eq.s32.totalorder %s26, 0
          // Predicated region
          $region57: #{bilstm_forward.3} parent=55 // pred_check
            %p2346 = pneg %p2345
          $region58: #{bilstm_forward.3} parent=55 // pred_check_branch
            %2348 = sbr.rel (%p2346) target = $region60
          $region59: #{bilstm_forward.3} parent=55 // pred_region
            %s2349 = scalar_lea.vmem [#allocation3], 16
            %2350 = vst [vmem:[%s2349] sm:$0xff] 0.0
            %2351 = vst [vmem:[%s2349 + $0x8] sm:$0xff] 0.0
            %s2352 = scalar_lea.vmem [#allocation4], 16
            %2353 = vst [vmem:[%s2352] sm:$0xff] 0.0
            %2354 = vst [vmem:[%s2352 + $0x8] sm:$0xff] 0.0
          $region60: #{bilstm_forward.3} parent=55 // pred_fallthru
            _
          %s2355 = scalar_lea.vmem [#allocation3], 16
          %v2356 = vld [vmem:[%s2355] sm:$0xff]
          %v2357 = vld [vmem:[%s2355 + $0x8] sm:$0xff]
          %s2358 = scalar_lea.vmem [#allocation4], 16
          %v2359 = vld [vmem:[%s2358] sm:$0xff]
          %v2360 = vld [vmem:[%s2358 + $0x8] sm:$0xff]
          %s2361 = scalar_lea.vmem [#allocation2], 192
          %v2362 = vld [vmem:[%s2361] sm:$0xff]
          %v2363 = vld [vmem:[%s2361 + $0x8] sm:$0xff]
          %v2364 = vld [vmem:[%s2361 + $0x10] sm:$0xff]
          %v2365 = vld [vmem:[%s2361 + $0x18] sm:$0xff]
          %v2366 = vld [vmem:[%s2361 + $0x20] sm:$0xff]
          %v2367 = vld [vmem:[%s2361 + $0x28] sm:$0xff]
          %v2368 = vld [vmem:[%s2361 + $0x30] sm:$0xff]
          %v2369 = vld [vmem:[%s2361 + $0x38] sm:$0xff]
          %v2370 = vpack.c.bf16 %v2357, %v2356
          %v2371 = vld [vmem:[%s272] sm:$0xff]
          %v2372 = vld [vmem:[%s272 + $0x8] sm:$0xff]
          %v2373 = vld [vmem:[%s272 + $0x10] sm:$0xff]
          %v2374 = vld [vmem:[%s272 + $0x18] sm:$0xff]
          %v2375 = vld [vmem:[%s272 + $0x20] sm:$0xff]
          %v2376 = vld [vmem:[%s272 + $0x28] sm:$0xff]
          %v2377 = vld [vmem:[%s272 + $0x30] sm:$0xff]
          %v2378 = vld [vmem:[%s272 + $0x38] sm:$0xff]
          %v2379 = vld [vmem:[%s272 + $0x40] sm:$0xff]
          %v2380 = vld [vmem:[%s272 + $0x48] sm:$0xff]
          %v2381 = vld [vmem:[%s272 + $0x50] sm:$0xff]
          %v2382 = vld [vmem:[%s272 + $0x58] sm:$0xff]
          %v2383 = vld [vmem:[%s272 + $0x60] sm:$0xff]
          %v2384 = vld [vmem:[%s272 + $0x68] sm:$0xff]
          %v2385 = vld [vmem:[%s272 + $0x70] sm:$0xff]
          %v2386 = vld [vmem:[%s272 + $0x78] sm:$0xff]
          %v2387 = vld [vmem:[%s272 + $0x80] sm:$0xff]
          %v2388 = vld [vmem:[%s272 + $0x88] sm:$0xff]
          %v2389 = vld [vmem:[%s272 + $0x90] sm:$0xff]
          %v2390 = vld [vmem:[%s272 + $0x98] sm:$0xff]
          %v2391 = vld [vmem:[%s272 + $0xa0] sm:$0xff]
          %v2392 = vld [vmem:[%s272 + $0xa8] sm:$0xff]
          %v2393 = vld [vmem:[%s272 + $0xb0] sm:$0xff]
          %v2394 = vld [vmem:[%s272 + $0xb8] sm:$0xff]
          %v2395 = vld [vmem:[%s272 + $0xc0] sm:$0xff]
          %v2396 = vld [vmem:[%s272 + $0xc8] sm:$0xff]
          %v2397 = vld [vmem:[%s272 + $0xd0] sm:$0xff]
          %v2398 = vld [vmem:[%s272 + $0xd8] sm:$0xff]
          %v2399 = vld [vmem:[%s272 + $0xe0] sm:$0xff]
          %v2400 = vld [vmem:[%s272 + $0xe8] sm:$0xff]
          %v2401 = vld [vmem:[%s272 + $0xf0] sm:$0xff]
          %v2402 = vld [vmem:[%s272 + $0xf8] sm:$0xff]
          %v2435 = vunpack.c.l.b16 %v2371
          %v2436 = vunpack.c.h.b16 %v2371
          %v2437 = vunpack.c.l.b16 %v2372
          %v2438 = vunpack.c.h.b16 %v2372
          %v2439 = vunpack.c.l.b16 %v2373
          %v2440 = vunpack.c.h.b16 %v2373
          %v2441 = vunpack.c.l.b16 %v2374
          %v2442 = vunpack.c.h.b16 %v2374
          %v2443 = vunpack.c.l.b16 %v2375
          %v2444 = vunpack.c.h.b16 %v2375
          %v2445 = vunpack.c.l.b16 %v2376
          %v2446 = vunpack.c.h.b16 %v2376
          %v2447 = vunpack.c.l.b16 %v2377
          %v2448 = vunpack.c.h.b16 %v2377
          %v2449 = vunpack.c.l.b16 %v2378
          %v2450 = vunpack.c.h.b16 %v2378
          %v2451 = vunpack.c.l.b16 %v2379
          %v2452 = vunpack.c.h.b16 %v2379
          %v2453 = vunpack.c.l.b16 %v2380
          %v2454 = vunpack.c.h.b16 %v2380
          %v2455 = vunpack.c.l.b16 %v2381
          %v2456 = vunpack.c.h.b16 %v2381
          %v2457 = vunpack.c.l.b16 %v2382
          %v2458 = vunpack.c.h.b16 %v2382
          %v2459 = vunpack.c.l.b16 %v2383
          %v2460 = vunpack.c.h.b16 %v2383
          %v2461 = vunpack.c.l.b16 %v2384
          %v2462 = vunpack.c.h.b16 %v2384
          %v2463 = vunpack.c.l.b16 %v2385
          %v2464 = vunpack.c.h.b16 %v2385
          %v2465 = vunpack.c.l.b16 %v2386
          %v2466 = vunpack.c.h.b16 %v2386
          %v2467 = vunpack.c.l.b16 %v2387
          %v2468 = vunpack.c.h.b16 %v2387
          %v2469 = vunpack.c.l.b16 %v2388
          %v2470 = vunpack.c.h.b16 %v2388
          %v2471 = vunpack.c.l.b16 %v2389
          %v2472 = vunpack.c.h.b16 %v2389
          %v2473 = vunpack.c.l.b16 %v2390
          %v2474 = vunpack.c.h.b16 %v2390
          %v2475 = vunpack.c.l.b16 %v2391
          %v2476 = vunpack.c.h.b16 %v2391
          %v2477 = vunpack.c.l.b16 %v2392
          %v2478 = vunpack.c.h.b16 %v2392
          %v2479 = vunpack.c.l.b16 %v2393
          %v2480 = vunpack.c.h.b16 %v2393
          %v2481 = vunpack.c.l.b16 %v2394
          %v2482 = vunpack.c.h.b16 %v2394
          %v2483 = vunpack.c.l.b16 %v2395
          %v2484 = vunpack.c.h.b16 %v2395
          %v2485 = vunpack.c.l.b16 %v2396
          %v2486 = vunpack.c.h.b16 %v2396
          %v2487 = vunpack.c.l.b16 %v2397
          %v2488 = vunpack.c.h.b16 %v2397
          %v2489 = vunpack.c.l.b16 %v2398
          %v2490 = vunpack.c.h.b16 %v2398
          %v2491 = vunpack.c.l.b16 %v2399
          %v2492 = vunpack.c.h.b16 %v2399
          %v2493 = vunpack.c.l.b16 %v2400
          %v2494 = vunpack.c.h.b16 %v2400
          %v2495 = vunpack.c.l.b16 %v2401
          %v2496 = vunpack.c.h.b16 %v2401
          %v2497 = vunpack.c.l.b16 %v2402
          %v2498 = vunpack.c.h.b16 %v2402
          %v2499 = vpack.c.b16 %v2439, %v2435
          %v2500 = vpack.c.b16 %v2440, %v2436
          %v2501 = vpack.c.b16 %v2441, %v2437
          %v2502 = vpack.c.b16 %v2442, %v2438
          %v2503 = vpack.c.b16 %v2447, %v2443
          %v2504 = vpack.c.b16 %v2448, %v2444
          %v2505 = vpack.c.b16 %v2449, %v2445
          %v2506 = vpack.c.b16 %v2450, %v2446
          %v2507 = vpack.c.b16 %v2455, %v2451
          %v2508 = vpack.c.b16 %v2456, %v2452
          %v2509 = vpack.c.b16 %v2457, %v2453
          %v2510 = vpack.c.b16 %v2458, %v2454
          %v2511 = vpack.c.b16 %v2463, %v2459
          %v2512 = vpack.c.b16 %v2464, %v2460
          %v2513 = vpack.c.b16 %v2465, %v2461
          %v2514 = vpack.c.b16 %v2466, %v2462
          %v2515 = vpack.c.b16 %v2471, %v2467
          %v2516 = vpack.c.b16 %v2472, %v2468
          %v2517 = vpack.c.b16 %v2473, %v2469
          %v2518 = vpack.c.b16 %v2474, %v2470
          %v2519 = vpack.c.b16 %v2479, %v2475
          %v2520 = vpack.c.b16 %v2480, %v2476
          %v2521 = vpack.c.b16 %v2481, %v2477
          %v2522 = vpack.c.b16 %v2482, %v2478
          %v2523 = vpack.c.b16 %v2487, %v2483
          %v2524 = vpack.c.b16 %v2488, %v2484
          %v2525 = vpack.c.b16 %v2489, %v2485
          %v2526 = vpack.c.b16 %v2490, %v2486
          %v2527 = vpack.c.b16 %v2495, %v2491
          %v2528 = vpack.c.b16 %v2496, %v2492
          %v2529 = vpack.c.b16 %v2497, %v2493
          %v2530 = vpack.c.b16 %v2498, %v2494
          %2563 = vmatprep.subr.bf16.mxu0 %v2528
          %2564 = vmatpush1.bf16.msra.mxu0 %v2527
          %2565 = vmatprep.subr.bf16.mxu0 %v2524
          %2566 = vmatpush1.bf16.msra.mxu0 %v2523
          %2567 = vmatprep.subr.bf16.mxu0 %v2520
          %2568 = vmatpush1.bf16.msra.mxu0 %v2519
          %2569 = vmatprep.subr.bf16.mxu0 %v2516
          %2570 = vmatpush1.bf16.msra.mxu0 %v2515
          %2571 = vmatprep.subr.bf16.mxu0 %v2512
          %2572 = vmatpush1.bf16.msra.mxu0 %v2511
          %2573 = vmatprep.subr.bf16.mxu0 %v2508
          %2574 = vmatpush1.bf16.msra.mxu0 %v2507
          %2575 = vmatprep.subr.bf16.mxu0 %v2504
          %2576 = vmatpush1.bf16.msra.mxu0 %v2503
          %2577 = vmatprep.subr.bf16.mxu0 %v2500
          %2578 = vmatpush1.bf16.msra.mxu0 %v2499
          %2579 = vmatprep.subr.bf16.mxu0 0
          %2580 = vmatpush2.bf16.msra.mxu0 0
          %2581 = vmatprep.subr.bf16.mxu0 0
          %2582 = vmatpush2.bf16.msra.mxu0 0
          %2583 = vmatprep.subr.bf16.mxu0 0
          %2584 = vmatpush2.bf16.msra.mxu0 0
          %2585 = vmatprep.subr.bf16.mxu0 0
          %2586 = vmatpush2.bf16.msra.mxu0 0
          %2587 = vmatprep.subr.bf16.mxu0 0
          %2588 = vmatpush2.bf16.msra.mxu0 0
          %2589 = vmatprep.subr.bf16.mxu0 0
          %2590 = vmatpush2.bf16.msra.mxu0 0
          %2591 = vmatprep.subr.bf16.mxu0 0
          %2592 = vmatpush2.bf16.msra.mxu0 0
          %2593 = vmatprep.subr.bf16.mxu0 0
          %2594 = vmatpush2.bf16.msra.mxu0 0
          %2595 = vmatprep.mubr.bf16.mxu0 0
          %2596 = vmatmul.mubr.bf16.gmra.mxu0 %v2370
          %v2597 = vpop.f32.mrf.mxu0
          %v2598 = vadd.f32 0.0, %v2597
          %v2599 = vpop.f32.mrf.mxu0
          %v2600 = vadd.f32 0.0, %v2599
          %v2601 = vpop.f32.mrf.mxu0
          %v2602 = vadd.f32 0.0, %v2601
          %v2603 = vpop.f32.mrf.mxu0
          %v2604 = vadd.f32 0.0, %v2603
          %2605 = vdwg.mxu0
          %2606 = vmatprep.subr.bf16.mxu0 %v2530
          %2607 = vmatpush1.bf16.msra.mxu0 %v2529
          %2608 = vmatprep.subr.bf16.mxu0 %v2526
          %2609 = vmatpush1.bf16.msra.mxu0 %v2525
          %2610 = vmatprep.subr.bf16.mxu0 %v2522
          %2611 = vmatpush1.bf16.msra.mxu0 %v2521
          %2612 = vmatprep.subr.bf16.mxu0 %v2518
          %2613 = vmatpush1.bf16.msra.mxu0 %v2517
          %2614 = vmatprep.subr.bf16.mxu0 %v2514
          %2615 = vmatpush1.bf16.msra.mxu0 %v2513
          %2616 = vmatprep.subr.bf16.mxu0 %v2510
          %2617 = vmatpush1.bf16.msra.mxu0 %v2509
          %2618 = vmatprep.subr.bf16.mxu0 %v2506
          %2619 = vmatpush1.bf16.msra.mxu0 %v2505
          %2620 = vmatprep.subr.bf16.mxu0 %v2502
          %2621 = vmatpush1.bf16.msra.mxu0 %v2501
          %2622 = vmatprep.subr.bf16.mxu0 0
          %2623 = vmatpush2.bf16.msra.mxu0 0
          %2624 = vmatprep.subr.bf16.mxu0 0
          %2625 = vmatpush2.bf16.msra.mxu0 0
          %2626 = vmatprep.subr.bf16.mxu0 0
          %2627 = vmatpush2.bf16.msra.mxu0 0
          %2628 = vmatprep.subr.bf16.mxu0 0
          %2629 = vmatpush2.bf16.msra.mxu0 0
          %2630 = vmatprep.subr.bf16.mxu0 0
          %2631 = vmatpush2.bf16.msra.mxu0 0
          %2632 = vmatprep.subr.bf16.mxu0 0
          %2633 = vmatpush2.bf16.msra.mxu0 0
          %2634 = vmatprep.subr.bf16.mxu0 0
          %2635 = vmatpush2.bf16.msra.mxu0 0
          %2636 = vmatprep.subr.bf16.mxu0 0
          %2637 = vmatpush2.bf16.msra.mxu0 0
          %2638 = vmatprep.mubr.bf16.mxu0 0
          %2639 = vmatmul.mubr.bf16.gmra.mxu0 %v2370
          %v2640 = vpop.f32.mrf.mxu0
          %v2641 = vadd.f32 0.0, %v2640
          %v2642 = vpop.f32.mrf.mxu0
          %v2643 = vadd.f32 0.0, %v2642
          %v2644 = vpop.f32.mrf.mxu0
          %v2645 = vadd.f32 0.0, %v2644
          %v2646 = vpop.f32.mrf.mxu0
          %v2647 = vadd.f32 0.0, %v2646
          %2648 = vdwg.mxu0
          %v2649 = vadd.f32 %v2362, %v2598
          %v2650 = vadd.f32 %v2363, %v2600
          %v2651 = vadd.f32 %v2364, %v2641
          %v2652 = vadd.f32 %v2365, %v2643
          %v2653 = vadd.f32 %v2366, %v2602
          %v2654 = vadd.f32 %v2367, %v2604
          %v2655 = vadd.f32 %v2368, %v2645
          %v2656 = vadd.f32 %v2369, %v2647
          %v2657 = vmul.f32 %v2649, 0.5
          %v2658 = vmul.f32 %v2653, 0.5
          %v2659 = vtanh.pop %v2657
          %v2660 = vtanh.pop %v2658
          %v2661 = vadd.f32 %v2659, 1.0
          %v2662 = vadd.f32 %v2660, 1.0
          %v2663 = vmul.f32 %v2661, 0.5
          %v2664 = vmul.f32 %v2662, 0.5
          %v2665 = vmul.f32 %v2650, 0.5
          %v2666 = vmul.f32 %v2654, 0.5
          %v2667 = vtanh.pop %v2665
          %v2668 = vtanh.pop %v2666
          %v2669 = vadd.f32 %v2667, 1.0
          %v2670 = vadd.f32 %v2668, 1.0
          %v2671 = vmul.f32 %v2669, 0.5
          %v2672 = vmul.f32 %v2670, 0.5
          %v2673 = vtanh.pop %v2651
          %v2674 = vtanh.pop %v2655
          %v2675 = vmul.f32 %v2652, 0.5
          %v2676 = vmul.f32 %v2656, 0.5
          %v2677 = vtanh.pop %v2675
          %v2678 = vtanh.pop %v2676
          %v2679 = vadd.f32 %v2677, 1.0
          %v2680 = vadd.f32 %v2678, 1.0
          %v2681 = vmul.f32 %v2679, 0.5
          %v2682 = vmul.f32 %v2680, 0.5
          %v2683 = vmul.f32 %v2671, %v2359
          %v2684 = vmul.f32 %v2672, %v2360
          %v2685 = vmul.f32 %v2663, %v2673
          %v2686 = vmul.f32 %v2664, %v2674
          %v2687 = vadd.f32 %v2683, %v2685
          %v2688 = vadd.f32 %v2684, %v2686
          %v2689 = vtanh.pop %v2687
          %v2690 = vtanh.pop %v2688
          %v2691 = vmul.f32 %v2681, %v2689
          %v2692 = vmul.f32 %v2682, %v2690
          %s2693 = scalar_lea.vmem %s324, 48 [#allocation9]
          %2694 = vst [vmem:[%s2693] sm:$0xff] %v2691
          %2695 = vst [vmem:[%s2693 + $0x8] sm:$0xff] %v2692
          %s2696 = scalar_lea.vmem [#allocation2], 128
          %v2697 = vld [vmem:[%s2696] sm:$0xff]
          %v2698 = vld [vmem:[%s2696 + $0x8] sm:$0xff]
          %v2699 = vld [vmem:[%s2696 + $0x10] sm:$0xff]
          %v2700 = vld [vmem:[%s2696 + $0x18] sm:$0xff]
          %v2701 = vld [vmem:[%s2696 + $0x20] sm:$0xff]
          %v2702 = vld [vmem:[%s2696 + $0x28] sm:$0xff]
          %v2703 = vld [vmem:[%s2696 + $0x30] sm:$0xff]
          %v2704 = vld [vmem:[%s2696 + $0x38] sm:$0xff]
          %v2705 = vpack.c.bf16 %v2692, %v2691
          %v2706 = vld [vmem:[%s272] sm:$0xff]
          %v2707 = vld [vmem:[%s272 + $0x8] sm:$0xff]
          %v2708 = vld [vmem:[%s272 + $0x10] sm:$0xff]
          %v2709 = vld [vmem:[%s272 + $0x18] sm:$0xff]
          %v2710 = vld [vmem:[%s272 + $0x20] sm:$0xff]
          %v2711 = vld [vmem:[%s272 + $0x28] sm:$0xff]
          %v2712 = vld [vmem:[%s272 + $0x30] sm:$0xff]
          %v2713 = vld [vmem:[%s272 + $0x38] sm:$0xff]
          %v2714 = vld [vmem:[%s272 + $0x40] sm:$0xff]
          %v2715 = vld [vmem:[%s272 + $0x48] sm:$0xff]
          %v2716 = vld [vmem:[%s272 + $0x50] sm:$0xff]
          %v2717 = vld [vmem:[%s272 + $0x58] sm:$0xff]
          %v2718 = vld [vmem:[%s272 + $0x60] sm:$0xff]
          %v2719 = vld [vmem:[%s272 + $0x68] sm:$0xff]
          %v2720 = vld [vmem:[%s272 + $0x70] sm:$0xff]
          %v2721 = vld [vmem:[%s272 + $0x78] sm:$0xff]
          %v2722 = vld [vmem:[%s272 + $0x80] sm:$0xff]
          %v2723 = vld [vmem:[%s272 + $0x88] sm:$0xff]
          %v2724 = vld [vmem:[%s272 + $0x90] sm:$0xff]
          %v2725 = vld [vmem:[%s272 + $0x98] sm:$0xff]
          %v2726 = vld [vmem:[%s272 + $0xa0] sm:$0xff]
          %v2727 = vld [vmem:[%s272 + $0xa8] sm:$0xff]
          %v2728 = vld [vmem:[%s272 + $0xb0] sm:$0xff]
          %v2729 = vld [vmem:[%s272 + $0xb8] sm:$0xff]
          %v2730 = vld [vmem:[%s272 + $0xc0] sm:$0xff]
          %v2731 = vld [vmem:[%s272 + $0xc8] sm:$0xff]
          %v2732 = vld [vmem:[%s272 + $0xd0] sm:$0xff]
          %v2733 = vld [vmem:[%s272 + $0xd8] sm:$0xff]
          %v2734 = vld [vmem:[%s272 + $0xe0] sm:$0xff]
          %v2735 = vld [vmem:[%s272 + $0xe8] sm:$0xff]
          %v2736 = vld [vmem:[%s272 + $0xf0] sm:$0xff]
          %v2737 = vld [vmem:[%s272 + $0xf8] sm:$0xff]
          %v2770 = vunpack.c.l.b16 %v2706
          %v2771 = vunpack.c.h.b16 %v2706
          %v2772 = vunpack.c.l.b16 %v2707
          %v2773 = vunpack.c.h.b16 %v2707
          %v2774 = vunpack.c.l.b16 %v2708
          %v2775 = vunpack.c.h.b16 %v2708
          %v2776 = vunpack.c.l.b16 %v2709
          %v2777 = vunpack.c.h.b16 %v2709
          %v2778 = vunpack.c.l.b16 %v2710
          %v2779 = vunpack.c.h.b16 %v2710
          %v2780 = vunpack.c.l.b16 %v2711
          %v2781 = vunpack.c.h.b16 %v2711
          %v2782 = vunpack.c.l.b16 %v2712
          %v2783 = vunpack.c.h.b16 %v2712
          %v2784 = vunpack.c.l.b16 %v2713
          %v2785 = vunpack.c.h.b16 %v2713
          %v2786 = vunpack.c.l.b16 %v2714
          %v2787 = vunpack.c.h.b16 %v2714
          %v2788 = vunpack.c.l.b16 %v2715
          %v2789 = vunpack.c.h.b16 %v2715
          %v2790 = vunpack.c.l.b16 %v2716
          %v2791 = vunpack.c.h.b16 %v2716
          %v2792 = vunpack.c.l.b16 %v2717
          %v2793 = vunpack.c.h.b16 %v2717
          %v2794 = vunpack.c.l.b16 %v2718
          %v2795 = vunpack.c.h.b16 %v2718
          %v2796 = vunpack.c.l.b16 %v2719
          %v2797 = vunpack.c.h.b16 %v2719
          %v2798 = vunpack.c.l.b16 %v2720
          %v2799 = vunpack.c.h.b16 %v2720
          %v2800 = vunpack.c.l.b16 %v2721
          %v2801 = vunpack.c.h.b16 %v2721
          %v2802 = vunpack.c.l.b16 %v2722
          %v2803 = vunpack.c.h.b16 %v2722
          %v2804 = vunpack.c.l.b16 %v2723
          %v2805 = vunpack.c.h.b16 %v2723
          %v2806 = vunpack.c.l.b16 %v2724
          %v2807 = vunpack.c.h.b16 %v2724
          %v2808 = vunpack.c.l.b16 %v2725
          %v2809 = vunpack.c.h.b16 %v2725
          %v2810 = vunpack.c.l.b16 %v2726
          %v2811 = vunpack.c.h.b16 %v2726
          %v2812 = vunpack.c.l.b16 %v2727
          %v2813 = vunpack.c.h.b16 %v2727
          %v2814 = vunpack.c.l.b16 %v2728
          %v2815 = vunpack.c.h.b16 %v2728
          %v2816 = vunpack.c.l.b16 %v2729
          %v2817 = vunpack.c.h.b16 %v2729
          %v2818 = vunpack.c.l.b16 %v2730
          %v2819 = vunpack.c.h.b16 %v2730
          %v2820 = vunpack.c.l.b16 %v2731
          %v2821 = vunpack.c.h.b16 %v2731
          %v2822 = vunpack.c.l.b16 %v2732
          %v2823 = vunpack.c.h.b16 %v2732
          %v2824 = vunpack.c.l.b16 %v2733
          %v2825 = vunpack.c.h.b16 %v2733
          %v2826 = vunpack.c.l.b16 %v2734
          %v2827 = vunpack.c.h.b16 %v2734
          %v2828 = vunpack.c.l.b16 %v2735
          %v2829 = vunpack.c.h.b16 %v2735
          %v2830 = vunpack.c.l.b16 %v2736
          %v2831 = vunpack.c.h.b16 %v2736
          %v2832 = vunpack.c.l.b16 %v2737
          %v2833 = vunpack.c.h.b16 %v2737
          %v2834 = vpack.c.b16 %v2774, %v2770
          %v2835 = vpack.c.b16 %v2775, %v2771
          %v2836 = vpack.c.b16 %v2776, %v2772
          %v2837 = vpack.c.b16 %v2777, %v2773
          %v2838 = vpack.c.b16 %v2782, %v2778
          %v2839 = vpack.c.b16 %v2783, %v2779
          %v2840 = vpack.c.b16 %v2784, %v2780
          %v2841 = vpack.c.b16 %v2785, %v2781
          %v2842 = vpack.c.b16 %v2790, %v2786
          %v2843 = vpack.c.b16 %v2791, %v2787
          %v2844 = vpack.c.b16 %v2792, %v2788
          %v2845 = vpack.c.b16 %v2793, %v2789
          %v2846 = vpack.c.b16 %v2798, %v2794
          %v2847 = vpack.c.b16 %v2799, %v2795
          %v2848 = vpack.c.b16 %v2800, %v2796
          %v2849 = vpack.c.b16 %v2801, %v2797
          %v2850 = vpack.c.b16 %v2806, %v2802
          %v2851 = vpack.c.b16 %v2807, %v2803
          %v2852 = vpack.c.b16 %v2808, %v2804
          %v2853 = vpack.c.b16 %v2809, %v2805
          %v2854 = vpack.c.b16 %v2814, %v2810
          %v2855 = vpack.c.b16 %v2815, %v2811
          %v2856 = vpack.c.b16 %v2816, %v2812
          %v2857 = vpack.c.b16 %v2817, %v2813
          %v2858 = vpack.c.b16 %v2822, %v2818
          %v2859 = vpack.c.b16 %v2823, %v2819
          %v2860 = vpack.c.b16 %v2824, %v2820
          %v2861 = vpack.c.b16 %v2825, %v2821
          %v2862 = vpack.c.b16 %v2830, %v2826
          %v2863 = vpack.c.b16 %v2831, %v2827
          %v2864 = vpack.c.b16 %v2832, %v2828
          %v2865 = vpack.c.b16 %v2833, %v2829
          %2898 = vmatprep.subr.bf16.mxu0 %v2863
          %2899 = vmatpush1.bf16.msra.mxu0 %v2862
          %2900 = vmatprep.subr.bf16.mxu0 %v2859
          %2901 = vmatpush1.bf16.msra.mxu0 %v2858
          %2902 = vmatprep.subr.bf16.mxu0 %v2855
          %2903 = vmatpush1.bf16.msra.mxu0 %v2854
          %2904 = vmatprep.subr.bf16.mxu0 %v2851
          %2905 = vmatpush1.bf16.msra.mxu0 %v2850
          %2906 = vmatprep.subr.bf16.mxu0 %v2847
          %2907 = vmatpush1.bf16.msra.mxu0 %v2846
          %2908 = vmatprep.subr.bf16.mxu0 %v2843
          %2909 = vmatpush1.bf16.msra.mxu0 %v2842
          %2910 = vmatprep.subr.bf16.mxu0 %v2839
          %2911 = vmatpush1.bf16.msra.mxu0 %v2838
          %2912 = vmatprep.subr.bf16.mxu0 %v2835
          %2913 = vmatpush1.bf16.msra.mxu0 %v2834
          %2914 = vmatprep.subr.bf16.mxu0 0
          %2915 = vmatpush2.bf16.msra.mxu0 0
          %2916 = vmatprep.subr.bf16.mxu0 0
          %2917 = vmatpush2.bf16.msra.mxu0 0
          %2918 = vmatprep.subr.bf16.mxu0 0
          %2919 = vmatpush2.bf16.msra.mxu0 0
          %2920 = vmatprep.subr.bf16.mxu0 0
          %2921 = vmatpush2.bf16.msra.mxu0 0
          %2922 = vmatprep.subr.bf16.mxu0 0
          %2923 = vmatpush2.bf16.msra.mxu0 0
          %2924 = vmatprep.subr.bf16.mxu0 0
          %2925 = vmatpush2.bf16.msra.mxu0 0
          %2926 = vmatprep.subr.bf16.mxu0 0
          %2927 = vmatpush2.bf16.msra.mxu0 0
          %2928 = vmatprep.subr.bf16.mxu0 0
          %2929 = vmatpush2.bf16.msra.mxu0 0
          %2930 = vmatprep.mubr.bf16.mxu0 0
          %2931 = vmatmul.mubr.bf16.gmra.mxu0 %v2705
          %v2932 = vpop.f32.mrf.mxu0
          %v2933 = vadd.f32 0.0, %v2932
          %v2934 = vpop.f32.mrf.mxu0
          %v2935 = vadd.f32 0.0, %v2934
          %v2936 = vpop.f32.mrf.mxu0
          %v2937 = vadd.f32 0.0, %v2936
          %v2938 = vpop.f32.mrf.mxu0
          %v2939 = vadd.f32 0.0, %v2938
          %2940 = vdwg.mxu0
          %2941 = vmatprep.subr.bf16.mxu0 %v2865
          %2942 = vmatpush1.bf16.msra.mxu0 %v2864
          %2943 = vmatprep.subr.bf16.mxu0 %v2861
          %2944 = vmatpush1.bf16.msra.mxu0 %v2860
          %2945 = vmatprep.subr.bf16.mxu0 %v2857
          %2946 = vmatpush1.bf16.msra.mxu0 %v2856
          %2947 = vmatprep.subr.bf16.mxu0 %v2853
          %2948 = vmatpush1.bf16.msra.mxu0 %v2852
          %2949 = vmatprep.subr.bf16.mxu0 %v2849
          %2950 = vmatpush1.bf16.msra.mxu0 %v2848
          %2951 = vmatprep.subr.bf16.mxu0 %v2845
          %2952 = vmatpush1.bf16.msra.mxu0 %v2844
          %2953 = vmatprep.subr.bf16.mxu0 %v2841
          %2954 = vmatpush1.bf16.msra.mxu0 %v2840
          %2955 = vmatprep.subr.bf16.mxu0 %v2837
          %2956 = vmatpush1.bf16.msra.mxu0 %v2836
          %2957 = vmatprep.subr.bf16.mxu0 0
          %2958 = vmatpush2.bf16.msra.mxu0 0
          %2959 = vmatprep.subr.bf16.mxu0 0
          %2960 = vmatpush2.bf16.msra.mxu0 0
          %2961 = vmatprep.subr.bf16.mxu0 0
          %2962 = vmatpush2.bf16.msra.mxu0 0
          %2963 = vmatprep.subr.bf16.mxu0 0
          %2964 = vmatpush2.bf16.msra.mxu0 0
          %2965 = vmatprep.subr.bf16.mxu0 0
          %2966 = vmatpush2.bf16.msra.mxu0 0
          %2967 = vmatprep.subr.bf16.mxu0 0
          %2968 = vmatpush2.bf16.msra.mxu0 0
          %2969 = vmatprep.subr.bf16.mxu0 0
          %2970 = vmatpush2.bf16.msra.mxu0 0
          %2971 = vmatprep.subr.bf16.mxu0 0
          %2972 = vmatpush2.bf16.msra.mxu0 0
          %2973 = vmatprep.mubr.bf16.mxu0 0
          %2974 = vmatmul.mubr.bf16.gmra.mxu0 %v2705
          %v2975 = vpop.f32.mrf.mxu0
          %v2976 = vadd.f32 0.0, %v2975
          %v2977 = vpop.f32.mrf.mxu0
          %v2978 = vadd.f32 0.0, %v2977
          %v2979 = vpop.f32.mrf.mxu0
          %v2980 = vadd.f32 0.0, %v2979
          %v2981 = vpop.f32.mrf.mxu0
          %v2982 = vadd.f32 0.0, %v2981
          %2983 = vdwg.mxu0
          %v2984 = vadd.f32 %v2697, %v2933
          %v2985 = vadd.f32 %v2698, %v2935
          %v2986 = vadd.f32 %v2699, %v2976
          %v2987 = vadd.f32 %v2700, %v2978
          %v2988 = vadd.f32 %v2701, %v2937
          %v2989 = vadd.f32 %v2702, %v2939
          %v2990 = vadd.f32 %v2703, %v2980
          %v2991 = vadd.f32 %v2704, %v2982
          %v2992 = vmul.f32 %v2984, 0.5
          %v2993 = vmul.f32 %v2988, 0.5
          %v2994 = vtanh.pop %v2992
          %v2995 = vtanh.pop %v2993
          %v2996 = vadd.f32 %v2994, 1.0
          %v2997 = vadd.f32 %v2995, 1.0
          %v2998 = vmul.f32 %v2996, 0.5
          %v2999 = vmul.f32 %v2997, 0.5
          %v3000 = vmul.f32 %v2985, 0.5
          %v3001 = vmul.f32 %v2989, 0.5
          %v3002 = vtanh.pop %v3000
          %v3003 = vtanh.pop %v3001
          %v3004 = vadd.f32 %v3002, 1.0
          %v3005 = vadd.f32 %v3003, 1.0
          %v3006 = vmul.f32 %v3004, 0.5
          %v3007 = vmul.f32 %v3005, 0.5
          %v3008 = vtanh.pop %v2986
          %v3009 = vtanh.pop %v2990
          %v3010 = vmul.f32 %v2987, 0.5
          %v3011 = vmul.f32 %v2991, 0.5
          %v3012 = vtanh.pop %v3010
          %v3013 = vtanh.pop %v3011
          %v3014 = vadd.f32 %v3012, 1.0
          %v3015 = vadd.f32 %v3013, 1.0
          %v3016 = vmul.f32 %v3014, 0.5
          %v3017 = vmul.f32 %v3015, 0.5
          %v3018 = vmul.f32 %v3006, %v2687
          %v3019 = vmul.f32 %v3007, %v2688
          %v3020 = vmul.f32 %v2998, %v3008
          %v3021 = vmul.f32 %v2999, %v3009
          %v3022 = vadd.f32 %v3018, %v3020
          %v3023 = vadd.f32 %v3019, %v3021
          %v3024 = vtanh.pop %v3022
          %v3025 = vtanh.pop %v3023
          %v3026 = vmul.f32 %v3016, %v3024
          %v3027 = vmul.f32 %v3017, %v3025
          %s3028 = scalar_lea.vmem %s324, 32 [#allocation9]
          %3029 = vst [vmem:[%s3028] sm:$0xff] %v3026
          %3030 = vst [vmem:[%s3028 + $0x8] sm:$0xff] %v3027
          %s3031 = scalar_lea.vmem [#allocation2], 64
          %v3032 = vld [vmem:[%s3031] sm:$0xff]
          %v3033 = vld [vmem:[%s3031 + $0x8] sm:$0xff]
          %v3034 = vld [vmem:[%s3031 + $0x10] sm:$0xff]
          %v3035 = vld [vmem:[%s3031 + $0x18] sm:$0xff]
          %v3036 = vld [vmem:[%s3031 + $0x20] sm:$0xff]
          %v3037 = vld [vmem:[%s3031 + $0x28] sm:$0xff]
          %v3038 = vld [vmem:[%s3031 + $0x30] sm:$0xff]
          %v3039 = vld [vmem:[%s3031 + $0x38] sm:$0xff]
          %v3040 = vpack.c.bf16 %v3027, %v3026
          %v3041 = vld [vmem:[%s272] sm:$0xff]
          %v3042 = vld [vmem:[%s272 + $0x8] sm:$0xff]
          %v3043 = vld [vmem:[%s272 + $0x10] sm:$0xff]
          %v3044 = vld [vmem:[%s272 + $0x18] sm:$0xff]
          %v3045 = vld [vmem:[%s272 + $0x20] sm:$0xff]
          %v3046 = vld [vmem:[%s272 + $0x28] sm:$0xff]
          %v3047 = vld [vmem:[%s272 + $0x30] sm:$0xff]
          %v3048 = vld [vmem:[%s272 + $0x38] sm:$0xff]
          %v3049 = vld [vmem:[%s272 + $0x40] sm:$0xff]
          %v3050 = vld [vmem:[%s272 + $0x48] sm:$0xff]
          %v3051 = vld [vmem:[%s272 + $0x50] sm:$0xff]
          %v3052 = vld [vmem:[%s272 + $0x58] sm:$0xff]
          %v3053 = vld [vmem:[%s272 + $0x60] sm:$0xff]
          %v3054 = vld [vmem:[%s272 + $0x68] sm:$0xff]
          %v3055 = vld [vmem:[%s272 + $0x70] sm:$0xff]
          %v3056 = vld [vmem:[%s272 + $0x78] sm:$0xff]
          %v3057 = vld [vmem:[%s272 + $0x80] sm:$0xff]
          %v3058 = vld [vmem:[%s272 + $0x88] sm:$0xff]
          %v3059 = vld [vmem:[%s272 + $0x90] sm:$0xff]
          %v3060 = vld [vmem:[%s272 + $0x98] sm:$0xff]
          %v3061 = vld [vmem:[%s272 + $0xa0] sm:$0xff]
          %v3062 = vld [vmem:[%s272 + $0xa8] sm:$0xff]
          %v3063 = vld [vmem:[%s272 + $0xb0] sm:$0xff]
          %v3064 = vld [vmem:[%s272 + $0xb8] sm:$0xff]
          %v3065 = vld [vmem:[%s272 + $0xc0] sm:$0xff]
          %v3066 = vld [vmem:[%s272 + $0xc8] sm:$0xff]
          %v3067 = vld [vmem:[%s272 + $0xd0] sm:$0xff]
          %v3068 = vld [vmem:[%s272 + $0xd8] sm:$0xff]
          %v3069 = vld [vmem:[%s272 + $0xe0] sm:$0xff]
          %v3070 = vld [vmem:[%s272 + $0xe8] sm:$0xff]
          %v3071 = vld [vmem:[%s272 + $0xf0] sm:$0xff]
          %v3072 = vld [vmem:[%s272 + $0xf8] sm:$0xff]
          %v3105 = vunpack.c.l.b16 %v3041
          %v3106 = vunpack.c.h.b16 %v3041
          %v3107 = vunpack.c.l.b16 %v3042
          %v3108 = vunpack.c.h.b16 %v3042
          %v3109 = vunpack.c.l.b16 %v3043
          %v3110 = vunpack.c.h.b16 %v3043
          %v3111 = vunpack.c.l.b16 %v3044
          %v3112 = vunpack.c.h.b16 %v3044
          %v3113 = vunpack.c.l.b16 %v3045
          %v3114 = vunpack.c.h.b16 %v3045
          %v3115 = vunpack.c.l.b16 %v3046
          %v3116 = vunpack.c.h.b16 %v3046
          %v3117 = vunpack.c.l.b16 %v3047
          %v3118 = vunpack.c.h.b16 %v3047
          %v3119 = vunpack.c.l.b16 %v3048
          %v3120 = vunpack.c.h.b16 %v3048
          %v3121 = vunpack.c.l.b16 %v3049
          %v3122 = vunpack.c.h.b16 %v3049
          %v3123 = vunpack.c.l.b16 %v3050
          %v3124 = vunpack.c.h.b16 %v3050
          %v3125 = vunpack.c.l.b16 %v3051
          %v3126 = vunpack.c.h.b16 %v3051
          %v3127 = vunpack.c.l.b16 %v3052
          %v3128 = vunpack.c.h.b16 %v3052
          %v3129 = vunpack.c.l.b16 %v3053
          %v3130 = vunpack.c.h.b16 %v3053
          %v3131 = vunpack.c.l.b16 %v3054
          %v3132 = vunpack.c.h.b16 %v3054
          %v3133 = vunpack.c.l.b16 %v3055
          %v3134 = vunpack.c.h.b16 %v3055
          %v3135 = vunpack.c.l.b16 %v3056
          %v3136 = vunpack.c.h.b16 %v3056
          %v3137 = vunpack.c.l.b16 %v3057
          %v3138 = vunpack.c.h.b16 %v3057
          %v3139 = vunpack.c.l.b16 %v3058
          %v3140 = vunpack.c.h.b16 %v3058
          %v3141 = vunpack.c.l.b16 %v3059
          %v3142 = vunpack.c.h.b16 %v3059
          %v3143 = vunpack.c.l.b16 %v3060
          %v3144 = vunpack.c.h.b16 %v3060
          %v3145 = vunpack.c.l.b16 %v3061
          %v3146 = vunpack.c.h.b16 %v3061
          %v3147 = vunpack.c.l.b16 %v3062
          %v3148 = vunpack.c.h.b16 %v3062
          %v3149 = vunpack.c.l.b16 %v3063
          %v3150 = vunpack.c.h.b16 %v3063
          %v3151 = vunpack.c.l.b16 %v3064
          %v3152 = vunpack.c.h.b16 %v3064
          %v3153 = vunpack.c.l.b16 %v3065
          %v3154 = vunpack.c.h.b16 %v3065
          %v3155 = vunpack.c.l.b16 %v3066
          %v3156 = vunpack.c.h.b16 %v3066
          %v3157 = vunpack.c.l.b16 %v3067
          %v3158 = vunpack.c.h.b16 %v3067
          %v3159 = vunpack.c.l.b16 %v3068
          %v3160 = vunpack.c.h.b16 %v3068
          %v3161 = vunpack.c.l.b16 %v3069
          %v3162 = vunpack.c.h.b16 %v3069
          %v3163 = vunpack.c.l.b16 %v3070
          %v3164 = vunpack.c.h.b16 %v3070
          %v3165 = vunpack.c.l.b16 %v3071
          %v3166 = vunpack.c.h.b16 %v3071
          %v3167 = vunpack.c.l.b16 %v3072
          %v3168 = vunpack.c.h.b16 %v3072
          %v3169 = vpack.c.b16 %v3109, %v3105
          %v3170 = vpack.c.b16 %v3110, %v3106
          %v3171 = vpack.c.b16 %v3111, %v3107
          %v3172 = vpack.c.b16 %v3112, %v3108
          %v3173 = vpack.c.b16 %v3117, %v3113
          %v3174 = vpack.c.b16 %v3118, %v3114
          %v3175 = vpack.c.b16 %v3119, %v3115
          %v3176 = vpack.c.b16 %v3120, %v3116
          %v3177 = vpack.c.b16 %v3125, %v3121
          %v3178 = vpack.c.b16 %v3126, %v3122
          %v3179 = vpack.c.b16 %v3127, %v3123
          %v3180 = vpack.c.b16 %v3128, %v3124
          %v3181 = vpack.c.b16 %v3133, %v3129
          %v3182 = vpack.c.b16 %v3134, %v3130
          %v3183 = vpack.c.b16 %v3135, %v3131
          %v3184 = vpack.c.b16 %v3136, %v3132
          %v3185 = vpack.c.b16 %v3141, %v3137
          %v3186 = vpack.c.b16 %v3142, %v3138
          %v3187 = vpack.c.b16 %v3143, %v3139
          %v3188 = vpack.c.b16 %v3144, %v3140
          %v3189 = vpack.c.b16 %v3149, %v3145
          %v3190 = vpack.c.b16 %v3150, %v3146
          %v3191 = vpack.c.b16 %v3151, %v3147
          %v3192 = vpack.c.b16 %v3152, %v3148
          %v3193 = vpack.c.b16 %v3157, %v3153
          %v3194 = vpack.c.b16 %v3158, %v3154
          %v3195 = vpack.c.b16 %v3159, %v3155
          %v3196 = vpack.c.b16 %v3160, %v3156
          %v3197 = vpack.c.b16 %v3165, %v3161
          %v3198 = vpack.c.b16 %v3166, %v3162
          %v3199 = vpack.c.b16 %v3167, %v3163
          %v3200 = vpack.c.b16 %v3168, %v3164
          %3233 = vmatprep.subr.bf16.mxu0 %v3198
          %3234 = vmatpush1.bf16.msra.mxu0 %v3197
          %3235 = vmatprep.subr.bf16.mxu0 %v3194
          %3236 = vmatpush1.bf16.msra.mxu0 %v3193
          %3237 = vmatprep.subr.bf16.mxu0 %v3190
          %3238 = vmatpush1.bf16.msra.mxu0 %v3189
          %3239 = vmatprep.subr.bf16.mxu0 %v3186
          %3240 = vmatpush1.bf16.msra.mxu0 %v3185
          %3241 = vmatprep.subr.bf16.mxu0 %v3182
          %3242 = vmatpush1.bf16.msra.mxu0 %v3181
          %3243 = vmatprep.subr.bf16.mxu0 %v3178
          %3244 = vmatpush1.bf16.msra.mxu0 %v3177
          %3245 = vmatprep.subr.bf16.mxu0 %v3174
          %3246 = vmatpush1.bf16.msra.mxu0 %v3173
          %3247 = vmatprep.subr.bf16.mxu0 %v3170
          %3248 = vmatpush1.bf16.msra.mxu0 %v3169
          %3249 = vmatprep.subr.bf16.mxu0 0
          %3250 = vmatpush2.bf16.msra.mxu0 0
          %3251 = vmatprep.subr.bf16.mxu0 0
          %3252 = vmatpush2.bf16.msra.mxu0 0
          %3253 = vmatprep.subr.bf16.mxu0 0
          %3254 = vmatpush2.bf16.msra.mxu0 0
          %3255 = vmatprep.subr.bf16.mxu0 0
          %3256 = vmatpush2.bf16.msra.mxu0 0
          %3257 = vmatprep.subr.bf16.mxu0 0
          %3258 = vmatpush2.bf16.msra.mxu0 0
          %3259 = vmatprep.subr.bf16.mxu0 0
          %3260 = vmatpush2.bf16.msra.mxu0 0
          %3261 = vmatprep.subr.bf16.mxu0 0
          %3262 = vmatpush2.bf16.msra.mxu0 0
          %3263 = vmatprep.subr.bf16.mxu0 0
          %3264 = vmatpush2.bf16.msra.mxu0 0
          %3265 = vmatprep.mubr.bf16.mxu0 0
          %3266 = vmatmul.mubr.bf16.gmra.mxu0 %v3040
          %v3267 = vpop.f32.mrf.mxu0
          %v3268 = vadd.f32 0.0, %v3267
          %v3269 = vpop.f32.mrf.mxu0
          %v3270 = vadd.f32 0.0, %v3269
          %v3271 = vpop.f32.mrf.mxu0
          %v3272 = vadd.f32 0.0, %v3271
          %v3273 = vpop.f32.mrf.mxu0
          %v3274 = vadd.f32 0.0, %v3273
          %3275 = vdwg.mxu0
          %3276 = vmatprep.subr.bf16.mxu0 %v3200
          %3277 = vmatpush1.bf16.msra.mxu0 %v3199
          %3278 = vmatprep.subr.bf16.mxu0 %v3196
          %3279 = vmatpush1.bf16.msra.mxu0 %v3195
          %3280 = vmatprep.subr.bf16.mxu0 %v3192
          %3281 = vmatpush1.bf16.msra.mxu0 %v3191
          %3282 = vmatprep.subr.bf16.mxu0 %v3188
          %3283 = vmatpush1.bf16.msra.mxu0 %v3187
          %3284 = vmatprep.subr.bf16.mxu0 %v3184
          %3285 = vmatpush1.bf16.msra.mxu0 %v3183
          %3286 = vmatprep.subr.bf16.mxu0 %v3180
          %3287 = vmatpush1.bf16.msra.mxu0 %v3179
          %3288 = vmatprep.subr.bf16.mxu0 %v3176
          %3289 = vmatpush1.bf16.msra.mxu0 %v3175
          %3290 = vmatprep.subr.bf16.mxu0 %v3172
          %3291 = vmatpush1.bf16.msra.mxu0 %v3171
          %3292 = vmatprep.subr.bf16.mxu0 0
          %3293 = vmatpush2.bf16.msra.mxu0 0
          %3294 = vmatprep.subr.bf16.mxu0 0
          %3295 = vmatpush2.bf16.msra.mxu0 0
          %3296 = vmatprep.subr.bf16.mxu0 0
          %3297 = vmatpush2.bf16.msra.mxu0 0
          %3298 = vmatprep.subr.bf16.mxu0 0
          %3299 = vmatpush2.bf16.msra.mxu0 0
          %3300 = vmatprep.subr.bf16.mxu0 0
          %3301 = vmatpush2.bf16.msra.mxu0 0
          %3302 = vmatprep.subr.bf16.mxu0 0
          %3303 = vmatpush2.bf16.msra.mxu0 0
          %3304 = vmatprep.subr.bf16.mxu0 0
          %3305 = vmatpush2.bf16.msra.mxu0 0
          %3306 = vmatprep.subr.bf16.mxu0 0
          %3307 = vmatpush2.bf16.msra.mxu0 0
          %3308 = vmatprep.mubr.bf16.mxu0 0
          %3309 = vmatmul.mubr.bf16.gmra.mxu0 %v3040
          %v3310 = vpop.f32.mrf.mxu0
          %v3311 = vadd.f32 0.0, %v3310
          %v3312 = vpop.f32.mrf.mxu0
          %v3313 = vadd.f32 0.0, %v3312
          %v3314 = vpop.f32.mrf.mxu0
          %v3315 = vadd.f32 0.0, %v3314
          %v3316 = vpop.f32.mrf.mxu0
          %v3317 = vadd.f32 0.0, %v3316
          %3318 = vdwg.mxu0
          %v3319 = vadd.f32 %v3032, %v3268
          %v3320 = vadd.f32 %v3033, %v3270
          %v3321 = vadd.f32 %v3034, %v3311
          %v3322 = vadd.f32 %v3035, %v3313
          %v3323 = vadd.f32 %v3036, %v3272
          %v3324 = vadd.f32 %v3037, %v3274
          %v3325 = vadd.f32 %v3038, %v3315
          %v3326 = vadd.f32 %v3039, %v3317
          %v3327 = vmul.f32 %v3319, 0.5
          %v3328 = vmul.f32 %v3323, 0.5
          %v3329 = vtanh.pop %v3327
          %v3330 = vtanh.pop %v3328
          %v3331 = vadd.f32 %v3329, 1.0
          %v3332 = vadd.f32 %v3330, 1.0
          %v3333 = vmul.f32 %v3331, 0.5
          %v3334 = vmul.f32 %v3332, 0.5
          %v3335 = vmul.f32 %v3320, 0.5
          %v3336 = vmul.f32 %v3324, 0.5
          %v3337 = vtanh.pop %v3335
          %v3338 = vtanh.pop %v3336
          %v3339 = vadd.f32 %v3337, 1.0
          %v3340 = vadd.f32 %v3338, 1.0
          %v3341 = vmul.f32 %v3339, 0.5
          %v3342 = vmul.f32 %v3340, 0.5
          %v3343 = vtanh.pop %v3321
          %v3344 = vtanh.pop %v3325
          %v3345 = vmul.f32 %v3322, 0.5
          %v3346 = vmul.f32 %v3326, 0.5
          %v3347 = vtanh.pop %v3345
          %v3348 = vtanh.pop %v3346
          %v3349 = vadd.f32 %v3347, 1.0
          %v3350 = vadd.f32 %v3348, 1.0
          %v3351 = vmul.f32 %v3349, 0.5
          %v3352 = vmul.f32 %v3350, 0.5
          %v3353 = vmul.f32 %v3341, %v3022
          %v3354 = vmul.f32 %v3342, %v3023
          %v3355 = vmul.f32 %v3333, %v3343
          %v3356 = vmul.f32 %v3334, %v3344
          %v3357 = vadd.f32 %v3353, %v3355
          %v3358 = vadd.f32 %v3354, %v3356
          %v3359 = vtanh.pop %v3357
          %v3360 = vtanh.pop %v3358
          %v3361 = vmul.f32 %v3351, %v3359
          %v3362 = vmul.f32 %v3352, %v3360
          %s3363 = scalar_lea.vmem %s324, 16 [#allocation9]
          %3364 = vst [vmem:[%s3363] sm:$0xff] %v3361
          %3365 = vst [vmem:[%s3363 + $0x8] sm:$0xff] %v3362
          %v3366 = vld [vmem:[#allocation2] sm:$0xff]
          %v3367 = vld [vmem:[#allocation2 + $0x8] sm:$0xff]
          %v3368 = vld [vmem:[#allocation2 + $0x10] sm:$0xff]
          %v3369 = vld [vmem:[#allocation2 + $0x18] sm:$0xff]
          %v3370 = vld [vmem:[#allocation2 + $0x20] sm:$0xff]
          %v3371 = vld [vmem:[#allocation2 + $0x28] sm:$0xff]
          %v3372 = vld [vmem:[#allocation2 + $0x30] sm:$0xff]
          %v3373 = vld [vmem:[#allocation2 + $0x38] sm:$0xff]
          %v3374 = vpack.c.bf16 %v3362, %v3361
          %v3375 = vld [vmem:[%s272] sm:$0xff]
          %v3376 = vld [vmem:[%s272 + $0x8] sm:$0xff]
          %v3377 = vld [vmem:[%s272 + $0x10] sm:$0xff]
          %v3378 = vld [vmem:[%s272 + $0x18] sm:$0xff]
          %v3379 = vld [vmem:[%s272 + $0x20] sm:$0xff]
          %v3380 = vld [vmem:[%s272 + $0x28] sm:$0xff]
          %v3381 = vld [vmem:[%s272 + $0x30] sm:$0xff]
          %v3382 = vld [vmem:[%s272 + $0x38] sm:$0xff]
          %v3383 = vld [vmem:[%s272 + $0x40] sm:$0xff]
          %v3384 = vld [vmem:[%s272 + $0x48] sm:$0xff]
          %v3385 = vld [vmem:[%s272 + $0x50] sm:$0xff]
          %v3386 = vld [vmem:[%s272 + $0x58] sm:$0xff]
          %v3387 = vld [vmem:[%s272 + $0x60] sm:$0xff]
          %v3388 = vld [vmem:[%s272 + $0x68] sm:$0xff]
          %v3389 = vld [vmem:[%s272 + $0x70] sm:$0xff]
          %v3390 = vld [vmem:[%s272 + $0x78] sm:$0xff]
          %v3391 = vld [vmem:[%s272 + $0x80] sm:$0xff]
          %v3392 = vld [vmem:[%s272 + $0x88] sm:$0xff]
          %v3393 = vld [vmem:[%s272 + $0x90] sm:$0xff]
          %v3394 = vld [vmem:[%s272 + $0x98] sm:$0xff]
          %v3395 = vld [vmem:[%s272 + $0xa0] sm:$0xff]
          %v3396 = vld [vmem:[%s272 + $0xa8] sm:$0xff]
          %v3397 = vld [vmem:[%s272 + $0xb0] sm:$0xff]
          %v3398 = vld [vmem:[%s272 + $0xb8] sm:$0xff]
          %v3399 = vld [vmem:[%s272 + $0xc0] sm:$0xff]
          %v3400 = vld [vmem:[%s272 + $0xc8] sm:$0xff]
          %v3401 = vld [vmem:[%s272 + $0xd0] sm:$0xff]
          %v3402 = vld [vmem:[%s272 + $0xd8] sm:$0xff]
          %v3403 = vld [vmem:[%s272 + $0xe0] sm:$0xff]
          %v3404 = vld [vmem:[%s272 + $0xe8] sm:$0xff]
          %v3405 = vld [vmem:[%s272 + $0xf0] sm:$0xff]
          %v3406 = vld [vmem:[%s272 + $0xf8] sm:$0xff]
          %v3439 = vunpack.c.l.b16 %v3375
          %v3440 = vunpack.c.h.b16 %v3375
          %v3441 = vunpack.c.l.b16 %v3376
          %v3442 = vunpack.c.h.b16 %v3376
          %v3443 = vunpack.c.l.b16 %v3377
          %v3444 = vunpack.c.h.b16 %v3377
          %v3445 = vunpack.c.l.b16 %v3378
          %v3446 = vunpack.c.h.b16 %v3378
          %v3447 = vunpack.c.l.b16 %v3379
          %v3448 = vunpack.c.h.b16 %v3379
          %v3449 = vunpack.c.l.b16 %v3380
          %v3450 = vunpack.c.h.b16 %v3380
          %v3451 = vunpack.c.l.b16 %v3381
          %v3452 = vunpack.c.h.b16 %v3381
          %v3453 = vunpack.c.l.b16 %v3382
          %v3454 = vunpack.c.h.b16 %v3382
          %v3455 = vunpack.c.l.b16 %v3383
          %v3456 = vunpack.c.h.b16 %v3383
          %v3457 = vunpack.c.l.b16 %v3384
          %v3458 = vunpack.c.h.b16 %v3384
          %v3459 = vunpack.c.l.b16 %v3385
          %v3460 = vunpack.c.h.b16 %v3385
          %v3461 = vunpack.c.l.b16 %v3386
          %v3462 = vunpack.c.h.b16 %v3386
          %v3463 = vunpack.c.l.b16 %v3387
          %v3464 = vunpack.c.h.b16 %v3387
          %v3465 = vunpack.c.l.b16 %v3388
          %v3466 = vunpack.c.h.b16 %v3388
          %v3467 = vunpack.c.l.b16 %v3389
          %v3468 = vunpack.c.h.b16 %v3389
          %v3469 = vunpack.c.l.b16 %v3390
          %v3470 = vunpack.c.h.b16 %v3390
          %v3471 = vunpack.c.l.b16 %v3391
          %v3472 = vunpack.c.h.b16 %v3391
          %v3473 = vunpack.c.l.b16 %v3392
          %v3474 = vunpack.c.h.b16 %v3392
          %v3475 = vunpack.c.l.b16 %v3393
          %v3476 = vunpack.c.h.b16 %v3393
          %v3477 = vunpack.c.l.b16 %v3394
          %v3478 = vunpack.c.h.b16 %v3394
          %v3479 = vunpack.c.l.b16 %v3395
          %v3480 = vunpack.c.h.b16 %v3395
          %v3481 = vunpack.c.l.b16 %v3396
          %v3482 = vunpack.c.h.b16 %v3396
          %v3483 = vunpack.c.l.b16 %v3397
          %v3484 = vunpack.c.h.b16 %v3397
          %v3485 = vunpack.c.l.b16 %v3398
          %v3486 = vunpack.c.h.b16 %v3398
          %v3487 = vunpack.c.l.b16 %v3399
          %v3488 = vunpack.c.h.b16 %v3399
          %v3489 = vunpack.c.l.b16 %v3400
          %v3490 = vunpack.c.h.b16 %v3400
          %v3491 = vunpack.c.l.b16 %v3401
          %v3492 = vunpack.c.h.b16 %v3401
          %v3493 = vunpack.c.l.b16 %v3402
          %v3494 = vunpack.c.h.b16 %v3402
          %v3495 = vunpack.c.l.b16 %v3403
          %v3496 = vunpack.c.h.b16 %v3403
          %v3497 = vunpack.c.l.b16 %v3404
          %v3498 = vunpack.c.h.b16 %v3404
          %v3499 = vunpack.c.l.b16 %v3405
          %v3500 = vunpack.c.h.b16 %v3405
          %v3501 = vunpack.c.l.b16 %v3406
          %v3502 = vunpack.c.h.b16 %v3406
          %v3503 = vpack.c.b16 %v3443, %v3439
          %v3504 = vpack.c.b16 %v3444, %v3440
          %v3505 = vpack.c.b16 %v3445, %v3441
          %v3506 = vpack.c.b16 %v3446, %v3442
          %v3507 = vpack.c.b16 %v3451, %v3447
          %v3508 = vpack.c.b16 %v3452, %v3448
          %v3509 = vpack.c.b16 %v3453, %v3449
          %v3510 = vpack.c.b16 %v3454, %v3450
          %v3511 = vpack.c.b16 %v3459, %v3455
          %v3512 = vpack.c.b16 %v3460, %v3456
          %v3513 = vpack.c.b16 %v3461, %v3457
          %v3514 = vpack.c.b16 %v3462, %v3458
          %v3515 = vpack.c.b16 %v3467, %v3463
          %v3516 = vpack.c.b16 %v3468, %v3464
          %v3517 = vpack.c.b16 %v3469, %v3465
          %v3518 = vpack.c.b16 %v3470, %v3466
          %v3519 = vpack.c.b16 %v3475, %v3471
          %v3520 = vpack.c.b16 %v3476, %v3472
          %v3521 = vpack.c.b16 %v3477, %v3473
          %v3522 = vpack.c.b16 %v3478, %v3474
          %v3523 = vpack.c.b16 %v3483, %v3479
          %v3524 = vpack.c.b16 %v3484, %v3480
          %v3525 = vpack.c.b16 %v3485, %v3481
          %v3526 = vpack.c.b16 %v3486, %v3482
          %v3527 = vpack.c.b16 %v3491, %v3487
          %v3528 = vpack.c.b16 %v3492, %v3488
          %v3529 = vpack.c.b16 %v3493, %v3489
          %v3530 = vpack.c.b16 %v3494, %v3490
          %v3531 = vpack.c.b16 %v3499, %v3495
          %v3532 = vpack.c.b16 %v3500, %v3496
          %v3533 = vpack.c.b16 %v3501, %v3497
          %v3534 = vpack.c.b16 %v3502, %v3498
          %3567 = vmatprep.subr.bf16.mxu0 %v3532
          %3568 = vmatpush1.bf16.msra.mxu0 %v3531
          %3569 = vmatprep.subr.bf16.mxu0 %v3528
          %3570 = vmatpush1.bf16.msra.mxu0 %v3527
          %3571 = vmatprep.subr.bf16.mxu0 %v3524
          %3572 = vmatpush1.bf16.msra.mxu0 %v3523
          %3573 = vmatprep.subr.bf16.mxu0 %v3520
          %3574 = vmatpush1.bf16.msra.mxu0 %v3519
          %3575 = vmatprep.subr.bf16.mxu0 %v3516
          %3576 = vmatpush1.bf16.msra.mxu0 %v3515
          %3577 = vmatprep.subr.bf16.mxu0 %v3512
          %3578 = vmatpush1.bf16.msra.mxu0 %v3511
          %3579 = vmatprep.subr.bf16.mxu0 %v3508
          %3580 = vmatpush1.bf16.msra.mxu0 %v3507
          %3581 = vmatprep.subr.bf16.mxu0 %v3504
          %3582 = vmatpush1.bf16.msra.mxu0 %v3503
          %3583 = vmatprep.subr.bf16.mxu0 0
          %3584 = vmatpush2.bf16.msra.mxu0 0
          %3585 = vmatprep.subr.bf16.mxu0 0
          %3586 = vmatpush2.bf16.msra.mxu0 0
          %3587 = vmatprep.subr.bf16.mxu0 0
          %3588 = vmatpush2.bf16.msra.mxu0 0
          %3589 = vmatprep.subr.bf16.mxu0 0
          %3590 = vmatpush2.bf16.msra.mxu0 0
          %3591 = vmatprep.subr.bf16.mxu0 0
          %3592 = vmatpush2.bf16.msra.mxu0 0
          %3593 = vmatprep.subr.bf16.mxu0 0
          %3594 = vmatpush2.bf16.msra.mxu0 0
          %3595 = vmatprep.subr.bf16.mxu0 0
          %3596 = vmatpush2.bf16.msra.mxu0 0
          %3597 = vmatprep.subr.bf16.mxu0 0
          %3598 = vmatpush2.bf16.msra.mxu0 0
          %3599 = vmatprep.mubr.bf16.mxu0 0
          %3600 = vmatmul.mubr.bf16.gmra.mxu0 %v3374
          %v3601 = vpop.f32.mrf.mxu0
          %v3602 = vadd.f32 0.0, %v3601
          %v3603 = vpop.f32.mrf.mxu0
          %v3604 = vadd.f32 0.0, %v3603
          %v3605 = vpop.f32.mrf.mxu0
          %v3606 = vadd.f32 0.0, %v3605
          %v3607 = vpop.f32.mrf.mxu0
          %v3608 = vadd.f32 0.0, %v3607
          %3609 = vdwg.mxu0
          %3610 = vmatprep.subr.bf16.mxu0 %v3534
          %3611 = vmatpush1.bf16.msra.mxu0 %v3533
          %3612 = vmatprep.subr.bf16.mxu0 %v3530
          %3613 = vmatpush1.bf16.msra.mxu0 %v3529
          %3614 = vmatprep.subr.bf16.mxu0 %v3526
          %3615 = vmatpush1.bf16.msra.mxu0 %v3525
          %3616 = vmatprep.subr.bf16.mxu0 %v3522
          %3617 = vmatpush1.bf16.msra.mxu0 %v3521
          %3618 = vmatprep.subr.bf16.mxu0 %v3518
          %3619 = vmatpush1.bf16.msra.mxu0 %v3517
          %3620 = vmatprep.subr.bf16.mxu0 %v3514
          %3621 = vmatpush1.bf16.msra.mxu0 %v3513
          %3622 = vmatprep.subr.bf16.mxu0 %v3510
          %3623 = vmatpush1.bf16.msra.mxu0 %v3509
          %3624 = vmatprep.subr.bf16.mxu0 %v3506
          %3625 = vmatpush1.bf16.msra.mxu0 %v3505
          %3626 = vmatprep.subr.bf16.mxu0 0
          %3627 = vmatpush2.bf16.msra.mxu0 0
          %3628 = vmatprep.subr.bf16.mxu0 0
          %3629 = vmatpush2.bf16.msra.mxu0 0
          %3630 = vmatprep.subr.bf16.mxu0 0
          %3631 = vmatpush2.bf16.msra.mxu0 0
          %3632 = vmatprep.subr.bf16.mxu0 0
          %3633 = vmatpush2.bf16.msra.mxu0 0
          %3634 = vmatprep.subr.bf16.mxu0 0
          %3635 = vmatpush2.bf16.msra.mxu0 0
          %3636 = vmatprep.subr.bf16.mxu0 0
          %3637 = vmatpush2.bf16.msra.mxu0 0
          %3638 = vmatprep.subr.bf16.mxu0 0
          %3639 = vmatpush2.bf16.msra.mxu0 0
          %3640 = vmatprep.subr.bf16.mxu0 0
          %3641 = vmatpush2.bf16.msra.mxu0 0
          %3642 = vmatprep.mubr.bf16.mxu0 0
          %3643 = vmatmul.mubr.bf16.gmra.mxu0 %v3374
          %v3644 = vpop.f32.mrf.mxu0
          %v3645 = vadd.f32 0.0, %v3644
          %v3646 = vpop.f32.mrf.mxu0
          %v3647 = vadd.f32 0.0, %v3646
          %v3648 = vpop.f32.mrf.mxu0
          %v3649 = vadd.f32 0.0, %v3648
          %v3650 = vpop.f32.mrf.mxu0
          %v3651 = vadd.f32 0.0, %v3650
          %3652 = vdwg.mxu0
          %v3653 = vadd.f32 %v3366, %v3602
          %v3654 = vadd.f32 %v3367, %v3604
          %v3655 = vadd.f32 %v3368, %v3645
          %v3656 = vadd.f32 %v3369, %v3647
          %v3657 = vadd.f32 %v3370, %v3606
          %v3658 = vadd.f32 %v3371, %v3608
          %v3659 = vadd.f32 %v3372, %v3649
          %v3660 = vadd.f32 %v3373, %v3651
          %v3661 = vmul.f32 %v3653, 0.5
          %v3662 = vmul.f32 %v3657, 0.5
          %v3663 = vtanh.pop %v3661
          %v3664 = vtanh.pop %v3662
          %v3665 = vadd.f32 %v3663, 1.0
          %v3666 = vadd.f32 %v3664, 1.0
          %v3667 = vmul.f32 %v3665, 0.5
          %v3668 = vmul.f32 %v3666, 0.5
          %v3669 = vmul.f32 %v3654, 0.5
          %v3670 = vmul.f32 %v3658, 0.5
          %v3671 = vtanh.pop %v3669
          %v3672 = vtanh.pop %v3670
          %v3673 = vadd.f32 %v3671, 1.0
          %v3674 = vadd.f32 %v3672, 1.0
          %v3675 = vmul.f32 %v3673, 0.5
          %v3676 = vmul.f32 %v3674, 0.5
          %v3677 = vtanh.pop %v3655
          %v3678 = vtanh.pop %v3659
          %v3679 = vmul.f32 %v3656, 0.5
          %v3680 = vmul.f32 %v3660, 0.5
          %v3681 = vtanh.pop %v3679
          %v3682 = vtanh.pop %v3680
          %v3683 = vadd.f32 %v3681, 1.0
          %v3684 = vadd.f32 %v3682, 1.0
          %v3685 = vmul.f32 %v3683, 0.5
          %v3686 = vmul.f32 %v3684, 0.5
          %v3687 = vmul.f32 %v3675, %v3357
          %v3688 = vmul.f32 %v3676, %v3358
          %v3689 = vmul.f32 %v3667, %v3677
          %v3690 = vmul.f32 %v3668, %v3678
          %v3691 = vadd.f32 %v3687, %v3689
          %v3692 = vadd.f32 %v3688, %v3690
          %v3693 = vtanh.pop %v3691
          %v3694 = vtanh.pop %v3692
          %v3695 = vmul.f32 %v3685, %v3693
          %v3696 = vmul.f32 %v3686, %v3694
          %3697 = vst [vmem:[%s324] sm:$0xff] %v3695
          %3698 = vst [vmem:[%s324 + $0x8] sm:$0xff] %v3696
          %3699 = vst [vmem:[%s2355] sm:$0xff] %v3695
          %3700 = vst [vmem:[%s2355 + $0x8] sm:$0xff] %v3696
          %3701 = vst [vmem:[%s2358] sm:$0xff] %v3691
          %3702 = vst [vmem:[%s2358 + $0x8] sm:$0xff] %v3692
        $region56: #{bilstm_forward.3} parent=35 // pred_fallthru
          _
        %s3703 = sand.u32 %s163, 1
        %s3704 = sand.u32 %s163, 1
        %s3705 = smul.addr %s3704, 64
        %s3706 = scalar_lea.vmem [#allocation9], %s3705
        // Predicated region
        $region61: #{bilstm_forward.3} parent=35 // pred_check
          %p3707 = pneg %p173
        $region62: #{bilstm_forward.3} parent=35 // pred_check_branch
          %3709 = sbr.rel (%p3707) target = $region64
        $region63: #{bilstm_forward.3} parent=35 // pred_region
          %s3710 = smul.u32 %s25, 2
          %s3711 = ssub.s32 1, %s3710
          %s3712 = smul.u32 %s26, %s3711
          %s3713 = sadd.s32 %s3712, %s25
          %s3714 = smul.u32 4, %s3713
          %s3715 = smul.addr %s3714, 4
          %s3716 = sadd.s32 %s25, %s3715
          %s3717 = smul.addr %s3716, 8
          %s3718 = scalar_lea.vmem %s4, %s3717
          // Predicated region
          $region65: #{bilstm_forward.3} parent=63 // pred_check
            _
          $region66: #{bilstm_forward.3} parent=63 // pred_check_branch
            %3720 = sbr.rel (0) target = $region68
          $region67: #{bilstm_forward.3} parent=63 // pred_region
            // Predicated region
            $region69: #{bilstm_forward.3} parent=67 // pred_check
              _
            $region70: #{bilstm_forward.3} parent=67 // pred_check_branch
              %3722 = sbr.rel (0) target = $region72
            $region71: #{bilstm_forward.3} parent=67 // pred_region
              // Predicated region
              $region84: #{bilstm_forward.3} parent=71 // pred_check
                _
              $region85: #{bilstm_forward.3} parent=71 // pred_check_branch
                %3752 = sbr.rel (0) target = $region87
              $region86: #{bilstm_forward.3} parent=71 // pred_region
                loop: start=0, step=1, limit=1
                $region88: #{bilstm_forward.3} parent=86 // loop_pre_header
                  _
                $region89: #{bilstm_forward.3} parent=86 // loop_header
                  %s3754 = sphi 0, %s3758
                  %p3755 = scmp.ge.s32.totalorder %s3754, 1
                  %s3759 = sphi %s3706, %s3706
                  %s3760 = sphi %s3718, %s3718
                $region90: #{bilstm_forward.3} parent=86 // loop_header_branch
                  %3757 = sbr.rel (%p3755) target = $region94
                $region91: #{bilstm_forward.3} parent=86 // loop_body
                  %v3761 = vld [vmem:[%s3759] sm:$0xff]
                  %3762 = vst [vmem:[%s3760] sm:$0xff] %v3761
                  %v3763 = vld [vmem:[%s3759 + $0x8] sm:$0xff]
                  %3764 = vst [vmem:[%s3760 + $0x10] sm:$0xff] %v3763
                  %v3765 = vld [vmem:[%s3759 + $0x10] sm:$0xff]
                  %3766 = vst [vmem:[%s3760 + $0x20] sm:$0xff] %v3765
                  %v3767 = vld [vmem:[%s3759 + $0x18] sm:$0xff]
                  %3768 = vst [vmem:[%s3760 + $0x30] sm:$0xff] %v3767
                  %v3769 = vld [vmem:[%s3759 + $0x20] sm:$0xff]
                  %3770 = vst [vmem:[%s3760 + $0x40] sm:$0xff] %v3769
                  %v3771 = vld [vmem:[%s3759 + $0x28] sm:$0xff]
                  %3772 = vst [vmem:[%s3760 + $0x50] sm:$0xff] %v3771
                  %v3773 = vld [vmem:[%s3759 + $0x30] sm:$0xff]
                  %3774 = vst [vmem:[%s3760 + $0x60] sm:$0xff] %v3773
                  %v3775 = vld [vmem:[%s3759 + $0x38] sm:$0xff]
                  %3776 = vst [vmem:[%s3760 + $0x70] sm:$0xff] %v3775
                $region92: #{bilstm_forward.3} parent=86 // loop_footer
                  %s3758 = sadd.s32 1, %s3754
                $region93: #{bilstm_forward.3} parent=86 // loop_footer_branch
                  %3753 = sbr.rel target = $region89
                $region94: #{bilstm_forward.3} parent=86 // loop_exit
                  _
              $region87: #{bilstm_forward.3} parent=71 // pred_fallthru
                _
              // Predicated region
              $region95: #{bilstm_forward.3} parent=71 // pred_check
                _
              $region96: #{bilstm_forward.3} parent=71 // pred_check_branch
                %3778 = sbr.rel target = $region98
              $region97: #{bilstm_forward.3} parent=71 // pred_region
                _
              $region98: #{bilstm_forward.3} parent=71 // pred_fallthru
                _
            $region72: #{bilstm_forward.3} parent=67 // pred_fallthru
              _
            // Predicated region
            $region73: #{bilstm_forward.3} parent=67 // pred_check
              _
            $region74: #{bilstm_forward.3} parent=67 // pred_check_branch
              %3724 = sbr.rel target = $region76
            $region75: #{bilstm_forward.3} parent=67 // pred_region
              %s3726 = ssub.s32 256, 1
              loop: start=0, step=1, limit=1
              $region77: #{bilstm_forward.3} parent=75 // loop_pre_header
                _
              $region78: #{bilstm_forward.3} parent=75 // loop_header
                %s3728 = sphi 0, %s3732
                %p3729 = scmp.ge.s32.totalorder %s3728, 1
                %s3733 = sphi %s3706, %s3706
                %s3734 = sphi %s3718, %s3718
              $region79: #{bilstm_forward.3} parent=75 // loop_header_branch
                %3731 = sbr.rel (%p3729) target = $region83
              $region80: #{bilstm_forward.3} parent=75 // loop_body
                %v3735 = vld [vmem:[%s3733] sm:%s3726]
                %3736 = vst [vmem:[%s3734] sm:%s3726] %v3735
                %v3737 = vld [vmem:[%s3733 + $0x8] sm:%s3726]
                %3738 = vst [vmem:[%s3734 + $0x10] sm:%s3726] %v3737
                %v3739 = vld [vmem:[%s3733 + $0x10] sm:%s3726]
                %3740 = vst [vmem:[%s3734 + $0x20] sm:%s3726] %v3739
                %v3741 = vld [vmem:[%s3733 + $0x18] sm:%s3726]
                %3742 = vst [vmem:[%s3734 + $0x30] sm:%s3726] %v3741
                %v3743 = vld [vmem:[%s3733 + $0x20] sm:%s3726]
                %3744 = vst [vmem:[%s3734 + $0x40] sm:%s3726] %v3743
                %v3745 = vld [vmem:[%s3733 + $0x28] sm:%s3726]
                %3746 = vst [vmem:[%s3734 + $0x50] sm:%s3726] %v3745
                %v3747 = vld [vmem:[%s3733 + $0x30] sm:%s3726]
                %3748 = vst [vmem:[%s3734 + $0x60] sm:%s3726] %v3747
                %v3749 = vld [vmem:[%s3733 + $0x38] sm:%s3726]
                %3750 = vst [vmem:[%s3734 + $0x70] sm:%s3726] %v3749
              $region81: #{bilstm_forward.3} parent=75 // loop_footer
                %s3732 = sadd.s32 1, %s3728
              $region82: #{bilstm_forward.3} parent=75 // loop_footer_branch
                %3727 = sbr.rel target = $region78
              $region83: #{bilstm_forward.3} parent=75 // loop_exit
                _
            $region76: #{bilstm_forward.3} parent=67 // pred_fallthru
              _
          $region68: #{bilstm_forward.3} parent=63 // pred_fallthru
            _
          %3779 = vnop
        $region64: #{bilstm_forward.3} parent=35 // pred_fallthru
          _
      $region36: #{bilstm_forward.3} parent=5 // pred_fallthru
        _
      %p3780 = scmp.le.s32.totalorder 2, %s16
      // Predicated region
      $region99: #{bilstm_forward.3} parent=5 // pred_check
        %p3781 = pneg %p3780
      $region100: #{bilstm_forward.3} parent=5 // pred_check_branch
        %3783 = sbr.rel (%p3781) target = $region102
      $region101: #{bilstm_forward.3} parent=5 // pred_region
        %s3784 = ssub.s32 %s16, 2
        // Predicated region
        $region103: #{bilstm_forward.3} parent=101 // pred_check
          %p3785 = pneg %p179
        $region104: #{bilstm_forward.3} parent=101 // pred_check_branch
          %3787 = sbr.rel (%p3785) target = $region106
        $region105: #{bilstm_forward.3} parent=101 // pred_region
          %s3788 = sand.u32 %s164, 1
          %s3789 = sand.u32 %s164, 1
          %s3790 = smul.addr %s3789, 64
          %s3791 = scalar_lea.vmem [#allocation9], %s3790
        $region106: #{bilstm_forward.3} parent=101 // pred_fallthru
          _
      $region102: #{bilstm_forward.3} parent=5 // pred_fallthru
        _
    $region6: #{bilstm_forward.3} parent=1 // loop_footer
      %s20 = sadd.s32 1, %s16
    $region7: #{bilstm_forward.3} parent=1 // loop_footer_branch
      %15 = sbr.rel target = $region3
    $region8: #{bilstm_forward.3} parent=1 // loop_exit
      _
    %3792 = vsyncpa [#allocation6], 1
    %s3793 = scalar_lea.sflag [#allocation6], 1
    %3794 = vsyncpa %s3793, 1
    %3795 = vsyncpa [#allocation8], 1
    %s3796 = scalar_lea.sflag [#allocation8], 1
    %3797 = vsyncpa %s3796, 1

</llo_original>
